<compile_context>
chip_gen: v7x
topology: tpu7x:2x2x1
jax: 0.10.0
libtpu: 0.0.40
codegen_flags: <defaults>
</compile_context>

<pallas_src>
import numpy as np
import jax
import jax.numpy as jnp
from jax import lax
from jax.experimental import pallas as pl
from jax.experimental.pallas import tpu as pltpu

# ----- config (mirrors config.architecture / config.num_classes) -----------
NUM_FEATURES = 4            # input channel count
BLOCK_FEATURES = (16, 16)   # config.architecture.block_features
DEPTH_OF_MLP = 2            # config.architecture.depth_of_mlp
NUM_CLASSES = 3             # config.num_classes
NEW_SUFFIX = True           # config.architecture.new_suffix
BN_EPS = 1e-5               # PyTorch BatchNorm default eps
# NOTE: BatchNorm layers are affine=False; forward() in training mode uses
# batch statistics (biased variance), which is what the kernel implements.
# TODO(synk): running-stat buffers (momentum=1.0 bookkeeping) are not modeled
# since they do not affect this forward pass.


# ------------------------- fused forward kernel ------------------------------

def _make_fused_kernel(B, N, meta, block_feats, num_classes, depth,
                       new_suffix, n_tail_fc):
    M = B * N * N
    inv_m = 1.0 / M

    def kernel(x_ref, masks_ref, theta_ref, out_ref):
        pos = [0]

        def nxt():
            off, r, c = meta[pos[0]]
            pos[0] += 1
            return theta_ref[off:off + r, :c]        # static sub-block of theta

        def mm(a, b):
            return jnp.dot(a, b, preferred_element_type=jnp.float32)

        ones_row = jnp.ones((1, M), jnp.float32)     # built once, reused

        def batchnorm(h):
            # per-channel biased batch stats over all B*N*N rows, sums on MXU
            mu = mm(ones_row, h) * inv_m
            d = h - mu
            var = mm(ones_row, d * d) * inv_m        # two-pass form (numerics)
            return d * lax.rsqrt(var + BN_EPS)

        def make_repmask(C):
            # mask16[c, i*C + c'] = (c == c'): replicates a (.., C) block N
            # times along lanes when used as a matmul RHS (runs on the MXU).
            NC = N * C
            ci = lax.broadcasted_iota(jnp.int32, (C, NC), 0)
            qi = lax.broadcasted_iota(jnp.int32, (C, NC), 1)
            if (C & (C - 1)) == 0:
                qc = jnp.bitwise_and(qi, C - 1)
            else:
                qc = lax.rem(qi, C)
            return (qc == ci).astype(jnp.float32)

        repmask = {C: make_repmask(C) for C in sorted(set(block_feats))}

        x = x_ref[...]                               # (M, C_in) channels-last flat
        masks = masks_ref[...]                       # (2B, M): diag rows, batch rows
        scores = jnp.zeros((B, num_classes), jnp.float32)

        for C in block_feats:
            C2, NC = 2 * C, N * C
            # --- fused two-route 1x1-conv MLP (width 2C) ---
            W0, b0 = nxt(), nxt()
            h = jnp.maximum(mm(x, W0) + b0, 0.0)
            for _ in range(depth - 1):
                Wl, bl = nxt(), nxt()
                h = jnp.maximum(mm(h, Wl) + bl, 0.0)
            h1 = h[:, 0:C]                           # mlp1 route
            h2 = h[:, C:C2]                          # mlp2 route

            # --- per-(batch, channel) NxN matmul, lane-dense accumulator ---
            mask16 = repmask[C]
            pieces = []
            for b in range(B):
                base = b * N * N
                # big[(k,j), i*C+c] = h2[b,k,j,c]  (MXU replication across i)
                big = mm(h2[base:base + N * N, :], mask16)        # (N*N, N*C)
                # A_kd[k, i*C+c] = h1[b,i,k,c]
                A_kd = jnp.concatenate(
                    [h1[base + i * N: base + (i + 1) * N, :] for i in range(N)],
                    axis=-1)                                      # (N, N*C)
                mt = jnp.zeros((N, NC), jnp.float32)              # 4 full vregs
                for k in range(N):
                    mt = mt + big[k * N:(k + 1) * N, :] * A_kd[k:k + 1, :]
                # mt[j, i*C+c] = mult[b,i,j,c] -> back to (rows=(b,i,j), lanes=c)
                pieces += [mt[:, i * C:(i + 1) * C] for i in range(N)]
            mult2 = jnp.concatenate(pieces, axis=0)               # (M, C)

            # --- skip connection: concat eliminated by pre-split weights ---
            Wa, Wb, bsk = nxt(), nxt(), nxt()
            x = mm(x, Wa) + mm(mult2, Wb) + bsk
            # --- BatchNorm2d(affine=False), training-mode batch stats ---
            x = batchnorm(x)
            # --- per-block FC on diag/offdiag mean pooling (new_suffix) ---
            if new_suffix:
                Wd, Wt, bfc = nxt(), nxt(), nxt()    # pooling scales pre-folded
                pooled = mm(masks, x)                # (2B, C): diag sums, total sums
                scores = (scores + mm(pooled[0:B, :], Wd)
                          + mm(pooled[B:2 * B, :], Wt) + bfc)

        if not new_suffix:
            Wd, Wt, b1 = nxt(), nxt(), nxt()
            pooled = mm(masks, x)
            hfc = jnp.maximum(mm(pooled[0:B, :], Wd)
                              + mm(pooled[B:2 * B, :], Wt) + b1, 0.0)
            for j in range(n_tail_fc):
                Wl, bl = nxt(), nxt()
                hfc = mm(hfc, Wl) + bl
                if j < n_tail_fc - 1:
                    hfc = jnp.maximum(hfc, 0.0)
            scores = hfc

        # --- final BatchNorm1d(num_classes, affine=False) over the batch ---
        mu = jnp.mean(scores, axis=0, keepdims=True)
        var = jnp.mean(jnp.square(scores - mu), axis=0, keepdims=True)
        out_ref[...] = ((scores - mu) * lax.rsqrt(var + BN_EPS)).astype(out_ref.dtype)

    return kernel


# ------------------------------ packing --------------------------------------

def _pack_params(params, N):
    """Pack every weight/bias into one (rows, width) f32 buffer in the exact
    order the kernel consumes them.  Returns (theta, meta, n_tail_fc) where
    meta[i] = (row_offset, rows, cols) for the i-th consumed tensor."""
    inv_n = 1.0 / N
    # TODO(synk): divide-by-zero if N == 1; matches the reference layer.
    inv_off = 1.0 / (N * N - N) if N > 1 else 1.0

    entries = []

    def add(a):
        a = jnp.asarray(a, jnp.float32)
        if a.ndim == 1:
            a = a.reshape(1, -1)
        entries.append(a)

    in_f = NUM_FEATURES
    for bi, (blk, C) in enumerate(zip(params["blocks"], BLOCK_FEATURES)):
        W1_0, b1_0 = blk["mlp1"][0]
        W2_0, b2_0 = blk["mlp2"][0]
        add(jnp.concatenate([W1_0, W2_0], axis=1))            # fused layer 0
        add(jnp.concatenate([b1_0, b2_0], axis=0))
        for l in range(1, DEPTH_OF_MLP):                      # block-diag layers
            W1l, b1l = blk["mlp1"][l]
            W2l, b2l = blk["mlp2"][l]
            z = jnp.zeros((C, C), jnp.float32)
            add(jnp.concatenate(
                [jnp.concatenate([W1l, z], axis=1),
                 jnp.concatenate([z, W2l], axis=1)], axis=0))
            add(jnp.concatenate([b1l, b2l], axis=0))
        Wsk, bsk = blk["skip"]                                # (in_f + C, C)
        add(Wsk[:in_f, :]); add(Wsk[in_f:, :]); add(bsk)
        if NEW_SUFFIX:
            Wfc, bfc = params["fcs"][bi]                      # (2C, nc)
            add(inv_n * Wfc[:C, :] - inv_off * Wfc[C:, :])    # Wd (diag part)
            add(inv_off * Wfc[C:, :])                         # Wt (total part)
            add(bfc)
        in_f = C

    n_tail_fc = 0
    if not NEW_SUFFIX:
        C = BLOCK_FEATURES[-1]
        Wfc, bfc = params["fcs"][0]
        add(inv_n * Wfc[:C, :] - inv_off * Wfc[C:, :])
        add(inv_off * Wfc[C:, :])
        add(bfc)
        for (W, b) in params["fcs"][1:]:
            add(W); add(b)
        n_tail_fc = len(params["fcs"]) - 1

    pw = max(int(a.shape[1]) for a in entries)
    meta, rows, off = [], [], 0
    for a in entries:
        r, c = int(a.shape[0]), int(a.shape[1])
        rp = ((r + 7) // 8) * 8                               # 8-row aligned entries
        rows.append(jnp.pad(a, ((0, rp - r), (0, pw - c))))
        meta.append((off, r, c))
        off += rp
    theta = jnp.concatenate(rows, axis=0)                     # one packed buffer
    return theta, meta, n_tail_fc


def _pool_masks(B, N):
    """Stacked (2B, B*N*N) selection masks: rows [0,B) pick diagonal entries,
    rows [B,2B) pick all entries of that batch element."""
    M = B * N * N
    m = np.zeros((2 * B, M), np.float32)
    for b in range(B):
        for i in range(N):
            m[b, b * N * N + i * (N + 1)] = 1.0
        m[B + b, b * N * N:(b + 1) * N * N] = 1.0
    return jnp.asarray(m)


# ------------------------------ wrapper --------------------------------------

def forward(params, x):
    """x: (B, C_in, N, N) NCHW, same layout as the PyTorch module."""
    B, C_in, N, _ = x.shape
    # single boundary transpose to channels-last-flat; everything else is fused
    xf = jnp.transpose(x, (0, 2, 3, 1)).reshape(B * N * N, C_in)
    masks = _pool_masks(B, N)
    theta, meta, n_tail_fc = _pack_params(params, N)
    kernel = _make_fused_kernel(B, N, meta, BLOCK_FEATURES, NUM_CLASSES,
                                DEPTH_OF_MLP, NEW_SUFFIX, n_tail_fc)
    vmem = pl.BlockSpec(memory_space=pltpu.MemorySpace.VMEM)
    # Whole working set is well under 1 MiB -> one VMEM-resident kernel, no grid.
    return pl.pallas_call(
        kernel,
        in_specs=[vmem, vmem, vmem],
        out_specs=vmem,
        out_shape=jax.ShapeDtypeStruct((B, NUM_CLASSES), jnp.float32),
    )(xf, masks, theta)


# ------------------------------ parameters -----------------------------------

def init_params(key):
    def _dense_init(k, cin, cout):
        k1, k2 = jax.random.split(k)
        W = jax.random.normal(k1, (cin, cout), jnp.float32) * (1.0 / (cin ** 0.5))
        b = jax.random.normal(k2, (cout,), jnp.float32) * 0.01
        return W, b

    params = {"blocks": [], "fcs": []}
    in_f = NUM_FEATURES
    for out_f in BLOCK_FEATURES:
        blk = {}
        for name in ("mlp1", "mlp2"):
            layers = []
            cin = in_f
            for _ in range(DEPTH_OF_MLP):
                key, sub = jax.random.split(key)
                layers.append(_dense_init(sub, cin, out_f))
                cin = out_f
            blk[name] = layers
        key, sub = jax.random.split(key)
        blk["skip"] = _dense_init(sub, in_f + out_f, out_f)
        params["blocks"].append(blk)
        in_f = out_f
    if NEW_SUFFIX:
        for out_f in BLOCK_FEATURES:
            key, sub = jax.random.split(key)
            params["fcs"].append(_dense_init(sub, 2 * out_f, NUM_CLASSES))
    else:
        widths = [2 * BLOCK_FEATURES[-1], 64, 32, NUM_CLASSES]
        for cin, cout in zip(widths[:-1], widths[1:]):
            key, sub = jax.random.split(key)
            params["fcs"].append(_dense_init(sub, cin, cout))
    return params


# --------------------------------- main ---------------------------------------

if __name__ == "__main__":
    B, N = 2, 16
    key = jax.random.PRNGKey(0)
    key, xkey = jax.random.split(key)
    x = jax.random.normal(xkey, (B, NUM_FEATURES, N, N), jnp.float32)  # NCHW
    params = init_params(key)

    fwd = jax.jit(forward)
    scores = jax.block_until_ready(fwd(params, x))

    assert scores.shape == (B, NUM_CLASSES), scores.shape
    assert bool(jnp.all(jnp.isfinite(scores)))
    print("KERNEL_OK")
</pallas_src>

<mosaic_0001>
module attributes {stable_mosaic.version = 11 : i64} {
  func.func @kernel(%arg0: memref<512x4xf32, #tpu.memory_space<vmem>>, %arg1: memref<4x512xf32, #tpu.memory_space<vmem>>, %arg2: memref<272x32xf32, #tpu.memory_space<vmem>>, %arg3: memref<2x3xf32, #tpu.memory_space<vmem>>) attributes {dimension_semantics = [], scalar_prefetch = 0 : i64, scratch_operands = 0 : i64, tpu.core_type = #tpu.core_type<tc>} {
    %cst = arith.constant 1.000000e+00 : f32
    %0 = vector.broadcast %cst : f32 to vector<1x512xf32>
    %1 = tpu.iota {dimensions = array<i32: 0>} : vector<16x256xi32>
    %2 = tpu.iota {dimensions = array<i32: 1>} : vector<16x256xi32>
    %c15_i32 = arith.constant 15 : i32
    %3 = vector.broadcast %c15_i32 : i32 to vector<16x256xi32>
    %4 = arith.andi %2, %3 : vector<16x256xi32>
    %5 = arith.cmpi eq, %4, %1 : vector<16x256xi32>
    %6 = arith.extui %5 : vector<16x256xi1> to vector<16x256xi32>
    %7 = arith.sitofp %6 : vector<16x256xi32> to vector<16x256xf32>
    %c0 = arith.constant 0 : index
    %c0_0 = arith.constant 0 : index
    %8 = vector.load %arg0[%c0, %c0_0] : memref<512x4xf32, #tpu.memory_space<vmem>>, vector<512x4xf32>
    %c0_1 = arith.constant 0 : index
    %c0_2 = arith.constant 0 : index
    %9 = vector.load %arg1[%c0_1, %c0_2] : memref<4x512xf32, #tpu.memory_space<vmem>>, vector<4x512xf32>
    %cst_3 = arith.constant 0.000000e+00 : f32
    %10 = vector.broadcast %cst_3 : f32 to vector<2x3xf32>
    %c0_4 = arith.constant 0 : index
    %c0_5 = arith.constant 0 : index
    %11 = vector.load %arg2[%c0_4, %c0_5] : memref<272x32xf32, #tpu.memory_space<vmem>>, vector<4x32xf32>
    %c8 = arith.constant 8 : index
    %c0_6 = arith.constant 0 : index
    %12 = vector.load %arg2[%c8, %c0_6] : memref<272x32xf32, #tpu.memory_space<vmem>>, vector<1x32xf32>
    %cst_7 = arith.constant dense<0.000000e+00> : vector<512x32xf32>
    %13 = tpu.matmul %8, %11, %cst_7 {dimension_numbers = #tpu.dot_dimension_numbers<[1], [0], [0], [1], [0, 0, 1, 1], [], []>} : vector<512x4xf32>, vector<4x32xf32>, vector<512x32xf32> -> vector<512x32xf32>
    %14 = vector.broadcast %12 : vector<1x32xf32> to vector<512x32xf32>
    %15 = arith.addf %13, %14 : vector<512x32xf32>
    %cst_8 = arith.constant 0.000000e+00 : f32
    %16 = vector.broadcast %cst_8 : f32 to vector<512x32xf32>
    %17 = arith.maximumf %15, %16 : vector<512x32xf32>
    %c16 = arith.constant 16 : index
    %c0_9 = arith.constant 0 : index
    %18 = vector.load %arg2[%c16, %c0_9] : memref<272x32xf32, #tpu.memory_space<vmem>>, vector<32x32xf32>
    %c48 = arith.constant 48 : index
    %c0_10 = arith.constant 0 : index
    %19 = vector.load %arg2[%c48, %c0_10] : memref<272x32xf32, #tpu.memory_space<vmem>>, vector<1x32xf32>
    %cst_11 = arith.constant dense<0.000000e+00> : vector<512x32xf32>
    %20 = tpu.matmul %17, %18, %cst_11 {dimension_numbers = #tpu.dot_dimension_numbers<[1], [0], [0], [1], [0, 0, 1, 1], [], []>} : vector<512x32xf32>, vector<32x32xf32>, vector<512x32xf32> -> vector<512x32xf32>
    %21 = vector.broadcast %19 : vector<1x32xf32> to vector<512x32xf32>
    %22 = arith.addf %20, %21 : vector<512x32xf32>
    %cst_12 = arith.constant 0.000000e+00 : f32
    %23 = vector.broadcast %cst_12 : f32 to vector<512x32xf32>
    %24 = arith.maximumf %22, %23 : vector<512x32xf32>
    %25 = vector.extract_strided_slice %24 {offsets = [0, 0], sizes = [512, 16], strides = [1, 1]} : vector<512x32xf32> to vector<512x16xf32>
    %26 = vector.extract_strided_slice %24 {offsets = [0, 16], sizes = [512, 16], strides = [1, 1]} : vector<512x32xf32> to vector<512x16xf32>
    %27 = vector.extract_strided_slice %26 {offsets = [0, 0], sizes = [256, 16], strides = [1, 1]} : vector<512x16xf32> to vector<256x16xf32>
    %cst_13 = arith.constant dense<0.000000e+00> : vector<256x256xf32>
    %28 = tpu.matmul %27, %7, %cst_13 {dimension_numbers = #tpu.dot_dimension_numbers<[1], [0], [0], [1], [0, 0, 1, 1], [], []>} : vector<256x16xf32>, vector<16x256xf32>, vector<256x256xf32> -> vector<256x256xf32>
    %29 = vector.extract_strided_slice %25 {offsets = [0, 0], sizes = [16, 16], strides = [1, 1]} : vector<512x16xf32> to vector<16x16xf32>
    %30 = vector.extract_strided_slice %25 {offsets = [16, 0], sizes = [16, 16], strides = [1, 1]} : vector<512x16xf32> to vector<16x16xf32>
    %31 = vector.extract_strided_slice %25 {offsets = [32, 0], sizes = [16, 16], strides = [1, 1]} : vector<512x16xf32> to vector<16x16xf32>
    %32 = vector.extract_strided_slice %25 {offsets = [48, 0], sizes = [16, 16], strides = [1, 1]} : vector<512x16xf32> to vector<16x16xf32>
    %33 = vector.extract_strided_slice %25 {offsets = [64, 0], sizes = [16, 16], strides = [1, 1]} : vector<512x16xf32> to vector<16x16xf32>
    %34 = vector.extract_strided_slice %25 {offsets = [80, 0], sizes = [16, 16], strides = [1, 1]} : vector<512x16xf32> to vector<16x16xf32>
    %35 = vector.extract_strided_slice %25 {offsets = [96, 0], sizes = [16, 16], strides = [1, 1]} : vector<512x16xf32> to vector<16x16xf32>
    %36 = vector.extract_strided_slice %25 {offsets = [112, 0], sizes = [16, 16], strides = [1, 1]} : vector<512x16xf32> to vector<16x16xf32>
    %37 = vector.extract_strided_slice %25 {offsets = [128, 0], sizes = [16, 16], strides = [1, 1]} : vector<512x16xf32> to vector<16x16xf32>
    %38 = vector.extract_strided_slice %25 {offsets = [144, 0], sizes = [16, 16], strides = [1, 1]} : vector<512x16xf32> to vector<16x16xf32>
    %39 = vector.extract_strided_slice %25 {offsets = [160, 0], sizes = [16, 16], strides = [1, 1]} : vector<512x16xf32> to vector<16x16xf32>
    %40 = vector.extract_strided_slice %25 {offsets = [176, 0], sizes = [16, 16], strides = [1, 1]} : vector<512x16xf32> to vector<16x16xf32>
    %41 = vector.extract_strided_slice %25 {offsets = [192, 0], sizes = [16, 16], strides = [1, 1]} : vector<512x16xf32> to vector<16x16xf32>
    %42 = vector.extract_strided_slice %25 {offsets = [208, 0], sizes = [16, 16], strides = [1, 1]} : vector<512x16xf32> to vector<16x16xf32>
    %43 = vector.extract_strided_slice %25 {offsets = [224, 0], sizes = [16, 16], strides = [1, 1]} : vector<512x16xf32> to vector<16x16xf32>
    %44 = vector.extract_strided_slice %25 {offsets = [240, 0], sizes = [16, 16], strides = [1, 1]} : vector<512x16xf32> to vector<16x16xf32>
    %45 = tpu.concatenate %29, %30, %31, %32, %33, %34, %35, %36, %37, %38, %39, %40, %41, %42, %43, %44 in 1 : vector<16x16xf32>, vector<16x16xf32>, vector<16x16xf32>, vector<16x16xf32>, vector<16x16xf32>, vector<16x16xf32>, vector<16x16xf32>, vector<16x16xf32>, vector<16x16xf32>, vector<16x16xf32>, vector<16x16xf32>, vector<16x16xf32>, vector<16x16xf32>, vector<16x16xf32>, vector<16x16xf32>, vector<16x16xf32> -> vector<16x256xf32>
    %cst_14 = arith.constant 0.000000e+00 : f32
    %46 = vector.broadcast %cst_14 : f32 to vector<16x256xf32>
    %47 = vector.extract_strided_slice %28 {offsets = [0, 0], sizes = [16, 256], strides = [1, 1]} : vector<256x256xf32> to vector<16x256xf32>
    %48 = vector.extract_strided_slice %45 {offsets = [0, 0], sizes = [1, 256], strides = [1, 1]} : vector<16x256xf32> to vector<1x256xf32>
    %49 = vector.broadcast %48 : vector<1x256xf32> to vector<16x256xf32>
    %50 = arith.mulf %47, %49 : vector<16x256xf32>
    %51 = arith.addf %46, %50 : vector<16x256xf32>
    %52 = vector.extract_strided_slice %28 {offsets = [16, 0], sizes = [16, 256], strides = [1, 1]} : vector<256x256xf32> to vector<16x256xf32>
    %53 = vector.extract_strided_slice %45 {offsets = [1, 0], sizes = [1, 256], strides = [1, 1]} : vector<16x256xf32> to vector<1x256xf32>
    %54 = vector.broadcast %53 : vector<1x256xf32> to vector<16x256xf32>
    %55 = arith.mulf %52, %54 : vector<16x256xf32>
    %56 = arith.addf %51, %55 : vector<16x256xf32>
    %57 = vector.extract_strided_slice %28 {offsets = [32, 0], sizes = [16, 256], strides = [1, 1]} : vector<256x256xf32> to vector<16x256xf32>
    %58 = vector.extract_strided_slice %45 {offsets = [2, 0], sizes = [1, 256], strides = [1, 1]} : vector<16x256xf32> to vector<1x256xf32>
    %59 = vector.broadcast %58 : vector<1x256xf32> to vector<16x256xf32>
    %60 = arith.mulf %57, %59 : vector<16x256xf32>
    %61 = arith.addf %56, %60 : vector<16x256xf32>
    %62 = vector.extract_strided_slice %28 {offsets = [48, 0], sizes = [16, 256], strides = [1, 1]} : vector<256x256xf32> to vector<16x256xf32>
    %63 = vector.extract_strided_slice %45 {offsets = [3, 0], sizes = [1, 256], strides = [1, 1]} : vector<16x256xf32> to vector<1x256xf32>
    %64 = vector.broadcast %63 : vector<1x256xf32> to vector<16x256xf32>
    %65 = arith.mulf %62, %64 : vector<16x256xf32>
    %66 = arith.addf %61, %65 : vector<16x256xf32>
    %67 = vector.extract_strided_slice %28 {offsets = [64, 0], sizes = [16, 256], strides = [1, 1]} : vector<256x256xf32> to vector<16x256xf32>
    %68 = vector.extract_strided_slice %45 {offsets = [4, 0], sizes = [1, 256], strides = [1, 1]} : vector<16x256xf32> to vector<1x256xf32>
    %69 = vector.broadcast %68 : vector<1x256xf32> to vector<16x256xf32>
    %70 = arith.mulf %67, %69 : vector<16x256xf32>
    %71 = arith.addf %66, %70 : vector<16x256xf32>
    %72 = vector.extract_strided_slice %28 {offsets = [80, 0], sizes = [16, 256], strides = [1, 1]} : vector<256x256xf32> to vector<16x256xf32>
    %73 = vector.extract_strided_slice %45 {offsets = [5, 0], sizes = [1, 256], strides = [1, 1]} : vector<16x256xf32> to vector<1x256xf32>
    %74 = vector.broadcast %73 : vector<1x256xf32> to vector<16x256xf32>
    %75 = arith.mulf %72, %74 : vector<16x256xf32>
    %76 = arith.addf %71, %75 : vector<16x256xf32>
    %77 = vector.extract_strided_slice %28 {offsets = [96, 0], sizes = [16, 256], strides = [1, 1]} : vector<256x256xf32> to vector<16x256xf32>
    %78 = vector.extract_strided_slice %45 {offsets = [6, 0], sizes = [1, 256], strides = [1, 1]} : vector<16x256xf32> to vector<1x256xf32>
    %79 = vector.broadcast %78 : vector<1x256xf32> to vector<16x256xf32>
    %80 = arith.mulf %77, %79 : vector<16x256xf32>
    %81 = arith.addf %76, %80 : vector<16x256xf32>
    %82 = vector.extract_strided_slice %28 {offsets = [112, 0], sizes = [16, 256], strides = [1, 1]} : vector<256x256xf32> to vector<16x256xf32>
    %83 = vector.extract_strided_slice %45 {offsets = [7, 0], sizes = [1, 256], strides = [1, 1]} : vector<16x256xf32> to vector<1x256xf32>
    %84 = vector.broadcast %83 : vector<1x256xf32> to vector<16x256xf32>
    %85 = arith.mulf %82, %84 : vector<16x256xf32>
    %86 = arith.addf %81, %85 : vector<16x256xf32>
    %87 = vector.extract_strided_slice %28 {offsets = [128, 0], sizes = [16, 256], strides = [1, 1]} : vector<256x256xf32> to vector<16x256xf32>
    %88 = vector.extract_strided_slice %45 {offsets = [8, 0], sizes = [1, 256], strides = [1, 1]} : vector<16x256xf32> to vector<1x256xf32>
    %89 = vector.broadcast %88 : vector<1x256xf32> to vector<16x256xf32>
    %90 = arith.mulf %87, %89 : vector<16x256xf32>
    %91 = arith.addf %86, %90 : vector<16x256xf32>
    %92 = vector.extract_strided_slice %28 {offsets = [144, 0], sizes = [16, 256], strides = [1, 1]} : vector<256x256xf32> to vector<16x256xf32>
    %93 = vector.extract_strided_slice %45 {offsets = [9, 0], sizes = [1, 256], strides = [1, 1]} : vector<16x256xf32> to vector<1x256xf32>
    %94 = vector.broadcast %93 : vector<1x256xf32> to vector<16x256xf32>
    %95 = arith.mulf %92, %94 : vector<16x256xf32>
    %96 = arith.addf %91, %95 : vector<16x256xf32>
    %97 = vector.extract_strided_slice %28 {offsets = [160, 0], sizes = [16, 256], strides = [1, 1]} : vector<256x256xf32> to vector<16x256xf32>
    %98 = vector.extract_strided_slice %45 {offsets = [10, 0], sizes = [1, 256], strides = [1, 1]} : vector<16x256xf32> to vector<1x256xf32>
    %99 = vector.broadcast %98 : vector<1x256xf32> to vector<16x256xf32>
    %100 = arith.mulf %97, %99 : vector<16x256xf32>
    %101 = arith.addf %96, %100 : vector<16x256xf32>
    %102 = vector.extract_strided_slice %28 {offsets = [176, 0], sizes = [16, 256], strides = [1, 1]} : vector<256x256xf32> to vector<16x256xf32>
    %103 = vector.extract_strided_slice %45 {offsets = [11, 0], sizes = [1, 256], strides = [1, 1]} : vector<16x256xf32> to vector<1x256xf32>
    %104 = vector.broadcast %103 : vector<1x256xf32> to vector<16x256xf32>
    %105 = arith.mulf %102, %104 : vector<16x256xf32>
    %106 = arith.addf %101, %105 : vector<16x256xf32>
    %107 = vector.extract_strided_slice %28 {offsets = [192, 0], sizes = [16, 256], strides = [1, 1]} : vector<256x256xf32> to vector<16x256xf32>
    %108 = vector.extract_strided_slice %45 {offsets = [12, 0], sizes = [1, 256], strides = [1, 1]} : vector<16x256xf32> to vector<1x256xf32>
    %109 = vector.broadcast %108 : vector<1x256xf32> to vector<16x256xf32>
    %110 = arith.mulf %107, %109 : vector<16x256xf32>
    %111 = arith.addf %106, %110 : vector<16x256xf32>
    %112 = vector.extract_strided_slice %28 {offsets = [208, 0], sizes = [16, 256], strides = [1, 1]} : vector<256x256xf32> to vector<16x256xf32>
    %113 = vector.extract_strided_slice %45 {offsets = [13, 0], sizes = [1, 256], strides = [1, 1]} : vector<16x256xf32> to vector<1x256xf32>
    %114 = vector.broadcast %113 : vector<1x256xf32> to vector<16x256xf32>
    %115 = arith.mulf %112, %114 : vector<16x256xf32>
    %116 = arith.addf %111, %115 : vector<16x256xf32>
    %117 = vector.extract_strided_slice %28 {offsets = [224, 0], sizes = [16, 256], strides = [1, 1]} : vector<256x256xf32> to vector<16x256xf32>
    %118 = vector.extract_strided_slice %45 {offsets = [14, 0], sizes = [1, 256], strides = [1, 1]} : vector<16x256xf32> to vector<1x256xf32>
    %119 = vector.broadcast %118 : vector<1x256xf32> to vector<16x256xf32>
    %120 = arith.mulf %117, %119 : vector<16x256xf32>
    %121 = arith.addf %116, %120 : vector<16x256xf32>
    %122 = vector.extract_strided_slice %28 {offsets = [240, 0], sizes = [16, 256], strides = [1, 1]} : vector<256x256xf32> to vector<16x256xf32>
    %123 = vector.extract_strided_slice %45 {offsets = [15, 0], sizes = [1, 256], strides = [1, 1]} : vector<16x256xf32> to vector<1x256xf32>
    %124 = vector.broadcast %123 : vector<1x256xf32> to vector<16x256xf32>
    %125 = arith.mulf %122, %124 : vector<16x256xf32>
    %126 = arith.addf %121, %125 : vector<16x256xf32>
    %127 = vector.extract_strided_slice %126 {offsets = [0, 0], sizes = [16, 16], strides = [1, 1]} : vector<16x256xf32> to vector<16x16xf32>
    %128 = vector.extract_strided_slice %126 {offsets = [0, 16], sizes = [16, 16], strides = [1, 1]} : vector<16x256xf32> to vector<16x16xf32>
    %129 = vector.extract_strided_slice %126 {offsets = [0, 32], sizes = [16, 16], strides = [1, 1]} : vector<16x256xf32> to vector<16x16xf32>
    %130 = vector.extract_strided_slice %126 {offsets = [0, 48], sizes = [16, 16], strides = [1, 1]} : vector<16x256xf32> to vector<16x16xf32>
    %131 = vector.extract_strided_slice %126 {offsets = [0, 64], sizes = [16, 16], strides = [1, 1]} : vector<16x256xf32> to vector<16x16xf32>
    %132 = vector.extract_strided_slice %126 {offsets = [0, 80], sizes = [16, 16], strides = [1, 1]} : vector<16x256xf32> to vector<16x16xf32>
    %133 = vector.extract_strided_slice %126 {offsets = [0, 96], sizes = [16, 16], strides = [1, 1]} : vector<16x256xf32> to vector<16x16xf32>
    %134 = vector.extract_strided_slice %126 {offsets = [0, 112], sizes = [16, 16], strides = [1, 1]} : vector<16x256xf32> to vector<16x16xf32>
    %135 = vector.extract_strided_slice %126 {offsets = [0, 128], sizes = [16, 16], strides = [1, 1]} : vector<16x256xf32> to vector<16x16xf32>
    %136 = vector.extract_strided_slice %126 {offsets = [0, 144], sizes = [16, 16], strides = [1, 1]} : vector<16x256xf32> to vector<16x16xf32>
    %137 = vector.extract_strided_slice %126 {offsets = [0, 160], sizes = [16, 16], strides = [1, 1]} : vector<16x256xf32> to vector<16x16xf32>
    %138 = vector.extract_strided_slice %126 {offsets = [0, 176], sizes = [16, 16], strides = [1, 1]} : vector<16x256xf32> to vector<16x16xf32>
    %139 = vector.extract_strided_slice %126 {offsets = [0, 192], sizes = [16, 16], strides = [1, 1]} : vector<16x256xf32> to vector<16x16xf32>
    %140 = vector.extract_strided_slice %126 {offsets = [0, 208], sizes = [16, 16], strides = [1, 1]} : vector<16x256xf32> to vector<16x16xf32>
    %141 = vector.extract_strided_slice %126 {offsets = [0, 224], sizes = [16, 16], strides = [1, 1]} : vector<16x256xf32> to vector<16x16xf32>
    %142 = vector.extract_strided_slice %126 {offsets = [0, 240], sizes = [16, 16], strides = [1, 1]} : vector<16x256xf32> to vector<16x16xf32>
    %143 = vector.extract_strided_slice %26 {offsets = [256, 0], sizes = [256, 16], strides = [1, 1]} : vector<512x16xf32> to vector<256x16xf32>
    %cst_15 = arith.constant dense<0.000000e+00> : vector<256x256xf32>
    %144 = tpu.matmul %143, %7, %cst_15 {dimension_numbers = #tpu.dot_dimension_numbers<[1], [0], [0], [1], [0, 0, 1, 1], [], []>} : vector<256x16xf32>, vector<16x256xf32>, vector<256x256xf32> -> vector<256x256xf32>
    %145 = vector.extract_strided_slice %25 {offsets = [256, 0], sizes = [16, 16], strides = [1, 1]} : vector<512x16xf32> to vector<16x16xf32>
    %146 = vector.extract_strided_slice %25 {offsets = [272, 0], sizes = [16, 16], strides = [1, 1]} : vector<512x16xf32> to vector<16x16xf32>
    %147 = vector.extract_strided_slice %25 {offsets = [288, 0], sizes = [16, 16], strides = [1, 1]} : vector<512x16xf32> to vector<16x16xf32>
    %148 = vector.extract_strided_slice %25 {offsets = [304, 0], sizes = [16, 16], strides = [1, 1]} : vector<512x16xf32> to vector<16x16xf32>
    %149 = vector.extract_strided_slice %25 {offsets = [320, 0], sizes = [16, 16], strides = [1, 1]} : vector<512x16xf32> to vector<16x16xf32>
    %150 = vector.extract_strided_slice %25 {offsets = [336, 0], sizes = [16, 16], strides = [1, 1]} : vector<512x16xf32> to vector<16x16xf32>
    %151 = vector.extract_strided_slice %25 {offsets = [352, 0], sizes = [16, 16], strides = [1, 1]} : vector<512x16xf32> to vector<16x16xf32>
    %152 = vector.extract_strided_slice %25 {offsets = [368, 0], sizes = [16, 16], strides = [1, 1]} : vector<512x16xf32> to vector<16x16xf32>
    %153 = vector.extract_strided_slice %25 {offsets = [384, 0], sizes = [16, 16], strides = [1, 1]} : vector<512x16xf32> to vector<16x16xf32>
    %154 = vector.extract_strided_slice %25 {offsets = [400, 0], sizes = [16, 16], strides = [1, 1]} : vector<512x16xf32> to vector<16x16xf32>
    %155 = vector.extract_strided_slice %25 {offsets = [416, 0], sizes = [16, 16], strides = [1, 1]} : vector<512x16xf32> to vector<16x16xf32>
    %156 = vector.extract_strided_slice %25 {offsets = [432, 0], sizes = [16, 16], strides = [1, 1]} : vector<512x16xf32> to vector<16x16xf32>
    %157 = vector.extract_strided_slice %25 {offsets = [448, 0], sizes = [16, 16], strides = [1, 1]} : vector<512x16xf32> to vector<16x16xf32>
    %158 = vector.extract_strided_slice %25 {offsets = [464, 0], sizes = [16, 16], strides = [1, 1]} : vector<512x16xf32> to vector<16x16xf32>
    %159 = vector.extract_strided_slice %25 {offsets = [480, 0], sizes = [16, 16], strides = [1, 1]} : vector<512x16xf32> to vector<16x16xf32>
    %160 = vector.extract_strided_slice %25 {offsets = [496, 0], sizes = [16, 16], strides = [1, 1]} : vector<512x16xf32> to vector<16x16xf32>
    %161 = tpu.concatenate %145, %146, %147, %148, %149, %150, %151, %152, %153, %154, %155, %156, %157, %158, %159, %160 in 1 : vector<16x16xf32>, vector<16x16xf32>, vector<16x16xf32>, vector<16x16xf32>, vector<16x16xf32>, vector<16x16xf32>, vector<16x16xf32>, vector<16x16xf32>, vector<16x16xf32>, vector<16x16xf32>, vector<16x16xf32>, vector<16x16xf32>, vector<16x16xf32>, vector<16x16xf32>, vector<16x16xf32>, vector<16x16xf32> -> vector<16x256xf32>
    %cst_16 = arith.constant 0.000000e+00 : f32
    %162 = vector.broadcast %cst_16 : f32 to vector<16x256xf32>
    %163 = vector.extract_strided_slice %144 {offsets = [0, 0], sizes = [16, 256], strides = [1, 1]} : vector<256x256xf32> to vector<16x256xf32>
    %164 = vector.extract_strided_slice %161 {offsets = [0, 0], sizes = [1, 256], strides = [1, 1]} : vector<16x256xf32> to vector<1x256xf32>
    %165 = vector.broadcast %164 : vector<1x256xf32> to vector<16x256xf32>
    %166 = arith.mulf %163, %165 : vector<16x256xf32>
    %167 = arith.addf %162, %166 : vector<16x256xf32>
    %168 = vector.extract_strided_slice %144 {offsets = [16, 0], sizes = [16, 256], strides = [1, 1]} : vector<256x256xf32> to vector<16x256xf32>
    %169 = vector.extract_strided_slice %161 {offsets = [1, 0], sizes = [1, 256], strides = [1, 1]} : vector<16x256xf32> to vector<1x256xf32>
    %170 = vector.broadcast %169 : vector<1x256xf32> to vector<16x256xf32>
    %171 = arith.mulf %168, %170 : vector<16x256xf32>
    %172 = arith.addf %167, %171 : vector<16x256xf32>
    %173 = vector.extract_strided_slice %144 {offsets = [32, 0], sizes = [16, 256], strides = [1, 1]} : vector<256x256xf32> to vector<16x256xf32>
    %174 = vector.extract_strided_slice %161 {offsets = [2, 0], sizes = [1, 256], strides = [1, 1]} : vector<16x256xf32> to vector<1x256xf32>
    %175 = vector.broadcast %174 : vector<1x256xf32> to vector<16x256xf32>
    %176 = arith.mulf %173, %175 : vector<16x256xf32>
    %177 = arith.addf %172, %176 : vector<16x256xf32>
    %178 = vector.extract_strided_slice %144 {offsets = [48, 0], sizes = [16, 256], strides = [1, 1]} : vector<256x256xf32> to vector<16x256xf32>
    %179 = vector.extract_strided_slice %161 {offsets = [3, 0], sizes = [1, 256], strides = [1, 1]} : vector<16x256xf32> to vector<1x256xf32>
    %180 = vector.broadcast %179 : vector<1x256xf32> to vector<16x256xf32>
    %181 = arith.mulf %178, %180 : vector<16x256xf32>
    %182 = arith.addf %177, %181 : vector<16x256xf32>
    %183 = vector.extract_strided_slice %144 {offsets = [64, 0], sizes = [16, 256], strides = [1, 1]} : vector<256x256xf32> to vector<16x256xf32>
    %184 = vector.extract_strided_slice %161 {offsets = [4, 0], sizes = [1, 256], strides = [1, 1]} : vector<16x256xf32> to vector<1x256xf32>
    %185 = vector.broadcast %184 : vector<1x256xf32> to vector<16x256xf32>
    %186 = arith.mulf %183, %185 : vector<16x256xf32>
    %187 = arith.addf %182, %186 : vector<16x256xf32>
    %188 = vector.extract_strided_slice %144 {offsets = [80, 0], sizes = [16, 256], strides = [1, 1]} : vector<256x256xf32> to vector<16x256xf32>
    %189 = vector.extract_strided_slice %161 {offsets = [5, 0], sizes = [1, 256], strides = [1, 1]} : vector<16x256xf32> to vector<1x256xf32>
    %190 = vector.broadcast %189 : vector<1x256xf32> to vector<16x256xf32>
    %191 = arith.mulf %188, %190 : vector<16x256xf32>
    %192 = arith.addf %187, %191 : vector<16x256xf32>
    %193 = vector.extract_strided_slice %144 {offsets = [96, 0], sizes = [16, 256], strides = [1, 1]} : vector<256x256xf32> to vector<16x256xf32>
    %194 = vector.extract_strided_slice %161 {offsets = [6, 0], sizes = [1, 256], strides = [1, 1]} : vector<16x256xf32> to vector<1x256xf32>
    %195 = vector.broadcast %194 : vector<1x256xf32> to vector<16x256xf32>
    %196 = arith.mulf %193, %195 : vector<16x256xf32>
    %197 = arith.addf %192, %196 : vector<16x256xf32>
    %198 = vector.extract_strided_slice %144 {offsets = [112, 0], sizes = [16, 256], strides = [1, 1]} : vector<256x256xf32> to vector<16x256xf32>
    %199 = vector.extract_strided_slice %161 {offsets = [7, 0], sizes = [1, 256], strides = [1, 1]} : vector<16x256xf32> to vector<1x256xf32>
    %200 = vector.broadcast %199 : vector<1x256xf32> to vector<16x256xf32>
    %201 = arith.mulf %198, %200 : vector<16x256xf32>
    %202 = arith.addf %197, %201 : vector<16x256xf32>
    %203 = vector.extract_strided_slice %144 {offsets = [128, 0], sizes = [16, 256], strides = [1, 1]} : vector<256x256xf32> to vector<16x256xf32>
    %204 = vector.extract_strided_slice %161 {offsets = [8, 0], sizes = [1, 256], strides = [1, 1]} : vector<16x256xf32> to vector<1x256xf32>
    %205 = vector.broadcast %204 : vector<1x256xf32> to vector<16x256xf32>
    %206 = arith.mulf %203, %205 : vector<16x256xf32>
    %207 = arith.addf %202, %206 : vector<16x256xf32>
    %208 = vector.extract_strided_slice %144 {offsets = [144, 0], sizes = [16, 256], strides = [1, 1]} : vector<256x256xf32> to vector<16x256xf32>
    %209 = vector.extract_strided_slice %161 {offsets = [9, 0], sizes = [1, 256], strides = [1, 1]} : vector<16x256xf32> to vector<1x256xf32>
    %210 = vector.broadcast %209 : vector<1x256xf32> to vector<16x256xf32>
    %211 = arith.mulf %208, %210 : vector<16x256xf32>
    %212 = arith.addf %207, %211 : vector<16x256xf32>
    %213 = vector.extract_strided_slice %144 {offsets = [160, 0], sizes = [16, 256], strides = [1, 1]} : vector<256x256xf32> to vector<16x256xf32>
    %214 = vector.extract_strided_slice %161 {offsets = [10, 0], sizes = [1, 256], strides = [1, 1]} : vector<16x256xf32> to vector<1x256xf32>
    %215 = vector.broadcast %214 : vector<1x256xf32> to vector<16x256xf32>
    %216 = arith.mulf %213, %215 : vector<16x256xf32>
    %217 = arith.addf %212, %216 : vector<16x256xf32>
    %218 = vector.extract_strided_slice %144 {offsets = [176, 0], sizes = [16, 256], strides = [1, 1]} : vector<256x256xf32> to vector<16x256xf32>
    %219 = vector.extract_strided_slice %161 {offsets = [11, 0], sizes = [1, 256], strides = [1, 1]} : vector<16x256xf32> to vector<1x256xf32>
    %220 = vector.broadcast %219 : vector<1x256xf32> to vector<16x256xf32>
    %221 = arith.mulf %218, %220 : vector<16x256xf32>
    %222 = arith.addf %217, %221 : vector<16x256xf32>
    %223 = vector.extract_strided_slice %144 {offsets = [192, 0], sizes = [16, 256], strides = [1, 1]} : vector<256x256xf32> to vector<16x256xf32>
    %224 = vector.extract_strided_slice %161 {offsets = [12, 0], sizes = [1, 256], strides = [1, 1]} : vector<16x256xf32> to vector<1x256xf32>
    %225 = vector.broadcast %224 : vector<1x256xf32> to vector<16x256xf32>
    %226 = arith.mulf %223, %225 : vector<16x256xf32>
    %227 = arith.addf %222, %226 : vector<16x256xf32>
    %228 = vector.extract_strided_slice %144 {offsets = [208, 0], sizes = [16, 256], strides = [1, 1]} : vector<256x256xf32> to vector<16x256xf32>
    %229 = vector.extract_strided_slice %161 {offsets = [13, 0], sizes = [1, 256], strides = [1, 1]} : vector<16x256xf32> to vector<1x256xf32>
    %230 = vector.broadcast %229 : vector<1x256xf32> to vector<16x256xf32>
    %231 = arith.mulf %228, %230 : vector<16x256xf32>
    %232 = arith.addf %227, %231 : vector<16x256xf32>
    %233 = vector.extract_strided_slice %144 {offsets = [224, 0], sizes = [16, 256], strides = [1, 1]} : vector<256x256xf32> to vector<16x256xf32>
    %234 = vector.extract_strided_slice %161 {offsets = [14, 0], sizes = [1, 256], strides = [1, 1]} : vector<16x256xf32> to vector<1x256xf32>
    %235 = vector.broadcast %234 : vector<1x256xf32> to vector<16x256xf32>
    %236 = arith.mulf %233, %235 : vector<16x256xf32>
    %237 = arith.addf %232, %236 : vector<16x256xf32>
    %238 = vector.extract_strided_slice %144 {offsets = [240, 0], sizes = [16, 256], strides = [1, 1]} : vector<256x256xf32> to vector<16x256xf32>
    %239 = vector.extract_strided_slice %161 {offsets = [15, 0], sizes = [1, 256], strides = [1, 1]} : vector<16x256xf32> to vector<1x256xf32>
    %240 = vector.broadcast %239 : vector<1x256xf32> to vector<16x256xf32>
    %241 = arith.mulf %238, %240 : vector<16x256xf32>
    %242 = arith.addf %237, %241 : vector<16x256xf32>
    %243 = vector.extract_strided_slice %242 {offsets = [0, 0], sizes = [16, 16], strides = [1, 1]} : vector<16x256xf32> to vector<16x16xf32>
    %244 = vector.extract_strided_slice %242 {offsets = [0, 16], sizes = [16, 16], strides = [1, 1]} : vector<16x256xf32> to vector<16x16xf32>
    %245 = vector.extract_strided_slice %242 {offsets = [0, 32], sizes = [16, 16], strides = [1, 1]} : vector<16x256xf32> to vector<16x16xf32>
    %246 = vector.extract_strided_slice %242 {offsets = [0, 48], sizes = [16, 16], strides = [1, 1]} : vector<16x256xf32> to vector<16x16xf32>
    %247 = vector.extract_strided_slice %242 {offsets = [0, 64], sizes = [16, 16], strides = [1, 1]} : vector<16x256xf32> to vector<16x16xf32>
    %248 = vector.extract_strided_slice %242 {offsets = [0, 80], sizes = [16, 16], strides = [1, 1]} : vector<16x256xf32> to vector<16x16xf32>
    %249 = vector.extract_strided_slice %242 {offsets = [0, 96], sizes = [16, 16], strides = [1, 1]} : vector<16x256xf32> to vector<16x16xf32>
    %250 = vector.extract_strided_slice %242 {offsets = [0, 112], sizes = [16, 16], strides = [1, 1]} : vector<16x256xf32> to vector<16x16xf32>
    %251 = vector.extract_strided_slice %242 {offsets = [0, 128], sizes = [16, 16], strides = [1, 1]} : vector<16x256xf32> to vector<16x16xf32>
    %252 = vector.extract_strided_slice %242 {offsets = [0, 144], sizes = [16, 16], strides = [1, 1]} : vector<16x256xf32> to vector<16x16xf32>
    %253 = vector.extract_strided_slice %242 {offsets = [0, 160], sizes = [16, 16], strides = [1, 1]} : vector<16x256xf32> to vector<16x16xf32>
    %254 = vector.extract_strided_slice %242 {offsets = [0, 176], sizes = [16, 16], strides = [1, 1]} : vector<16x256xf32> to vector<16x16xf32>
    %255 = vector.extract_strided_slice %242 {offsets = [0, 192], sizes = [16, 16], strides = [1, 1]} : vector<16x256xf32> to vector<16x16xf32>
    %256 = vector.extract_strided_slice %242 {offsets = [0, 208], sizes = [16, 16], strides = [1, 1]} : vector<16x256xf32> to vector<16x16xf32>
    %257 = vector.extract_strided_slice %242 {offsets = [0, 224], sizes = [16, 16], strides = [1, 1]} : vector<16x256xf32> to vector<16x16xf32>
    %258 = vector.extract_strided_slice %242 {offsets = [0, 240], sizes = [16, 16], strides = [1, 1]} : vector<16x256xf32> to vector<16x16xf32>
    %259 = tpu.concatenate %127, %128, %129, %130, %131, %132, %133, %134, %135, %136, %137, %138, %139, %140, %141, %142 in 0 : vector<16x16xf32>, vector<16x16xf32>, vector<16x16xf32>, vector<16x16xf32>, vector<16x16xf32>, vector<16x16xf32>, vector<16x16xf32>, vector<16x16xf32>, vector<16x16xf32>, vector<16x16xf32>, vector<16x16xf32>, vector<16x16xf32>, vector<16x16xf32>, vector<16x16xf32>, vector<16x16xf32>, vector<16x16xf32> -> vector<256x16xf32>
    %260 = tpu.concatenate %243, %244, %245, %246, %247, %248, %249, %250, %251, %252, %253, %254, %255, %256, %257, %258 in 0 : vector<16x16xf32>, vector<16x16xf32>, vector<16x16xf32>, vector<16x16xf32>, vector<16x16xf32>, vector<16x16xf32>, vector<16x16xf32>, vector<16x16xf32>, vector<16x16xf32>, vector<16x16xf32>, vector<16x16xf32>, vector<16x16xf32>, vector<16x16xf32>, vector<16x16xf32>, vector<16x16xf32>, vector<16x16xf32> -> vector<256x16xf32>
    %261 = tpu.concatenate %259, %260 in 0 : vector<256x16xf32>, vector<256x16xf32> -> vector<512x16xf32>
    %c56 = arith.constant 56 : index
    %c0_17 = arith.constant 0 : index
    %262 = vector.load %arg2[%c56, %c0_17] : memref<272x32xf32, #tpu.memory_space<vmem>>, vector<4x16xf32>
    %c64 = arith.constant 64 : index
    %c0_18 = arith.constant 0 : index
    %263 = vector.load %arg2[%c64, %c0_18] : memref<272x32xf32, #tpu.memory_space<vmem>>, vector<16x16xf32>
    %c80 = arith.constant 80 : index
    %c0_19 = arith.constant 0 : index
    %264 = vector.load %arg2[%c80, %c0_19] : memref<272x32xf32, #tpu.memory_space<vmem>>, vector<1x16xf32>
    %cst_20 = arith.constant dense<0.000000e+00> : vector<512x16xf32>
    %265 = tpu.matmul %8, %262, %cst_20 {dimension_numbers = #tpu.dot_dimension_numbers<[1], [0], [0], [1], [0, 0, 1, 1], [], []>} : vector<512x4xf32>, vector<4x16xf32>, vector<512x16xf32> -> vector<512x16xf32>
    %cst_21 = arith.constant dense<0.000000e+00> : vector<512x16xf32>
    %266 = tpu.matmul %261, %263, %cst_21 {dimension_numbers = #tpu.dot_dimension_numbers<[1], [0], [0], [1], [0, 0, 1, 1], [], []>} : vector<512x16xf32>, vector<16x16xf32>, vector<512x16xf32> -> vector<512x16xf32>
    %267 = arith.addf %265, %266 : vector<512x16xf32>
    %268 = vector.broadcast %264 : vector<1x16xf32> to vector<512x16xf32>
    %269 = arith.addf %267, %268 : vector<512x16xf32>
    %cst_22 = arith.constant dense<0.000000e+00> : vector<1x16xf32>
    %270 = tpu.matmul %0, %269, %cst_22 {dimension_numbers = #tpu.dot_dimension_numbers<[1], [0], [0], [1], [0, 0, 1, 1], [], []>} : vector<1x512xf32>, vector<512x16xf32>, vector<1x16xf32> -> vector<1x16xf32>
    %cst_23 = arith.constant 0.001953125 : f32
    %271 = vector.broadcast %cst_23 : f32 to vector<1x16xf32>
    %272 = arith.mulf %270, %271 : vector<1x16xf32>
    %273 = vector.broadcast %272 : vector<1x16xf32> to vector<512x16xf32>
    %274 = arith.subf %269, %273 : vector<512x16xf32>
    %275 = arith.mulf %274, %274 : vector<512x16xf32>
    %cst_24 = arith.constant dense<0.000000e+00> : vector<1x16xf32>
    %276 = tpu.matmul %0, %275, %cst_24 {dimension_numbers = #tpu.dot_dimension_numbers<[1], [0], [0], [1], [0, 0, 1, 1], [], []>} : vector<1x512xf32>, vector<512x16xf32>, vector<1x16xf32> -> vector<1x16xf32>
    %cst_25 = arith.constant 0.001953125 : f32
    %277 = vector.broadcast %cst_25 : f32 to vector<1x16xf32>
    %278 = arith.mulf %276, %277 : vector<1x16xf32>
    %cst_26 = arith.constant 9.99999974E-6 : f32
    %279 = vector.broadcast %cst_26 : f32 to vector<1x16xf32>
    %280 = arith.addf %278, %279 : vector<1x16xf32>
    %281 = math.rsqrt %280 : vector<1x16xf32>
    %282 = vector.broadcast %281 : vector<1x16xf32> to vector<512x16xf32>
    %283 = arith.mulf %274, %282 : vector<512x16xf32>
    %c88 = arith.constant 88 : index
    %c0_27 = arith.constant 0 : index
    %284 = vector.load %arg2[%c88, %c0_27] : memref<272x32xf32, #tpu.memory_space<vmem>>, vector<16x3xf32>
    %c104 = arith.constant 104 : index
    %c0_28 = arith.constant 0 : index
    %285 = vector.load %arg2[%c104, %c0_28] : memref<272x32xf32, #tpu.memory_space<vmem>>, vector<16x3xf32>
    %c120 = arith.constant 120 : index
    %c0_29 = arith.constant 0 : index
    %286 = vector.load %arg2[%c120, %c0_29] : memref<272x32xf32, #tpu.memory_space<vmem>>, vector<1x3xf32>
    %cst_30 = arith.constant dense<0.000000e+00> : vector<4x16xf32>
    %287 = tpu.matmul %9, %283, %cst_30 {dimension_numbers = #tpu.dot_dimension_numbers<[1], [0], [0], [1], [0, 0, 1, 1], [], []>} : vector<4x512xf32>, vector<512x16xf32>, vector<4x16xf32> -> vector<4x16xf32>
    %288 = vector.extract_strided_slice %287 {offsets = [0, 0], sizes = [2, 16], strides = [1, 1]} : vector<4x16xf32> to vector<2x16xf32>
    %cst_31 = arith.constant dense<0.000000e+00> : vector<2x3xf32>
    %289 = tpu.matmul %288, %284, %cst_31 {dimension_numbers = #tpu.dot_dimension_numbers<[1], [0], [0], [1], [0, 0, 1, 1], [], []>} : vector<2x16xf32>, vector<16x3xf32>, vector<2x3xf32> -> vector<2x3xf32>
    %290 = arith.addf %10, %289 : vector<2x3xf32>
    %291 = vector.extract_strided_slice %287 {offsets = [2, 0], sizes = [2, 16], strides = [1, 1]} : vector<4x16xf32> to vector<2x16xf32>
    %cst_32 = arith.constant dense<0.000000e+00> : vector<2x3xf32>
    %292 = tpu.matmul %291, %285, %cst_32 {dimension_numbers = #tpu.dot_dimension_numbers<[1], [0], [0], [1], [0, 0, 1, 1], [], []>} : vector<2x16xf32>, vector<16x3xf32>, vector<2x3xf32> -> vector<2x3xf32>
    %293 = arith.addf %290, %292 : vector<2x3xf32>
    %294 = vector.broadcast %286 : vector<1x3xf32> to vector<2x3xf32>
    %295 = arith.addf %293, %294 : vector<2x3xf32>
    %c128 = arith.constant 128 : index
    %c0_33 = arith.constant 0 : index
    %296 = vector.load %arg2[%c128, %c0_33] : memref<272x32xf32, #tpu.memory_space<vmem>>, vector<16x32xf32>
    %c144 = arith.constant 144 : index
    %c0_34 = arith.constant 0 : index
    %297 = vector.load %arg2[%c144, %c0_34] : memref<272x32xf32, #tpu.memory_space<vmem>>, vector<1x32xf32>
    %cst_35 = arith.constant dense<0.000000e+00> : vector<512x32xf32>
    %298 = tpu.matmul %283, %296, %cst_35 {dimension_numbers = #tpu.dot_dimension_numbers<[1], [0], [0], [1], [0, 0, 1, 1], [], []>} : vector<512x16xf32>, vector<16x32xf32>, vector<512x32xf32> -> vector<512x32xf32>
    %299 = vector.broadcast %297 : vector<1x32xf32> to vector<512x32xf32>
    %300 = arith.addf %298, %299 : vector<512x32xf32>
    %cst_36 = arith.constant 0.000000e+00 : f32
    %301 = vector.broadcast %cst_36 : f32 to vector<512x32xf32>
    %302 = arith.maximumf %300, %301 : vector<512x32xf32>
    %c152 = arith.constant 152 : index
    %c0_37 = arith.constant 0 : index
    %303 = vector.load %arg2[%c152, %c0_37] : memref<272x32xf32, #tpu.memory_space<vmem>>, vector<32x32xf32>
    %c184 = arith.constant 184 : index
    %c0_38 = arith.constant 0 : index
    %304 = vector.load %arg2[%c184, %c0_38] : memref<272x32xf32, #tpu.memory_space<vmem>>, vector<1x32xf32>
    %cst_39 = arith.constant dense<0.000000e+00> : vector<512x32xf32>
    %305 = tpu.matmul %302, %303, %cst_39 {dimension_numbers = #tpu.dot_dimension_numbers<[1], [0], [0], [1], [0, 0, 1, 1], [], []>} : vector<512x32xf32>, vector<32x32xf32>, vector<512x32xf32> -> vector<512x32xf32>
    %306 = vector.broadcast %304 : vector<1x32xf32> to vector<512x32xf32>
    %307 = arith.addf %305, %306 : vector<512x32xf32>
    %cst_40 = arith.constant 0.000000e+00 : f32
    %308 = vector.broadcast %cst_40 : f32 to vector<512x32xf32>
    %309 = arith.maximumf %307, %308 : vector<512x32xf32>
    %310 = vector.extract_strided_slice %309 {offsets = [0, 0], sizes = [512, 16], strides = [1, 1]} : vector<512x32xf32> to vector<512x16xf32>
    %311 = vector.extract_strided_slice %309 {offsets = [0, 16], sizes = [512, 16], strides = [1, 1]} : vector<512x32xf32> to vector<512x16xf32>
    %312 = vector.extract_strided_slice %311 {offsets = [0, 0], sizes = [256, 16], strides = [1, 1]} : vector<512x16xf32> to vector<256x16xf32>
    %cst_41 = arith.constant dense<0.000000e+00> : vector<256x256xf32>
    %313 = tpu.matmul %312, %7, %cst_41 {dimension_numbers = #tpu.dot_dimension_numbers<[1], [0], [0], [1], [0, 0, 1, 1], [], []>} : vector<256x16xf32>, vector<16x256xf32>, vector<256x256xf32> -> vector<256x256xf32>
    %314 = vector.extract_strided_slice %310 {offsets = [0, 0], sizes = [16, 16], strides = [1, 1]} : vector<512x16xf32> to vector<16x16xf32>
    %315 = vector.extract_strided_slice %310 {offsets = [16, 0], sizes = [16, 16], strides = [1, 1]} : vector<512x16xf32> to vector<16x16xf32>
    %316 = vector.extract_strided_slice %310 {offsets = [32, 0], sizes = [16, 16], strides = [1, 1]} : vector<512x16xf32> to vector<16x16xf32>
    %317 = vector.extract_strided_slice %310 {offsets = [48, 0], sizes = [16, 16], strides = [1, 1]} : vector<512x16xf32> to vector<16x16xf32>
    %318 = vector.extract_strided_slice %310 {offsets = [64, 0], sizes = [16, 16], strides = [1, 1]} : vector<512x16xf32> to vector<16x16xf32>
    %319 = vector.extract_strided_slice %310 {offsets = [80, 0], sizes = [16, 16], strides = [1, 1]} : vector<512x16xf32> to vector<16x16xf32>
    %320 = vector.extract_strided_slice %310 {offsets = [96, 0], sizes = [16, 16], strides = [1, 1]} : vector<512x16xf32> to vector<16x16xf32>
    %321 = vector.extract_strided_slice %310 {offsets = [112, 0], sizes = [16, 16], strides = [1, 1]} : vector<512x16xf32> to vector<16x16xf32>
    %322 = vector.extract_strided_slice %310 {offsets = [128, 0], sizes = [16, 16], strides = [1, 1]} : vector<512x16xf32> to vector<16x16xf32>
    %323 = vector.extract_strided_slice %310 {offsets = [144, 0], sizes = [16, 16], strides = [1, 1]} : vector<512x16xf32> to vector<16x16xf32>
    %324 = vector.extract_strided_slice %310 {offsets = [160, 0], sizes = [16, 16], strides = [1, 1]} : vector<512x16xf32> to vector<16x16xf32>
    %325 = vector.extract_strided_slice %310 {offsets = [176, 0], sizes = [16, 16], strides = [1, 1]} : vector<512x16xf32> to vector<16x16xf32>
    %326 = vector.extract_strided_slice %310 {offsets = [192, 0], sizes = [16, 16], strides = [1, 1]} : vector<512x16xf32> to vector<16x16xf32>
    %327 = vector.extract_strided_slice %310 {offsets = [208, 0], sizes = [16, 16], strides = [1, 1]} : vector<512x16xf32> to vector<16x16xf32>
    %328 = vector.extract_strided_slice %310 {offsets = [224, 0], sizes = [16, 16], strides = [1, 1]} : vector<512x16xf32> to vector<16x16xf32>
    %329 = vector.extract_strided_slice %310 {offsets = [240, 0], sizes = [16, 16], strides = [1, 1]} : vector<512x16xf32> to vector<16x16xf32>
    %330 = tpu.concatenate %314, %315, %316, %317, %318, %319, %320, %321, %322, %323, %324, %325, %326, %327, %328, %329 in 1 : vector<16x16xf32>, vector<16x16xf32>, vector<16x16xf32>, vector<16x16xf32>, vector<16x16xf32>, vector<16x16xf32>, vector<16x16xf32>, vector<16x16xf32>, vector<16x16xf32>, vector<16x16xf32>, vector<16x16xf32>, vector<16x16xf32>, vector<16x16xf32>, vector<16x16xf32>, vector<16x16xf32>, vector<16x16xf32> -> vector<16x256xf32>
    %cst_42 = arith.constant 0.000000e+00 : f32
    %331 = vector.broadcast %cst_42 : f32 to vector<16x256xf32>
    %332 = vector.extract_strided_slice %313 {offsets = [0, 0], sizes = [16, 256], strides = [1, 1]} : vector<256x256xf32> to vector<16x256xf32>
    %333 = vector.extract_strided_slice %330 {offsets = [0, 0], sizes = [1, 256], strides = [1, 1]} : vector<16x256xf32> to vector<1x256xf32>
    %334 = vector.broadcast %333 : vector<1x256xf32> to vector<16x256xf32>
    %335 = arith.mulf %332, %334 : vector<16x256xf32>
    %336 = arith.addf %331, %335 : vector<16x256xf32>
    %337 = vector.extract_strided_slice %313 {offsets = [16, 0], sizes = [16, 256], strides = [1, 1]} : vector<256x256xf32> to vector<16x256xf32>
    %338 = vector.extract_strided_slice %330 {offsets = [1, 0], sizes = [1, 256], strides = [1, 1]} : vector<16x256xf32> to vector<1x256xf32>
    %339 = vector.broadcast %338 : vector<1x256xf32> to vector<16x256xf32>
    %340 = arith.mulf %337, %339 : vector<16x256xf32>
    %341 = arith.addf %336, %340 : vector<16x256xf32>
    %342 = vector.extract_strided_slice %313 {offsets = [32, 0], sizes = [16, 256], strides = [1, 1]} : vector<256x256xf32> to vector<16x256xf32>
    %343 = vector.extract_strided_slice %330 {offsets = [2, 0], sizes = [1, 256], strides = [1, 1]} : vector<16x256xf32> to vector<1x256xf32>
    %344 = vector.broadcast %343 : vector<1x256xf32> to vector<16x256xf32>
    %345 = arith.mulf %342, %344 : vector<16x256xf32>
    %346 = arith.addf %341, %345 : vector<16x256xf32>
    %347 = vector.extract_strided_slice %313 {offsets = [48, 0], sizes = [16, 256], strides = [1, 1]} : vector<256x256xf32> to vector<16x256xf32>
    %348 = vector.extract_strided_slice %330 {offsets = [3, 0], sizes = [1, 256], strides = [1, 1]} : vector<16x256xf32> to vector<1x256xf32>
    %349 = vector.broadcast %348 : vector<1x256xf32> to vector<16x256xf32>
    %350 = arith.mulf %347, %349 : vector<16x256xf32>
    %351 = arith.addf %346, %350 : vector<16x256xf32>
    %352 = vector.extract_strided_slice %313 {offsets = [64, 0], sizes = [16, 256], strides = [1, 1]} : vector<256x256xf32> to vector<16x256xf32>
    %353 = vector.extract_strided_slice %330 {offsets = [4, 0], sizes = [1, 256], strides = [1, 1]} : vector<16x256xf32> to vector<1x256xf32>
    %354 = vector.broadcast %353 : vector<1x256xf32> to vector<16x256xf32>
    %355 = arith.mulf %352, %354 : vector<16x256xf32>
    %356 = arith.addf %351, %355 : vector<16x256xf32>
    %357 = vector.extract_strided_slice %313 {offsets = [80, 0], sizes = [16, 256], strides = [1, 1]} : vector<256x256xf32> to vector<16x256xf32>
    %358 = vector.extract_strided_slice %330 {offsets = [5, 0], sizes = [1, 256], strides = [1, 1]} : vector<16x256xf32> to vector<1x256xf32>
    %359 = vector.broadcast %358 : vector<1x256xf32> to vector<16x256xf32>
    %360 = arith.mulf %357, %359 : vector<16x256xf32>
    %361 = arith.addf %356, %360 : vector<16x256xf32>
    %362 = vector.extract_strided_slice %313 {offsets = [96, 0], sizes = [16, 256], strides = [1, 1]} : vector<256x256xf32> to vector<16x256xf32>
    %363 = vector.extract_strided_slice %330 {offsets = [6, 0], sizes = [1, 256], strides = [1, 1]} : vector<16x256xf32> to vector<1x256xf32>
    %364 = vector.broadcast %363 : vector<1x256xf32> to vector<16x256xf32>
    %365 = arith.mulf %362, %364 : vector<16x256xf32>
    %366 = arith.addf %361, %365 : vector<16x256xf32>
    %367 = vector.extract_strided_slice %313 {offsets = [112, 0], sizes = [16, 256], strides = [1, 1]} : vector<256x256xf32> to vector<16x256xf32>
    %368 = vector.extract_strided_slice %330 {offsets = [7, 0], sizes = [1, 256], strides = [1, 1]} : vector<16x256xf32> to vector<1x256xf32>
    %369 = vector.broadcast %368 : vector<1x256xf32> to vector<16x256xf32>
    %370 = arith.mulf %367, %369 : vector<16x256xf32>
    %371 = arith.addf %366, %370 : vector<16x256xf32>
    %372 = vector.extract_strided_slice %313 {offsets = [128, 0], sizes = [16, 256], strides = [1, 1]} : vector<256x256xf32> to vector<16x256xf32>
    %373 = vector.extract_strided_slice %330 {offsets = [8, 0], sizes = [1, 256], strides = [1, 1]} : vector<16x256xf32> to vector<1x256xf32>
    %374 = vector.broadcast %373 : vector<1x256xf32> to vector<16x256xf32>
    %375 = arith.mulf %372, %374 : vector<16x256xf32>
    %376 = arith.addf %371, %375 : vector<16x256xf32>
    %377 = vector.extract_strided_slice %313 {offsets = [144, 0], sizes = [16, 256], strides = [1, 1]} : vector<256x256xf32> to vector<16x256xf32>
    %378 = vector.extract_strided_slice %330 {offsets = [9, 0], sizes = [1, 256], strides = [1, 1]} : vector<16x256xf32> to vector<1x256xf32>
    %379 = vector.broadcast %378 : vector<1x256xf32> to vector<16x256xf32>
    %380 = arith.mulf %377, %379 : vector<16x256xf32>
    %381 = arith.addf %376, %380 : vector<16x256xf32>
    %382 = vector.extract_strided_slice %313 {offsets = [160, 0], sizes = [16, 256], strides = [1, 1]} : vector<256x256xf32> to vector<16x256xf32>
    %383 = vector.extract_strided_slice %330 {offsets = [10, 0], sizes = [1, 256], strides = [1, 1]} : vector<16x256xf32> to vector<1x256xf32>
    %384 = vector.broadcast %383 : vector<1x256xf32> to vector<16x256xf32>
    %385 = arith.mulf %382, %384 : vector<16x256xf32>
    %386 = arith.addf %381, %385 : vector<16x256xf32>
    %387 = vector.extract_strided_slice %313 {offsets = [176, 0], sizes = [16, 256], strides = [1, 1]} : vector<256x256xf32> to vector<16x256xf32>
    %388 = vector.extract_strided_slice %330 {offsets = [11, 0], sizes = [1, 256], strides = [1, 1]} : vector<16x256xf32> to vector<1x256xf32>
    %389 = vector.broadcast %388 : vector<1x256xf32> to vector<16x256xf32>
    %390 = arith.mulf %387, %389 : vector<16x256xf32>
    %391 = arith.addf %386, %390 : vector<16x256xf32>
    %392 = vector.extract_strided_slice %313 {offsets = [192, 0], sizes = [16, 256], strides = [1, 1]} : vector<256x256xf32> to vector<16x256xf32>
    %393 = vector.extract_strided_slice %330 {offsets = [12, 0], sizes = [1, 256], strides = [1, 1]} : vector<16x256xf32> to vector<1x256xf32>
    %394 = vector.broadcast %393 : vector<1x256xf32> to vector<16x256xf32>
    %395 = arith.mulf %392, %394 : vector<16x256xf32>
    %396 = arith.addf %391, %395 : vector<16x256xf32>
    %397 = vector.extract_strided_slice %313 {offsets = [208, 0], sizes = [16, 256], strides = [1, 1]} : vector<256x256xf32> to vector<16x256xf32>
    %398 = vector.extract_strided_slice %330 {offsets = [13, 0], sizes = [1, 256], strides = [1, 1]} : vector<16x256xf32> to vector<1x256xf32>
    %399 = vector.broadcast %398 : vector<1x256xf32> to vector<16x256xf32>
    %400 = arith.mulf %397, %399 : vector<16x256xf32>
    %401 = arith.addf %396, %400 : vector<16x256xf32>
    %402 = vector.extract_strided_slice %313 {offsets = [224, 0], sizes = [16, 256], strides = [1, 1]} : vector<256x256xf32> to vector<16x256xf32>
    %403 = vector.extract_strided_slice %330 {offsets = [14, 0], sizes = [1, 256], strides = [1, 1]} : vector<16x256xf32> to vector<1x256xf32>
    %404 = vector.broadcast %403 : vector<1x256xf32> to vector<16x256xf32>
    %405 = arith.mulf %402, %404 : vector<16x256xf32>
    %406 = arith.addf %401, %405 : vector<16x256xf32>
    %407 = vector.extract_strided_slice %313 {offsets = [240, 0], sizes = [16, 256], strides = [1, 1]} : vector<256x256xf32> to vector<16x256xf32>
    %408 = vector.extract_strided_slice %330 {offsets = [15, 0], sizes = [1, 256], strides = [1, 1]} : vector<16x256xf32> to vector<1x256xf32>
    %409 = vector.broadcast %408 : vector<1x256xf32> to vector<16x256xf32>
    %410 = arith.mulf %407, %409 : vector<16x256xf32>
    %411 = arith.addf %406, %410 : vector<16x256xf32>
    %412 = vector.extract_strided_slice %411 {offsets = [0, 0], sizes = [16, 16], strides = [1, 1]} : vector<16x256xf32> to vector<16x16xf32>
    %413 = vector.extract_strided_slice %411 {offsets = [0, 16], sizes = [16, 16], strides = [1, 1]} : vector<16x256xf32> to vector<16x16xf32>
    %414 = vector.extract_strided_slice %411 {offsets = [0, 32], sizes = [16, 16], strides = [1, 1]} : vector<16x256xf32> to vector<16x16xf32>
    %415 = vector.extract_strided_slice %411 {offsets = [0, 48], sizes = [16, 16], strides = [1, 1]} : vector<16x256xf32> to vector<16x16xf32>
    %416 = vector.extract_strided_slice %411 {offsets = [0, 64], sizes = [16, 16], strides = [1, 1]} : vector<16x256xf32> to vector<16x16xf32>
    %417 = vector.extract_strided_slice %411 {offsets = [0, 80], sizes = [16, 16], strides = [1, 1]} : vector<16x256xf32> to vector<16x16xf32>
    %418 = vector.extract_strided_slice %411 {offsets = [0, 96], sizes = [16, 16], strides = [1, 1]} : vector<16x256xf32> to vector<16x16xf32>
    %419 = vector.extract_strided_slice %411 {offsets = [0, 112], sizes = [16, 16], strides = [1, 1]} : vector<16x256xf32> to vector<16x16xf32>
    %420 = vector.extract_strided_slice %411 {offsets = [0, 128], sizes = [16, 16], strides = [1, 1]} : vector<16x256xf32> to vector<16x16xf32>
    %421 = vector.extract_strided_slice %411 {offsets = [0, 144], sizes = [16, 16], strides = [1, 1]} : vector<16x256xf32> to vector<16x16xf32>
    %422 = vector.extract_strided_slice %411 {offsets = [0, 160], sizes = [16, 16], strides = [1, 1]} : vector<16x256xf32> to vector<16x16xf32>
    %423 = vector.extract_strided_slice %411 {offsets = [0, 176], sizes = [16, 16], strides = [1, 1]} : vector<16x256xf32> to vector<16x16xf32>
    %424 = vector.extract_strided_slice %411 {offsets = [0, 192], sizes = [16, 16], strides = [1, 1]} : vector<16x256xf32> to vector<16x16xf32>
    %425 = vector.extract_strided_slice %411 {offsets = [0, 208], sizes = [16, 16], strides = [1, 1]} : vector<16x256xf32> to vector<16x16xf32>
    %426 = vector.extract_strided_slice %411 {offsets = [0, 224], sizes = [16, 16], strides = [1, 1]} : vector<16x256xf32> to vector<16x16xf32>
    %427 = vector.extract_strided_slice %411 {offsets = [0, 240], sizes = [16, 16], strides = [1, 1]} : vector<16x256xf32> to vector<16x16xf32>
    %428 = vector.extract_strided_slice %311 {offsets = [256, 0], sizes = [256, 16], strides = [1, 1]} : vector<512x16xf32> to vector<256x16xf32>
    %cst_43 = arith.constant dense<0.000000e+00> : vector<256x256xf32>
    %429 = tpu.matmul %428, %7, %cst_43 {dimension_numbers = #tpu.dot_dimension_numbers<[1], [0], [0], [1], [0, 0, 1, 1], [], []>} : vector<256x16xf32>, vector<16x256xf32>, vector<256x256xf32> -> vector<256x256xf32>
    %430 = vector.extract_strided_slice %310 {offsets = [256, 0], sizes = [16, 16], strides = [1, 1]} : vector<512x16xf32> to vector<16x16xf32>
    %431 = vector.extract_strided_slice %310 {offsets = [272, 0], sizes = [16, 16], strides = [1, 1]} : vector<512x16xf32> to vector<16x16xf32>
    %432 = vector.extract_strided_slice %310 {offsets = [288, 0], sizes = [16, 16], strides = [1, 1]} : vector<512x16xf32> to vector<16x16xf32>
    %433 = vector.extract_strided_slice %310 {offsets = [304, 0], sizes = [16, 16], strides = [1, 1]} : vector<512x16xf32> to vector<16x16xf32>
    %434 = vector.extract_strided_slice %310 {offsets = [320, 0], sizes = [16, 16], strides = [1, 1]} : vector<512x16xf32> to vector<16x16xf32>
    %435 = vector.extract_strided_slice %310 {offsets = [336, 0], sizes = [16, 16], strides = [1, 1]} : vector<512x16xf32> to vector<16x16xf32>
    %436 = vector.extract_strided_slice %310 {offsets = [352, 0], sizes = [16, 16], strides = [1, 1]} : vector<512x16xf32> to vector<16x16xf32>
    %437 = vector.extract_strided_slice %310 {offsets = [368, 0], sizes = [16, 16], strides = [1, 1]} : vector<512x16xf32> to vector<16x16xf32>
    %438 = vector.extract_strided_slice %310 {offsets = [384, 0], sizes = [16, 16], strides = [1, 1]} : vector<512x16xf32> to vector<16x16xf32>
    %439 = vector.extract_strided_slice %310 {offsets = [400, 0], sizes = [16, 16], strides = [1, 1]} : vector<512x16xf32> to vector<16x16xf32>
    %440 = vector.extract_strided_slice %310 {offsets = [416, 0], sizes = [16, 16], strides = [1, 1]} : vector<512x16xf32> to vector<16x16xf32>
    %441 = vector.extract_strided_slice %310 {offsets = [432, 0], sizes = [16, 16], strides = [1, 1]} : vector<512x16xf32> to vector<16x16xf32>
    %442 = vector.extract_strided_slice %310 {offsets = [448, 0], sizes = [16, 16], strides = [1, 1]} : vector<512x16xf32> to vector<16x16xf32>
    %443 = vector.extract_strided_slice %310 {offsets = [464, 0], sizes = [16, 16], strides = [1, 1]} : vector<512x16xf32> to vector<16x16xf32>
    %444 = vector.extract_strided_slice %310 {offsets = [480, 0], sizes = [16, 16], strides = [1, 1]} : vector<512x16xf32> to vector<16x16xf32>
    %445 = vector.extract_strided_slice %310 {offsets = [496, 0], sizes = [16, 16], strides = [1, 1]} : vector<512x16xf32> to vector<16x16xf32>
    %446 = tpu.concatenate %430, %431, %432, %433, %434, %435, %436, %437, %438, %439, %440, %441, %442, %443, %444, %445 in 1 : vector<16x16xf32>, vector<16x16xf32>, vector<16x16xf32>, vector<16x16xf32>, vector<16x16xf32>, vector<16x16xf32>, vector<16x16xf32>, vector<16x16xf32>, vector<16x16xf32>, vector<16x16xf32>, vector<16x16xf32>, vector<16x16xf32>, vector<16x16xf32>, vector<16x16xf32>, vector<16x16xf32>, vector<16x16xf32> -> vector<16x256xf32>
    %cst_44 = arith.constant 0.000000e+00 : f32
    %447 = vector.broadcast %cst_44 : f32 to vector<16x256xf32>
    %448 = vector.extract_strided_slice %429 {offsets = [0, 0], sizes = [16, 256], strides = [1, 1]} : vector<256x256xf32> to vector<16x256xf32>
    %449 = vector.extract_strided_slice %446 {offsets = [0, 0], sizes = [1, 256], strides = [1, 1]} : vector<16x256xf32> to vector<1x256xf32>
    %450 = vector.broadcast %449 : vector<1x256xf32> to vector<16x256xf32>
    %451 = arith.mulf %448, %450 : vector<16x256xf32>
    %452 = arith.addf %447, %451 : vector<16x256xf32>
    %453 = vector.extract_strided_slice %429 {offsets = [16, 0], sizes = [16, 256], strides = [1, 1]} : vector<256x256xf32> to vector<16x256xf32>
    %454 = vector.extract_strided_slice %446 {offsets = [1, 0], sizes = [1, 256], strides = [1, 1]} : vector<16x256xf32> to vector<1x256xf32>
    %455 = vector.broadcast %454 : vector<1x256xf32> to vector<16x256xf32>
    %456 = arith.mulf %453, %455 : vector<16x256xf32>
    %457 = arith.addf %452, %456 : vector<16x256xf32>
    %458 = vector.extract_strided_slice %429 {offsets = [32, 0], sizes = [16, 256], strides = [1, 1]} : vector<256x256xf32> to vector<16x256xf32>
    %459 = vector.extract_strided_slice %446 {offsets = [2, 0], sizes = [1, 256], strides = [1, 1]} : vector<16x256xf32> to vector<1x256xf32>
    %460 = vector.broadcast %459 : vector<1x256xf32> to vector<16x256xf32>
    %461 = arith.mulf %458, %460 : vector<16x256xf32>
    %462 = arith.addf %457, %461 : vector<16x256xf32>
    %463 = vector.extract_strided_slice %429 {offsets = [48, 0], sizes = [16, 256], strides = [1, 1]} : vector<256x256xf32> to vector<16x256xf32>
    %464 = vector.extract_strided_slice %446 {offsets = [3, 0], sizes = [1, 256], strides = [1, 1]} : vector<16x256xf32> to vector<1x256xf32>
    %465 = vector.broadcast %464 : vector<1x256xf32> to vector<16x256xf32>
    %466 = arith.mulf %463, %465 : vector<16x256xf32>
    %467 = arith.addf %462, %466 : vector<16x256xf32>
    %468 = vector.extract_strided_slice %429 {offsets = [64, 0], sizes = [16, 256], strides = [1, 1]} : vector<256x256xf32> to vector<16x256xf32>
    %469 = vector.extract_strided_slice %446 {offsets = [4, 0], sizes = [1, 256], strides = [1, 1]} : vector<16x256xf32> to vector<1x256xf32>
    %470 = vector.broadcast %469 : vector<1x256xf32> to vector<16x256xf32>
    %471 = arith.mulf %468, %470 : vector<16x256xf32>
    %472 = arith.addf %467, %471 : vector<16x256xf32>
    %473 = vector.extract_strided_slice %429 {offsets = [80, 0], sizes = [16, 256], strides = [1, 1]} : vector<256x256xf32> to vector<16x256xf32>
    %474 = vector.extract_strided_slice %446 {offsets = [5, 0], sizes = [1, 256], strides = [1, 1]} : vector<16x256xf32> to vector<1x256xf32>
    %475 = vector.broadcast %474 : vector<1x256xf32> to vector<16x256xf32>
    %476 = arith.mulf %473, %475 : vector<16x256xf32>
    %477 = arith.addf %472, %476 : vector<16x256xf32>
    %478 = vector.extract_strided_slice %429 {offsets = [96, 0], sizes = [16, 256], strides = [1, 1]} : vector<256x256xf32> to vector<16x256xf32>
    %479 = vector.extract_strided_slice %446 {offsets = [6, 0], sizes = [1, 256], strides = [1, 1]} : vector<16x256xf32> to vector<1x256xf32>
    %480 = vector.broadcast %479 : vector<1x256xf32> to vector<16x256xf32>
    %481 = arith.mulf %478, %480 : vector<16x256xf32>
    %482 = arith.addf %477, %481 : vector<16x256xf32>
    %483 = vector.extract_strided_slice %429 {offsets = [112, 0], sizes = [16, 256], strides = [1, 1]} : vector<256x256xf32> to vector<16x256xf32>
    %484 = vector.extract_strided_slice %446 {offsets = [7, 0], sizes = [1, 256], strides = [1, 1]} : vector<16x256xf32> to vector<1x256xf32>
    %485 = vector.broadcast %484 : vector<1x256xf32> to vector<16x256xf32>
    %486 = arith.mulf %483, %485 : vector<16x256xf32>
    %487 = arith.addf %482, %486 : vector<16x256xf32>
    %488 = vector.extract_strided_slice %429 {offsets = [128, 0], sizes = [16, 256], strides = [1, 1]} : vector<256x256xf32> to vector<16x256xf32>
    %489 = vector.extract_strided_slice %446 {offsets = [8, 0], sizes = [1, 256], strides = [1, 1]} : vector<16x256xf32> to vector<1x256xf32>
    %490 = vector.broadcast %489 : vector<1x256xf32> to vector<16x256xf32>
    %491 = arith.mulf %488, %490 : vector<16x256xf32>
    %492 = arith.addf %487, %491 : vector<16x256xf32>
    %493 = vector.extract_strided_slice %429 {offsets = [144, 0], sizes = [16, 256], strides = [1, 1]} : vector<256x256xf32> to vector<16x256xf32>
    %494 = vector.extract_strided_slice %446 {offsets = [9, 0], sizes = [1, 256], strides = [1, 1]} : vector<16x256xf32> to vector<1x256xf32>
    %495 = vector.broadcast %494 : vector<1x256xf32> to vector<16x256xf32>
    %496 = arith.mulf %493, %495 : vector<16x256xf32>
    %497 = arith.addf %492, %496 : vector<16x256xf32>
    %498 = vector.extract_strided_slice %429 {offsets = [160, 0], sizes = [16, 256], strides = [1, 1]} : vector<256x256xf32> to vector<16x256xf32>
    %499 = vector.extract_strided_slice %446 {offsets = [10, 0], sizes = [1, 256], strides = [1, 1]} : vector<16x256xf32> to vector<1x256xf32>
    %500 = vector.broadcast %499 : vector<1x256xf32> to vector<16x256xf32>
    %501 = arith.mulf %498, %500 : vector<16x256xf32>
    %502 = arith.addf %497, %501 : vector<16x256xf32>
    %503 = vector.extract_strided_slice %429 {offsets = [176, 0], sizes = [16, 256], strides = [1, 1]} : vector<256x256xf32> to vector<16x256xf32>
    %504 = vector.extract_strided_slice %446 {offsets = [11, 0], sizes = [1, 256], strides = [1, 1]} : vector<16x256xf32> to vector<1x256xf32>
    %505 = vector.broadcast %504 : vector<1x256xf32> to vector<16x256xf32>
    %506 = arith.mulf %503, %505 : vector<16x256xf32>
    %507 = arith.addf %502, %506 : vector<16x256xf32>
    %508 = vector.extract_strided_slice %429 {offsets = [192, 0], sizes = [16, 256], strides = [1, 1]} : vector<256x256xf32> to vector<16x256xf32>
    %509 = vector.extract_strided_slice %446 {offsets = [12, 0], sizes = [1, 256], strides = [1, 1]} : vector<16x256xf32> to vector<1x256xf32>
    %510 = vector.broadcast %509 : vector<1x256xf32> to vector<16x256xf32>
    %511 = arith.mulf %508, %510 : vector<16x256xf32>
    %512 = arith.addf %507, %511 : vector<16x256xf32>
    %513 = vector.extract_strided_slice %429 {offsets = [208, 0], sizes = [16, 256], strides = [1, 1]} : vector<256x256xf32> to vector<16x256xf32>
    %514 = vector.extract_strided_slice %446 {offsets = [13, 0], sizes = [1, 256], strides = [1, 1]} : vector<16x256xf32> to vector<1x256xf32>
    %515 = vector.broadcast %514 : vector<1x256xf32> to vector<16x256xf32>
    %516 = arith.mulf %513, %515 : vector<16x256xf32>
    %517 = arith.addf %512, %516 : vector<16x256xf32>
    %518 = vector.extract_strided_slice %429 {offsets = [224, 0], sizes = [16, 256], strides = [1, 1]} : vector<256x256xf32> to vector<16x256xf32>
    %519 = vector.extract_strided_slice %446 {offsets = [14, 0], sizes = [1, 256], strides = [1, 1]} : vector<16x256xf32> to vector<1x256xf32>
    %520 = vector.broadcast %519 : vector<1x256xf32> to vector<16x256xf32>
    %521 = arith.mulf %518, %520 : vector<16x256xf32>
    %522 = arith.addf %517, %521 : vector<16x256xf32>
    %523 = vector.extract_strided_slice %429 {offsets = [240, 0], sizes = [16, 256], strides = [1, 1]} : vector<256x256xf32> to vector<16x256xf32>
    %524 = vector.extract_strided_slice %446 {offsets = [15, 0], sizes = [1, 256], strides = [1, 1]} : vector<16x256xf32> to vector<1x256xf32>
    %525 = vector.broadcast %524 : vector<1x256xf32> to vector<16x256xf32>
    %526 = arith.mulf %523, %525 : vector<16x256xf32>
    %527 = arith.addf %522, %526 : vector<16x256xf32>
    %528 = vector.extract_strided_slice %527 {offsets = [0, 0], sizes = [16, 16], strides = [1, 1]} : vector<16x256xf32> to vector<16x16xf32>
    %529 = vector.extract_strided_slice %527 {offsets = [0, 16], sizes = [16, 16], strides = [1, 1]} : vector<16x256xf32> to vector<16x16xf32>
    %530 = vector.extract_strided_slice %527 {offsets = [0, 32], sizes = [16, 16], strides = [1, 1]} : vector<16x256xf32> to vector<16x16xf32>
    %531 = vector.extract_strided_slice %527 {offsets = [0, 48], sizes = [16, 16], strides = [1, 1]} : vector<16x256xf32> to vector<16x16xf32>
    %532 = vector.extract_strided_slice %527 {offsets = [0, 64], sizes = [16, 16], strides = [1, 1]} : vector<16x256xf32> to vector<16x16xf32>
    %533 = vector.extract_strided_slice %527 {offsets = [0, 80], sizes = [16, 16], strides = [1, 1]} : vector<16x256xf32> to vector<16x16xf32>
    %534 = vector.extract_strided_slice %527 {offsets = [0, 96], sizes = [16, 16], strides = [1, 1]} : vector<16x256xf32> to vector<16x16xf32>
    %535 = vector.extract_strided_slice %527 {offsets = [0, 112], sizes = [16, 16], strides = [1, 1]} : vector<16x256xf32> to vector<16x16xf32>
    %536 = vector.extract_strided_slice %527 {offsets = [0, 128], sizes = [16, 16], strides = [1, 1]} : vector<16x256xf32> to vector<16x16xf32>
    %537 = vector.extract_strided_slice %527 {offsets = [0, 144], sizes = [16, 16], strides = [1, 1]} : vector<16x256xf32> to vector<16x16xf32>
    %538 = vector.extract_strided_slice %527 {offsets = [0, 160], sizes = [16, 16], strides = [1, 1]} : vector<16x256xf32> to vector<16x16xf32>
    %539 = vector.extract_strided_slice %527 {offsets = [0, 176], sizes = [16, 16], strides = [1, 1]} : vector<16x256xf32> to vector<16x16xf32>
    %540 = vector.extract_strided_slice %527 {offsets = [0, 192], sizes = [16, 16], strides = [1, 1]} : vector<16x256xf32> to vector<16x16xf32>
    %541 = vector.extract_strided_slice %527 {offsets = [0, 208], sizes = [16, 16], strides = [1, 1]} : vector<16x256xf32> to vector<16x16xf32>
    %542 = vector.extract_strided_slice %527 {offsets = [0, 224], sizes = [16, 16], strides = [1, 1]} : vector<16x256xf32> to vector<16x16xf32>
    %543 = vector.extract_strided_slice %527 {offsets = [0, 240], sizes = [16, 16], strides = [1, 1]} : vector<16x256xf32> to vector<16x16xf32>
    %544 = tpu.concatenate %412, %413, %414, %415, %416, %417, %418, %419, %420, %421, %422, %423, %424, %425, %426, %427 in 0 : vector<16x16xf32>, vector<16x16xf32>, vector<16x16xf32>, vector<16x16xf32>, vector<16x16xf32>, vector<16x16xf32>, vector<16x16xf32>, vector<16x16xf32>, vector<16x16xf32>, vector<16x16xf32>, vector<16x16xf32>, vector<16x16xf32>, vector<16x16xf32>, vector<16x16xf32>, vector<16x16xf32>, vector<16x16xf32> -> vector<256x16xf32>
    %545 = tpu.concatenate %528, %529, %530, %531, %532, %533, %534, %535, %536, %537, %538, %539, %540, %541, %542, %543 in 0 : vector<16x16xf32>, vector<16x16xf32>, vector<16x16xf32>, vector<16x16xf32>, vector<16x16xf32>, vector<16x16xf32>, vector<16x16xf32>, vector<16x16xf32>, vector<16x16xf32>, vector<16x16xf32>, vector<16x16xf32>, vector<16x16xf32>, vector<16x16xf32>, vector<16x16xf32>, vector<16x16xf32>, vector<16x16xf32> -> vector<256x16xf32>
    %546 = tpu.concatenate %544, %545 in 0 : vector<256x16xf32>, vector<256x16xf32> -> vector<512x16xf32>
    %c192 = arith.constant 192 : index
    %c0_45 = arith.constant 0 : index
    %547 = vector.load %arg2[%c192, %c0_45] : memref<272x32xf32, #tpu.memory_space<vmem>>, vector<16x16xf32>
    %c208 = arith.constant 208 : index
    %c0_46 = arith.constant 0 : index
    %548 = vector.load %arg2[%c208, %c0_46] : memref<272x32xf32, #tpu.memory_space<vmem>>, vector<16x16xf32>
    %c224 = arith.constant 224 : index
    %c0_47 = arith.constant 0 : index
    %549 = vector.load %arg2[%c224, %c0_47] : memref<272x32xf32, #tpu.memory_space<vmem>>, vector<1x16xf32>
    %cst_48 = arith.constant dense<0.000000e+00> : vector<512x16xf32>
    %550 = tpu.matmul %283, %547, %cst_48 {dimension_numbers = #tpu.dot_dimension_numbers<[1], [0], [0], [1], [0, 0, 1, 1], [], []>} : vector<512x16xf32>, vector<16x16xf32>, vector<512x16xf32> -> vector<512x16xf32>
    %cst_49 = arith.constant dense<0.000000e+00> : vector<512x16xf32>
    %551 = tpu.matmul %546, %548, %cst_49 {dimension_numbers = #tpu.dot_dimension_numbers<[1], [0], [0], [1], [0, 0, 1, 1], [], []>} : vector<512x16xf32>, vector<16x16xf32>, vector<512x16xf32> -> vector<512x16xf32>
    %552 = arith.addf %550, %551 : vector<512x16xf32>
    %553 = vector.broadcast %549 : vector<1x16xf32> to vector<512x16xf32>
    %554 = arith.addf %552, %553 : vector<512x16xf32>
    %cst_50 = arith.constant dense<0.000000e+00> : vector<1x16xf32>
    %555 = tpu.matmul %0, %554, %cst_50 {dimension_numbers = #tpu.dot_dimension_numbers<[1], [0], [0], [1], [0, 0, 1, 1], [], []>} : vector<1x512xf32>, vector<512x16xf32>, vector<1x16xf32> -> vector<1x16xf32>
    %cst_51 = arith.constant 0.001953125 : f32
    %556 = vector.broadcast %cst_51 : f32 to vector<1x16xf32>
    %557 = arith.mulf %555, %556 : vector<1x16xf32>
    %558 = vector.broadcast %557 : vector<1x16xf32> to vector<512x16xf32>
    %559 = arith.subf %554, %558 : vector<512x16xf32>
    %560 = arith.mulf %559, %559 : vector<512x16xf32>
    %cst_52 = arith.constant dense<0.000000e+00> : vector<1x16xf32>
    %561 = tpu.matmul %0, %560, %cst_52 {dimension_numbers = #tpu.dot_dimension_numbers<[1], [0], [0], [1], [0, 0, 1, 1], [], []>} : vector<1x512xf32>, vector<512x16xf32>, vector<1x16xf32> -> vector<1x16xf32>
    %cst_53 = arith.constant 0.001953125 : f32
    %562 = vector.broadcast %cst_53 : f32 to vector<1x16xf32>
    %563 = arith.mulf %561, %562 : vector<1x16xf32>
    %cst_54 = arith.constant 9.99999974E-6 : f32
    %564 = vector.broadcast %cst_54 : f32 to vector<1x16xf32>
    %565 = arith.addf %563, %564 : vector<1x16xf32>
    %566 = math.rsqrt %565 : vector<1x16xf32>
    %567 = vector.broadcast %566 : vector<1x16xf32> to vector<512x16xf32>
    %568 = arith.mulf %559, %567 : vector<512x16xf32>
    %c232 = arith.constant 232 : index
    %c0_55 = arith.constant 0 : index
    %569 = vector.load %arg2[%c232, %c0_55] : memref<272x32xf32, #tpu.memory_space<vmem>>, vector<16x3xf32>
    %c248 = arith.constant 248 : index
    %c0_56 = arith.constant 0 : index
    %570 = vector.load %arg2[%c248, %c0_56] : memref<272x32xf32, #tpu.memory_space<vmem>>, vector<16x3xf32>
    %c264 = arith.constant 264 : index
    %c0_57 = arith.constant 0 : index
    %571 = vector.load %arg2[%c264, %c0_57] : memref<272x32xf32, #tpu.memory_space<vmem>>, vector<1x3xf32>
    %cst_58 = arith.constant dense<0.000000e+00> : vector<4x16xf32>
    %572 = tpu.matmul %9, %568, %cst_58 {dimension_numbers = #tpu.dot_dimension_numbers<[1], [0], [0], [1], [0, 0, 1, 1], [], []>} : vector<4x512xf32>, vector<512x16xf32>, vector<4x16xf32> -> vector<4x16xf32>
    %573 = vector.extract_strided_slice %572 {offsets = [0, 0], sizes = [2, 16], strides = [1, 1]} : vector<4x16xf32> to vector<2x16xf32>
    %cst_59 = arith.constant dense<0.000000e+00> : vector<2x3xf32>
    %574 = tpu.matmul %573, %569, %cst_59 {dimension_numbers = #tpu.dot_dimension_numbers<[1], [0], [0], [1], [0, 0, 1, 1], [], []>} : vector<2x16xf32>, vector<16x3xf32>, vector<2x3xf32> -> vector<2x3xf32>
    %575 = arith.addf %295, %574 : vector<2x3xf32>
    %576 = vector.extract_strided_slice %572 {offsets = [2, 0], sizes = [2, 16], strides = [1, 1]} : vector<4x16xf32> to vector<2x16xf32>
    %cst_60 = arith.constant dense<0.000000e+00> : vector<2x3xf32>
    %577 = tpu.matmul %576, %570, %cst_60 {dimension_numbers = #tpu.dot_dimension_numbers<[1], [0], [0], [1], [0, 0, 1, 1], [], []>} : vector<2x16xf32>, vector<16x3xf32>, vector<2x3xf32> -> vector<2x3xf32>
    %578 = arith.addf %575, %577 : vector<2x3xf32>
    %579 = vector.broadcast %571 : vector<1x3xf32> to vector<2x3xf32>
    %580 = arith.addf %578, %579 : vector<2x3xf32>
    %cst_61 = arith.constant dense<0.000000e+00> : vector<3xf32>
    %581 = vector.multi_reduction <add>, %580, %cst_61 [0] : vector<2x3xf32> to vector<3xf32>
    %582 = vector.shape_cast %581 : vector<3xf32> to vector<1x3xf32>
    %cst_62 = arith.constant 2.000000e+00 : f32
    %583 = vector.broadcast %cst_62 : f32 to vector<1x3xf32>
    %584 = arith.divf %582, %583 : vector<1x3xf32>
    %585 = vector.broadcast %584 : vector<1x3xf32> to vector<2x3xf32>
    %586 = arith.subf %580, %585 : vector<2x3xf32>
    %587 = arith.mulf %586, %586 : vector<2x3xf32>
    %cst_63 = arith.constant dense<0.000000e+00> : vector<3xf32>
    %588 = vector.multi_reduction <add>, %587, %cst_63 [0] : vector<2x3xf32> to vector<3xf32>
    %589 = vector.shape_cast %588 : vector<3xf32> to vector<1x3xf32>
    %cst_64 = arith.constant 2.000000e+00 : f32
    %590 = vector.broadcast %cst_64 : f32 to vector<1x3xf32>
    %591 = arith.divf %589, %590 : vector<1x3xf32>
    %592 = vector.broadcast %584 : vector<1x3xf32> to vector<2x3xf32>
    %593 = arith.subf %580, %592 : vector<2x3xf32>
    %cst_65 = arith.constant 9.99999974E-6 : f32
    %594 = vector.broadcast %cst_65 : f32 to vector<1x3xf32>
    %595 = arith.addf %591, %594 : vector<1x3xf32>
    %596 = math.rsqrt %595 : vector<1x3xf32>
    %597 = vector.broadcast %596 : vector<1x3xf32> to vector<2x3xf32>
    %598 = arith.mulf %593, %597 : vector<2x3xf32>
    %c0_66 = arith.constant 0 : index
    %c0_67 = arith.constant 0 : index
    %599 = vector.load %arg3[%c0_66, %c0_67] : memref<2x3xf32, #tpu.memory_space<vmem>>, vector<2x3xf32>
    tpu.vector_store %arg3[%c0_66, %c0_67], %598 {strides = array<i32>} : memref<2x3xf32, #tpu.memory_space<vmem>>, vector<2x3xf32>,
    return
  }
}

</mosaic_0001>

<llo_original>
// kernel: forward.1
$region0: #{forward.1}
  #allocation0 [shape = 'u32[]', space=smem, size = 0x4, offset = 0x4, fixed_abs, tag = 'smem constant byte address 0x4 - core index']
  #allocation1 [shape = 'u32[144,128]{1,0:T(1,128)}', space=vmem, size = 0x12000, scoped, tag = 'internal scratch']
  %s0 = inlined_call_operand.vmem [shape: f32[512,4], index: 0, kind: input, shape index: {}]
  %s1 = inlined_call_operand.vmem [shape: f32[4,512], index: 1, kind: input, shape index: {}]
  %s2 = inlined_call_operand.vmem [shape: f32[272,32], index: 2, kind: input, shape index: {}]
  %s3 = inlined_call_operand.hbm [shape: f32[2,3], index: 3, kind: output, shape index: {}]
  %s4 = sld [smem:[#allocation0]]
  $region22: #{forward.1} parent=0
    _
  %s6 = ssub.s32 1, %s4
  %s7 = scalar_select 0, %s6, %s4
  $region1: #{forward.1} parent=0
    #allocation2 [shape = 'u8[1024]{0}', space=vmem, size = 0x400, scoped, tag = 'output window, operand 0, single buffered']
    #allocation3 [shape = 's32[1]{0}', space=sflag, size = 0x4, scoped, tag = 'scoped memory for forward.1']
    %8 = vsyncpa [#allocation3], 0
    // Predicated region
    $region2: #{forward.1} parent=1 // pred_check
      _
    $region3: #{forward.1} parent=1 // pred_check_branch
      %10 = sbr.rel (0) target = $region5
    $region4: #{forward.1} parent=1 // pred_region
      _
    $region5: #{forward.1} parent=1 // pred_fallthru
      _
    // Predicated region
    $region6: #{forward.1} parent=1 // pred_check
      _
    $region7: #{forward.1} parent=1 // pred_check_branch
      %12 = sbr.rel (0) target = $region9
    $region8: #{forward.1} parent=1 // pred_region
      _
    $region9: #{forward.1} parent=1 // pred_fallthru
      _
    // Predicated region
    $region10: #{forward.1} parent=1 // pred_check
      _
    $region11: #{forward.1} parent=1 // pred_check_branch
      %14 = sbr.rel (0) target = $region13
    $region12: #{forward.1} parent=1 // pred_region
      _
    $region13: #{forward.1} parent=1 // pred_fallthru
      _
    %v15 = vlaneseq
    %v16 = vshrl.u32 %v15, 7
    %v17 = vadd.s32 %v16, 8
    %v18 = vlaneseq
    %v19 = vand.u32 %v18, 127
    %v20 = vadd.s32 %v19, 128
    %v21 = vand.u32 %v19, 15
    %v22 = vand.u32 %v20, 15
    %vm23 = vcmp.eq.s32.totalorder %v21, %v16
    %vm24 = vcmp.eq.s32.totalorder %v22, %v16
    %vm25 = vcmp.eq.s32.totalorder %v21, %v17
    %vm26 = vcmp.eq.s32.totalorder %v22, %v17
    %v27 = vsel %vm23, 1, 0
    %v28 = vsel %vm24, 1, 0
    %v29 = vsel %vm25, 1, 0
    %v30 = vsel %vm26, 1, 0
    %v31 = vcvt.s32.f32 %v27
    %v32 = vcvt.s32.f32 %v28
    %v33 = vcvt.s32.f32 %v29
    %v34 = vcvt.s32.f32 %v30
    %v35 = vld [vmem:[%s0] sm:$0xff]
    %v36 = vld [vmem:[%s0 + $0x8] sm:$0xff]
    %v37 = vld [vmem:[%s0 + $0x10] sm:$0xff]
    %v38 = vld [vmem:[%s0 + $0x18] sm:$0xff]
    %v39 = vld [vmem:[%s0 + $0x20] sm:$0xff]
    %v40 = vld [vmem:[%s0 + $0x28] sm:$0xff]
    %v41 = vld [vmem:[%s0 + $0x30] sm:$0xff]
    %v42 = vld [vmem:[%s0 + $0x38] sm:$0xff]
    %v43 = vld [vmem:[%s0 + $0x40] sm:$0xff]
    %v44 = vld [vmem:[%s0 + $0x48] sm:$0xff]
    %v45 = vld [vmem:[%s0 + $0x50] sm:$0xff]
    %v46 = vld [vmem:[%s0 + $0x58] sm:$0xff]
    %v47 = vld [vmem:[%s0 + $0x60] sm:$0xff]
    %v48 = vld [vmem:[%s0 + $0x68] sm:$0xff]
    %v49 = vld [vmem:[%s0 + $0x70] sm:$0xff]
    %v50 = vld [vmem:[%s0 + $0x78] sm:$0xff]
    %v51 = vld [vmem:[%s0 + $0x80] sm:$0xff]
    %v52 = vld [vmem:[%s0 + $0x88] sm:$0xff]
    %v53 = vld [vmem:[%s0 + $0x90] sm:$0xff]
    %v54 = vld [vmem:[%s0 + $0x98] sm:$0xff]
    %v55 = vld [vmem:[%s0 + $0xa0] sm:$0xff]
    %v56 = vld [vmem:[%s0 + $0xa8] sm:$0xff]
    %v57 = vld [vmem:[%s0 + $0xb0] sm:$0xff]
    %v58 = vld [vmem:[%s0 + $0xb8] sm:$0xff]
    %v59 = vld [vmem:[%s0 + $0xc0] sm:$0xff]
    %v60 = vld [vmem:[%s0 + $0xc8] sm:$0xff]
    %v61 = vld [vmem:[%s0 + $0xd0] sm:$0xff]
    %v62 = vld [vmem:[%s0 + $0xd8] sm:$0xff]
    %v63 = vld [vmem:[%s0 + $0xe0] sm:$0xff]
    %v64 = vld [vmem:[%s0 + $0xe8] sm:$0xff]
    %v65 = vld [vmem:[%s0 + $0xf0] sm:$0xff]
    %v66 = vld [vmem:[%s0 + $0xf8] sm:$0xff]
    %v67 = vld [vmem:[%s0 + $0x100] sm:$0xff]
    %v68 = vld [vmem:[%s0 + $0x108] sm:$0xff]
    %v69 = vld [vmem:[%s0 + $0x110] sm:$0xff]
    %v70 = vld [vmem:[%s0 + $0x118] sm:$0xff]
    %v71 = vld [vmem:[%s0 + $0x120] sm:$0xff]
    %v72 = vld [vmem:[%s0 + $0x128] sm:$0xff]
    %v73 = vld [vmem:[%s0 + $0x130] sm:$0xff]
    %v74 = vld [vmem:[%s0 + $0x138] sm:$0xff]
    %v75 = vld [vmem:[%s0 + $0x140] sm:$0xff]
    %v76 = vld [vmem:[%s0 + $0x148] sm:$0xff]
    %v77 = vld [vmem:[%s0 + $0x150] sm:$0xff]
    %v78 = vld [vmem:[%s0 + $0x158] sm:$0xff]
    %v79 = vld [vmem:[%s0 + $0x160] sm:$0xff]
    %v80 = vld [vmem:[%s0 + $0x168] sm:$0xff]
    %v81 = vld [vmem:[%s0 + $0x170] sm:$0xff]
    %v82 = vld [vmem:[%s0 + $0x178] sm:$0xff]
    %v83 = vld [vmem:[%s0 + $0x180] sm:$0xff]
    %v84 = vld [vmem:[%s0 + $0x188] sm:$0xff]
    %v85 = vld [vmem:[%s0 + $0x190] sm:$0xff]
    %v86 = vld [vmem:[%s0 + $0x198] sm:$0xff]
    %v87 = vld [vmem:[%s0 + $0x1a0] sm:$0xff]
    %v88 = vld [vmem:[%s0 + $0x1a8] sm:$0xff]
    %v89 = vld [vmem:[%s0 + $0x1b0] sm:$0xff]
    %v90 = vld [vmem:[%s0 + $0x1b8] sm:$0xff]
    %v91 = vld [vmem:[%s0 + $0x1c0] sm:$0xff]
    %v92 = vld [vmem:[%s0 + $0x1c8] sm:$0xff]
    %v93 = vld [vmem:[%s0 + $0x1d0] sm:$0xff]
    %v94 = vld [vmem:[%s0 + $0x1d8] sm:$0xff]
    %v95 = vld [vmem:[%s0 + $0x1e0] sm:$0xff]
    %v96 = vld [vmem:[%s0 + $0x1e8] sm:$0xff]
    %v97 = vld [vmem:[%s0 + $0x1f0] sm:$0xff]
    %v98 = vld [vmem:[%s0 + $0x1f8] sm:$0xff]
    %v99 = vld [vmem:[%s1] sm:$0xff]
    %v100 = vld [vmem:[%s1 + $0x8] sm:$0xff]
    %v101 = vld [vmem:[%s2] sm:$0xf]
    %v102 = vld [vmem:[%s2 + $0x8] sm:$0x1]
    %v103 = vlaneseq
    %v104 = vshrl.u32 %v103, 7
    %v105 = vsub.s32 0, %v104
    %v106 = vrot.slane %v102, %v105
    %vm107 = vcmask 31744
    %v109 = vsel %vm107, %v35, 0
    %v112 = vsel %vm107, %v36, 0
    %v115 = vsel %vm107, %v37, 0
    %v118 = vsel %vm107, %v38, 0
    %v121 = vsel %vm107, %v39, 0
    %v124 = vsel %vm107, %v40, 0
    %v127 = vsel %vm107, %v41, 0
    %v130 = vsel %vm107, %v42, 0
    %v133 = vsel %vm107, %v43, 0
    %v136 = vsel %vm107, %v44, 0
    %v139 = vsel %vm107, %v45, 0
    %v142 = vsel %vm107, %v46, 0
    %v145 = vsel %vm107, %v47, 0
    %v148 = vsel %vm107, %v48, 0
    %v151 = vsel %vm107, %v49, 0
    %v154 = vsel %vm107, %v50, 0
    %v157 = vsel %vm107, %v51, 0
    %v160 = vsel %vm107, %v52, 0
    %v163 = vsel %vm107, %v53, 0
    %v166 = vsel %vm107, %v54, 0
    %v169 = vsel %vm107, %v55, 0
    %v172 = vsel %vm107, %v56, 0
    %v175 = vsel %vm107, %v57, 0
    %v178 = vsel %vm107, %v58, 0
    %v181 = vsel %vm107, %v59, 0
    %v184 = vsel %vm107, %v60, 0
    %v187 = vsel %vm107, %v61, 0
    %v190 = vsel %vm107, %v62, 0
    %v193 = vsel %vm107, %v63, 0
    %v196 = vsel %vm107, %v64, 0
    %v199 = vsel %vm107, %v65, 0
    %v202 = vsel %vm107, %v66, 0
    %v205 = vsel %vm107, %v67, 0
    %v208 = vsel %vm107, %v68, 0
    %v211 = vsel %vm107, %v69, 0
    %v214 = vsel %vm107, %v70, 0
    %v217 = vsel %vm107, %v71, 0
    %v220 = vsel %vm107, %v72, 0
    %v223 = vsel %vm107, %v73, 0
    %v226 = vsel %vm107, %v74, 0
    %v229 = vsel %vm107, %v75, 0
    %v232 = vsel %vm107, %v76, 0
    %v235 = vsel %vm107, %v77, 0
    %v238 = vsel %vm107, %v78, 0
    %v241 = vsel %vm107, %v79, 0
    %v244 = vsel %vm107, %v80, 0
    %v247 = vsel %vm107, %v81, 0
    %v250 = vsel %vm107, %v82, 0
    %v253 = vsel %vm107, %v83, 0
    %v256 = vsel %vm107, %v84, 0
    %v259 = vsel %vm107, %v85, 0
    %v262 = vsel %vm107, %v86, 0
    %v265 = vsel %vm107, %v87, 0
    %v268 = vsel %vm107, %v88, 0
    %v271 = vsel %vm107, %v89, 0
    %v274 = vsel %vm107, %v90, 0
    %v277 = vsel %vm107, %v91, 0
    %v280 = vsel %vm107, %v92, 0
    %v283 = vsel %vm107, %v93, 0
    %v286 = vsel %vm107, %v94, 0
    %v289 = vsel %vm107, %v95, 0
    %v292 = vsel %vm107, %v96, 0
    %v295 = vsel %vm107, %v97, 0
    %v298 = vsel %vm107, %v98, 0
    %vm300 = vcmask 1043456
    %v302 = vsel %vm300, %v101, 0
    %304 = vmatprep.subr.mxu0 0.0
    %305 = vmatpush1.msra.mxu0 %v302
    %306 = vmatprep.subr.mxu0 0.0
    %307 = vmatpush1.msra.mxu0 0.0
    %308 = vmatprep.subr.mxu0 0.0
    %309 = vmatpush1.msra.mxu0 0.0
    %310 = vmatprep.subr.mxu0 0.0
    %311 = vmatpush1.msra.mxu0 0.0
    %312 = vmatprep.subr.mxu0 0.0
    %313 = vmatpush1.msra.mxu0 0.0
    %314 = vmatprep.subr.mxu0 0.0
    %315 = vmatpush1.msra.mxu0 0.0
    %316 = vmatprep.subr.mxu0 0.0
    %317 = vmatpush1.msra.mxu0 0.0
    %318 = vmatprep.subr.mxu0 0.0
    %319 = vmatpush1.msra.mxu0 0.0
    %320 = vmatprep.subr.mxu0 0.0
    %321 = vmatpush1.msra.mxu0 0.0
    %322 = vmatprep.subr.mxu0 0.0
    %323 = vmatpush1.msra.mxu0 0.0
    %324 = vmatprep.subr.mxu0 0.0
    %325 = vmatpush1.msra.mxu0 0.0
    %326 = vmatprep.subr.mxu0 0.0
    %327 = vmatpush1.msra.mxu0 0.0
    %328 = vmatprep.subr.mxu0 0.0
    %329 = vmatpush1.msra.mxu0 0.0
    %330 = vmatprep.subr.mxu0 0.0
    %331 = vmatpush1.msra.mxu0 0.0
    %332 = vmatprep.subr.mxu0 0.0
    %333 = vmatpush1.msra.mxu0 0.0
    %334 = vmatprep.subr.mxu0 0.0
    %335 = vmatpush1.msra.mxu0 0.0
    %336 = vmatprep.subr.mxu0 0.0
    %337 = vmatpush1.msra.mxu0 0.0
    %338 = vmatprep.subr.mxu0 0.0
    %339 = vmatpush1.msra.mxu0 0.0
    %340 = vmatprep.subr.mxu0 0.0
    %341 = vmatpush1.msra.mxu0 0.0
    %342 = vmatprep.subr.mxu0 0.0
    %343 = vmatpush1.msra.mxu0 0.0
    %344 = vmatprep.subr.mxu0 0.0
    %345 = vmatpush1.msra.mxu0 0.0
    %346 = vmatprep.subr.mxu0 0.0
    %347 = vmatpush1.msra.mxu0 0.0
    %348 = vmatprep.subr.mxu0 0.0
    %349 = vmatpush1.msra.mxu0 0.0
    %350 = vmatprep.subr.mxu0 0.0
    %351 = vmatpush1.msra.mxu0 0.0
    %352 = vmatprep.subr.mxu0 0.0
    %353 = vmatpush1.msra.mxu0 0.0
    %354 = vmatprep.subr.mxu0 0.0
    %355 = vmatpush1.msra.mxu0 0.0
    %356 = vmatprep.subr.mxu0 0.0
    %357 = vmatpush1.msra.mxu0 0.0
    %358 = vmatprep.subr.mxu0 0.0
    %359 = vmatpush1.msra.mxu0 0.0
    %360 = vmatprep.subr.mxu0 0.0
    %361 = vmatpush1.msra.mxu0 0.0
    %362 = vmatprep.subr.mxu0 0.0
    %363 = vmatpush1.msra.mxu0 0.0
    %364 = vmatprep.subr.mxu0 0.0
    %365 = vmatpush1.msra.mxu0 0.0
    %366 = vmatprep.subr.mxu0 0.0
    %367 = vmatpush1.msra.mxu0 0.0
    %368 = vmatprep.mubr.f32.mxu0 0.0
    %369 = vmatmul.mubr.f32.gmra.mrb[0].mxu0 %v109
    %v370 = vpop.f32.mrb[0].mxu0
    %v371 = vadd.f32 %v106, %v370
    %v372 = vpop.f32.mrb[0].mxu0
    %373 = vmatprep.mubr.f32.mxu0 0.0
    %374 = vmatmul.mubr.f32.gmra.mrb[0].mxu0 %v112
    %v375 = vpop.f32.mrb[0].mxu0
    %v376 = vadd.f32 %v106, %v375
    %v377 = vpop.f32.mrb[0].mxu0
    %378 = vmatprep.mubr.f32.mxu0 0.0
    %379 = vmatmul.mubr.f32.gmra.mrb[0].mxu0 %v115
    %v380 = vpop.f32.mrb[0].mxu0
    %v381 = vadd.f32 %v106, %v380
    %v382 = vpop.f32.mrb[0].mxu0
    %383 = vmatprep.mubr.f32.mxu0 0.0
    %384 = vmatmul.mubr.f32.gmra.mrb[0].mxu0 %v118
    %v385 = vpop.f32.mrb[0].mxu0
    %v386 = vadd.f32 %v106, %v385
    %v387 = vpop.f32.mrb[0].mxu0
    %388 = vmatprep.mubr.f32.mxu0 0.0
    %389 = vmatmul.mubr.f32.gmra.mrb[0].mxu0 %v121
    %v390 = vpop.f32.mrb[0].mxu0
    %v391 = vadd.f32 %v106, %v390
    %v392 = vpop.f32.mrb[0].mxu0
    %393 = vmatprep.mubr.f32.mxu0 0.0
    %394 = vmatmul.mubr.f32.gmra.mrb[0].mxu0 %v124
    %v395 = vpop.f32.mrb[0].mxu0
    %v396 = vadd.f32 %v106, %v395
    %v397 = vpop.f32.mrb[0].mxu0
    %398 = vmatprep.mubr.f32.mxu0 0.0
    %399 = vmatmul.mubr.f32.gmra.mrb[0].mxu0 %v127
    %v400 = vpop.f32.mrb[0].mxu0
    %v401 = vadd.f32 %v106, %v400
    %v402 = vpop.f32.mrb[0].mxu0
    %403 = vmatprep.mubr.f32.mxu0 0.0
    %404 = vmatmul.mubr.f32.gmra.mrb[0].mxu0 %v130
    %v405 = vpop.f32.mrb[0].mxu0
    %v406 = vadd.f32 %v106, %v405
    %v407 = vpop.f32.mrb[0].mxu0
    %408 = vmatprep.mubr.f32.mxu0 0.0
    %409 = vmatmul.mubr.f32.gmra.mrb[0].mxu0 %v133
    %v410 = vpop.f32.mrb[0].mxu0
    %v411 = vadd.f32 %v106, %v410
    %v412 = vpop.f32.mrb[0].mxu0
    %413 = vmatprep.mubr.f32.mxu0 0.0
    %414 = vmatmul.mubr.f32.gmra.mrb[0].mxu0 %v136
    %v415 = vpop.f32.mrb[0].mxu0
    %v416 = vadd.f32 %v106, %v415
    %v417 = vpop.f32.mrb[0].mxu0
    %418 = vmatprep.mubr.f32.mxu0 0.0
    %419 = vmatmul.mubr.f32.gmra.mrb[0].mxu0 %v139
    %v420 = vpop.f32.mrb[0].mxu0
    %v421 = vadd.f32 %v106, %v420
    %v422 = vpop.f32.mrb[0].mxu0
    %423 = vmatprep.mubr.f32.mxu0 0.0
    %424 = vmatmul.mubr.f32.gmra.mrb[0].mxu0 %v142
    %v425 = vpop.f32.mrb[0].mxu0
    %v426 = vadd.f32 %v106, %v425
    %v427 = vpop.f32.mrb[0].mxu0
    %428 = vmatprep.mubr.f32.mxu0 0.0
    %429 = vmatmul.mubr.f32.gmra.mrb[0].mxu0 %v145
    %v430 = vpop.f32.mrb[0].mxu0
    %v431 = vadd.f32 %v106, %v430
    %v432 = vpop.f32.mrb[0].mxu0
    %433 = vmatprep.mubr.f32.mxu0 0.0
    %434 = vmatmul.mubr.f32.gmra.mrb[0].mxu0 %v148
    %v435 = vpop.f32.mrb[0].mxu0
    %v436 = vadd.f32 %v106, %v435
    %v437 = vpop.f32.mrb[0].mxu0
    %438 = vmatprep.mubr.f32.mxu0 0.0
    %439 = vmatmul.mubr.f32.gmra.mrb[0].mxu0 %v151
    %v440 = vpop.f32.mrb[0].mxu0
    %v441 = vadd.f32 %v106, %v440
    %v442 = vpop.f32.mrb[0].mxu0
    %443 = vmatprep.mubr.f32.mxu0 0.0
    %444 = vmatmul.mubr.f32.gmra.mrb[0].mxu0 %v154
    %v445 = vpop.f32.mrb[0].mxu0
    %v446 = vadd.f32 %v106, %v445
    %v447 = vpop.f32.mrb[0].mxu0
    %448 = vmatprep.mubr.f32.mxu0 0.0
    %449 = vmatmul.mubr.f32.gmra.mrb[0].mxu0 %v157
    %v450 = vpop.f32.mrb[0].mxu0
    %v451 = vadd.f32 %v106, %v450
    %v452 = vpop.f32.mrb[0].mxu0
    %453 = vmatprep.mubr.f32.mxu0 0.0
    %454 = vmatmul.mubr.f32.gmra.mrb[0].mxu0 %v160
    %v455 = vpop.f32.mrb[0].mxu0
    %v456 = vadd.f32 %v106, %v455
    %v457 = vpop.f32.mrb[0].mxu0
    %458 = vmatprep.mubr.f32.mxu0 0.0
    %459 = vmatmul.mubr.f32.gmra.mrb[0].mxu0 %v163
    %v460 = vpop.f32.mrb[0].mxu0
    %v461 = vadd.f32 %v106, %v460
    %v462 = vpop.f32.mrb[0].mxu0
    %463 = vmatprep.mubr.f32.mxu0 0.0
    %464 = vmatmul.mubr.f32.gmra.mrb[0].mxu0 %v166
    %v465 = vpop.f32.mrb[0].mxu0
    %v466 = vadd.f32 %v106, %v465
    %v467 = vpop.f32.mrb[0].mxu0
    %468 = vmatprep.mubr.f32.mxu0 0.0
    %469 = vmatmul.mubr.f32.gmra.mrb[0].mxu0 %v169
    %v470 = vpop.f32.mrb[0].mxu0
    %v471 = vadd.f32 %v106, %v470
    %v472 = vpop.f32.mrb[0].mxu0
    %473 = vmatprep.mubr.f32.mxu0 0.0
    %474 = vmatmul.mubr.f32.gmra.mrb[0].mxu0 %v172
    %v475 = vpop.f32.mrb[0].mxu0
    %v476 = vadd.f32 %v106, %v475
    %v477 = vpop.f32.mrb[0].mxu0
    %478 = vmatprep.mubr.f32.mxu0 0.0
    %479 = vmatmul.mubr.f32.gmra.mrb[0].mxu0 %v175
    %v480 = vpop.f32.mrb[0].mxu0
    %v481 = vadd.f32 %v106, %v480
    %v482 = vpop.f32.mrb[0].mxu0
    %483 = vmatprep.mubr.f32.mxu0 0.0
    %484 = vmatmul.mubr.f32.gmra.mrb[0].mxu0 %v178
    %v485 = vpop.f32.mrb[0].mxu0
    %v486 = vadd.f32 %v106, %v485
    %v487 = vpop.f32.mrb[0].mxu0
    %488 = vmatprep.mubr.f32.mxu0 0.0
    %489 = vmatmul.mubr.f32.gmra.mrb[0].mxu0 %v181
    %v490 = vpop.f32.mrb[0].mxu0
    %v491 = vadd.f32 %v106, %v490
    %v492 = vpop.f32.mrb[0].mxu0
    %493 = vmatprep.mubr.f32.mxu0 0.0
    %494 = vmatmul.mubr.f32.gmra.mrb[0].mxu0 %v184
    %v495 = vpop.f32.mrb[0].mxu0
    %v496 = vadd.f32 %v106, %v495
    %v497 = vpop.f32.mrb[0].mxu0
    %498 = vmatprep.mubr.f32.mxu0 0.0
    %499 = vmatmul.mubr.f32.gmra.mrb[0].mxu0 %v187
    %v500 = vpop.f32.mrb[0].mxu0
    %v501 = vadd.f32 %v106, %v500
    %v502 = vpop.f32.mrb[0].mxu0
    %503 = vmatprep.mubr.f32.mxu0 0.0
    %504 = vmatmul.mubr.f32.gmra.mrb[0].mxu0 %v190
    %v505 = vpop.f32.mrb[0].mxu0
    %v506 = vadd.f32 %v106, %v505
    %v507 = vpop.f32.mrb[0].mxu0
    %508 = vmatprep.mubr.f32.mxu0 0.0
    %509 = vmatmul.mubr.f32.gmra.mrb[0].mxu0 %v193
    %v510 = vpop.f32.mrb[0].mxu0
    %v511 = vadd.f32 %v106, %v510
    %v512 = vpop.f32.mrb[0].mxu0
    %513 = vmatprep.mubr.f32.mxu0 0.0
    %514 = vmatmul.mubr.f32.gmra.mrb[0].mxu0 %v196
    %v515 = vpop.f32.mrb[0].mxu0
    %v516 = vadd.f32 %v106, %v515
    %v517 = vpop.f32.mrb[0].mxu0
    %518 = vmatprep.mubr.f32.mxu0 0.0
    %519 = vmatmul.mubr.f32.gmra.mrb[0].mxu0 %v199
    %v520 = vpop.f32.mrb[0].mxu0
    %v521 = vadd.f32 %v106, %v520
    %v522 = vpop.f32.mrb[0].mxu0
    %523 = vmatprep.mubr.f32.mxu0 0.0
    %524 = vmatmul.mubr.f32.gmra.mrb[0].mxu0 %v202
    %v525 = vpop.f32.mrb[0].mxu0
    %v526 = vadd.f32 %v106, %v525
    %v527 = vpop.f32.mrb[0].mxu0
    %528 = vmatprep.mubr.f32.mxu0 0.0
    %529 = vmatmul.mubr.f32.gmra.mrb[0].mxu0 %v205
    %v530 = vpop.f32.mrb[0].mxu0
    %v531 = vadd.f32 %v106, %v530
    %v532 = vpop.f32.mrb[0].mxu0
    %533 = vmatprep.mubr.f32.mxu0 0.0
    %534 = vmatmul.mubr.f32.gmra.mrb[0].mxu0 %v208
    %v535 = vpop.f32.mrb[0].mxu0
    %v536 = vadd.f32 %v106, %v535
    %v537 = vpop.f32.mrb[0].mxu0
    %538 = vmatprep.mubr.f32.mxu0 0.0
    %539 = vmatmul.mubr.f32.gmra.mrb[0].mxu0 %v211
    %v540 = vpop.f32.mrb[0].mxu0
    %v541 = vadd.f32 %v106, %v540
    %v542 = vpop.f32.mrb[0].mxu0
    %543 = vmatprep.mubr.f32.mxu0 0.0
    %544 = vmatmul.mubr.f32.gmra.mrb[0].mxu0 %v214
    %v545 = vpop.f32.mrb[0].mxu0
    %v546 = vadd.f32 %v106, %v545
    %v547 = vpop.f32.mrb[0].mxu0
    %548 = vmatprep.mubr.f32.mxu0 0.0
    %549 = vmatmul.mubr.f32.gmra.mrb[0].mxu0 %v217
    %v550 = vpop.f32.mrb[0].mxu0
    %v551 = vadd.f32 %v106, %v550
    %v552 = vpop.f32.mrb[0].mxu0
    %553 = vmatprep.mubr.f32.mxu0 0.0
    %554 = vmatmul.mubr.f32.gmra.mrb[0].mxu0 %v220
    %v555 = vpop.f32.mrb[0].mxu0
    %v556 = vadd.f32 %v106, %v555
    %v557 = vpop.f32.mrb[0].mxu0
    %558 = vmatprep.mubr.f32.mxu0 0.0
    %559 = vmatmul.mubr.f32.gmra.mrb[0].mxu0 %v223
    %v560 = vpop.f32.mrb[0].mxu0
    %v561 = vadd.f32 %v106, %v560
    %v562 = vpop.f32.mrb[0].mxu0
    %563 = vmatprep.mubr.f32.mxu0 0.0
    %564 = vmatmul.mubr.f32.gmra.mrb[0].mxu0 %v226
    %v565 = vpop.f32.mrb[0].mxu0
    %v566 = vadd.f32 %v106, %v565
    %v567 = vpop.f32.mrb[0].mxu0
    %568 = vmatprep.mubr.f32.mxu0 0.0
    %569 = vmatmul.mubr.f32.gmra.mrb[0].mxu0 %v229
    %v570 = vpop.f32.mrb[0].mxu0
    %v571 = vadd.f32 %v106, %v570
    %v572 = vpop.f32.mrb[0].mxu0
    %573 = vmatprep.mubr.f32.mxu0 0.0
    %574 = vmatmul.mubr.f32.gmra.mrb[0].mxu0 %v232
    %v575 = vpop.f32.mrb[0].mxu0
    %v576 = vadd.f32 %v106, %v575
    %v577 = vpop.f32.mrb[0].mxu0
    %578 = vmatprep.mubr.f32.mxu0 0.0
    %579 = vmatmul.mubr.f32.gmra.mrb[0].mxu0 %v235
    %v580 = vpop.f32.mrb[0].mxu0
    %v581 = vadd.f32 %v106, %v580
    %v582 = vpop.f32.mrb[0].mxu0
    %583 = vmatprep.mubr.f32.mxu0 0.0
    %584 = vmatmul.mubr.f32.gmra.mrb[0].mxu0 %v238
    %v585 = vpop.f32.mrb[0].mxu0
    %v586 = vadd.f32 %v106, %v585
    %v587 = vpop.f32.mrb[0].mxu0
    %588 = vmatprep.mubr.f32.mxu0 0.0
    %589 = vmatmul.mubr.f32.gmra.mrb[0].mxu0 %v241
    %v590 = vpop.f32.mrb[0].mxu0
    %v591 = vadd.f32 %v106, %v590
    %v592 = vpop.f32.mrb[0].mxu0
    %593 = vmatprep.mubr.f32.mxu0 0.0
    %594 = vmatmul.mubr.f32.gmra.mrb[0].mxu0 %v244
    %v595 = vpop.f32.mrb[0].mxu0
    %v596 = vadd.f32 %v106, %v595
    %v597 = vpop.f32.mrb[0].mxu0
    %598 = vmatprep.mubr.f32.mxu0 0.0
    %599 = vmatmul.mubr.f32.gmra.mrb[0].mxu0 %v247
    %v600 = vpop.f32.mrb[0].mxu0
    %v601 = vadd.f32 %v106, %v600
    %v602 = vpop.f32.mrb[0].mxu0
    %603 = vmatprep.mubr.f32.mxu0 0.0
    %604 = vmatmul.mubr.f32.gmra.mrb[0].mxu0 %v250
    %v605 = vpop.f32.mrb[0].mxu0
    %v606 = vadd.f32 %v106, %v605
    %v607 = vpop.f32.mrb[0].mxu0
    %608 = vmatprep.mubr.f32.mxu0 0.0
    %609 = vmatmul.mubr.f32.gmra.mrb[0].mxu0 %v253
    %v610 = vpop.f32.mrb[0].mxu0
    %v611 = vadd.f32 %v106, %v610
    %v612 = vpop.f32.mrb[0].mxu0
    %613 = vmatprep.mubr.f32.mxu0 0.0
    %614 = vmatmul.mubr.f32.gmra.mrb[0].mxu0 %v256
    %v615 = vpop.f32.mrb[0].mxu0
    %v616 = vadd.f32 %v106, %v615
    %v617 = vpop.f32.mrb[0].mxu0
    %618 = vmatprep.mubr.f32.mxu0 0.0
    %619 = vmatmul.mubr.f32.gmra.mrb[0].mxu0 %v259
    %v620 = vpop.f32.mrb[0].mxu0
    %v621 = vadd.f32 %v106, %v620
    %v622 = vpop.f32.mrb[0].mxu0
    %623 = vmatprep.mubr.f32.mxu0 0.0
    %624 = vmatmul.mubr.f32.gmra.mrb[0].mxu0 %v262
    %v625 = vpop.f32.mrb[0].mxu0
    %v626 = vadd.f32 %v106, %v625
    %v627 = vpop.f32.mrb[0].mxu0
    %628 = vmatprep.mubr.f32.mxu0 0.0
    %629 = vmatmul.mubr.f32.gmra.mrb[0].mxu0 %v265
    %v630 = vpop.f32.mrb[0].mxu0
    %v631 = vadd.f32 %v106, %v630
    %v632 = vpop.f32.mrb[0].mxu0
    %633 = vmatprep.mubr.f32.mxu0 0.0
    %634 = vmatmul.mubr.f32.gmra.mrb[0].mxu0 %v268
    %v635 = vpop.f32.mrb[0].mxu0
    %v636 = vadd.f32 %v106, %v635
    %v637 = vpop.f32.mrb[0].mxu0
    %638 = vmatprep.mubr.f32.mxu0 0.0
    %639 = vmatmul.mubr.f32.gmra.mrb[0].mxu0 %v271
    %v640 = vpop.f32.mrb[0].mxu0
    %v641 = vadd.f32 %v106, %v640
    %v642 = vpop.f32.mrb[0].mxu0
    %643 = vmatprep.mubr.f32.mxu0 0.0
    %644 = vmatmul.mubr.f32.gmra.mrb[0].mxu0 %v274
    %v645 = vpop.f32.mrb[0].mxu0
    %v646 = vadd.f32 %v106, %v645
    %v647 = vpop.f32.mrb[0].mxu0
    %648 = vmatprep.mubr.f32.mxu0 0.0
    %649 = vmatmul.mubr.f32.gmra.mrb[0].mxu0 %v277
    %v650 = vpop.f32.mrb[0].mxu0
    %v651 = vadd.f32 %v106, %v650
    %v652 = vpop.f32.mrb[0].mxu0
    %653 = vmatprep.mubr.f32.mxu0 0.0
    %654 = vmatmul.mubr.f32.gmra.mrb[0].mxu0 %v280
    %v655 = vpop.f32.mrb[0].mxu0
    %v656 = vadd.f32 %v106, %v655
    %v657 = vpop.f32.mrb[0].mxu0
    %658 = vmatprep.mubr.f32.mxu0 0.0
    %659 = vmatmul.mubr.f32.gmra.mrb[0].mxu0 %v283
    %v660 = vpop.f32.mrb[0].mxu0
    %v661 = vadd.f32 %v106, %v660
    %v662 = vpop.f32.mrb[0].mxu0
    %663 = vmatprep.mubr.f32.mxu0 0.0
    %664 = vmatmul.mubr.f32.gmra.mrb[0].mxu0 %v286
    %v665 = vpop.f32.mrb[0].mxu0
    %v666 = vadd.f32 %v106, %v665
    %v667 = vpop.f32.mrb[0].mxu0
    %668 = vmatprep.mubr.f32.mxu0 0.0
    %669 = vmatmul.mubr.f32.gmra.mrb[0].mxu0 %v289
    %v670 = vpop.f32.mrb[0].mxu0
    %v671 = vadd.f32 %v106, %v670
    %v672 = vpop.f32.mrb[0].mxu0
    %673 = vmatprep.mubr.f32.mxu0 0.0
    %674 = vmatmul.mubr.f32.gmra.mrb[0].mxu0 %v292
    %v675 = vpop.f32.mrb[0].mxu0
    %v676 = vadd.f32 %v106, %v675
    %v677 = vpop.f32.mrb[0].mxu0
    %678 = vmatprep.mubr.f32.mxu0 0.0
    %679 = vmatmul.mubr.f32.gmra.mrb[0].mxu0 %v295
    %v680 = vpop.f32.mrb[0].mxu0
    %v681 = vadd.f32 %v106, %v680
    %v682 = vpop.f32.mrb[0].mxu0
    %683 = vmatprep.mubr.f32.mxu0 0.0
    %684 = vmatmul.mubr.f32.gmra.mrb[0].mxu0 %v298
    %v685 = vpop.f32.mrb[0].mxu0
    %v686 = vadd.f32 %v106, %v685
    %v687 = vpop.f32.mrb[0].mxu0
    %688 = vdwg.mxu0
    %v689 = vmax.f32 %v371, 0.0
    %v690 = vmax.f32 %v376, 0.0
    %v691 = vmax.f32 %v381, 0.0
    %v692 = vmax.f32 %v386, 0.0
    %v693 = vmax.f32 %v391, 0.0
    %v694 = vmax.f32 %v396, 0.0
    %v695 = vmax.f32 %v401, 0.0
    %v696 = vmax.f32 %v406, 0.0
    %v697 = vmax.f32 %v411, 0.0
    %v698 = vmax.f32 %v416, 0.0
    %v699 = vmax.f32 %v421, 0.0
    %v700 = vmax.f32 %v426, 0.0
    %v701 = vmax.f32 %v431, 0.0
    %v702 = vmax.f32 %v436, 0.0
    %v703 = vmax.f32 %v441, 0.0
    %v704 = vmax.f32 %v446, 0.0
    %v705 = vmax.f32 %v451, 0.0
    %v706 = vmax.f32 %v456, 0.0
    %v707 = vmax.f32 %v461, 0.0
    %v708 = vmax.f32 %v466, 0.0
    %v709 = vmax.f32 %v471, 0.0
    %v710 = vmax.f32 %v476, 0.0
    %v711 = vmax.f32 %v481, 0.0
    %v712 = vmax.f32 %v486, 0.0
    %v713 = vmax.f32 %v491, 0.0
    %v714 = vmax.f32 %v496, 0.0
    %v715 = vmax.f32 %v501, 0.0
    %v716 = vmax.f32 %v506, 0.0
    %v717 = vmax.f32 %v511, 0.0
    %v718 = vmax.f32 %v516, 0.0
    %v719 = vmax.f32 %v521, 0.0
    %v720 = vmax.f32 %v526, 0.0
    %v721 = vmax.f32 %v531, 0.0
    %v722 = vmax.f32 %v536, 0.0
    %v723 = vmax.f32 %v541, 0.0
    %v724 = vmax.f32 %v546, 0.0
    %v725 = vmax.f32 %v551, 0.0
    %v726 = vmax.f32 %v556, 0.0
    %v727 = vmax.f32 %v561, 0.0
    %v728 = vmax.f32 %v566, 0.0
    %v729 = vmax.f32 %v571, 0.0
    %v730 = vmax.f32 %v576, 0.0
    %v731 = vmax.f32 %v581, 0.0
    %v732 = vmax.f32 %v586, 0.0
    %v733 = vmax.f32 %v591, 0.0
    %v734 = vmax.f32 %v596, 0.0
    %v735 = vmax.f32 %v601, 0.0
    %v736 = vmax.f32 %v606, 0.0
    %v737 = vmax.f32 %v611, 0.0
    %v738 = vmax.f32 %v616, 0.0
    %v739 = vmax.f32 %v621, 0.0
    %v740 = vmax.f32 %v626, 0.0
    %v741 = vmax.f32 %v631, 0.0
    %v742 = vmax.f32 %v636, 0.0
    %v743 = vmax.f32 %v641, 0.0
    %v744 = vmax.f32 %v646, 0.0
    %v745 = vmax.f32 %v651, 0.0
    %v746 = vmax.f32 %v656, 0.0
    %v747 = vmax.f32 %v661, 0.0
    %v748 = vmax.f32 %v666, 0.0
    %v749 = vmax.f32 %v671, 0.0
    %v750 = vmax.f32 %v676, 0.0
    %v751 = vmax.f32 %v681, 0.0
    %v752 = vmax.f32 %v686, 0.0
    %v753 = vld [vmem:[%s2 + $0x10] sm:$0xff]
    %v754 = vld [vmem:[%s2 + $0x18] sm:$0xff]
    %v755 = vld [vmem:[%s2 + $0x20] sm:$0xff]
    %v756 = vld [vmem:[%s2 + $0x28] sm:$0xff]
    %v757 = vld [vmem:[%s2 + $0x30] sm:$0x1]
    %v758 = vlaneseq
    %v759 = vshrl.u32 %v758, 7
    %v760 = vsub.s32 0, %v759
    %v761 = vrot.slane %v757, %v760
    %vm762 = vcmask 261120
    %v764 = vsel %vm762, %v689, 0
    %v767 = vsel %vm762, %v690, 0
    %v770 = vsel %vm762, %v691, 0
    %v773 = vsel %vm762, %v692, 0
    %v776 = vsel %vm762, %v693, 0
    %v779 = vsel %vm762, %v694, 0
    %v782 = vsel %vm762, %v695, 0
    %v785 = vsel %vm762, %v696, 0
    %v788 = vsel %vm762, %v697, 0
    %v791 = vsel %vm762, %v698, 0
    %v794 = vsel %vm762, %v699, 0
    %v797 = vsel %vm762, %v700, 0
    %v800 = vsel %vm762, %v701, 0
    %v803 = vsel %vm762, %v702, 0
    %v806 = vsel %vm762, %v703, 0
    %v809 = vsel %vm762, %v704, 0
    %v812 = vsel %vm762, %v705, 0
    %v815 = vsel %vm762, %v706, 0
    %v818 = vsel %vm762, %v707, 0
    %v821 = vsel %vm762, %v708, 0
    %v824 = vsel %vm762, %v709, 0
    %v827 = vsel %vm762, %v710, 0
    %v830 = vsel %vm762, %v711, 0
    %v833 = vsel %vm762, %v712, 0
    %v836 = vsel %vm762, %v713, 0
    %v839 = vsel %vm762, %v714, 0
    %v842 = vsel %vm762, %v715, 0
    %v845 = vsel %vm762, %v716, 0
    %v848 = vsel %vm762, %v717, 0
    %v851 = vsel %vm762, %v718, 0
    %v854 = vsel %vm762, %v719, 0
    %v857 = vsel %vm762, %v720, 0
    %v860 = vsel %vm762, %v721, 0
    %v863 = vsel %vm762, %v722, 0
    %v866 = vsel %vm762, %v723, 0
    %v869 = vsel %vm762, %v724, 0
    %v872 = vsel %vm762, %v725, 0
    %v875 = vsel %vm762, %v726, 0
    %v878 = vsel %vm762, %v727, 0
    %v881 = vsel %vm762, %v728, 0
    %v884 = vsel %vm762, %v729, 0
    %v887 = vsel %vm762, %v730, 0
    %v890 = vsel %vm762, %v731, 0
    %v893 = vsel %vm762, %v732, 0
    %v896 = vsel %vm762, %v733, 0
    %v899 = vsel %vm762, %v734, 0
    %v902 = vsel %vm762, %v735, 0
    %v905 = vsel %vm762, %v736, 0
    %v908 = vsel %vm762, %v737, 0
    %v911 = vsel %vm762, %v738, 0
    %v914 = vsel %vm762, %v739, 0
    %v917 = vsel %vm762, %v740, 0
    %v920 = vsel %vm762, %v741, 0
    %v923 = vsel %vm762, %v742, 0
    %v926 = vsel %vm762, %v743, 0
    %v929 = vsel %vm762, %v744, 0
    %v932 = vsel %vm762, %v745, 0
    %v935 = vsel %vm762, %v746, 0
    %v938 = vsel %vm762, %v747, 0
    %v941 = vsel %vm762, %v748, 0
    %v944 = vsel %vm762, %v749, 0
    %v947 = vsel %vm762, %v750, 0
    %v950 = vsel %vm762, %v751, 0
    %v953 = vsel %vm762, %v752, 0
    %955 = vmatprep.subr.mxu0 0.0
    %956 = vmatpush1.msra.mxu0 %v753
    %957 = vmatprep.subr.mxu0 0.0
    %958 = vmatpush1.msra.mxu0 %v754
    %959 = vmatprep.subr.mxu0 0.0
    %960 = vmatpush1.msra.mxu0 %v755
    %961 = vmatprep.subr.mxu0 0.0
    %962 = vmatpush1.msra.mxu0 %v756
    %963 = vmatprep.subr.mxu0 0.0
    %964 = vmatpush1.msra.mxu0 0.0
    %965 = vmatprep.subr.mxu0 0.0
    %966 = vmatpush1.msra.mxu0 0.0
    %967 = vmatprep.subr.mxu0 0.0
    %968 = vmatpush1.msra.mxu0 0.0
    %969 = vmatprep.subr.mxu0 0.0
    %970 = vmatpush1.msra.mxu0 0.0
    %971 = vmatprep.subr.mxu0 0.0
    %972 = vmatpush1.msra.mxu0 0.0
    %973 = vmatprep.subr.mxu0 0.0
    %974 = vmatpush1.msra.mxu0 0.0
    %975 = vmatprep.subr.mxu0 0.0
    %976 = vmatpush1.msra.mxu0 0.0
    %977 = vmatprep.subr.mxu0 0.0
    %978 = vmatpush1.msra.mxu0 0.0
    %979 = vmatprep.subr.mxu0 0.0
    %980 = vmatpush1.msra.mxu0 0.0
    %981 = vmatprep.subr.mxu0 0.0
    %982 = vmatpush1.msra.mxu0 0.0
    %983 = vmatprep.subr.mxu0 0.0
    %984 = vmatpush1.msra.mxu0 0.0
    %985 = vmatprep.subr.mxu0 0.0
    %986 = vmatpush1.msra.mxu0 0.0
    %987 = vmatprep.subr.mxu0 0.0
    %988 = vmatpush1.msra.mxu0 0.0
    %989 = vmatprep.subr.mxu0 0.0
    %990 = vmatpush1.msra.mxu0 0.0
    %991 = vmatprep.subr.mxu0 0.0
    %992 = vmatpush1.msra.mxu0 0.0
    %993 = vmatprep.subr.mxu0 0.0
    %994 = vmatpush1.msra.mxu0 0.0
    %995 = vmatprep.subr.mxu0 0.0
    %996 = vmatpush1.msra.mxu0 0.0
    %997 = vmatprep.subr.mxu0 0.0
    %998 = vmatpush1.msra.mxu0 0.0
    %999 = vmatprep.subr.mxu0 0.0
    %1000 = vmatpush1.msra.mxu0 0.0
    %1001 = vmatprep.subr.mxu0 0.0
    %1002 = vmatpush1.msra.mxu0 0.0
    %1003 = vmatprep.subr.mxu0 0.0
    %1004 = vmatpush1.msra.mxu0 0.0
    %1005 = vmatprep.subr.mxu0 0.0
    %1006 = vmatpush1.msra.mxu0 0.0
    %1007 = vmatprep.subr.mxu0 0.0
    %1008 = vmatpush1.msra.mxu0 0.0
    %1009 = vmatprep.subr.mxu0 0.0
    %1010 = vmatpush1.msra.mxu0 0.0
    %1011 = vmatprep.subr.mxu0 0.0
    %1012 = vmatpush1.msra.mxu0 0.0
    %1013 = vmatprep.subr.mxu0 0.0
    %1014 = vmatpush1.msra.mxu0 0.0
    %1015 = vmatprep.subr.mxu0 0.0
    %1016 = vmatpush1.msra.mxu0 0.0
    %1017 = vmatprep.subr.mxu0 0.0
    %1018 = vmatpush1.msra.mxu0 0.0
    %1019 = vmatprep.mubr.f32.mxu0 0.0
    %1020 = vmatmul.mubr.f32.gmra.mrb[0].mxu0 %v764
    %v1021 = vpop.f32.mrb[0].mxu0
    %v1022 = vadd.f32 %v761, %v1021
    %v1023 = vpop.f32.mrb[0].mxu0
    %1024 = vmatprep.mubr.f32.mxu0 0.0
    %1025 = vmatmul.mubr.f32.gmra.mrb[0].mxu0 %v767
    %v1026 = vpop.f32.mrb[0].mxu0
    %v1027 = vadd.f32 %v761, %v1026
    %v1028 = vpop.f32.mrb[0].mxu0
    %1029 = vmatprep.mubr.f32.mxu0 0.0
    %1030 = vmatmul.mubr.f32.gmra.mrb[0].mxu0 %v770
    %v1031 = vpop.f32.mrb[0].mxu0
    %v1032 = vadd.f32 %v761, %v1031
    %v1033 = vpop.f32.mrb[0].mxu0
    %1034 = vmatprep.mubr.f32.mxu0 0.0
    %1035 = vmatmul.mubr.f32.gmra.mrb[0].mxu0 %v773
    %v1036 = vpop.f32.mrb[0].mxu0
    %v1037 = vadd.f32 %v761, %v1036
    %v1038 = vpop.f32.mrb[0].mxu0
    %1039 = vmatprep.mubr.f32.mxu0 0.0
    %1040 = vmatmul.mubr.f32.gmra.mrb[0].mxu0 %v776
    %v1041 = vpop.f32.mrb[0].mxu0
    %v1042 = vadd.f32 %v761, %v1041
    %v1043 = vpop.f32.mrb[0].mxu0
    %1044 = vmatprep.mubr.f32.mxu0 0.0
    %1045 = vmatmul.mubr.f32.gmra.mrb[0].mxu0 %v779
    %v1046 = vpop.f32.mrb[0].mxu0
    %v1047 = vadd.f32 %v761, %v1046
    %v1048 = vpop.f32.mrb[0].mxu0
    %1049 = vmatprep.mubr.f32.mxu0 0.0
    %1050 = vmatmul.mubr.f32.gmra.mrb[0].mxu0 %v782
    %v1051 = vpop.f32.mrb[0].mxu0
    %v1052 = vadd.f32 %v761, %v1051
    %v1053 = vpop.f32.mrb[0].mxu0
    %1054 = vmatprep.mubr.f32.mxu0 0.0
    %1055 = vmatmul.mubr.f32.gmra.mrb[0].mxu0 %v785
    %v1056 = vpop.f32.mrb[0].mxu0
    %v1057 = vadd.f32 %v761, %v1056
    %v1058 = vpop.f32.mrb[0].mxu0
    %1059 = vmatprep.mubr.f32.mxu0 0.0
    %1060 = vmatmul.mubr.f32.gmra.mrb[0].mxu0 %v788
    %v1061 = vpop.f32.mrb[0].mxu0
    %v1062 = vadd.f32 %v761, %v1061
    %v1063 = vpop.f32.mrb[0].mxu0
    %1064 = vmatprep.mubr.f32.mxu0 0.0
    %1065 = vmatmul.mubr.f32.gmra.mrb[0].mxu0 %v791
    %v1066 = vpop.f32.mrb[0].mxu0
    %v1067 = vadd.f32 %v761, %v1066
    %v1068 = vpop.f32.mrb[0].mxu0
    %1069 = vmatprep.mubr.f32.mxu0 0.0
    %1070 = vmatmul.mubr.f32.gmra.mrb[0].mxu0 %v794
    %v1071 = vpop.f32.mrb[0].mxu0
    %v1072 = vadd.f32 %v761, %v1071
    %v1073 = vpop.f32.mrb[0].mxu0
    %1074 = vmatprep.mubr.f32.mxu0 0.0
    %1075 = vmatmul.mubr.f32.gmra.mrb[0].mxu0 %v797
    %v1076 = vpop.f32.mrb[0].mxu0
    %v1077 = vadd.f32 %v761, %v1076
    %v1078 = vpop.f32.mrb[0].mxu0
    %1079 = vmatprep.mubr.f32.mxu0 0.0
    %1080 = vmatmul.mubr.f32.gmra.mrb[0].mxu0 %v800
    %v1081 = vpop.f32.mrb[0].mxu0
    %v1082 = vadd.f32 %v761, %v1081
    %v1083 = vpop.f32.mrb[0].mxu0
    %1084 = vmatprep.mubr.f32.mxu0 0.0
    %1085 = vmatmul.mubr.f32.gmra.mrb[0].mxu0 %v803
    %v1086 = vpop.f32.mrb[0].mxu0
    %v1087 = vadd.f32 %v761, %v1086
    %v1088 = vpop.f32.mrb[0].mxu0
    %1089 = vmatprep.mubr.f32.mxu0 0.0
    %1090 = vmatmul.mubr.f32.gmra.mrb[0].mxu0 %v806
    %v1091 = vpop.f32.mrb[0].mxu0
    %v1092 = vadd.f32 %v761, %v1091
    %v1093 = vpop.f32.mrb[0].mxu0
    %1094 = vmatprep.mubr.f32.mxu0 0.0
    %1095 = vmatmul.mubr.f32.gmra.mrb[0].mxu0 %v809
    %v1096 = vpop.f32.mrb[0].mxu0
    %v1097 = vadd.f32 %v761, %v1096
    %v1098 = vpop.f32.mrb[0].mxu0
    %1099 = vmatprep.mubr.f32.mxu0 0.0
    %1100 = vmatmul.mubr.f32.gmra.mrb[0].mxu0 %v812
    %v1101 = vpop.f32.mrb[0].mxu0
    %v1102 = vadd.f32 %v761, %v1101
    %v1103 = vpop.f32.mrb[0].mxu0
    %1104 = vmatprep.mubr.f32.mxu0 0.0
    %1105 = vmatmul.mubr.f32.gmra.mrb[0].mxu0 %v815
    %v1106 = vpop.f32.mrb[0].mxu0
    %v1107 = vadd.f32 %v761, %v1106
    %v1108 = vpop.f32.mrb[0].mxu0
    %1109 = vmatprep.mubr.f32.mxu0 0.0
    %1110 = vmatmul.mubr.f32.gmra.mrb[0].mxu0 %v818
    %v1111 = vpop.f32.mrb[0].mxu0
    %v1112 = vadd.f32 %v761, %v1111
    %v1113 = vpop.f32.mrb[0].mxu0
    %1114 = vmatprep.mubr.f32.mxu0 0.0
    %1115 = vmatmul.mubr.f32.gmra.mrb[0].mxu0 %v821
    %v1116 = vpop.f32.mrb[0].mxu0
    %v1117 = vadd.f32 %v761, %v1116
    %v1118 = vpop.f32.mrb[0].mxu0
    %1119 = vmatprep.mubr.f32.mxu0 0.0
    %1120 = vmatmul.mubr.f32.gmra.mrb[0].mxu0 %v824
    %v1121 = vpop.f32.mrb[0].mxu0
    %v1122 = vadd.f32 %v761, %v1121
    %v1123 = vpop.f32.mrb[0].mxu0
    %1124 = vmatprep.mubr.f32.mxu0 0.0
    %1125 = vmatmul.mubr.f32.gmra.mrb[0].mxu0 %v827
    %v1126 = vpop.f32.mrb[0].mxu0
    %v1127 = vadd.f32 %v761, %v1126
    %v1128 = vpop.f32.mrb[0].mxu0
    %1129 = vmatprep.mubr.f32.mxu0 0.0
    %1130 = vmatmul.mubr.f32.gmra.mrb[0].mxu0 %v830
    %v1131 = vpop.f32.mrb[0].mxu0
    %v1132 = vadd.f32 %v761, %v1131
    %v1133 = vpop.f32.mrb[0].mxu0
    %1134 = vmatprep.mubr.f32.mxu0 0.0
    %1135 = vmatmul.mubr.f32.gmra.mrb[0].mxu0 %v833
    %v1136 = vpop.f32.mrb[0].mxu0
    %v1137 = vadd.f32 %v761, %v1136
    %v1138 = vpop.f32.mrb[0].mxu0
    %1139 = vmatprep.mubr.f32.mxu0 0.0
    %1140 = vmatmul.mubr.f32.gmra.mrb[0].mxu0 %v836
    %v1141 = vpop.f32.mrb[0].mxu0
    %v1142 = vadd.f32 %v761, %v1141
    %v1143 = vpop.f32.mrb[0].mxu0
    %1144 = vmatprep.mubr.f32.mxu0 0.0
    %1145 = vmatmul.mubr.f32.gmra.mrb[0].mxu0 %v839
    %v1146 = vpop.f32.mrb[0].mxu0
    %v1147 = vadd.f32 %v761, %v1146
    %v1148 = vpop.f32.mrb[0].mxu0
    %1149 = vmatprep.mubr.f32.mxu0 0.0
    %1150 = vmatmul.mubr.f32.gmra.mrb[0].mxu0 %v842
    %v1151 = vpop.f32.mrb[0].mxu0
    %v1152 = vadd.f32 %v761, %v1151
    %v1153 = vpop.f32.mrb[0].mxu0
    %1154 = vmatprep.mubr.f32.mxu0 0.0
    %1155 = vmatmul.mubr.f32.gmra.mrb[0].mxu0 %v845
    %v1156 = vpop.f32.mrb[0].mxu0
    %v1157 = vadd.f32 %v761, %v1156
    %v1158 = vpop.f32.mrb[0].mxu0
    %1159 = vmatprep.mubr.f32.mxu0 0.0
    %1160 = vmatmul.mubr.f32.gmra.mrb[0].mxu0 %v848
    %v1161 = vpop.f32.mrb[0].mxu0
    %v1162 = vadd.f32 %v761, %v1161
    %v1163 = vpop.f32.mrb[0].mxu0
    %1164 = vmatprep.mubr.f32.mxu0 0.0
    %1165 = vmatmul.mubr.f32.gmra.mrb[0].mxu0 %v851
    %v1166 = vpop.f32.mrb[0].mxu0
    %v1167 = vadd.f32 %v761, %v1166
    %v1168 = vpop.f32.mrb[0].mxu0
    %1169 = vmatprep.mubr.f32.mxu0 0.0
    %1170 = vmatmul.mubr.f32.gmra.mrb[0].mxu0 %v854
    %v1171 = vpop.f32.mrb[0].mxu0
    %v1172 = vadd.f32 %v761, %v1171
    %v1173 = vpop.f32.mrb[0].mxu0
    %1174 = vmatprep.mubr.f32.mxu0 0.0
    %1175 = vmatmul.mubr.f32.gmra.mrb[0].mxu0 %v857
    %v1176 = vpop.f32.mrb[0].mxu0
    %v1177 = vadd.f32 %v761, %v1176
    %v1178 = vpop.f32.mrb[0].mxu0
    %1179 = vmatprep.mubr.f32.mxu0 0.0
    %1180 = vmatmul.mubr.f32.gmra.mrb[0].mxu0 %v860
    %v1181 = vpop.f32.mrb[0].mxu0
    %v1182 = vadd.f32 %v761, %v1181
    %v1183 = vpop.f32.mrb[0].mxu0
    %1184 = vmatprep.mubr.f32.mxu0 0.0
    %1185 = vmatmul.mubr.f32.gmra.mrb[0].mxu0 %v863
    %v1186 = vpop.f32.mrb[0].mxu0
    %v1187 = vadd.f32 %v761, %v1186
    %v1188 = vpop.f32.mrb[0].mxu0
    %1189 = vmatprep.mubr.f32.mxu0 0.0
    %1190 = vmatmul.mubr.f32.gmra.mrb[0].mxu0 %v866
    %v1191 = vpop.f32.mrb[0].mxu0
    %v1192 = vadd.f32 %v761, %v1191
    %v1193 = vpop.f32.mrb[0].mxu0
    %1194 = vmatprep.mubr.f32.mxu0 0.0
    %1195 = vmatmul.mubr.f32.gmra.mrb[0].mxu0 %v869
    %v1196 = vpop.f32.mrb[0].mxu0
    %v1197 = vadd.f32 %v761, %v1196
    %v1198 = vpop.f32.mrb[0].mxu0
    %1199 = vmatprep.mubr.f32.mxu0 0.0
    %1200 = vmatmul.mubr.f32.gmra.mrb[0].mxu0 %v872
    %v1201 = vpop.f32.mrb[0].mxu0
    %v1202 = vadd.f32 %v761, %v1201
    %v1203 = vpop.f32.mrb[0].mxu0
    %1204 = vmatprep.mubr.f32.mxu0 0.0
    %1205 = vmatmul.mubr.f32.gmra.mrb[0].mxu0 %v875
    %v1206 = vpop.f32.mrb[0].mxu0
    %v1207 = vadd.f32 %v761, %v1206
    %v1208 = vpop.f32.mrb[0].mxu0
    %1209 = vmatprep.mubr.f32.mxu0 0.0
    %1210 = vmatmul.mubr.f32.gmra.mrb[0].mxu0 %v878
    %v1211 = vpop.f32.mrb[0].mxu0
    %v1212 = vadd.f32 %v761, %v1211
    %v1213 = vpop.f32.mrb[0].mxu0
    %1214 = vmatprep.mubr.f32.mxu0 0.0
    %1215 = vmatmul.mubr.f32.gmra.mrb[0].mxu0 %v881
    %v1216 = vpop.f32.mrb[0].mxu0
    %v1217 = vadd.f32 %v761, %v1216
    %v1218 = vpop.f32.mrb[0].mxu0
    %1219 = vmatprep.mubr.f32.mxu0 0.0
    %1220 = vmatmul.mubr.f32.gmra.mrb[0].mxu0 %v884
    %v1221 = vpop.f32.mrb[0].mxu0
    %v1222 = vadd.f32 %v761, %v1221
    %v1223 = vpop.f32.mrb[0].mxu0
    %1224 = vmatprep.mubr.f32.mxu0 0.0
    %1225 = vmatmul.mubr.f32.gmra.mrb[0].mxu0 %v887
    %v1226 = vpop.f32.mrb[0].mxu0
    %v1227 = vadd.f32 %v761, %v1226
    %v1228 = vpop.f32.mrb[0].mxu0
    %1229 = vmatprep.mubr.f32.mxu0 0.0
    %1230 = vmatmul.mubr.f32.gmra.mrb[0].mxu0 %v890
    %v1231 = vpop.f32.mrb[0].mxu0
    %v1232 = vadd.f32 %v761, %v1231
    %v1233 = vpop.f32.mrb[0].mxu0
    %1234 = vmatprep.mubr.f32.mxu0 0.0
    %1235 = vmatmul.mubr.f32.gmra.mrb[0].mxu0 %v893
    %v1236 = vpop.f32.mrb[0].mxu0
    %v1237 = vadd.f32 %v761, %v1236
    %v1238 = vpop.f32.mrb[0].mxu0
    %1239 = vmatprep.mubr.f32.mxu0 0.0
    %1240 = vmatmul.mubr.f32.gmra.mrb[0].mxu0 %v896
    %v1241 = vpop.f32.mrb[0].mxu0
    %v1242 = vadd.f32 %v761, %v1241
    %v1243 = vpop.f32.mrb[0].mxu0
    %1244 = vmatprep.mubr.f32.mxu0 0.0
    %1245 = vmatmul.mubr.f32.gmra.mrb[0].mxu0 %v899
    %v1246 = vpop.f32.mrb[0].mxu0
    %v1247 = vadd.f32 %v761, %v1246
    %v1248 = vpop.f32.mrb[0].mxu0
    %1249 = vmatprep.mubr.f32.mxu0 0.0
    %1250 = vmatmul.mubr.f32.gmra.mrb[0].mxu0 %v902
    %v1251 = vpop.f32.mrb[0].mxu0
    %v1252 = vadd.f32 %v761, %v1251
    %v1253 = vpop.f32.mrb[0].mxu0
    %1254 = vmatprep.mubr.f32.mxu0 0.0
    %1255 = vmatmul.mubr.f32.gmra.mrb[0].mxu0 %v905
    %v1256 = vpop.f32.mrb[0].mxu0
    %v1257 = vadd.f32 %v761, %v1256
    %v1258 = vpop.f32.mrb[0].mxu0
    %1259 = vmatprep.mubr.f32.mxu0 0.0
    %1260 = vmatmul.mubr.f32.gmra.mrb[0].mxu0 %v908
    %v1261 = vpop.f32.mrb[0].mxu0
    %v1262 = vadd.f32 %v761, %v1261
    %v1263 = vpop.f32.mrb[0].mxu0
    %1264 = vmatprep.mubr.f32.mxu0 0.0
    %1265 = vmatmul.mubr.f32.gmra.mrb[0].mxu0 %v911
    %v1266 = vpop.f32.mrb[0].mxu0
    %v1267 = vadd.f32 %v761, %v1266
    %v1268 = vpop.f32.mrb[0].mxu0
    %1269 = vmatprep.mubr.f32.mxu0 0.0
    %1270 = vmatmul.mubr.f32.gmra.mrb[0].mxu0 %v914
    %v1271 = vpop.f32.mrb[0].mxu0
    %v1272 = vadd.f32 %v761, %v1271
    %v1273 = vpop.f32.mrb[0].mxu0
    %1274 = vmatprep.mubr.f32.mxu0 0.0
    %1275 = vmatmul.mubr.f32.gmra.mrb[0].mxu0 %v917
    %v1276 = vpop.f32.mrb[0].mxu0
    %v1277 = vadd.f32 %v761, %v1276
    %v1278 = vpop.f32.mrb[0].mxu0
    %1279 = vmatprep.mubr.f32.mxu0 0.0
    %1280 = vmatmul.mubr.f32.gmra.mrb[0].mxu0 %v920
    %v1281 = vpop.f32.mrb[0].mxu0
    %v1282 = vadd.f32 %v761, %v1281
    %v1283 = vpop.f32.mrb[0].mxu0
    %1284 = vmatprep.mubr.f32.mxu0 0.0
    %1285 = vmatmul.mubr.f32.gmra.mrb[0].mxu0 %v923
    %v1286 = vpop.f32.mrb[0].mxu0
    %v1287 = vadd.f32 %v761, %v1286
    %v1288 = vpop.f32.mrb[0].mxu0
    %1289 = vmatprep.mubr.f32.mxu0 0.0
    %1290 = vmatmul.mubr.f32.gmra.mrb[0].mxu0 %v926
    %v1291 = vpop.f32.mrb[0].mxu0
    %v1292 = vadd.f32 %v761, %v1291
    %v1293 = vpop.f32.mrb[0].mxu0
    %1294 = vmatprep.mubr.f32.mxu0 0.0
    %1295 = vmatmul.mubr.f32.gmra.mrb[0].mxu0 %v929
    %v1296 = vpop.f32.mrb[0].mxu0
    %v1297 = vadd.f32 %v761, %v1296
    %v1298 = vpop.f32.mrb[0].mxu0
    %1299 = vmatprep.mubr.f32.mxu0 0.0
    %1300 = vmatmul.mubr.f32.gmra.mrb[0].mxu0 %v932
    %v1301 = vpop.f32.mrb[0].mxu0
    %v1302 = vadd.f32 %v761, %v1301
    %v1303 = vpop.f32.mrb[0].mxu0
    %1304 = vmatprep.mubr.f32.mxu0 0.0
    %1305 = vmatmul.mubr.f32.gmra.mrb[0].mxu0 %v935
    %v1306 = vpop.f32.mrb[0].mxu0
    %v1307 = vadd.f32 %v761, %v1306
    %v1308 = vpop.f32.mrb[0].mxu0
    %1309 = vmatprep.mubr.f32.mxu0 0.0
    %1310 = vmatmul.mubr.f32.gmra.mrb[0].mxu0 %v938
    %v1311 = vpop.f32.mrb[0].mxu0
    %v1312 = vadd.f32 %v761, %v1311
    %v1313 = vpop.f32.mrb[0].mxu0
    %1314 = vmatprep.mubr.f32.mxu0 0.0
    %1315 = vmatmul.mubr.f32.gmra.mrb[0].mxu0 %v941
    %v1316 = vpop.f32.mrb[0].mxu0
    %v1317 = vadd.f32 %v761, %v1316
    %v1318 = vpop.f32.mrb[0].mxu0
    %1319 = vmatprep.mubr.f32.mxu0 0.0
    %1320 = vmatmul.mubr.f32.gmra.mrb[0].mxu0 %v944
    %v1321 = vpop.f32.mrb[0].mxu0
    %v1322 = vadd.f32 %v761, %v1321
    %v1323 = vpop.f32.mrb[0].mxu0
    %1324 = vmatprep.mubr.f32.mxu0 0.0
    %1325 = vmatmul.mubr.f32.gmra.mrb[0].mxu0 %v947
    %v1326 = vpop.f32.mrb[0].mxu0
    %v1327 = vadd.f32 %v761, %v1326
    %v1328 = vpop.f32.mrb[0].mxu0
    %1329 = vmatprep.mubr.f32.mxu0 0.0
    %1330 = vmatmul.mubr.f32.gmra.mrb[0].mxu0 %v950
    %v1331 = vpop.f32.mrb[0].mxu0
    %v1332 = vadd.f32 %v761, %v1331
    %v1333 = vpop.f32.mrb[0].mxu0
    %1334 = vmatprep.mubr.f32.mxu0 0.0
    %1335 = vmatmul.mubr.f32.gmra.mrb[0].mxu0 %v953
    %v1336 = vpop.f32.mrb[0].mxu0
    %v1337 = vadd.f32 %v761, %v1336
    %v1338 = vpop.f32.mrb[0].mxu0
    %1339 = vdwg.mxu0
    %v1340 = vmax.f32 %v1022, 0.0
    %v1341 = vmax.f32 %v1027, 0.0
    %v1342 = vmax.f32 %v1032, 0.0
    %v1343 = vmax.f32 %v1037, 0.0
    %v1344 = vmax.f32 %v1042, 0.0
    %v1345 = vmax.f32 %v1047, 0.0
    %v1346 = vmax.f32 %v1052, 0.0
    %v1347 = vmax.f32 %v1057, 0.0
    %v1348 = vmax.f32 %v1062, 0.0
    %v1349 = vmax.f32 %v1067, 0.0
    %v1350 = vmax.f32 %v1072, 0.0
    %v1351 = vmax.f32 %v1077, 0.0
    %v1352 = vmax.f32 %v1082, 0.0
    %v1353 = vmax.f32 %v1087, 0.0
    %v1354 = vmax.f32 %v1092, 0.0
    %v1355 = vmax.f32 %v1097, 0.0
    %v1356 = vmax.f32 %v1102, 0.0
    %v1357 = vmax.f32 %v1107, 0.0
    %v1358 = vmax.f32 %v1112, 0.0
    %v1359 = vmax.f32 %v1117, 0.0
    %v1360 = vmax.f32 %v1122, 0.0
    %v1361 = vmax.f32 %v1127, 0.0
    %v1362 = vmax.f32 %v1132, 0.0
    %v1363 = vmax.f32 %v1137, 0.0
    %v1364 = vmax.f32 %v1142, 0.0
    %v1365 = vmax.f32 %v1147, 0.0
    %v1366 = vmax.f32 %v1152, 0.0
    %v1367 = vmax.f32 %v1157, 0.0
    %v1368 = vmax.f32 %v1162, 0.0
    %v1369 = vmax.f32 %v1167, 0.0
    %v1370 = vmax.f32 %v1172, 0.0
    %v1371 = vmax.f32 %v1177, 0.0
    %v1372 = vmax.f32 %v1182, 0.0
    %v1373 = vmax.f32 %v1187, 0.0
    %v1374 = vmax.f32 %v1192, 0.0
    %v1375 = vmax.f32 %v1197, 0.0
    %v1376 = vmax.f32 %v1202, 0.0
    %v1377 = vmax.f32 %v1207, 0.0
    %v1378 = vmax.f32 %v1212, 0.0
    %v1379 = vmax.f32 %v1217, 0.0
    %v1380 = vmax.f32 %v1222, 0.0
    %v1381 = vmax.f32 %v1227, 0.0
    %v1382 = vmax.f32 %v1232, 0.0
    %v1383 = vmax.f32 %v1237, 0.0
    %v1384 = vmax.f32 %v1242, 0.0
    %v1385 = vmax.f32 %v1247, 0.0
    %v1386 = vmax.f32 %v1252, 0.0
    %v1387 = vmax.f32 %v1257, 0.0
    %v1388 = vmax.f32 %v1262, 0.0
    %v1389 = vmax.f32 %v1267, 0.0
    %v1390 = vmax.f32 %v1272, 0.0
    %v1391 = vmax.f32 %v1277, 0.0
    %v1392 = vmax.f32 %v1282, 0.0
    %v1393 = vmax.f32 %v1287, 0.0
    %v1394 = vmax.f32 %v1292, 0.0
    %v1395 = vmax.f32 %v1297, 0.0
    %v1396 = vmax.f32 %v1302, 0.0
    %v1397 = vmax.f32 %v1307, 0.0
    %v1398 = vmax.f32 %v1312, 0.0
    %v1399 = vmax.f32 %v1317, 0.0
    %v1400 = vmax.f32 %v1322, 0.0
    %v1401 = vmax.f32 %v1327, 0.0
    %v1402 = vmax.f32 %v1332, 0.0
    %v1403 = vmax.f32 %v1337, 0.0
    %1436 = vrot.lane.b32.xlu0 %v1340, 112
    %v1437 = vpop.permute.xlu0 %1436
    %1438 = vrot.lane.b32.xlu0 %v1341, 112
    %v1439 = vpop.permute.xlu0 %1438
    %1440 = vrot.lane.b32.xlu0 %v1342, 112
    %v1441 = vpop.permute.xlu0 %1440
    %1442 = vrot.lane.b32.xlu0 %v1343, 112
    %v1443 = vpop.permute.xlu0 %1442
    %1444 = vrot.lane.b32.xlu0 %v1344, 112
    %v1445 = vpop.permute.xlu0 %1444
    %1446 = vrot.lane.b32.xlu0 %v1345, 112
    %v1447 = vpop.permute.xlu0 %1446
    %1448 = vrot.lane.b32.xlu0 %v1346, 112
    %v1449 = vpop.permute.xlu0 %1448
    %1450 = vrot.lane.b32.xlu0 %v1347, 112
    %v1451 = vpop.permute.xlu0 %1450
    %1452 = vrot.lane.b32.xlu0 %v1348, 112
    %v1453 = vpop.permute.xlu0 %1452
    %1454 = vrot.lane.b32.xlu0 %v1349, 112
    %v1455 = vpop.permute.xlu0 %1454
    %1456 = vrot.lane.b32.xlu0 %v1350, 112
    %v1457 = vpop.permute.xlu0 %1456
    %1458 = vrot.lane.b32.xlu0 %v1351, 112
    %v1459 = vpop.permute.xlu0 %1458
    %1460 = vrot.lane.b32.xlu0 %v1352, 112
    %v1461 = vpop.permute.xlu0 %1460
    %1462 = vrot.lane.b32.xlu0 %v1353, 112
    %v1463 = vpop.permute.xlu0 %1462
    %1464 = vrot.lane.b32.xlu0 %v1354, 112
    %v1465 = vpop.permute.xlu0 %1464
    %1466 = vrot.lane.b32.xlu0 %v1355, 112
    %v1467 = vpop.permute.xlu0 %1466
    %1468 = vrot.lane.b32.xlu0 %v1356, 112
    %v1469 = vpop.permute.xlu0 %1468
    %1470 = vrot.lane.b32.xlu0 %v1357, 112
    %v1471 = vpop.permute.xlu0 %1470
    %1472 = vrot.lane.b32.xlu0 %v1358, 112
    %v1473 = vpop.permute.xlu0 %1472
    %1474 = vrot.lane.b32.xlu0 %v1359, 112
    %v1475 = vpop.permute.xlu0 %1474
    %1476 = vrot.lane.b32.xlu0 %v1360, 112
    %v1477 = vpop.permute.xlu0 %1476
    %1478 = vrot.lane.b32.xlu0 %v1361, 112
    %v1479 = vpop.permute.xlu0 %1478
    %1480 = vrot.lane.b32.xlu0 %v1362, 112
    %v1481 = vpop.permute.xlu0 %1480
    %1482 = vrot.lane.b32.xlu0 %v1363, 112
    %v1483 = vpop.permute.xlu0 %1482
    %1484 = vrot.lane.b32.xlu0 %v1364, 112
    %v1485 = vpop.permute.xlu0 %1484
    %1486 = vrot.lane.b32.xlu0 %v1365, 112
    %v1487 = vpop.permute.xlu0 %1486
    %1488 = vrot.lane.b32.xlu0 %v1366, 112
    %v1489 = vpop.permute.xlu0 %1488
    %1490 = vrot.lane.b32.xlu0 %v1367, 112
    %v1491 = vpop.permute.xlu0 %1490
    %1492 = vrot.lane.b32.xlu0 %v1368, 112
    %v1493 = vpop.permute.xlu0 %1492
    %1494 = vrot.lane.b32.xlu0 %v1369, 112
    %v1495 = vpop.permute.xlu0 %1494
    %1496 = vrot.lane.b32.xlu0 %v1370, 112
    %v1497 = vpop.permute.xlu0 %1496
    %1498 = vrot.lane.b32.xlu0 %v1371, 112
    %v1499 = vpop.permute.xlu0 %1498
    %vm1500 = vcmask 130048
    %v1501 = vsel %vm1500, %v1437, 0
    %v1503 = vsel %vm1500, %v1439, 0
    %v1505 = vsel %vm1500, %v1441, 0
    %v1507 = vsel %vm1500, %v1443, 0
    %v1509 = vsel %vm1500, %v1445, 0
    %v1511 = vsel %vm1500, %v1447, 0
    %v1513 = vsel %vm1500, %v1449, 0
    %v1515 = vsel %vm1500, %v1451, 0
    %v1517 = vsel %vm1500, %v1453, 0
    %v1519 = vsel %vm1500, %v1455, 0
    %v1521 = vsel %vm1500, %v1457, 0
    %v1523 = vsel %vm1500, %v1459, 0
    %v1525 = vsel %vm1500, %v1461, 0
    %v1527 = vsel %vm1500, %v1463, 0
    %v1529 = vsel %vm1500, %v1465, 0
    %v1531 = vsel %vm1500, %v1467, 0
    %v1533 = vsel %vm1500, %v1469, 0
    %v1535 = vsel %vm1500, %v1471, 0
    %v1537 = vsel %vm1500, %v1473, 0
    %v1539 = vsel %vm1500, %v1475, 0
    %v1541 = vsel %vm1500, %v1477, 0
    %v1543 = vsel %vm1500, %v1479, 0
    %v1545 = vsel %vm1500, %v1481, 0
    %v1547 = vsel %vm1500, %v1483, 0
    %v1549 = vsel %vm1500, %v1485, 0
    %v1551 = vsel %vm1500, %v1487, 0
    %v1553 = vsel %vm1500, %v1489, 0
    %v1555 = vsel %vm1500, %v1491, 0
    %v1557 = vsel %vm1500, %v1493, 0
    %v1559 = vsel %vm1500, %v1495, 0
    %v1561 = vsel %vm1500, %v1497, 0
    %v1563 = vsel %vm1500, %v1499, 0
    %1565 = vmatprep.subr.mxu0 %v32
    %1566 = vmatpush1.msra.mxu0 %v31
    %1567 = vmatprep.subr.mxu0 %v34
    %1568 = vmatpush1.msra.mxu0 %v33
    %1569 = vmatprep.subr.mxu0 0.0
    %1570 = vmatpush1.msra.mxu0 0.0
    %1571 = vmatprep.subr.mxu0 0.0
    %1572 = vmatpush1.msra.mxu0 0.0
    %1573 = vmatprep.subr.mxu0 0.0
    %1574 = vmatpush1.msra.mxu0 0.0
    %1575 = vmatprep.subr.mxu0 0.0
    %1576 = vmatpush1.msra.mxu0 0.0
    %1577 = vmatprep.subr.mxu0 0.0
    %1578 = vmatpush1.msra.mxu0 0.0
    %1579 = vmatprep.subr.mxu0 0.0
    %1580 = vmatpush1.msra.mxu0 0.0
    %1581 = vmatprep.subr.mxu0 0.0
    %1582 = vmatpush1.msra.mxu0 0.0
    %1583 = vmatprep.subr.mxu0 0.0
    %1584 = vmatpush1.msra.mxu0 0.0
    %1585 = vmatprep.subr.mxu0 0.0
    %1586 = vmatpush1.msra.mxu0 0.0
    %1587 = vmatprep.subr.mxu0 0.0
    %1588 = vmatpush1.msra.mxu0 0.0
    %1589 = vmatprep.subr.mxu0 0.0
    %1590 = vmatpush1.msra.mxu0 0.0
    %1591 = vmatprep.subr.mxu0 0.0
    %1592 = vmatpush1.msra.mxu0 0.0
    %1593 = vmatprep.subr.mxu0 0.0
    %1594 = vmatpush1.msra.mxu0 0.0
    %1595 = vmatprep.subr.mxu0 0.0
    %1596 = vmatpush1.msra.mxu0 0.0
    %1597 = vmatprep.subr.mxu0 0.0
    %1598 = vmatpush1.msra.mxu0 0.0
    %1599 = vmatprep.subr.mxu0 0.0
    %1600 = vmatpush1.msra.mxu0 0.0
    %1601 = vmatprep.subr.mxu0 0.0
    %1602 = vmatpush1.msra.mxu0 0.0
    %1603 = vmatprep.subr.mxu0 0.0
    %1604 = vmatpush1.msra.mxu0 0.0
    %1605 = vmatprep.subr.mxu0 0.0
    %1606 = vmatpush1.msra.mxu0 0.0
    %1607 = vmatprep.subr.mxu0 0.0
    %1608 = vmatpush1.msra.mxu0 0.0
    %1609 = vmatprep.subr.mxu0 0.0
    %1610 = vmatpush1.msra.mxu0 0.0
    %1611 = vmatprep.subr.mxu0 0.0
    %1612 = vmatpush1.msra.mxu0 0.0
    %1613 = vmatprep.subr.mxu0 0.0
    %1614 = vmatpush1.msra.mxu0 0.0
    %1615 = vmatprep.subr.mxu0 0.0
    %1616 = vmatpush1.msra.mxu0 0.0
    %1617 = vmatprep.subr.mxu0 0.0
    %1618 = vmatpush1.msra.mxu0 0.0
    %1619 = vmatprep.subr.mxu0 0.0
    %1620 = vmatpush1.msra.mxu0 0.0
    %1621 = vmatprep.subr.mxu0 0.0
    %1622 = vmatpush1.msra.mxu0 0.0
    %1623 = vmatprep.subr.mxu0 0.0
    %1624 = vmatpush1.msra.mxu0 0.0
    %1625 = vmatprep.subr.mxu0 0.0
    %1626 = vmatpush1.msra.mxu0 0.0
    %1627 = vmatprep.subr.mxu0 0.0
    %1628 = vmatpush1.msra.mxu0 0.0
    %1629 = vmatprep.mubr.f32.mxu0 0.0
    %1630 = vmatmul.mubr.f32.gmra.mrb[0].mxu0 %v1501
    %v1631 = vpop.f32.mrb[0].mxu0
    %v1632 = vadd.f32 0.0, %v1631
    %v1633 = vpop.f32.mrb[0].mxu0
    %v1634 = vadd.f32 0.0, %v1633
    %1635 = vmatprep.mubr.f32.mxu0 0.0
    %1636 = vmatmul.mubr.f32.gmra.mrb[0].mxu0 %v1503
    %v1637 = vpop.f32.mrb[0].mxu0
    %v1638 = vadd.f32 0.0, %v1637
    %v1639 = vpop.f32.mrb[0].mxu0
    %v1640 = vadd.f32 0.0, %v1639
    %1641 = vmatprep.mubr.f32.mxu0 0.0
    %1642 = vmatmul.mubr.f32.gmra.mrb[0].mxu0 %v1505
    %v1643 = vpop.f32.mrb[0].mxu0
    %v1644 = vadd.f32 0.0, %v1643
    %v1645 = vpop.f32.mrb[0].mxu0
    %v1646 = vadd.f32 0.0, %v1645
    %1647 = vmatprep.mubr.f32.mxu0 0.0
    %1648 = vmatmul.mubr.f32.gmra.mrb[0].mxu0 %v1507
    %v1649 = vpop.f32.mrb[0].mxu0
    %v1650 = vadd.f32 0.0, %v1649
    %v1651 = vpop.f32.mrb[0].mxu0
    %v1652 = vadd.f32 0.0, %v1651
    %1653 = vmatprep.mubr.f32.mxu0 0.0
    %1654 = vmatmul.mubr.f32.gmra.mrb[0].mxu0 %v1509
    %v1655 = vpop.f32.mrb[0].mxu0
    %v1656 = vadd.f32 0.0, %v1655
    %v1657 = vpop.f32.mrb[0].mxu0
    %v1658 = vadd.f32 0.0, %v1657
    %1659 = vmatprep.mubr.f32.mxu0 0.0
    %1660 = vmatmul.mubr.f32.gmra.mrb[0].mxu0 %v1511
    %v1661 = vpop.f32.mrb[0].mxu0
    %v1662 = vadd.f32 0.0, %v1661
    %v1663 = vpop.f32.mrb[0].mxu0
    %v1664 = vadd.f32 0.0, %v1663
    %1665 = vmatprep.mubr.f32.mxu0 0.0
    %1666 = vmatmul.mubr.f32.gmra.mrb[0].mxu0 %v1513
    %v1667 = vpop.f32.mrb[0].mxu0
    %v1668 = vadd.f32 0.0, %v1667
    %v1669 = vpop.f32.mrb[0].mxu0
    %v1670 = vadd.f32 0.0, %v1669
    %1671 = vmatprep.mubr.f32.mxu0 0.0
    %1672 = vmatmul.mubr.f32.gmra.mrb[0].mxu0 %v1515
    %v1673 = vpop.f32.mrb[0].mxu0
    %v1674 = vadd.f32 0.0, %v1673
    %v1675 = vpop.f32.mrb[0].mxu0
    %v1676 = vadd.f32 0.0, %v1675
    %1677 = vmatprep.mubr.f32.mxu0 0.0
    %1678 = vmatmul.mubr.f32.gmra.mrb[0].mxu0 %v1517
    %v1679 = vpop.f32.mrb[0].mxu0
    %v1680 = vadd.f32 0.0, %v1679
    %v1681 = vpop.f32.mrb[0].mxu0
    %v1682 = vadd.f32 0.0, %v1681
    %1683 = vmatprep.mubr.f32.mxu0 0.0
    %1684 = vmatmul.mubr.f32.gmra.mrb[0].mxu0 %v1519
    %v1685 = vpop.f32.mrb[0].mxu0
    %v1686 = vadd.f32 0.0, %v1685
    %v1687 = vpop.f32.mrb[0].mxu0
    %v1688 = vadd.f32 0.0, %v1687
    %1689 = vmatprep.mubr.f32.mxu0 0.0
    %1690 = vmatmul.mubr.f32.gmra.mrb[0].mxu0 %v1521
    %v1691 = vpop.f32.mrb[0].mxu0
    %v1692 = vadd.f32 0.0, %v1691
    %v1693 = vpop.f32.mrb[0].mxu0
    %v1694 = vadd.f32 0.0, %v1693
    %1695 = vmatprep.mubr.f32.mxu0 0.0
    %1696 = vmatmul.mubr.f32.gmra.mrb[0].mxu0 %v1523
    %v1697 = vpop.f32.mrb[0].mxu0
    %v1698 = vadd.f32 0.0, %v1697
    %v1699 = vpop.f32.mrb[0].mxu0
    %v1700 = vadd.f32 0.0, %v1699
    %1701 = vmatprep.mubr.f32.mxu0 0.0
    %1702 = vmatmul.mubr.f32.gmra.mrb[0].mxu0 %v1525
    %v1703 = vpop.f32.mrb[0].mxu0
    %v1704 = vadd.f32 0.0, %v1703
    %v1705 = vpop.f32.mrb[0].mxu0
    %v1706 = vadd.f32 0.0, %v1705
    %1707 = vmatprep.mubr.f32.mxu0 0.0
    %1708 = vmatmul.mubr.f32.gmra.mrb[0].mxu0 %v1527
    %v1709 = vpop.f32.mrb[0].mxu0
    %v1710 = vadd.f32 0.0, %v1709
    %v1711 = vpop.f32.mrb[0].mxu0
    %v1712 = vadd.f32 0.0, %v1711
    %1713 = vmatprep.mubr.f32.mxu0 0.0
    %1714 = vmatmul.mubr.f32.gmra.mrb[0].mxu0 %v1529
    %v1715 = vpop.f32.mrb[0].mxu0
    %v1716 = vadd.f32 0.0, %v1715
    %v1717 = vpop.f32.mrb[0].mxu0
    %v1718 = vadd.f32 0.0, %v1717
    %1719 = vmatprep.mubr.f32.mxu0 0.0
    %1720 = vmatmul.mubr.f32.gmra.mrb[0].mxu0 %v1531
    %v1721 = vpop.f32.mrb[0].mxu0
    %v1722 = vadd.f32 0.0, %v1721
    %v1723 = vpop.f32.mrb[0].mxu0
    %v1724 = vadd.f32 0.0, %v1723
    %1725 = vmatprep.mubr.f32.mxu0 0.0
    %1726 = vmatmul.mubr.f32.gmra.mrb[0].mxu0 %v1533
    %v1727 = vpop.f32.mrb[0].mxu0
    %v1728 = vadd.f32 0.0, %v1727
    %v1729 = vpop.f32.mrb[0].mxu0
    %v1730 = vadd.f32 0.0, %v1729
    %1731 = vmatprep.mubr.f32.mxu0 0.0
    %1732 = vmatmul.mubr.f32.gmra.mrb[0].mxu0 %v1535
    %v1733 = vpop.f32.mrb[0].mxu0
    %v1734 = vadd.f32 0.0, %v1733
    %v1735 = vpop.f32.mrb[0].mxu0
    %v1736 = vadd.f32 0.0, %v1735
    %1737 = vmatprep.mubr.f32.mxu0 0.0
    %1738 = vmatmul.mubr.f32.gmra.mrb[0].mxu0 %v1537
    %v1739 = vpop.f32.mrb[0].mxu0
    %v1740 = vadd.f32 0.0, %v1739
    %v1741 = vpop.f32.mrb[0].mxu0
    %v1742 = vadd.f32 0.0, %v1741
    %1743 = vmatprep.mubr.f32.mxu0 0.0
    %1744 = vmatmul.mubr.f32.gmra.mrb[0].mxu0 %v1539
    %v1745 = vpop.f32.mrb[0].mxu0
    %v1746 = vadd.f32 0.0, %v1745
    %v1747 = vpop.f32.mrb[0].mxu0
    %v1748 = vadd.f32 0.0, %v1747
    %1749 = vmatprep.mubr.f32.mxu0 0.0
    %1750 = vmatmul.mubr.f32.gmra.mrb[0].mxu0 %v1541
    %v1751 = vpop.f32.mrb[0].mxu0
    %v1752 = vadd.f32 0.0, %v1751
    %v1753 = vpop.f32.mrb[0].mxu0
    %v1754 = vadd.f32 0.0, %v1753
    %1755 = vmatprep.mubr.f32.mxu0 0.0
    %1756 = vmatmul.mubr.f32.gmra.mrb[0].mxu0 %v1543
    %v1757 = vpop.f32.mrb[0].mxu0
    %v1758 = vadd.f32 0.0, %v1757
    %v1759 = vpop.f32.mrb[0].mxu0
    %v1760 = vadd.f32 0.0, %v1759
    %1761 = vmatprep.mubr.f32.mxu0 0.0
    %1762 = vmatmul.mubr.f32.gmra.mrb[0].mxu0 %v1545
    %v1763 = vpop.f32.mrb[0].mxu0
    %v1764 = vadd.f32 0.0, %v1763
    %v1765 = vpop.f32.mrb[0].mxu0
    %v1766 = vadd.f32 0.0, %v1765
    %1767 = vmatprep.mubr.f32.mxu0 0.0
    %1768 = vmatmul.mubr.f32.gmra.mrb[0].mxu0 %v1547
    %v1769 = vpop.f32.mrb[0].mxu0
    %v1770 = vadd.f32 0.0, %v1769
    %v1771 = vpop.f32.mrb[0].mxu0
    %v1772 = vadd.f32 0.0, %v1771
    %1773 = vmatprep.mubr.f32.mxu0 0.0
    %1774 = vmatmul.mubr.f32.gmra.mrb[0].mxu0 %v1549
    %v1775 = vpop.f32.mrb[0].mxu0
    %v1776 = vadd.f32 0.0, %v1775
    %v1777 = vpop.f32.mrb[0].mxu0
    %v1778 = vadd.f32 0.0, %v1777
    %1779 = vmatprep.mubr.f32.mxu0 0.0
    %1780 = vmatmul.mubr.f32.gmra.mrb[0].mxu0 %v1551
    %v1781 = vpop.f32.mrb[0].mxu0
    %v1782 = vadd.f32 0.0, %v1781
    %v1783 = vpop.f32.mrb[0].mxu0
    %v1784 = vadd.f32 0.0, %v1783
    %1785 = vmatprep.mubr.f32.mxu0 0.0
    %1786 = vmatmul.mubr.f32.gmra.mrb[0].mxu0 %v1553
    %v1787 = vpop.f32.mrb[0].mxu0
    %v1788 = vadd.f32 0.0, %v1787
    %v1789 = vpop.f32.mrb[0].mxu0
    %v1790 = vadd.f32 0.0, %v1789
    %1791 = vmatprep.mubr.f32.mxu0 0.0
    %1792 = vmatmul.mubr.f32.gmra.mrb[0].mxu0 %v1555
    %v1793 = vpop.f32.mrb[0].mxu0
    %v1794 = vadd.f32 0.0, %v1793
    %v1795 = vpop.f32.mrb[0].mxu0
    %v1796 = vadd.f32 0.0, %v1795
    %1797 = vmatprep.mubr.f32.mxu0 0.0
    %1798 = vmatmul.mubr.f32.gmra.mrb[0].mxu0 %v1557
    %v1799 = vpop.f32.mrb[0].mxu0
    %v1800 = vadd.f32 0.0, %v1799
    %v1801 = vpop.f32.mrb[0].mxu0
    %v1802 = vadd.f32 0.0, %v1801
    %1803 = vmatprep.mubr.f32.mxu0 0.0
    %1804 = vmatmul.mubr.f32.gmra.mrb[0].mxu0 %v1559
    %v1805 = vpop.f32.mrb[0].mxu0
    %v1806 = vadd.f32 0.0, %v1805
    %v1807 = vpop.f32.mrb[0].mxu0
    %v1808 = vadd.f32 0.0, %v1807
    %1809 = vmatprep.mubr.f32.mxu0 0.0
    %1810 = vmatmul.mubr.f32.gmra.mrb[0].mxu0 %v1561
    %v1811 = vpop.f32.mrb[0].mxu0
    %v1812 = vadd.f32 0.0, %v1811
    %v1813 = vpop.f32.mrb[0].mxu0
    %v1814 = vadd.f32 0.0, %v1813
    %1815 = vmatprep.mubr.f32.mxu0 0.0
    %1816 = vmatmul.mubr.f32.gmra.mrb[0].mxu0 %v1563
    %v1817 = vpop.f32.mrb[0].mxu0
    %v1818 = vadd.f32 0.0, %v1817
    %v1819 = vpop.f32.mrb[0].mxu0
    %v1820 = vadd.f32 0.0, %v1819
    %1821 = vdwg.mxu0
    %1822 = vrot.lane.b32.xlu0 %v1342, 16
    %v1823 = vpop.permute.xlu0 %1822
    %1824 = vrot.lane.b32.xlu0 %v1343, 16
    %v1825 = vpop.permute.xlu0 %1824
    %1828 = vrot.lane.b32.xlu0 %v1344, 32
    %v1829 = vpop.permute.xlu0 %1828
    %1830 = vrot.lane.b32.xlu0 %v1345, 32
    %v1831 = vpop.permute.xlu0 %1830
    %1834 = vrot.lane.b32.xlu0 %v1346, 48
    %v1835 = vpop.permute.xlu0 %1834
    %1836 = vrot.lane.b32.xlu0 %v1347, 48
    %v1837 = vpop.permute.xlu0 %1836
    %1840 = vrot.lane.b32.xlu0 %v1348, 64
    %v1841 = vpop.permute.xlu0 %1840
    %1842 = vrot.lane.b32.xlu0 %v1349, 64
    %v1843 = vpop.permute.xlu0 %1842
    %1846 = vrot.lane.b32.xlu0 %v1350, 80
    %v1847 = vpop.permute.xlu0 %1846
    %1848 = vrot.lane.b32.xlu0 %v1351, 80
    %v1849 = vpop.permute.xlu0 %1848
    %1852 = vrot.lane.b32.xlu0 %v1352, 96
    %v1853 = vpop.permute.xlu0 %1852
    %1854 = vrot.lane.b32.xlu0 %v1353, 96
    %v1855 = vpop.permute.xlu0 %1854
    %1860 = vrot.lane.b32.xlu0 %v1358, 16
    %v1861 = vpop.permute.xlu0 %1860
    %1862 = vrot.lane.b32.xlu0 %v1359, 16
    %v1863 = vpop.permute.xlu0 %1862
    %1866 = vrot.lane.b32.xlu0 %v1360, 32
    %v1867 = vpop.permute.xlu0 %1866
    %1868 = vrot.lane.b32.xlu0 %v1361, 32
    %v1869 = vpop.permute.xlu0 %1868
    %1872 = vrot.lane.b32.xlu0 %v1362, 48
    %v1873 = vpop.permute.xlu0 %1872
    %1874 = vrot.lane.b32.xlu0 %v1363, 48
    %v1875 = vpop.permute.xlu0 %1874
    %1878 = vrot.lane.b32.xlu0 %v1364, 64
    %v1879 = vpop.permute.xlu0 %1878
    %1880 = vrot.lane.b32.xlu0 %v1365, 64
    %v1881 = vpop.permute.xlu0 %1880
    %1884 = vrot.lane.b32.xlu0 %v1366, 80
    %v1885 = vpop.permute.xlu0 %1884
    %1886 = vrot.lane.b32.xlu0 %v1367, 80
    %v1887 = vpop.permute.xlu0 %1886
    %1890 = vrot.lane.b32.xlu0 %v1368, 96
    %v1891 = vpop.permute.xlu0 %1890
    %1892 = vrot.lane.b32.xlu0 %v1369, 96
    %v1893 = vpop.permute.xlu0 %1892
    %v1898 = vsel %vm1500, %v1340, %v1823
    %v1899 = vsel %vm1500, %v1341, %v1825
    %v1900 = vsel %vm762, %v1898, %v1829
    %v1901 = vsel %vm762, %v1899, %v1831
    %vm1902 = vcmask 392192
    %v1903 = vsel %vm1902, %v1900, %v1835
    %v1904 = vsel %vm1902, %v1901, %v1837
    %vm1905 = vcmask 523264
    %v1906 = vsel %vm1905, %v1903, %v1841
    %v1907 = vsel %vm1905, %v1904, %v1843
    %vm1908 = vcmask 654336
    %v1909 = vsel %vm1908, %v1906, %v1847
    %v1910 = vsel %vm1908, %v1907, %v1849
    %vm1911 = vcmask 785408
    %v1912 = vsel %vm1911, %v1909, %v1853
    %v1913 = vsel %vm1911, %v1910, %v1855
    %vm1914 = vcmask 916480
    %v1915 = vsel %vm1914, %v1912, %v1465
    %v1916 = vsel %vm1914, %v1913, %v1467
    %v1917 = vsel %vm1500, %v1356, %v1861
    %v1918 = vsel %vm1500, %v1357, %v1863
    %v1919 = vsel %vm762, %v1917, %v1867
    %v1920 = vsel %vm762, %v1918, %v1869
    %v1921 = vsel %vm1902, %v1919, %v1873
    %v1922 = vsel %vm1902, %v1920, %v1875
    %v1923 = vsel %vm1905, %v1921, %v1879
    %v1924 = vsel %vm1905, %v1922, %v1881
    %v1925 = vsel %vm1908, %v1923, %v1885
    %v1926 = vsel %vm1908, %v1924, %v1887
    %v1927 = vsel %vm1911, %v1925, %v1891
    %v1928 = vsel %vm1911, %v1926, %v1893
    %v1929 = vsel %vm1914, %v1927, %v1497
    %v1930 = vsel %vm1914, %v1928, %v1499
    %v1931 = vlaneseq
    %v1932 = vshrl.u32 %v1931, 7
    %v1933 = vsub.s32 0, %v1932
    %v1934 = vrot.slane %v1915, %v1933
    %v1935 = vlaneseq
    %v1936 = vshrl.u32 %v1935, 7
    %v1937 = vsub.s32 0, %v1936
    %v1938 = vrot.slane %v1929, %v1937
    %v1939 = vmul.f32 %v1632, %v1934
    %v1940 = vmul.f32 %v1634, %v1938
    %v1941 = vmul.f32 %v1638, %v1934
    %v1942 = vmul.f32 %v1640, %v1938
    %v1943 = vadd.f32 %v1939, 0.0
    %v1944 = vadd.f32 %v1940, 0.0
    %v1945 = vadd.f32 %v1941, 0.0
    %v1946 = vadd.f32 %v1942, 0.0
    %v1947 = vlaneseq
    %v1948 = vshrl.u32 %v1947, 7
    %v1949 = vsub.s32 1, %v1948
    %v1950 = vrot.slane %v1915, %v1949
    %v1951 = vlaneseq
    %v1952 = vshrl.u32 %v1951, 7
    %v1953 = vsub.s32 1, %v1952
    %v1954 = vrot.slane %v1929, %v1953
    %v1955 = vmul.f32 %v1644, %v1950
    %v1956 = vmul.f32 %v1646, %v1954
    %v1957 = vmul.f32 %v1650, %v1950
    %v1958 = vmul.f32 %v1652, %v1954
    %v1959 = vadd.f32 %v1943, %v1955
    %v1960 = vadd.f32 %v1944, %v1956
    %v1961 = vadd.f32 %v1945, %v1957
    %v1962 = vadd.f32 %v1946, %v1958
    %v1963 = vlaneseq
    %v1964 = vshrl.u32 %v1963, 7
    %v1965 = vsub.s32 2, %v1964
    %v1966 = vrot.slane %v1915, %v1965
    %v1967 = vlaneseq
    %v1968 = vshrl.u32 %v1967, 7
    %v1969 = vsub.s32 2, %v1968
    %v1970 = vrot.slane %v1929, %v1969
    %v1971 = vmul.f32 %v1656, %v1966
    %v1972 = vmul.f32 %v1658, %v1970
    %v1973 = vmul.f32 %v1662, %v1966
    %v1974 = vmul.f32 %v1664, %v1970
    %v1975 = vadd.f32 %v1959, %v1971
    %v1976 = vadd.f32 %v1960, %v1972
    %v1977 = vadd.f32 %v1961, %v1973
    %v1978 = vadd.f32 %v1962, %v1974
    %v1979 = vlaneseq
    %v1980 = vshrl.u32 %v1979, 7
    %v1981 = vsub.s32 3, %v1980
    %v1982 = vrot.slane %v1915, %v1981
    %v1983 = vlaneseq
    %v1984 = vshrl.u32 %v1983, 7
    %v1985 = vsub.s32 3, %v1984
    %v1986 = vrot.slane %v1929, %v1985
    %v1987 = vmul.f32 %v1668, %v1982
    %v1988 = vmul.f32 %v1670, %v1986
    %v1989 = vmul.f32 %v1674, %v1982
    %v1990 = vmul.f32 %v1676, %v1986
    %v1991 = vadd.f32 %v1975, %v1987
    %v1992 = vadd.f32 %v1976, %v1988
    %v1993 = vadd.f32 %v1977, %v1989
    %v1994 = vadd.f32 %v1978, %v1990
    %v1995 = vlaneseq
    %v1996 = vshrl.u32 %v1995, 7
    %v1997 = vsub.s32 4, %v1996
    %v1998 = vrot.slane %v1915, %v1997
    %v1999 = vlaneseq
    %v2000 = vshrl.u32 %v1999, 7
    %v2001 = vsub.s32 4, %v2000
    %v2002 = vrot.slane %v1929, %v2001
    %v2003 = vmul.f32 %v1680, %v1998
    %v2004 = vmul.f32 %v1682, %v2002
    %v2005 = vmul.f32 %v1686, %v1998
    %v2006 = vmul.f32 %v1688, %v2002
    %v2007 = vadd.f32 %v1991, %v2003
    %v2008 = vadd.f32 %v1992, %v2004
    %v2009 = vadd.f32 %v1993, %v2005
    %v2010 = vadd.f32 %v1994, %v2006
    %v2011 = vlaneseq
    %v2012 = vshrl.u32 %v2011, 7
    %v2013 = vsub.s32 5, %v2012
    %v2014 = vrot.slane %v1915, %v2013
    %v2015 = vlaneseq
    %v2016 = vshrl.u32 %v2015, 7
    %v2017 = vsub.s32 5, %v2016
    %v2018 = vrot.slane %v1929, %v2017
    %v2019 = vmul.f32 %v1692, %v2014
    %v2020 = vmul.f32 %v1694, %v2018
    %v2021 = vmul.f32 %v1698, %v2014
    %v2022 = vmul.f32 %v1700, %v2018
    %v2023 = vadd.f32 %v2007, %v2019
    %v2024 = vadd.f32 %v2008, %v2020
    %v2025 = vadd.f32 %v2009, %v2021
    %v2026 = vadd.f32 %v2010, %v2022
    %v2027 = vlaneseq
    %v2028 = vshrl.u32 %v2027, 7
    %v2029 = vsub.s32 6, %v2028
    %v2030 = vrot.slane %v1915, %v2029
    %v2031 = vlaneseq
    %v2032 = vshrl.u32 %v2031, 7
    %v2033 = vsub.s32 6, %v2032
    %v2034 = vrot.slane %v1929, %v2033
    %v2035 = vmul.f32 %v1704, %v2030
    %v2036 = vmul.f32 %v1706, %v2034
    %v2037 = vmul.f32 %v1710, %v2030
    %v2038 = vmul.f32 %v1712, %v2034
    %v2039 = vadd.f32 %v2023, %v2035
    %v2040 = vadd.f32 %v2024, %v2036
    %v2041 = vadd.f32 %v2025, %v2037
    %v2042 = vadd.f32 %v2026, %v2038
    %v2043 = vlaneseq
    %v2044 = vshrl.u32 %v2043, 7
    %v2045 = vsub.s32 7, %v2044
    %v2046 = vrot.slane %v1915, %v2045
    %v2047 = vlaneseq
    %v2048 = vshrl.u32 %v2047, 7
    %v2049 = vsub.s32 7, %v2048
    %v2050 = vrot.slane %v1929, %v2049
    %v2051 = vmul.f32 %v1716, %v2046
    %v2052 = vmul.f32 %v1718, %v2050
    %v2053 = vmul.f32 %v1722, %v2046
    %v2054 = vmul.f32 %v1724, %v2050
    %v2055 = vadd.f32 %v2039, %v2051
    %v2056 = vadd.f32 %v2040, %v2052
    %v2057 = vadd.f32 %v2041, %v2053
    %v2058 = vadd.f32 %v2042, %v2054
    %v2059 = vlaneseq
    %v2060 = vshrl.u32 %v2059, 7
    %v2061 = vsub.s32 0, %v2060
    %v2062 = vrot.slane %v1916, %v2061
    %v2063 = vlaneseq
    %v2064 = vshrl.u32 %v2063, 7
    %v2065 = vsub.s32 0, %v2064
    %v2066 = vrot.slane %v1930, %v2065
    %v2067 = vmul.f32 %v1728, %v2062
    %v2068 = vmul.f32 %v1730, %v2066
    %v2069 = vmul.f32 %v1734, %v2062
    %v2070 = vmul.f32 %v1736, %v2066
    %v2071 = vadd.f32 %v2055, %v2067
    %v2072 = vadd.f32 %v2056, %v2068
    %v2073 = vadd.f32 %v2057, %v2069
    %v2074 = vadd.f32 %v2058, %v2070
    %v2075 = vlaneseq
    %v2076 = vshrl.u32 %v2075, 7
    %v2077 = vsub.s32 1, %v2076
    %v2078 = vrot.slane %v1916, %v2077
    %v2079 = vlaneseq
    %v2080 = vshrl.u32 %v2079, 7
    %v2081 = vsub.s32 1, %v2080
    %v2082 = vrot.slane %v1930, %v2081
    %v2083 = vmul.f32 %v1740, %v2078
    %v2084 = vmul.f32 %v1742, %v2082
    %v2085 = vmul.f32 %v1746, %v2078
    %v2086 = vmul.f32 %v1748, %v2082
    %v2087 = vadd.f32 %v2071, %v2083
    %v2088 = vadd.f32 %v2072, %v2084
    %v2089 = vadd.f32 %v2073, %v2085
    %v2090 = vadd.f32 %v2074, %v2086
    %v2091 = vlaneseq
    %v2092 = vshrl.u32 %v2091, 7
    %v2093 = vsub.s32 2, %v2092
    %v2094 = vrot.slane %v1916, %v2093
    %v2095 = vlaneseq
    %v2096 = vshrl.u32 %v2095, 7
    %v2097 = vsub.s32 2, %v2096
    %v2098 = vrot.slane %v1930, %v2097
    %v2099 = vmul.f32 %v1752, %v2094
    %v2100 = vmul.f32 %v1754, %v2098
    %v2101 = vmul.f32 %v1758, %v2094
    %v2102 = vmul.f32 %v1760, %v2098
    %v2103 = vadd.f32 %v2087, %v2099
    %v2104 = vadd.f32 %v2088, %v2100
    %v2105 = vadd.f32 %v2089, %v2101
    %v2106 = vadd.f32 %v2090, %v2102
    %v2107 = vlaneseq
    %v2108 = vshrl.u32 %v2107, 7
    %v2109 = vsub.s32 3, %v2108
    %v2110 = vrot.slane %v1916, %v2109
    %v2111 = vlaneseq
    %v2112 = vshrl.u32 %v2111, 7
    %v2113 = vsub.s32 3, %v2112
    %v2114 = vrot.slane %v1930, %v2113
    %v2115 = vmul.f32 %v1764, %v2110
    %v2116 = vmul.f32 %v1766, %v2114
    %v2117 = vmul.f32 %v1770, %v2110
    %v2118 = vmul.f32 %v1772, %v2114
    %v2119 = vadd.f32 %v2103, %v2115
    %v2120 = vadd.f32 %v2104, %v2116
    %v2121 = vadd.f32 %v2105, %v2117
    %v2122 = vadd.f32 %v2106, %v2118
    %v2123 = vlaneseq
    %v2124 = vshrl.u32 %v2123, 7
    %v2125 = vsub.s32 4, %v2124
    %v2126 = vrot.slane %v1916, %v2125
    %v2127 = vlaneseq
    %v2128 = vshrl.u32 %v2127, 7
    %v2129 = vsub.s32 4, %v2128
    %v2130 = vrot.slane %v1930, %v2129
    %v2131 = vmul.f32 %v1776, %v2126
    %v2132 = vmul.f32 %v1778, %v2130
    %v2133 = vmul.f32 %v1782, %v2126
    %v2134 = vmul.f32 %v1784, %v2130
    %v2135 = vadd.f32 %v2119, %v2131
    %v2136 = vadd.f32 %v2120, %v2132
    %v2137 = vadd.f32 %v2121, %v2133
    %v2138 = vadd.f32 %v2122, %v2134
    %v2139 = vlaneseq
    %v2140 = vshrl.u32 %v2139, 7
    %v2141 = vsub.s32 5, %v2140
    %v2142 = vrot.slane %v1916, %v2141
    %v2143 = vlaneseq
    %v2144 = vshrl.u32 %v2143, 7
    %v2145 = vsub.s32 5, %v2144
    %v2146 = vrot.slane %v1930, %v2145
    %v2147 = vmul.f32 %v1788, %v2142
    %v2148 = vmul.f32 %v1790, %v2146
    %v2149 = vmul.f32 %v1794, %v2142
    %v2150 = vmul.f32 %v1796, %v2146
    %v2151 = vadd.f32 %v2135, %v2147
    %v2152 = vadd.f32 %v2136, %v2148
    %v2153 = vadd.f32 %v2137, %v2149
    %v2154 = vadd.f32 %v2138, %v2150
    %v2155 = vlaneseq
    %v2156 = vshrl.u32 %v2155, 7
    %v2157 = vsub.s32 6, %v2156
    %v2158 = vrot.slane %v1916, %v2157
    %v2159 = vlaneseq
    %v2160 = vshrl.u32 %v2159, 7
    %v2161 = vsub.s32 6, %v2160
    %v2162 = vrot.slane %v1930, %v2161
    %v2163 = vmul.f32 %v1800, %v2158
    %v2164 = vmul.f32 %v1802, %v2162
    %v2165 = vmul.f32 %v1806, %v2158
    %v2166 = vmul.f32 %v1808, %v2162
    %v2167 = vadd.f32 %v2151, %v2163
    %v2168 = vadd.f32 %v2152, %v2164
    %v2169 = vadd.f32 %v2153, %v2165
    %v2170 = vadd.f32 %v2154, %v2166
    %v2171 = vlaneseq
    %v2172 = vshrl.u32 %v2171, 7
    %v2173 = vsub.s32 7, %v2172
    %v2174 = vrot.slane %v1916, %v2173
    %v2175 = vlaneseq
    %v2176 = vshrl.u32 %v2175, 7
    %v2177 = vsub.s32 7, %v2176
    %v2178 = vrot.slane %v1930, %v2177
    %v2179 = vmul.f32 %v1812, %v2174
    %v2180 = vmul.f32 %v1814, %v2178
    %v2181 = vmul.f32 %v1818, %v2174
    %v2182 = vmul.f32 %v1820, %v2178
    %v2183 = vadd.f32 %v2167, %v2179
    %v2184 = vadd.f32 %v2168, %v2180
    %v2185 = vadd.f32 %v2169, %v2181
    %v2186 = vadd.f32 %v2170, %v2182
    %2219 = vrot.lane.b32.xlu0 %v1372, 112
    %v2220 = vpop.permute.xlu0 %2219
    %2221 = vrot.lane.b32.xlu0 %v1373, 112
    %v2222 = vpop.permute.xlu0 %2221
    %2223 = vrot.lane.b32.xlu0 %v1374, 112
    %v2224 = vpop.permute.xlu0 %2223
    %2225 = vrot.lane.b32.xlu0 %v1375, 112
    %v2226 = vpop.permute.xlu0 %2225
    %2227 = vrot.lane.b32.xlu0 %v1376, 112
    %v2228 = vpop.permute.xlu0 %2227
    %2229 = vrot.lane.b32.xlu0 %v1377, 112
    %v2230 = vpop.permute.xlu0 %2229
    %2231 = vrot.lane.b32.xlu0 %v1378, 112
    %v2232 = vpop.permute.xlu0 %2231
    %2233 = vrot.lane.b32.xlu0 %v1379, 112
    %v2234 = vpop.permute.xlu0 %2233
    %2235 = vrot.lane.b32.xlu0 %v1380, 112
    %v2236 = vpop.permute.xlu0 %2235
    %2237 = vrot.lane.b32.xlu0 %v1381, 112
    %v2238 = vpop.permute.xlu0 %2237
    %2239 = vrot.lane.b32.xlu0 %v1382, 112
    %v2240 = vpop.permute.xlu0 %2239
    %2241 = vrot.lane.b32.xlu0 %v1383, 112
    %v2242 = vpop.permute.xlu0 %2241
    %2243 = vrot.lane.b32.xlu0 %v1384, 112
    %v2244 = vpop.permute.xlu0 %2243
    %2245 = vrot.lane.b32.xlu0 %v1385, 112
    %v2246 = vpop.permute.xlu0 %2245
    %2247 = vrot.lane.b32.xlu0 %v1386, 112
    %v2248 = vpop.permute.xlu0 %2247
    %2249 = vrot.lane.b32.xlu0 %v1387, 112
    %v2250 = vpop.permute.xlu0 %2249
    %2251 = vrot.lane.b32.xlu0 %v1388, 112
    %v2252 = vpop.permute.xlu0 %2251
    %2253 = vrot.lane.b32.xlu0 %v1389, 112
    %v2254 = vpop.permute.xlu0 %2253
    %2255 = vrot.lane.b32.xlu0 %v1390, 112
    %v2256 = vpop.permute.xlu0 %2255
    %2257 = vrot.lane.b32.xlu0 %v1391, 112
    %v2258 = vpop.permute.xlu0 %2257
    %2259 = vrot.lane.b32.xlu0 %v1392, 112
    %v2260 = vpop.permute.xlu0 %2259
    %2261 = vrot.lane.b32.xlu0 %v1393, 112
    %v2262 = vpop.permute.xlu0 %2261
    %2263 = vrot.lane.b32.xlu0 %v1394, 112
    %v2264 = vpop.permute.xlu0 %2263
    %2265 = vrot.lane.b32.xlu0 %v1395, 112
    %v2266 = vpop.permute.xlu0 %2265
    %2267 = vrot.lane.b32.xlu0 %v1396, 112
    %v2268 = vpop.permute.xlu0 %2267
    %2269 = vrot.lane.b32.xlu0 %v1397, 112
    %v2270 = vpop.permute.xlu0 %2269
    %2271 = vrot.lane.b32.xlu0 %v1398, 112
    %v2272 = vpop.permute.xlu0 %2271
    %2273 = vrot.lane.b32.xlu0 %v1399, 112
    %v2274 = vpop.permute.xlu0 %2273
    %2275 = vrot.lane.b32.xlu0 %v1400, 112
    %v2276 = vpop.permute.xlu0 %2275
    %2277 = vrot.lane.b32.xlu0 %v1401, 112
    %v2278 = vpop.permute.xlu0 %2277
    %2279 = vrot.lane.b32.xlu0 %v1402, 112
    %v2280 = vpop.permute.xlu0 %2279
    %2281 = vrot.lane.b32.xlu0 %v1403, 112
    %v2282 = vpop.permute.xlu0 %2281
    %v2283 = vsel %vm1500, %v2220, 0
    %v2285 = vsel %vm1500, %v2222, 0
    %v2287 = vsel %vm1500, %v2224, 0
    %v2289 = vsel %vm1500, %v2226, 0
    %v2291 = vsel %vm1500, %v2228, 0
    %v2293 = vsel %vm1500, %v2230, 0
    %v2295 = vsel %vm1500, %v2232, 0
    %v2297 = vsel %vm1500, %v2234, 0
    %v2299 = vsel %vm1500, %v2236, 0
    %v2301 = vsel %vm1500, %v2238, 0
    %v2303 = vsel %vm1500, %v2240, 0
    %v2305 = vsel %vm1500, %v2242, 0
    %v2307 = vsel %vm1500, %v2244, 0
    %v2309 = vsel %vm1500, %v2246, 0
    %v2311 = vsel %vm1500, %v2248, 0
    %v2313 = vsel %vm1500, %v2250, 0
    %v2315 = vsel %vm1500, %v2252, 0
    %v2317 = vsel %vm1500, %v2254, 0
    %v2319 = vsel %vm1500, %v2256, 0
    %v2321 = vsel %vm1500, %v2258, 0
    %v2323 = vsel %vm1500, %v2260, 0
    %v2325 = vsel %vm1500, %v2262, 0
    %v2327 = vsel %vm1500, %v2264, 0
    %v2329 = vsel %vm1500, %v2266, 0
    %v2331 = vsel %vm1500, %v2268, 0
    %v2333 = vsel %vm1500, %v2270, 0
    %v2335 = vsel %vm1500, %v2272, 0
    %v2337 = vsel %vm1500, %v2274, 0
    %v2339 = vsel %vm1500, %v2276, 0
    %v2341 = vsel %vm1500, %v2278, 0
    %v2343 = vsel %vm1500, %v2280, 0
    %v2345 = vsel %vm1500, %v2282, 0
    %2347 = vmatprep.subr.mxu0 %v32
    %2348 = vmatpush1.msra.mxu0 %v31
    %2349 = vmatprep.subr.mxu0 %v34
    %2350 = vmatpush1.msra.mxu0 %v33
    %2351 = vmatprep.subr.mxu0 0.0
    %2352 = vmatpush1.msra.mxu0 0.0
    %2353 = vmatprep.subr.mxu0 0.0
    %2354 = vmatpush1.msra.mxu0 0.0
    %2355 = vmatprep.subr.mxu0 0.0
    %2356 = vmatpush1.msra.mxu0 0.0
    %2357 = vmatprep.subr.mxu0 0.0
    %2358 = vmatpush1.msra.mxu0 0.0
    %2359 = vmatprep.subr.mxu0 0.0
    %2360 = vmatpush1.msra.mxu0 0.0
    %2361 = vmatprep.subr.mxu0 0.0
    %2362 = vmatpush1.msra.mxu0 0.0
    %2363 = vmatprep.subr.mxu0 0.0
    %2364 = vmatpush1.msra.mxu0 0.0
    %2365 = vmatprep.subr.mxu0 0.0
    %2366 = vmatpush1.msra.mxu0 0.0
    %2367 = vmatprep.subr.mxu0 0.0
    %2368 = vmatpush1.msra.mxu0 0.0
    %2369 = vmatprep.subr.mxu0 0.0
    %2370 = vmatpush1.msra.mxu0 0.0
    %2371 = vmatprep.subr.mxu0 0.0
    %2372 = vmatpush1.msra.mxu0 0.0
    %2373 = vmatprep.subr.mxu0 0.0
    %2374 = vmatpush1.msra.mxu0 0.0
    %2375 = vmatprep.subr.mxu0 0.0
    %2376 = vmatpush1.msra.mxu0 0.0
    %2377 = vmatprep.subr.mxu0 0.0
    %2378 = vmatpush1.msra.mxu0 0.0
    %2379 = vmatprep.subr.mxu0 0.0
    %2380 = vmatpush1.msra.mxu0 0.0
    %2381 = vmatprep.subr.mxu0 0.0
    %2382 = vmatpush1.msra.mxu0 0.0
    %2383 = vmatprep.subr.mxu0 0.0
    %2384 = vmatpush1.msra.mxu0 0.0
    %2385 = vmatprep.subr.mxu0 0.0
    %2386 = vmatpush1.msra.mxu0 0.0
    %2387 = vmatprep.subr.mxu0 0.0
    %2388 = vmatpush1.msra.mxu0 0.0
    %2389 = vmatprep.subr.mxu0 0.0
    %2390 = vmatpush1.msra.mxu0 0.0
    %2391 = vmatprep.subr.mxu0 0.0
    %2392 = vmatpush1.msra.mxu0 0.0
    %2393 = vmatprep.subr.mxu0 0.0
    %2394 = vmatpush1.msra.mxu0 0.0
    %2395 = vmatprep.subr.mxu0 0.0
    %2396 = vmatpush1.msra.mxu0 0.0
    %2397 = vmatprep.subr.mxu0 0.0
    %2398 = vmatpush1.msra.mxu0 0.0
    %2399 = vmatprep.subr.mxu0 0.0
    %2400 = vmatpush1.msra.mxu0 0.0
    %2401 = vmatprep.subr.mxu0 0.0
    %2402 = vmatpush1.msra.mxu0 0.0
    %2403 = vmatprep.subr.mxu0 0.0
    %2404 = vmatpush1.msra.mxu0 0.0
    %2405 = vmatprep.subr.mxu0 0.0
    %2406 = vmatpush1.msra.mxu0 0.0
    %2407 = vmatprep.subr.mxu0 0.0
    %2408 = vmatpush1.msra.mxu0 0.0
    %2409 = vmatprep.subr.mxu0 0.0
    %2410 = vmatpush1.msra.mxu0 0.0
    %2411 = vmatprep.mubr.f32.mxu0 0.0
    %2412 = vmatmul.mubr.f32.gmra.mrb[0].mxu0 %v2283
    %v2413 = vpop.f32.mrb[0].mxu0
    %v2414 = vadd.f32 0.0, %v2413
    %v2415 = vpop.f32.mrb[0].mxu0
    %v2416 = vadd.f32 0.0, %v2415
    %2417 = vmatprep.mubr.f32.mxu0 0.0
    %2418 = vmatmul.mubr.f32.gmra.mrb[0].mxu0 %v2285
    %v2419 = vpop.f32.mrb[0].mxu0
    %v2420 = vadd.f32 0.0, %v2419
    %v2421 = vpop.f32.mrb[0].mxu0
    %v2422 = vadd.f32 0.0, %v2421
    %2423 = vmatprep.mubr.f32.mxu0 0.0
    %2424 = vmatmul.mubr.f32.gmra.mrb[0].mxu0 %v2287
    %v2425 = vpop.f32.mrb[0].mxu0
    %v2426 = vadd.f32 0.0, %v2425
    %v2427 = vpop.f32.mrb[0].mxu0
    %v2428 = vadd.f32 0.0, %v2427
    %2429 = vmatprep.mubr.f32.mxu0 0.0
    %2430 = vmatmul.mubr.f32.gmra.mrb[0].mxu0 %v2289
    %v2431 = vpop.f32.mrb[0].mxu0
    %v2432 = vadd.f32 0.0, %v2431
    %v2433 = vpop.f32.mrb[0].mxu0
    %v2434 = vadd.f32 0.0, %v2433
    %2435 = vmatprep.mubr.f32.mxu0 0.0
    %2436 = vmatmul.mubr.f32.gmra.mrb[0].mxu0 %v2291
    %v2437 = vpop.f32.mrb[0].mxu0
    %v2438 = vadd.f32 0.0, %v2437
    %v2439 = vpop.f32.mrb[0].mxu0
    %v2440 = vadd.f32 0.0, %v2439
    %2441 = vmatprep.mubr.f32.mxu0 0.0
    %2442 = vmatmul.mubr.f32.gmra.mrb[0].mxu0 %v2293
    %v2443 = vpop.f32.mrb[0].mxu0
    %v2444 = vadd.f32 0.0, %v2443
    %v2445 = vpop.f32.mrb[0].mxu0
    %v2446 = vadd.f32 0.0, %v2445
    %2447 = vmatprep.mubr.f32.mxu0 0.0
    %2448 = vmatmul.mubr.f32.gmra.mrb[0].mxu0 %v2295
    %v2449 = vpop.f32.mrb[0].mxu0
    %v2450 = vadd.f32 0.0, %v2449
    %v2451 = vpop.f32.mrb[0].mxu0
    %v2452 = vadd.f32 0.0, %v2451
    %2453 = vmatprep.mubr.f32.mxu0 0.0
    %2454 = vmatmul.mubr.f32.gmra.mrb[0].mxu0 %v2297
    %v2455 = vpop.f32.mrb[0].mxu0
    %v2456 = vadd.f32 0.0, %v2455
    %v2457 = vpop.f32.mrb[0].mxu0
    %v2458 = vadd.f32 0.0, %v2457
    %2459 = vmatprep.mubr.f32.mxu0 0.0
    %2460 = vmatmul.mubr.f32.gmra.mrb[0].mxu0 %v2299
    %v2461 = vpop.f32.mrb[0].mxu0
    %v2462 = vadd.f32 0.0, %v2461
    %v2463 = vpop.f32.mrb[0].mxu0
    %v2464 = vadd.f32 0.0, %v2463
    %2465 = vmatprep.mubr.f32.mxu0 0.0
    %2466 = vmatmul.mubr.f32.gmra.mrb[0].mxu0 %v2301
    %v2467 = vpop.f32.mrb[0].mxu0
    %v2468 = vadd.f32 0.0, %v2467
    %v2469 = vpop.f32.mrb[0].mxu0
    %v2470 = vadd.f32 0.0, %v2469
    %2471 = vmatprep.mubr.f32.mxu0 0.0
    %2472 = vmatmul.mubr.f32.gmra.mrb[0].mxu0 %v2303
    %v2473 = vpop.f32.mrb[0].mxu0
    %v2474 = vadd.f32 0.0, %v2473
    %v2475 = vpop.f32.mrb[0].mxu0
    %v2476 = vadd.f32 0.0, %v2475
    %2477 = vmatprep.mubr.f32.mxu0 0.0
    %2478 = vmatmul.mubr.f32.gmra.mrb[0].mxu0 %v2305
    %v2479 = vpop.f32.mrb[0].mxu0
    %v2480 = vadd.f32 0.0, %v2479
    %v2481 = vpop.f32.mrb[0].mxu0
    %v2482 = vadd.f32 0.0, %v2481
    %2483 = vmatprep.mubr.f32.mxu0 0.0
    %2484 = vmatmul.mubr.f32.gmra.mrb[0].mxu0 %v2307
    %v2485 = vpop.f32.mrb[0].mxu0
    %v2486 = vadd.f32 0.0, %v2485
    %v2487 = vpop.f32.mrb[0].mxu0
    %v2488 = vadd.f32 0.0, %v2487
    %2489 = vmatprep.mubr.f32.mxu0 0.0
    %2490 = vmatmul.mubr.f32.gmra.mrb[0].mxu0 %v2309
    %v2491 = vpop.f32.mrb[0].mxu0
    %v2492 = vadd.f32 0.0, %v2491
    %v2493 = vpop.f32.mrb[0].mxu0
    %v2494 = vadd.f32 0.0, %v2493
    %2495 = vmatprep.mubr.f32.mxu0 0.0
    %2496 = vmatmul.mubr.f32.gmra.mrb[0].mxu0 %v2311
    %v2497 = vpop.f32.mrb[0].mxu0
    %v2498 = vadd.f32 0.0, %v2497
    %v2499 = vpop.f32.mrb[0].mxu0
    %v2500 = vadd.f32 0.0, %v2499
    %2501 = vmatprep.mubr.f32.mxu0 0.0
    %2502 = vmatmul.mubr.f32.gmra.mrb[0].mxu0 %v2313
    %v2503 = vpop.f32.mrb[0].mxu0
    %v2504 = vadd.f32 0.0, %v2503
    %v2505 = vpop.f32.mrb[0].mxu0
    %v2506 = vadd.f32 0.0, %v2505
    %2507 = vmatprep.mubr.f32.mxu0 0.0
    %2508 = vmatmul.mubr.f32.gmra.mrb[0].mxu0 %v2315
    %v2509 = vpop.f32.mrb[0].mxu0
    %v2510 = vadd.f32 0.0, %v2509
    %v2511 = vpop.f32.mrb[0].mxu0
    %v2512 = vadd.f32 0.0, %v2511
    %2513 = vmatprep.mubr.f32.mxu0 0.0
    %2514 = vmatmul.mubr.f32.gmra.mrb[0].mxu0 %v2317
    %v2515 = vpop.f32.mrb[0].mxu0
    %v2516 = vadd.f32 0.0, %v2515
    %v2517 = vpop.f32.mrb[0].mxu0
    %v2518 = vadd.f32 0.0, %v2517
    %2519 = vmatprep.mubr.f32.mxu0 0.0
    %2520 = vmatmul.mubr.f32.gmra.mrb[0].mxu0 %v2319
    %v2521 = vpop.f32.mrb[0].mxu0
    %v2522 = vadd.f32 0.0, %v2521
    %v2523 = vpop.f32.mrb[0].mxu0
    %v2524 = vadd.f32 0.0, %v2523
    %2525 = vmatprep.mubr.f32.mxu0 0.0
    %2526 = vmatmul.mubr.f32.gmra.mrb[0].mxu0 %v2321
    %v2527 = vpop.f32.mrb[0].mxu0
    %v2528 = vadd.f32 0.0, %v2527
    %v2529 = vpop.f32.mrb[0].mxu0
    %v2530 = vadd.f32 0.0, %v2529
    %2531 = vmatprep.mubr.f32.mxu0 0.0
    %2532 = vmatmul.mubr.f32.gmra.mrb[0].mxu0 %v2323
    %v2533 = vpop.f32.mrb[0].mxu0
    %v2534 = vadd.f32 0.0, %v2533
    %v2535 = vpop.f32.mrb[0].mxu0
    %v2536 = vadd.f32 0.0, %v2535
    %2537 = vmatprep.mubr.f32.mxu0 0.0
    %2538 = vmatmul.mubr.f32.gmra.mrb[0].mxu0 %v2325
    %v2539 = vpop.f32.mrb[0].mxu0
    %v2540 = vadd.f32 0.0, %v2539
    %v2541 = vpop.f32.mrb[0].mxu0
    %v2542 = vadd.f32 0.0, %v2541
    %2543 = vmatprep.mubr.f32.mxu0 0.0
    %2544 = vmatmul.mubr.f32.gmra.mrb[0].mxu0 %v2327
    %v2545 = vpop.f32.mrb[0].mxu0
    %v2546 = vadd.f32 0.0, %v2545
    %v2547 = vpop.f32.mrb[0].mxu0
    %v2548 = vadd.f32 0.0, %v2547
    %2549 = vmatprep.mubr.f32.mxu0 0.0
    %2550 = vmatmul.mubr.f32.gmra.mrb[0].mxu0 %v2329
    %v2551 = vpop.f32.mrb[0].mxu0
    %v2552 = vadd.f32 0.0, %v2551
    %v2553 = vpop.f32.mrb[0].mxu0
    %v2554 = vadd.f32 0.0, %v2553
    %2555 = vmatprep.mubr.f32.mxu0 0.0
    %2556 = vmatmul.mubr.f32.gmra.mrb[0].mxu0 %v2331
    %v2557 = vpop.f32.mrb[0].mxu0
    %v2558 = vadd.f32 0.0, %v2557
    %v2559 = vpop.f32.mrb[0].mxu0
    %v2560 = vadd.f32 0.0, %v2559
    %2561 = vmatprep.mubr.f32.mxu0 0.0
    %2562 = vmatmul.mubr.f32.gmra.mrb[0].mxu0 %v2333
    %v2563 = vpop.f32.mrb[0].mxu0
    %v2564 = vadd.f32 0.0, %v2563
    %v2565 = vpop.f32.mrb[0].mxu0
    %v2566 = vadd.f32 0.0, %v2565
    %2567 = vmatprep.mubr.f32.mxu0 0.0
    %2568 = vmatmul.mubr.f32.gmra.mrb[0].mxu0 %v2335
    %v2569 = vpop.f32.mrb[0].mxu0
    %v2570 = vadd.f32 0.0, %v2569
    %v2571 = vpop.f32.mrb[0].mxu0
    %v2572 = vadd.f32 0.0, %v2571
    %2573 = vmatprep.mubr.f32.mxu0 0.0
    %2574 = vmatmul.mubr.f32.gmra.mrb[0].mxu0 %v2337
    %v2575 = vpop.f32.mrb[0].mxu0
    %v2576 = vadd.f32 0.0, %v2575
    %v2577 = vpop.f32.mrb[0].mxu0
    %v2578 = vadd.f32 0.0, %v2577
    %2579 = vmatprep.mubr.f32.mxu0 0.0
    %2580 = vmatmul.mubr.f32.gmra.mrb[0].mxu0 %v2339
    %v2581 = vpop.f32.mrb[0].mxu0
    %v2582 = vadd.f32 0.0, %v2581
    %v2583 = vpop.f32.mrb[0].mxu0
    %v2584 = vadd.f32 0.0, %v2583
    %2585 = vmatprep.mubr.f32.mxu0 0.0
    %2586 = vmatmul.mubr.f32.gmra.mrb[0].mxu0 %v2341
    %v2587 = vpop.f32.mrb[0].mxu0
    %v2588 = vadd.f32 0.0, %v2587
    %v2589 = vpop.f32.mrb[0].mxu0
    %v2590 = vadd.f32 0.0, %v2589
    %2591 = vmatprep.mubr.f32.mxu0 0.0
    %2592 = vmatmul.mubr.f32.gmra.mrb[0].mxu0 %v2343
    %v2593 = vpop.f32.mrb[0].mxu0
    %v2594 = vadd.f32 0.0, %v2593
    %v2595 = vpop.f32.mrb[0].mxu0
    %v2596 = vadd.f32 0.0, %v2595
    %2597 = vmatprep.mubr.f32.mxu0 0.0
    %2598 = vmatmul.mubr.f32.gmra.mrb[0].mxu0 %v2345
    %v2599 = vpop.f32.mrb[0].mxu0
    %v2600 = vadd.f32 0.0, %v2599
    %v2601 = vpop.f32.mrb[0].mxu0
    %v2602 = vadd.f32 0.0, %v2601
    %2603 = vdwg.mxu0
    %2604 = vrot.lane.b32.xlu0 %v1374, 16
    %v2605 = vpop.permute.xlu0 %2604
    %2606 = vrot.lane.b32.xlu0 %v1375, 16
    %v2607 = vpop.permute.xlu0 %2606
    %2610 = vrot.lane.b32.xlu0 %v1376, 32
    %v2611 = vpop.permute.xlu0 %2610
    %2612 = vrot.lane.b32.xlu0 %v1377, 32
    %v2613 = vpop.permute.xlu0 %2612
    %2616 = vrot.lane.b32.xlu0 %v1378, 48
    %v2617 = vpop.permute.xlu0 %2616
    %2618 = vrot.lane.b32.xlu0 %v1379, 48
    %v2619 = vpop.permute.xlu0 %2618
    %2622 = vrot.lane.b32.xlu0 %v1380, 64
    %v2623 = vpop.permute.xlu0 %2622
    %2624 = vrot.lane.b32.xlu0 %v1381, 64
    %v2625 = vpop.permute.xlu0 %2624
    %2628 = vrot.lane.b32.xlu0 %v1382, 80
    %v2629 = vpop.permute.xlu0 %2628
    %2630 = vrot.lane.b32.xlu0 %v1383, 80
    %v2631 = vpop.permute.xlu0 %2630
    %2634 = vrot.lane.b32.xlu0 %v1384, 96
    %v2635 = vpop.permute.xlu0 %2634
    %2636 = vrot.lane.b32.xlu0 %v1385, 96
    %v2637 = vpop.permute.xlu0 %2636
    %2642 = vrot.lane.b32.xlu0 %v1390, 16
    %v2643 = vpop.permute.xlu0 %2642
    %2644 = vrot.lane.b32.xlu0 %v1391, 16
    %v2645 = vpop.permute.xlu0 %2644
    %2648 = vrot.lane.b32.xlu0 %v1392, 32
    %v2649 = vpop.permute.xlu0 %2648
    %2650 = vrot.lane.b32.xlu0 %v1393, 32
    %v2651 = vpop.permute.xlu0 %2650
    %2654 = vrot.lane.b32.xlu0 %v1394, 48
    %v2655 = vpop.permute.xlu0 %2654
    %2656 = vrot.lane.b32.xlu0 %v1395, 48
    %v2657 = vpop.permute.xlu0 %2656
    %2660 = vrot.lane.b32.xlu0 %v1396, 64
    %v2661 = vpop.permute.xlu0 %2660
    %2662 = vrot.lane.b32.xlu0 %v1397, 64
    %v2663 = vpop.permute.xlu0 %2662
    %2666 = vrot.lane.b32.xlu0 %v1398, 80
    %v2667 = vpop.permute.xlu0 %2666
    %2668 = vrot.lane.b32.xlu0 %v1399, 80
    %v2669 = vpop.permute.xlu0 %2668
    %2672 = vrot.lane.b32.xlu0 %v1400, 96
    %v2673 = vpop.permute.xlu0 %2672
    %2674 = vrot.lane.b32.xlu0 %v1401, 96
    %v2675 = vpop.permute.xlu0 %2674
    %v2680 = vsel %vm1500, %v1372, %v2605
    %v2681 = vsel %vm1500, %v1373, %v2607
    %v2682 = vsel %vm762, %v2680, %v2611
    %v2683 = vsel %vm762, %v2681, %v2613
    %v2684 = vsel %vm1902, %v2682, %v2617
    %v2685 = vsel %vm1902, %v2683, %v2619
    %v2686 = vsel %vm1905, %v2684, %v2623
    %v2687 = vsel %vm1905, %v2685, %v2625
    %v2688 = vsel %vm1908, %v2686, %v2629
    %v2689 = vsel %vm1908, %v2687, %v2631
    %v2690 = vsel %vm1911, %v2688, %v2635
    %v2691 = vsel %vm1911, %v2689, %v2637
    %v2692 = vsel %vm1914, %v2690, %v2248
    %v2693 = vsel %vm1914, %v2691, %v2250
    %v2694 = vsel %vm1500, %v1388, %v2643
    %v2695 = vsel %vm1500, %v1389, %v2645
    %v2696 = vsel %vm762, %v2694, %v2649
    %v2697 = vsel %vm762, %v2695, %v2651
    %v2698 = vsel %vm1902, %v2696, %v2655
    %v2699 = vsel %vm1902, %v2697, %v2657
    %v2700 = vsel %vm1905, %v2698, %v2661
    %v2701 = vsel %vm1905, %v2699, %v2663
    %v2702 = vsel %vm1908, %v2700, %v2667
    %v2703 = vsel %vm1908, %v2701, %v2669
    %v2704 = vsel %vm1911, %v2702, %v2673
    %v2705 = vsel %vm1911, %v2703, %v2675
    %v2706 = vsel %vm1914, %v2704, %v2280
    %v2707 = vsel %vm1914, %v2705, %v2282
    %v2708 = vlaneseq
    %v2709 = vshrl.u32 %v2708, 7
    %v2710 = vsub.s32 0, %v2709
    %v2711 = vrot.slane %v2692, %v2710
    %v2712 = vlaneseq
    %v2713 = vshrl.u32 %v2712, 7
    %v2714 = vsub.s32 0, %v2713
    %v2715 = vrot.slane %v2706, %v2714
    %v2716 = vmul.f32 %v2414, %v2711
    %v2717 = vmul.f32 %v2416, %v2715
    %v2718 = vmul.f32 %v2420, %v2711
    %v2719 = vmul.f32 %v2422, %v2715
    %v2720 = vadd.f32 %v2716, 0.0
    %v2721 = vadd.f32 %v2717, 0.0
    %v2722 = vadd.f32 %v2718, 0.0
    %v2723 = vadd.f32 %v2719, 0.0
    %v2724 = vlaneseq
    %v2725 = vshrl.u32 %v2724, 7
    %v2726 = vsub.s32 1, %v2725
    %v2727 = vrot.slane %v2692, %v2726
    %v2728 = vlaneseq
    %v2729 = vshrl.u32 %v2728, 7
    %v2730 = vsub.s32 1, %v2729
    %v2731 = vrot.slane %v2706, %v2730
    %v2732 = vmul.f32 %v2426, %v2727
    %v2733 = vmul.f32 %v2428, %v2731
    %v2734 = vmul.f32 %v2432, %v2727
    %v2735 = vmul.f32 %v2434, %v2731
    %v2736 = vadd.f32 %v2720, %v2732
    %v2737 = vadd.f32 %v2721, %v2733
    %v2738 = vadd.f32 %v2722, %v2734
    %v2739 = vadd.f32 %v2723, %v2735
    %v2740 = vlaneseq
    %v2741 = vshrl.u32 %v2740, 7
    %v2742 = vsub.s32 2, %v2741
    %v2743 = vrot.slane %v2692, %v2742
    %v2744 = vlaneseq
    %v2745 = vshrl.u32 %v2744, 7
    %v2746 = vsub.s32 2, %v2745
    %v2747 = vrot.slane %v2706, %v2746
    %v2748 = vmul.f32 %v2438, %v2743
    %v2749 = vmul.f32 %v2440, %v2747
    %v2750 = vmul.f32 %v2444, %v2743
    %v2751 = vmul.f32 %v2446, %v2747
    %v2752 = vadd.f32 %v2736, %v2748
    %v2753 = vadd.f32 %v2737, %v2749
    %v2754 = vadd.f32 %v2738, %v2750
    %v2755 = vadd.f32 %v2739, %v2751
    %v2756 = vlaneseq
    %v2757 = vshrl.u32 %v2756, 7
    %v2758 = vsub.s32 3, %v2757
    %v2759 = vrot.slane %v2692, %v2758
    %v2760 = vlaneseq
    %v2761 = vshrl.u32 %v2760, 7
    %v2762 = vsub.s32 3, %v2761
    %v2763 = vrot.slane %v2706, %v2762
    %v2764 = vmul.f32 %v2450, %v2759
    %v2765 = vmul.f32 %v2452, %v2763
    %v2766 = vmul.f32 %v2456, %v2759
    %v2767 = vmul.f32 %v2458, %v2763
    %v2768 = vadd.f32 %v2752, %v2764
    %v2769 = vadd.f32 %v2753, %v2765
    %v2770 = vadd.f32 %v2754, %v2766
    %v2771 = vadd.f32 %v2755, %v2767
    %v2772 = vlaneseq
    %v2773 = vshrl.u32 %v2772, 7
    %v2774 = vsub.s32 4, %v2773
    %v2775 = vrot.slane %v2692, %v2774
    %v2776 = vlaneseq
    %v2777 = vshrl.u32 %v2776, 7
    %v2778 = vsub.s32 4, %v2777
    %v2779 = vrot.slane %v2706, %v2778
    %v2780 = vmul.f32 %v2462, %v2775
    %v2781 = vmul.f32 %v2464, %v2779
    %v2782 = vmul.f32 %v2468, %v2775
    %v2783 = vmul.f32 %v2470, %v2779
    %v2784 = vadd.f32 %v2768, %v2780
    %v2785 = vadd.f32 %v2769, %v2781
    %v2786 = vadd.f32 %v2770, %v2782
    %v2787 = vadd.f32 %v2771, %v2783
    %v2788 = vlaneseq
    %v2789 = vshrl.u32 %v2788, 7
    %v2790 = vsub.s32 5, %v2789
    %v2791 = vrot.slane %v2692, %v2790
    %v2792 = vlaneseq
    %v2793 = vshrl.u32 %v2792, 7
    %v2794 = vsub.s32 5, %v2793
    %v2795 = vrot.slane %v2706, %v2794
    %v2796 = vmul.f32 %v2474, %v2791
    %v2797 = vmul.f32 %v2476, %v2795
    %v2798 = vmul.f32 %v2480, %v2791
    %v2799 = vmul.f32 %v2482, %v2795
    %v2800 = vadd.f32 %v2784, %v2796
    %v2801 = vadd.f32 %v2785, %v2797
    %v2802 = vadd.f32 %v2786, %v2798
    %v2803 = vadd.f32 %v2787, %v2799
    %v2804 = vlaneseq
    %v2805 = vshrl.u32 %v2804, 7
    %v2806 = vsub.s32 6, %v2805
    %v2807 = vrot.slane %v2692, %v2806
    %v2808 = vlaneseq
    %v2809 = vshrl.u32 %v2808, 7
    %v2810 = vsub.s32 6, %v2809
    %v2811 = vrot.slane %v2706, %v2810
    %v2812 = vmul.f32 %v2486, %v2807
    %v2813 = vmul.f32 %v2488, %v2811
    %v2814 = vmul.f32 %v2492, %v2807
    %v2815 = vmul.f32 %v2494, %v2811
    %v2816 = vadd.f32 %v2800, %v2812
    %v2817 = vadd.f32 %v2801, %v2813
    %v2818 = vadd.f32 %v2802, %v2814
    %v2819 = vadd.f32 %v2803, %v2815
    %v2820 = vlaneseq
    %v2821 = vshrl.u32 %v2820, 7
    %v2822 = vsub.s32 7, %v2821
    %v2823 = vrot.slane %v2692, %v2822
    %v2824 = vlaneseq
    %v2825 = vshrl.u32 %v2824, 7
    %v2826 = vsub.s32 7, %v2825
    %v2827 = vrot.slane %v2706, %v2826
    %v2828 = vmul.f32 %v2498, %v2823
    %v2829 = vmul.f32 %v2500, %v2827
    %v2830 = vmul.f32 %v2504, %v2823
    %v2831 = vmul.f32 %v2506, %v2827
    %v2832 = vadd.f32 %v2816, %v2828
    %v2833 = vadd.f32 %v2817, %v2829
    %v2834 = vadd.f32 %v2818, %v2830
    %v2835 = vadd.f32 %v2819, %v2831
    %v2836 = vlaneseq
    %v2837 = vshrl.u32 %v2836, 7
    %v2838 = vsub.s32 0, %v2837
    %v2839 = vrot.slane %v2693, %v2838
    %v2840 = vlaneseq
    %v2841 = vshrl.u32 %v2840, 7
    %v2842 = vsub.s32 0, %v2841
    %v2843 = vrot.slane %v2707, %v2842
    %v2844 = vmul.f32 %v2510, %v2839
    %v2845 = vmul.f32 %v2512, %v2843
    %v2846 = vmul.f32 %v2516, %v2839
    %v2847 = vmul.f32 %v2518, %v2843
    %v2848 = vadd.f32 %v2832, %v2844
    %v2849 = vadd.f32 %v2833, %v2845
    %v2850 = vadd.f32 %v2834, %v2846
    %v2851 = vadd.f32 %v2835, %v2847
    %v2852 = vlaneseq
    %v2853 = vshrl.u32 %v2852, 7
    %v2854 = vsub.s32 1, %v2853
    %v2855 = vrot.slane %v2693, %v2854
    %v2856 = vlaneseq
    %v2857 = vshrl.u32 %v2856, 7
    %v2858 = vsub.s32 1, %v2857
    %v2859 = vrot.slane %v2707, %v2858
    %v2860 = vmul.f32 %v2522, %v2855
    %v2861 = vmul.f32 %v2524, %v2859
    %v2862 = vmul.f32 %v2528, %v2855
    %v2863 = vmul.f32 %v2530, %v2859
    %v2864 = vadd.f32 %v2848, %v2860
    %v2865 = vadd.f32 %v2849, %v2861
    %v2866 = vadd.f32 %v2850, %v2862
    %v2867 = vadd.f32 %v2851, %v2863
    %v2868 = vlaneseq
    %v2869 = vshrl.u32 %v2868, 7
    %v2870 = vsub.s32 2, %v2869
    %v2871 = vrot.slane %v2693, %v2870
    %v2872 = vlaneseq
    %v2873 = vshrl.u32 %v2872, 7
    %v2874 = vsub.s32 2, %v2873
    %v2875 = vrot.slane %v2707, %v2874
    %v2876 = vmul.f32 %v2534, %v2871
    %v2877 = vmul.f32 %v2536, %v2875
    %v2878 = vmul.f32 %v2540, %v2871
    %v2879 = vmul.f32 %v2542, %v2875
    %v2880 = vadd.f32 %v2864, %v2876
    %v2881 = vadd.f32 %v2865, %v2877
    %v2882 = vadd.f32 %v2866, %v2878
    %v2883 = vadd.f32 %v2867, %v2879
    %v2884 = vlaneseq
    %v2885 = vshrl.u32 %v2884, 7
    %v2886 = vsub.s32 3, %v2885
    %v2887 = vrot.slane %v2693, %v2886
    %v2888 = vlaneseq
    %v2889 = vshrl.u32 %v2888, 7
    %v2890 = vsub.s32 3, %v2889
    %v2891 = vrot.slane %v2707, %v2890
    %v2892 = vmul.f32 %v2546, %v2887
    %v2893 = vmul.f32 %v2548, %v2891
    %v2894 = vmul.f32 %v2552, %v2887
    %v2895 = vmul.f32 %v2554, %v2891
    %v2896 = vadd.f32 %v2880, %v2892
    %v2897 = vadd.f32 %v2881, %v2893
    %v2898 = vadd.f32 %v2882, %v2894
    %v2899 = vadd.f32 %v2883, %v2895
    %v2900 = vlaneseq
    %v2901 = vshrl.u32 %v2900, 7
    %v2902 = vsub.s32 4, %v2901
    %v2903 = vrot.slane %v2693, %v2902
    %v2904 = vlaneseq
    %v2905 = vshrl.u32 %v2904, 7
    %v2906 = vsub.s32 4, %v2905
    %v2907 = vrot.slane %v2707, %v2906
    %v2908 = vmul.f32 %v2558, %v2903
    %v2909 = vmul.f32 %v2560, %v2907
    %v2910 = vmul.f32 %v2564, %v2903
    %v2911 = vmul.f32 %v2566, %v2907
    %v2912 = vadd.f32 %v2896, %v2908
    %v2913 = vadd.f32 %v2897, %v2909
    %v2914 = vadd.f32 %v2898, %v2910
    %v2915 = vadd.f32 %v2899, %v2911
    %v2916 = vlaneseq
    %v2917 = vshrl.u32 %v2916, 7
    %v2918 = vsub.s32 5, %v2917
    %v2919 = vrot.slane %v2693, %v2918
    %v2920 = vlaneseq
    %v2921 = vshrl.u32 %v2920, 7
    %v2922 = vsub.s32 5, %v2921
    %v2923 = vrot.slane %v2707, %v2922
    %v2924 = vmul.f32 %v2570, %v2919
    %v2925 = vmul.f32 %v2572, %v2923
    %v2926 = vmul.f32 %v2576, %v2919
    %v2927 = vmul.f32 %v2578, %v2923
    %v2928 = vadd.f32 %v2912, %v2924
    %v2929 = vadd.f32 %v2913, %v2925
    %v2930 = vadd.f32 %v2914, %v2926
    %v2931 = vadd.f32 %v2915, %v2927
    %v2932 = vlaneseq
    %v2933 = vshrl.u32 %v2932, 7
    %v2934 = vsub.s32 6, %v2933
    %v2935 = vrot.slane %v2693, %v2934
    %v2936 = vlaneseq
    %v2937 = vshrl.u32 %v2936, 7
    %v2938 = vsub.s32 6, %v2937
    %v2939 = vrot.slane %v2707, %v2938
    %v2940 = vmul.f32 %v2582, %v2935
    %v2941 = vmul.f32 %v2584, %v2939
    %v2942 = vmul.f32 %v2588, %v2935
    %v2943 = vmul.f32 %v2590, %v2939
    %v2944 = vadd.f32 %v2928, %v2940
    %v2945 = vadd.f32 %v2929, %v2941
    %v2946 = vadd.f32 %v2930, %v2942
    %v2947 = vadd.f32 %v2931, %v2943
    %v2948 = vlaneseq
    %v2949 = vshrl.u32 %v2948, 7
    %v2950 = vsub.s32 7, %v2949
    %v2951 = vrot.slane %v2693, %v2950
    %v2952 = vlaneseq
    %v2953 = vshrl.u32 %v2952, 7
    %v2954 = vsub.s32 7, %v2953
    %v2955 = vrot.slane %v2707, %v2954
    %v2956 = vmul.f32 %v2594, %v2951
    %v2957 = vmul.f32 %v2596, %v2955
    %v2958 = vmul.f32 %v2600, %v2951
    %v2959 = vmul.f32 %v2602, %v2955
    %v2960 = vadd.f32 %v2944, %v2956
    %v2961 = vadd.f32 %v2945, %v2957
    %v2962 = vadd.f32 %v2946, %v2958
    %v2963 = vadd.f32 %v2947, %v2959
    %2966 = vrot.lane.b32.xlu0 %v2183, 112
    %v2967 = vpop.permute.xlu0 %2966
    %2968 = vrot.lane.b32.xlu0 %v2185, 112
    %v2969 = vpop.permute.xlu0 %2968
    %2970 = vrot.lane.b32.xlu0 %v2183, 96
    %v2971 = vpop.permute.xlu0 %2970
    %2972 = vrot.lane.b32.xlu0 %v2185, 96
    %v2973 = vpop.permute.xlu0 %2972
    %2974 = vrot.lane.b32.xlu0 %v2183, 80
    %v2975 = vpop.permute.xlu0 %2974
    %2976 = vrot.lane.b32.xlu0 %v2185, 80
    %v2977 = vpop.permute.xlu0 %2976
    %2978 = vrot.lane.b32.xlu0 %v2183, 64
    %v2979 = vpop.permute.xlu0 %2978
    %2980 = vrot.lane.b32.xlu0 %v2185, 64
    %v2981 = vpop.permute.xlu0 %2980
    %2982 = vrot.lane.b32.xlu0 %v2183, 48
    %v2983 = vpop.permute.xlu0 %2982
    %2984 = vrot.lane.b32.xlu0 %v2185, 48
    %v2985 = vpop.permute.xlu0 %2984
    %2986 = vrot.lane.b32.xlu0 %v2183, 32
    %v2987 = vpop.permute.xlu0 %2986
    %2988 = vrot.lane.b32.xlu0 %v2185, 32
    %v2989 = vpop.permute.xlu0 %2988
    %2990 = vrot.lane.b32.xlu0 %v2183, 16
    %v2991 = vpop.permute.xlu0 %2990
    %2992 = vrot.lane.b32.xlu0 %v2185, 16
    %v2993 = vpop.permute.xlu0 %2992
    %2996 = vrot.lane.b32.xlu0 %v2184, 112
    %v2997 = vpop.permute.xlu0 %2996
    %2998 = vrot.lane.b32.xlu0 %v2186, 112
    %v2999 = vpop.permute.xlu0 %2998
    %3000 = vrot.lane.b32.xlu0 %v2184, 96
    %v3001 = vpop.permute.xlu0 %3000
    %3002 = vrot.lane.b32.xlu0 %v2186, 96
    %v3003 = vpop.permute.xlu0 %3002
    %3004 = vrot.lane.b32.xlu0 %v2184, 80
    %v3005 = vpop.permute.xlu0 %3004
    %3006 = vrot.lane.b32.xlu0 %v2186, 80
    %v3007 = vpop.permute.xlu0 %3006
    %3008 = vrot.lane.b32.xlu0 %v2184, 64
    %v3009 = vpop.permute.xlu0 %3008
    %3010 = vrot.lane.b32.xlu0 %v2186, 64
    %v3011 = vpop.permute.xlu0 %3010
    %3012 = vrot.lane.b32.xlu0 %v2184, 48
    %v3013 = vpop.permute.xlu0 %3012
    %3014 = vrot.lane.b32.xlu0 %v2186, 48
    %v3015 = vpop.permute.xlu0 %3014
    %3016 = vrot.lane.b32.xlu0 %v2184, 32
    %v3017 = vpop.permute.xlu0 %3016
    %3018 = vrot.lane.b32.xlu0 %v2186, 32
    %v3019 = vpop.permute.xlu0 %3018
    %3020 = vrot.lane.b32.xlu0 %v2184, 16
    %v3021 = vpop.permute.xlu0 %3020
    %3022 = vrot.lane.b32.xlu0 %v2186, 16
    %v3023 = vpop.permute.xlu0 %3022
    %3026 = vrot.lane.b32.xlu0 %v2960, 112
    %v3027 = vpop.permute.xlu0 %3026
    %3028 = vrot.lane.b32.xlu0 %v2962, 112
    %v3029 = vpop.permute.xlu0 %3028
    %3030 = vrot.lane.b32.xlu0 %v2960, 96
    %v3031 = vpop.permute.xlu0 %3030
    %3032 = vrot.lane.b32.xlu0 %v2962, 96
    %v3033 = vpop.permute.xlu0 %3032
    %3034 = vrot.lane.b32.xlu0 %v2960, 80
    %v3035 = vpop.permute.xlu0 %3034
    %3036 = vrot.lane.b32.xlu0 %v2962, 80
    %v3037 = vpop.permute.xlu0 %3036
    %3038 = vrot.lane.b32.xlu0 %v2960, 64
    %v3039 = vpop.permute.xlu0 %3038
    %3040 = vrot.lane.b32.xlu0 %v2962, 64
    %v3041 = vpop.permute.xlu0 %3040
    %3042 = vrot.lane.b32.xlu0 %v2960, 48
    %v3043 = vpop.permute.xlu0 %3042
    %3044 = vrot.lane.b32.xlu0 %v2962, 48
    %v3045 = vpop.permute.xlu0 %3044
    %3046 = vrot.lane.b32.xlu0 %v2960, 32
    %v3047 = vpop.permute.xlu0 %3046
    %3048 = vrot.lane.b32.xlu0 %v2962, 32
    %v3049 = vpop.permute.xlu0 %3048
    %3050 = vrot.lane.b32.xlu0 %v2960, 16
    %v3051 = vpop.permute.xlu0 %3050
    %3052 = vrot.lane.b32.xlu0 %v2962, 16
    %v3053 = vpop.permute.xlu0 %3052
    %3056 = vrot.lane.b32.xlu0 %v2961, 112
    %v3057 = vpop.permute.xlu0 %3056
    %3058 = vrot.lane.b32.xlu0 %v2963, 112
    %v3059 = vpop.permute.xlu0 %3058
    %3060 = vrot.lane.b32.xlu0 %v2961, 96
    %v3061 = vpop.permute.xlu0 %3060
    %3062 = vrot.lane.b32.xlu0 %v2963, 96
    %v3063 = vpop.permute.xlu0 %3062
    %3064 = vrot.lane.b32.xlu0 %v2961, 80
    %v3065 = vpop.permute.xlu0 %3064
    %3066 = vrot.lane.b32.xlu0 %v2963, 80
    %v3067 = vpop.permute.xlu0 %3066
    %3068 = vrot.lane.b32.xlu0 %v2961, 64
    %v3069 = vpop.permute.xlu0 %3068
    %3070 = vrot.lane.b32.xlu0 %v2963, 64
    %v3071 = vpop.permute.xlu0 %3070
    %3072 = vrot.lane.b32.xlu0 %v2961, 48
    %v3073 = vpop.permute.xlu0 %3072
    %3074 = vrot.lane.b32.xlu0 %v2963, 48
    %v3075 = vpop.permute.xlu0 %3074
    %3076 = vrot.lane.b32.xlu0 %v2961, 32
    %v3077 = vpop.permute.xlu0 %3076
    %3078 = vrot.lane.b32.xlu0 %v2963, 32
    %v3079 = vpop.permute.xlu0 %3078
    %3080 = vrot.lane.b32.xlu0 %v2961, 16
    %v3081 = vpop.permute.xlu0 %3080
    %3082 = vrot.lane.b32.xlu0 %v2963, 16
    %v3083 = vpop.permute.xlu0 %3082
    %v3084 = vld [vmem:[%s2 + $0x38] sm:$0xf]
    %v3085 = vld [vmem:[%s2 + $0x40] sm:$0xff]
    %v3086 = vld [vmem:[%s2 + $0x48] sm:$0xff]
    %v3087 = vld [vmem:[%s2 + $0x50] sm:$0x1]
    %v3088 = vsel %vm1500, %v2183, 0
    %v3090 = vsel %vm1500, %v2185, 0
    %v3092 = vsel %vm1500, %v2967, 0
    %v3094 = vsel %vm1500, %v2969, 0
    %v3096 = vsel %vm1500, %v2971, 0
    %v3098 = vsel %vm1500, %v2973, 0
    %v3100 = vsel %vm1500, %v2975, 0
    %v3102 = vsel %vm1500, %v2977, 0
    %v3104 = vsel %vm1500, %v2979, 0
    %v3106 = vsel %vm1500, %v2981, 0
    %v3108 = vsel %vm1500, %v2983, 0
    %v3110 = vsel %vm1500, %v2985, 0
    %v3112 = vsel %vm1500, %v2987, 0
    %v3114 = vsel %vm1500, %v2989, 0
    %v3116 = vsel %vm1500, %v2991, 0
    %v3118 = vsel %vm1500, %v2993, 0
    %v3120 = vsel %vm1500, %v2184, 0
    %v3122 = vsel %vm1500, %v2186, 0
    %v3124 = vsel %vm1500, %v2997, 0
    %v3126 = vsel %vm1500, %v2999, 0
    %v3128 = vsel %vm1500, %v3001, 0
    %v3130 = vsel %vm1500, %v3003, 0
    %v3132 = vsel %vm1500, %v3005, 0
    %v3134 = vsel %vm1500, %v3007, 0
    %v3136 = vsel %vm1500, %v3009, 0
    %v3138 = vsel %vm1500, %v3011, 0
    %v3140 = vsel %vm1500, %v3013, 0
    %v3142 = vsel %vm1500, %v3015, 0
    %v3144 = vsel %vm1500, %v3017, 0
    %v3146 = vsel %vm1500, %v3019, 0
    %v3148 = vsel %vm1500, %v3021, 0
    %v3150 = vsel %vm1500, %v3023, 0
    %v3152 = vsel %vm1500, %v2960, 0
    %v3154 = vsel %vm1500, %v2962, 0
    %v3156 = vsel %vm1500, %v3027, 0
    %v3158 = vsel %vm1500, %v3029, 0
    %v3160 = vsel %vm1500, %v3031, 0
    %v3162 = vsel %vm1500, %v3033, 0
    %v3164 = vsel %vm1500, %v3035, 0
    %v3166 = vsel %vm1500, %v3037, 0
    %v3168 = vsel %vm1500, %v3039, 0
    %v3170 = vsel %vm1500, %v3041, 0
    %v3172 = vsel %vm1500, %v3043, 0
    %v3174 = vsel %vm1500, %v3045, 0
    %v3176 = vsel %vm1500, %v3047, 0
    %v3178 = vsel %vm1500, %v3049, 0
    %v3180 = vsel %vm1500, %v3051, 0
    %v3182 = vsel %vm1500, %v3053, 0
    %v3184 = vsel %vm1500, %v2961, 0
    %v3186 = vsel %vm1500, %v2963, 0
    %v3188 = vsel %vm1500, %v3057, 0
    %v3190 = vsel %vm1500, %v3059, 0
    %v3192 = vsel %vm1500, %v3061, 0
    %v3194 = vsel %vm1500, %v3063, 0
    %v3196 = vsel %vm1500, %v3065, 0
    %v3198 = vsel %vm1500, %v3067, 0
    %v3200 = vsel %vm1500, %v3069, 0
    %v3202 = vsel %vm1500, %v3071, 0
    %v3204 = vsel %vm1500, %v3073, 0
    %v3206 = vsel %vm1500, %v3075, 0
    %v3208 = vsel %vm1500, %v3077, 0
    %v3210 = vsel %vm1500, %v3079, 0
    %v3212 = vsel %vm1500, %v3081, 0
    %v3214 = vsel %vm1500, %v3083, 0
    %3216 = vmatprep.subr.mxu0 0.0
    %3217 = vmatpush1.msra.mxu0 %v3085
    %3218 = vmatprep.subr.mxu0 0.0
    %3219 = vmatpush1.msra.mxu0 %v3086
    %3220 = vmatprep.subr.mxu0 0.0
    %3221 = vmatpush1.msra.mxu0 0.0
    %3222 = vmatprep.subr.mxu0 0.0
    %3223 = vmatpush1.msra.mxu0 0.0
    %3224 = vmatprep.subr.mxu0 0.0
    %3225 = vmatpush1.msra.mxu0 0.0
    %3226 = vmatprep.subr.mxu0 0.0
    %3227 = vmatpush1.msra.mxu0 0.0
    %3228 = vmatprep.subr.mxu0 0.0
    %3229 = vmatpush1.msra.mxu0 0.0
    %3230 = vmatprep.subr.mxu0 0.0
    %3231 = vmatpush1.msra.mxu0 0.0
    %3232 = vmatprep.subr.mxu0 0.0
    %3233 = vmatpush1.msra.mxu0 0.0
    %3234 = vmatprep.subr.mxu0 0.0
    %3235 = vmatpush1.msra.mxu0 0.0
    %3236 = vmatprep.subr.mxu0 0.0
    %3237 = vmatpush1.msra.mxu0 0.0
    %3238 = vmatprep.subr.mxu0 0.0
    %3239 = vmatpush1.msra.mxu0 0.0
    %3240 = vmatprep.subr.mxu0 0.0
    %3241 = vmatpush1.msra.mxu0 0.0
    %3242 = vmatprep.subr.mxu0 0.0
    %3243 = vmatpush1.msra.mxu0 0.0
    %3244 = vmatprep.subr.mxu0 0.0
    %3245 = vmatpush1.msra.mxu0 0.0
    %3246 = vmatprep.subr.mxu0 0.0
    %3247 = vmatpush1.msra.mxu0 0.0
    %3248 = vmatprep.subr.mxu0 0.0
    %3249 = vmatpush1.msra.mxu0 0.0
    %3250 = vmatprep.subr.mxu0 0.0
    %3251 = vmatpush1.msra.mxu0 0.0
    %3252 = vmatprep.subr.mxu0 0.0
    %3253 = vmatpush1.msra.mxu0 0.0
    %3254 = vmatprep.subr.mxu0 0.0
    %3255 = vmatpush1.msra.mxu0 0.0
    %3256 = vmatprep.subr.mxu0 0.0
    %3257 = vmatpush1.msra.mxu0 0.0
    %3258 = vmatprep.subr.mxu0 0.0
    %3259 = vmatpush1.msra.mxu0 0.0
    %3260 = vmatprep.subr.mxu0 0.0
    %3261 = vmatpush1.msra.mxu0 0.0
    %3262 = vmatprep.subr.mxu0 0.0
    %3263 = vmatpush1.msra.mxu0 0.0
    %3264 = vmatprep.subr.mxu0 0.0
    %3265 = vmatpush1.msra.mxu0 0.0
    %3266 = vmatprep.subr.mxu0 0.0
    %3267 = vmatpush1.msra.mxu0 0.0
    %3268 = vmatprep.subr.mxu0 0.0
    %3269 = vmatpush1.msra.mxu0 0.0
    %3270 = vmatprep.subr.mxu0 0.0
    %3271 = vmatpush1.msra.mxu0 0.0
    %3272 = vmatprep.subr.mxu0 0.0
    %3273 = vmatpush1.msra.mxu0 0.0
    %3274 = vmatprep.subr.mxu0 0.0
    %3275 = vmatpush1.msra.mxu0 0.0
    %3276 = vmatprep.subr.mxu0 0.0
    %3277 = vmatpush1.msra.mxu0 0.0
    %3278 = vmatprep.subr.mxu0 0.0
    %3279 = vmatpush1.msra.mxu0 0.0
    %3280 = vmatprep.mubr.f32.mxu0 0.0
    %3281 = vmatmul.mubr.f32.gmra.mrb[0].mxu0 %v3088
    %v3282 = vpop.f32.mrb[0].mxu0
    %v3283 = vadd.f32 0.0, %v3282
    %v3284 = vpop.f32.mrb[0].mxu0
    %3285 = vmatprep.mubr.f32.mxu0 0.0
    %3286 = vmatmul.mubr.f32.gmra.mrb[0].mxu0 %v3090
    %v3287 = vpop.f32.mrb[0].mxu0
    %v3288 = vadd.f32 0.0, %v3287
    %v3289 = vpop.f32.mrb[0].mxu0
    %3290 = vmatprep.mubr.f32.mxu0 0.0
    %3291 = vmatmul.mubr.f32.gmra.mrb[0].mxu0 %v3092
    %v3292 = vpop.f32.mrb[0].mxu0
    %v3293 = vadd.f32 0.0, %v3292
    %v3294 = vpop.f32.mrb[0].mxu0
    %3295 = vmatprep.mubr.f32.mxu0 0.0
    %3296 = vmatmul.mubr.f32.gmra.mrb[0].mxu0 %v3094
    %v3297 = vpop.f32.mrb[0].mxu0
    %v3298 = vadd.f32 0.0, %v3297
    %v3299 = vpop.f32.mrb[0].mxu0
    %3300 = vmatprep.mubr.f32.mxu0 0.0
    %3301 = vmatmul.mubr.f32.gmra.mrb[0].mxu0 %v3096
    %v3302 = vpop.f32.mrb[0].mxu0
    %v3303 = vadd.f32 0.0, %v3302
    %v3304 = vpop.f32.mrb[0].mxu0
    %3305 = vmatprep.mubr.f32.mxu0 0.0
    %3306 = vmatmul.mubr.f32.gmra.mrb[0].mxu0 %v3098
    %v3307 = vpop.f32.mrb[0].mxu0
    %v3308 = vadd.f32 0.0, %v3307
    %v3309 = vpop.f32.mrb[0].mxu0
    %3310 = vmatprep.mubr.f32.mxu0 0.0
    %3311 = vmatmul.mubr.f32.gmra.mrb[0].mxu0 %v3100
    %v3312 = vpop.f32.mrb[0].mxu0
    %v3313 = vadd.f32 0.0, %v3312
    %v3314 = vpop.f32.mrb[0].mxu0
    %3315 = vmatprep.mubr.f32.mxu0 0.0
    %3316 = vmatmul.mubr.f32.gmra.mrb[0].mxu0 %v3102
    %v3317 = vpop.f32.mrb[0].mxu0
    %v3318 = vadd.f32 0.0, %v3317
    %v3319 = vpop.f32.mrb[0].mxu0
    %3320 = vmatprep.mubr.f32.mxu0 0.0
    %3321 = vmatmul.mubr.f32.gmra.mrb[0].mxu0 %v3104
    %v3322 = vpop.f32.mrb[0].mxu0
    %v3323 = vadd.f32 0.0, %v3322
    %v3324 = vpop.f32.mrb[0].mxu0
    %3325 = vmatprep.mubr.f32.mxu0 0.0
    %3326 = vmatmul.mubr.f32.gmra.mrb[0].mxu0 %v3106
    %v3327 = vpop.f32.mrb[0].mxu0
    %v3328 = vadd.f32 0.0, %v3327
    %v3329 = vpop.f32.mrb[0].mxu0
    %3330 = vmatprep.mubr.f32.mxu0 0.0
    %3331 = vmatmul.mubr.f32.gmra.mrb[0].mxu0 %v3108
    %v3332 = vpop.f32.mrb[0].mxu0
    %v3333 = vadd.f32 0.0, %v3332
    %v3334 = vpop.f32.mrb[0].mxu0
    %3335 = vmatprep.mubr.f32.mxu0 0.0
    %3336 = vmatmul.mubr.f32.gmra.mrb[0].mxu0 %v3110
    %v3337 = vpop.f32.mrb[0].mxu0
    %v3338 = vadd.f32 0.0, %v3337
    %v3339 = vpop.f32.mrb[0].mxu0
    %3340 = vmatprep.mubr.f32.mxu0 0.0
    %3341 = vmatmul.mubr.f32.gmra.mrb[0].mxu0 %v3112
    %v3342 = vpop.f32.mrb[0].mxu0
    %v3343 = vadd.f32 0.0, %v3342
    %v3344 = vpop.f32.mrb[0].mxu0
    %3345 = vmatprep.mubr.f32.mxu0 0.0
    %3346 = vmatmul.mubr.f32.gmra.mrb[0].mxu0 %v3114
    %v3347 = vpop.f32.mrb[0].mxu0
    %v3348 = vadd.f32 0.0, %v3347
    %v3349 = vpop.f32.mrb[0].mxu0
    %3350 = vmatprep.mubr.f32.mxu0 0.0
    %3351 = vmatmul.mubr.f32.gmra.mrb[0].mxu0 %v3116
    %v3352 = vpop.f32.mrb[0].mxu0
    %v3353 = vadd.f32 0.0, %v3352
    %v3354 = vpop.f32.mrb[0].mxu0
    %3355 = vmatprep.mubr.f32.mxu0 0.0
    %3356 = vmatmul.mubr.f32.gmra.mrb[0].mxu0 %v3118
    %v3357 = vpop.f32.mrb[0].mxu0
    %v3358 = vadd.f32 0.0, %v3357
    %v3359 = vpop.f32.mrb[0].mxu0
    %3360 = vmatprep.mubr.f32.mxu0 0.0
    %3361 = vmatmul.mubr.f32.gmra.mrb[0].mxu0 %v3120
    %v3362 = vpop.f32.mrb[0].mxu0
    %v3363 = vadd.f32 0.0, %v3362
    %v3364 = vpop.f32.mrb[0].mxu0
    %3365 = vmatprep.mubr.f32.mxu0 0.0
    %3366 = vmatmul.mubr.f32.gmra.mrb[0].mxu0 %v3122
    %v3367 = vpop.f32.mrb[0].mxu0
    %v3368 = vadd.f32 0.0, %v3367
    %v3369 = vpop.f32.mrb[0].mxu0
    %3370 = vmatprep.mubr.f32.mxu0 0.0
    %3371 = vmatmul.mubr.f32.gmra.mrb[0].mxu0 %v3124
    %v3372 = vpop.f32.mrb[0].mxu0
    %v3373 = vadd.f32 0.0, %v3372
    %v3374 = vpop.f32.mrb[0].mxu0
    %3375 = vmatprep.mubr.f32.mxu0 0.0
    %3376 = vmatmul.mubr.f32.gmra.mrb[0].mxu0 %v3126
    %v3377 = vpop.f32.mrb[0].mxu0
    %v3378 = vadd.f32 0.0, %v3377
    %v3379 = vpop.f32.mrb[0].mxu0
    %3380 = vmatprep.mubr.f32.mxu0 0.0
    %3381 = vmatmul.mubr.f32.gmra.mrb[0].mxu0 %v3128
    %v3382 = vpop.f32.mrb[0].mxu0
    %v3383 = vadd.f32 0.0, %v3382
    %v3384 = vpop.f32.mrb[0].mxu0
    %3385 = vmatprep.mubr.f32.mxu0 0.0
    %3386 = vmatmul.mubr.f32.gmra.mrb[0].mxu0 %v3130
    %v3387 = vpop.f32.mrb[0].mxu0
    %v3388 = vadd.f32 0.0, %v3387
    %v3389 = vpop.f32.mrb[0].mxu0
    %3390 = vmatprep.mubr.f32.mxu0 0.0
    %3391 = vmatmul.mubr.f32.gmra.mrb[0].mxu0 %v3132
    %v3392 = vpop.f32.mrb[0].mxu0
    %v3393 = vadd.f32 0.0, %v3392
    %v3394 = vpop.f32.mrb[0].mxu0
    %3395 = vmatprep.mubr.f32.mxu0 0.0
    %3396 = vmatmul.mubr.f32.gmra.mrb[0].mxu0 %v3134
    %v3397 = vpop.f32.mrb[0].mxu0
    %v3398 = vadd.f32 0.0, %v3397
    %v3399 = vpop.f32.mrb[0].mxu0
    %3400 = vmatprep.mubr.f32.mxu0 0.0
    %3401 = vmatmul.mubr.f32.gmra.mrb[0].mxu0 %v3136
    %v3402 = vpop.f32.mrb[0].mxu0
    %v3403 = vadd.f32 0.0, %v3402
    %v3404 = vpop.f32.mrb[0].mxu0
    %3405 = vmatprep.mubr.f32.mxu0 0.0
    %3406 = vmatmul.mubr.f32.gmra.mrb[0].mxu0 %v3138
    %v3407 = vpop.f32.mrb[0].mxu0
    %v3408 = vadd.f32 0.0, %v3407
    %v3409 = vpop.f32.mrb[0].mxu0
    %3410 = vmatprep.mubr.f32.mxu0 0.0
    %3411 = vmatmul.mubr.f32.gmra.mrb[0].mxu0 %v3140
    %v3412 = vpop.f32.mrb[0].mxu0
    %v3413 = vadd.f32 0.0, %v3412
    %v3414 = vpop.f32.mrb[0].mxu0
    %3415 = vmatprep.mubr.f32.mxu0 0.0
    %3416 = vmatmul.mubr.f32.gmra.mrb[0].mxu0 %v3142
    %v3417 = vpop.f32.mrb[0].mxu0
    %v3418 = vadd.f32 0.0, %v3417
    %v3419 = vpop.f32.mrb[0].mxu0
    %3420 = vmatprep.mubr.f32.mxu0 0.0
    %3421 = vmatmul.mubr.f32.gmra.mrb[0].mxu0 %v3144
    %v3422 = vpop.f32.mrb[0].mxu0
    %v3423 = vadd.f32 0.0, %v3422
    %v3424 = vpop.f32.mrb[0].mxu0
    %3425 = vmatprep.mubr.f32.mxu0 0.0
    %3426 = vmatmul.mubr.f32.gmra.mrb[0].mxu0 %v3146
    %v3427 = vpop.f32.mrb[0].mxu0
    %v3428 = vadd.f32 0.0, %v3427
    %v3429 = vpop.f32.mrb[0].mxu0
    %3430 = vmatprep.mubr.f32.mxu0 0.0
    %3431 = vmatmul.mubr.f32.gmra.mrb[0].mxu0 %v3148
    %v3432 = vpop.f32.mrb[0].mxu0
    %v3433 = vadd.f32 0.0, %v3432
    %v3434 = vpop.f32.mrb[0].mxu0
    %3435 = vmatprep.mubr.f32.mxu0 0.0
    %3436 = vmatmul.mubr.f32.gmra.mrb[0].mxu0 %v3150
    %v3437 = vpop.f32.mrb[0].mxu0
    %v3438 = vadd.f32 0.0, %v3437
    %v3439 = vpop.f32.mrb[0].mxu0
    %3440 = vmatprep.mubr.f32.mxu0 0.0
    %3441 = vmatmul.mubr.f32.gmra.mrb[0].mxu0 %v3152
    %v3442 = vpop.f32.mrb[0].mxu0
    %v3443 = vadd.f32 0.0, %v3442
    %v3444 = vpop.f32.mrb[0].mxu0
    %3445 = vmatprep.mubr.f32.mxu0 0.0
    %3446 = vmatmul.mubr.f32.gmra.mrb[0].mxu0 %v3154
    %v3447 = vpop.f32.mrb[0].mxu0
    %v3448 = vadd.f32 0.0, %v3447
    %v3449 = vpop.f32.mrb[0].mxu0
    %3450 = vmatprep.mubr.f32.mxu0 0.0
    %3451 = vmatmul.mubr.f32.gmra.mrb[0].mxu0 %v3156
    %v3452 = vpop.f32.mrb[0].mxu0
    %v3453 = vadd.f32 0.0, %v3452
    %v3454 = vpop.f32.mrb[0].mxu0
    %3455 = vmatprep.mubr.f32.mxu0 0.0
    %3456 = vmatmul.mubr.f32.gmra.mrb[0].mxu0 %v3158
    %v3457 = vpop.f32.mrb[0].mxu0
    %v3458 = vadd.f32 0.0, %v3457
    %v3459 = vpop.f32.mrb[0].mxu0
    %3460 = vmatprep.mubr.f32.mxu0 0.0
    %3461 = vmatmul.mubr.f32.gmra.mrb[0].mxu0 %v3160
    %v3462 = vpop.f32.mrb[0].mxu0
    %v3463 = vadd.f32 0.0, %v3462
    %v3464 = vpop.f32.mrb[0].mxu0
    %3465 = vmatprep.mubr.f32.mxu0 0.0
    %3466 = vmatmul.mubr.f32.gmra.mrb[0].mxu0 %v3162
    %v3467 = vpop.f32.mrb[0].mxu0
    %v3468 = vadd.f32 0.0, %v3467
    %v3469 = vpop.f32.mrb[0].mxu0
    %3470 = vmatprep.mubr.f32.mxu0 0.0
    %3471 = vmatmul.mubr.f32.gmra.mrb[0].mxu0 %v3164
    %v3472 = vpop.f32.mrb[0].mxu0
    %v3473 = vadd.f32 0.0, %v3472
    %v3474 = vpop.f32.mrb[0].mxu0
    %3475 = vmatprep.mubr.f32.mxu0 0.0
    %3476 = vmatmul.mubr.f32.gmra.mrb[0].mxu0 %v3166
    %v3477 = vpop.f32.mrb[0].mxu0
    %v3478 = vadd.f32 0.0, %v3477
    %v3479 = vpop.f32.mrb[0].mxu0
    %3480 = vmatprep.mubr.f32.mxu0 0.0
    %3481 = vmatmul.mubr.f32.gmra.mrb[0].mxu0 %v3168
    %v3482 = vpop.f32.mrb[0].mxu0
    %v3483 = vadd.f32 0.0, %v3482
    %v3484 = vpop.f32.mrb[0].mxu0
    %3485 = vmatprep.mubr.f32.mxu0 0.0
    %3486 = vmatmul.mubr.f32.gmra.mrb[0].mxu0 %v3170
    %v3487 = vpop.f32.mrb[0].mxu0
    %v3488 = vadd.f32 0.0, %v3487
    %v3489 = vpop.f32.mrb[0].mxu0
    %3490 = vmatprep.mubr.f32.mxu0 0.0
    %3491 = vmatmul.mubr.f32.gmra.mrb[0].mxu0 %v3172
    %v3492 = vpop.f32.mrb[0].mxu0
    %v3493 = vadd.f32 0.0, %v3492
    %v3494 = vpop.f32.mrb[0].mxu0
    %3495 = vmatprep.mubr.f32.mxu0 0.0
    %3496 = vmatmul.mubr.f32.gmra.mrb[0].mxu0 %v3174
    %v3497 = vpop.f32.mrb[0].mxu0
    %v3498 = vadd.f32 0.0, %v3497
    %v3499 = vpop.f32.mrb[0].mxu0
    %3500 = vmatprep.mubr.f32.mxu0 0.0
    %3501 = vmatmul.mubr.f32.gmra.mrb[0].mxu0 %v3176
    %v3502 = vpop.f32.mrb[0].mxu0
    %v3503 = vadd.f32 0.0, %v3502
    %v3504 = vpop.f32.mrb[0].mxu0
    %3505 = vmatprep.mubr.f32.mxu0 0.0
    %3506 = vmatmul.mubr.f32.gmra.mrb[0].mxu0 %v3178
    %v3507 = vpop.f32.mrb[0].mxu0
    %v3508 = vadd.f32 0.0, %v3507
    %v3509 = vpop.f32.mrb[0].mxu0
    %3510 = vmatprep.mubr.f32.mxu0 0.0
    %3511 = vmatmul.mubr.f32.gmra.mrb[0].mxu0 %v3180
    %v3512 = vpop.f32.mrb[0].mxu0
    %v3513 = vadd.f32 0.0, %v3512
    %v3514 = vpop.f32.mrb[0].mxu0
    %3515 = vmatprep.mubr.f32.mxu0 0.0
    %3516 = vmatmul.mubr.f32.gmra.mrb[0].mxu0 %v3182
    %v3517 = vpop.f32.mrb[0].mxu0
    %v3518 = vadd.f32 0.0, %v3517
    %v3519 = vpop.f32.mrb[0].mxu0
    %3520 = vmatprep.mubr.f32.mxu0 0.0
    %3521 = vmatmul.mubr.f32.gmra.mrb[0].mxu0 %v3184
    %v3522 = vpop.f32.mrb[0].mxu0
    %v3523 = vadd.f32 0.0, %v3522
    %v3524 = vpop.f32.mrb[0].mxu0
    %3525 = vmatprep.mubr.f32.mxu0 0.0
    %3526 = vmatmul.mubr.f32.gmra.mrb[0].mxu0 %v3186
    %v3527 = vpop.f32.mrb[0].mxu0
    %v3528 = vadd.f32 0.0, %v3527
    %v3529 = vpop.f32.mrb[0].mxu0
    %3530 = vmatprep.mubr.f32.mxu0 0.0
    %3531 = vmatmul.mubr.f32.gmra.mrb[0].mxu0 %v3188
    %v3532 = vpop.f32.mrb[0].mxu0
    %v3533 = vadd.f32 0.0, %v3532
    %v3534 = vpop.f32.mrb[0].mxu0
    %3535 = vmatprep.mubr.f32.mxu0 0.0
    %3536 = vmatmul.mubr.f32.gmra.mrb[0].mxu0 %v3190
    %v3537 = vpop.f32.mrb[0].mxu0
    %v3538 = vadd.f32 0.0, %v3537
    %v3539 = vpop.f32.mrb[0].mxu0
    %3540 = vmatprep.mubr.f32.mxu0 0.0
    %3541 = vmatmul.mubr.f32.gmra.mrb[0].mxu0 %v3192
    %v3542 = vpop.f32.mrb[0].mxu0
    %v3543 = vadd.f32 0.0, %v3542
    %v3544 = vpop.f32.mrb[0].mxu0
    %3545 = vmatprep.mubr.f32.mxu0 0.0
    %3546 = vmatmul.mubr.f32.gmra.mrb[0].mxu0 %v3194
    %v3547 = vpop.f32.mrb[0].mxu0
    %v3548 = vadd.f32 0.0, %v3547
    %v3549 = vpop.f32.mrb[0].mxu0
    %3550 = vmatprep.mubr.f32.mxu0 0.0
    %3551 = vmatmul.mubr.f32.gmra.mrb[0].mxu0 %v3196
    %v3552 = vpop.f32.mrb[0].mxu0
    %v3553 = vadd.f32 0.0, %v3552
    %v3554 = vpop.f32.mrb[0].mxu0
    %3555 = vmatprep.mubr.f32.mxu0 0.0
    %3556 = vmatmul.mubr.f32.gmra.mrb[0].mxu0 %v3198
    %v3557 = vpop.f32.mrb[0].mxu0
    %v3558 = vadd.f32 0.0, %v3557
    %v3559 = vpop.f32.mrb[0].mxu0
    %3560 = vmatprep.mubr.f32.mxu0 0.0
    %3561 = vmatmul.mubr.f32.gmra.mrb[0].mxu0 %v3200
    %v3562 = vpop.f32.mrb[0].mxu0
    %v3563 = vadd.f32 0.0, %v3562
    %v3564 = vpop.f32.mrb[0].mxu0
    %3565 = vmatprep.mubr.f32.mxu0 0.0
    %3566 = vmatmul.mubr.f32.gmra.mrb[0].mxu0 %v3202
    %v3567 = vpop.f32.mrb[0].mxu0
    %v3568 = vadd.f32 0.0, %v3567
    %v3569 = vpop.f32.mrb[0].mxu0
    %3570 = vmatprep.mubr.f32.mxu0 0.0
    %3571 = vmatmul.mubr.f32.gmra.mrb[0].mxu0 %v3204
    %v3572 = vpop.f32.mrb[0].mxu0
    %v3573 = vadd.f32 0.0, %v3572
    %v3574 = vpop.f32.mrb[0].mxu0
    %3575 = vmatprep.mubr.f32.mxu0 0.0
    %3576 = vmatmul.mubr.f32.gmra.mrb[0].mxu0 %v3206
    %v3577 = vpop.f32.mrb[0].mxu0
    %v3578 = vadd.f32 0.0, %v3577
    %v3579 = vpop.f32.mrb[0].mxu0
    %3580 = vmatprep.mubr.f32.mxu0 0.0
    %3581 = vmatmul.mubr.f32.gmra.mrb[0].mxu0 %v3208
    %v3582 = vpop.f32.mrb[0].mxu0
    %v3583 = vadd.f32 0.0, %v3582
    %v3584 = vpop.f32.mrb[0].mxu0
    %3585 = vmatprep.mubr.f32.mxu0 0.0
    %3586 = vmatmul.mubr.f32.gmra.mrb[0].mxu0 %v3210
    %v3587 = vpop.f32.mrb[0].mxu0
    %v3588 = vadd.f32 0.0, %v3587
    %v3589 = vpop.f32.mrb[0].mxu0
    %3590 = vmatprep.mubr.f32.mxu0 0.0
    %3591 = vmatmul.mubr.f32.gmra.mrb[0].mxu0 %v3212
    %v3592 = vpop.f32.mrb[0].mxu0
    %v3593 = vadd.f32 0.0, %v3592
    %v3594 = vpop.f32.mrb[0].mxu0
    %3595 = vmatprep.mubr.f32.mxu0 0.0
    %3596 = vmatmul.mubr.f32.gmra.mrb[0].mxu0 %v3214
    %v3597 = vpop.f32.mrb[0].mxu0
    %v3598 = vadd.f32 0.0, %v3597
    %v3599 = vpop.f32.mrb[0].mxu0
    %3600 = vdwg.mxu0
    %v3602 = vsel %vm300, %v3084, 0
    %3604 = vmatprep.subr.mxu0 0.0
    %3605 = vmatpush1.msra.mxu0 %v3602
    %3606 = vmatprep.subr.mxu0 0.0
    %3607 = vmatpush1.msra.mxu0 0.0
    %3608 = vmatprep.subr.mxu0 0.0
    %3609 = vmatpush1.msra.mxu0 0.0
    %3610 = vmatprep.subr.mxu0 0.0
    %3611 = vmatpush1.msra.mxu0 0.0
    %3612 = vmatprep.subr.mxu0 0.0
    %3613 = vmatpush1.msra.mxu0 0.0
    %3614 = vmatprep.subr.mxu0 0.0
    %3615 = vmatpush1.msra.mxu0 0.0
    %3616 = vmatprep.subr.mxu0 0.0
    %3617 = vmatpush1.msra.mxu0 0.0
    %3618 = vmatprep.subr.mxu0 0.0
    %3619 = vmatpush1.msra.mxu0 0.0
    %3620 = vmatprep.subr.mxu0 0.0
    %3621 = vmatpush1.msra.mxu0 0.0
    %3622 = vmatprep.subr.mxu0 0.0
    %3623 = vmatpush1.msra.mxu0 0.0
    %3624 = vmatprep.subr.mxu0 0.0
    %3625 = vmatpush1.msra.mxu0 0.0
    %3626 = vmatprep.subr.mxu0 0.0
    %3627 = vmatpush1.msra.mxu0 0.0
    %3628 = vmatprep.subr.mxu0 0.0
    %3629 = vmatpush1.msra.mxu0 0.0
    %3630 = vmatprep.subr.mxu0 0.0
    %3631 = vmatpush1.msra.mxu0 0.0
    %3632 = vmatprep.subr.mxu0 0.0
    %3633 = vmatpush1.msra.mxu0 0.0
    %3634 = vmatprep.subr.mxu0 0.0
    %3635 = vmatpush1.msra.mxu0 0.0
    %3636 = vmatprep.subr.mxu0 0.0
    %3637 = vmatpush1.msra.mxu0 0.0
    %3638 = vmatprep.subr.mxu0 0.0
    %3639 = vmatpush1.msra.mxu0 0.0
    %3640 = vmatprep.subr.mxu0 0.0
    %3641 = vmatpush1.msra.mxu0 0.0
    %3642 = vmatprep.subr.mxu0 0.0
    %3643 = vmatpush1.msra.mxu0 0.0
    %3644 = vmatprep.subr.mxu0 0.0
    %3645 = vmatpush1.msra.mxu0 0.0
    %3646 = vmatprep.subr.mxu0 0.0
    %3647 = vmatpush1.msra.mxu0 0.0
    %3648 = vmatprep.subr.mxu0 0.0
    %3649 = vmatpush1.msra.mxu0 0.0
    %3650 = vmatprep.subr.mxu0 0.0
    %3651 = vmatpush1.msra.mxu0 0.0
    %3652 = vmatprep.subr.mxu0 0.0
    %3653 = vmatpush1.msra.mxu0 0.0
    %3654 = vmatprep.subr.mxu0 0.0
    %3655 = vmatpush1.msra.mxu0 0.0
    %3656 = vmatprep.subr.mxu0 0.0
    %3657 = vmatpush1.msra.mxu0 0.0
    %3658 = vmatprep.subr.mxu0 0.0
    %3659 = vmatpush1.msra.mxu0 0.0
    %3660 = vmatprep.subr.mxu0 0.0
    %3661 = vmatpush1.msra.mxu0 0.0
    %3662 = vmatprep.subr.mxu0 0.0
    %3663 = vmatpush1.msra.mxu0 0.0
    %3664 = vmatprep.subr.mxu0 0.0
    %3665 = vmatpush1.msra.mxu0 0.0
    %3666 = vmatprep.subr.mxu0 0.0
    %3667 = vmatpush1.msra.mxu0 0.0
    %3668 = vmatprep.mubr.f32.mxu0 0.0
    %3669 = vmatmul.mubr.f32.gmra.mrb[0].mxu0 %v109
    %v3670 = vpop.f32.mrb[0].mxu0
    %v3671 = vadd.f32 %v3283, %v3670
    %v3672 = vpop.f32.mrb[0].mxu0
    %3673 = vmatprep.mubr.f32.mxu0 0.0
    %3674 = vmatmul.mubr.f32.gmra.mrb[0].mxu0 %v112
    %v3675 = vpop.f32.mrb[0].mxu0
    %v3676 = vadd.f32 %v3288, %v3675
    %v3677 = vpop.f32.mrb[0].mxu0
    %3678 = vmatprep.mubr.f32.mxu0 0.0
    %3679 = vmatmul.mubr.f32.gmra.mrb[0].mxu0 %v115
    %v3680 = vpop.f32.mrb[0].mxu0
    %v3681 = vadd.f32 %v3293, %v3680
    %v3682 = vpop.f32.mrb[0].mxu0
    %3683 = vmatprep.mubr.f32.mxu0 0.0
    %3684 = vmatmul.mubr.f32.gmra.mrb[0].mxu0 %v118
    %v3685 = vpop.f32.mrb[0].mxu0
    %v3686 = vadd.f32 %v3298, %v3685
    %v3687 = vpop.f32.mrb[0].mxu0
    %3688 = vmatprep.mubr.f32.mxu0 0.0
    %3689 = vmatmul.mubr.f32.gmra.mrb[0].mxu0 %v121
    %v3690 = vpop.f32.mrb[0].mxu0
    %v3691 = vadd.f32 %v3303, %v3690
    %v3692 = vpop.f32.mrb[0].mxu0
    %3693 = vmatprep.mubr.f32.mxu0 0.0
    %3694 = vmatmul.mubr.f32.gmra.mrb[0].mxu0 %v124
    %v3695 = vpop.f32.mrb[0].mxu0
    %v3696 = vadd.f32 %v3308, %v3695
    %v3697 = vpop.f32.mrb[0].mxu0
    %3698 = vmatprep.mubr.f32.mxu0 0.0
    %3699 = vmatmul.mubr.f32.gmra.mrb[0].mxu0 %v127
    %v3700 = vpop.f32.mrb[0].mxu0
    %v3701 = vadd.f32 %v3313, %v3700
    %v3702 = vpop.f32.mrb[0].mxu0
    %3703 = vmatprep.mubr.f32.mxu0 0.0
    %3704 = vmatmul.mubr.f32.gmra.mrb[0].mxu0 %v130
    %v3705 = vpop.f32.mrb[0].mxu0
    %v3706 = vadd.f32 %v3318, %v3705
    %v3707 = vpop.f32.mrb[0].mxu0
    %3708 = vmatprep.mubr.f32.mxu0 0.0
    %3709 = vmatmul.mubr.f32.gmra.mrb[0].mxu0 %v133
    %v3710 = vpop.f32.mrb[0].mxu0
    %v3711 = vadd.f32 %v3323, %v3710
    %v3712 = vpop.f32.mrb[0].mxu0
    %3713 = vmatprep.mubr.f32.mxu0 0.0
    %3714 = vmatmul.mubr.f32.gmra.mrb[0].mxu0 %v136
    %v3715 = vpop.f32.mrb[0].mxu0
    %v3716 = vadd.f32 %v3328, %v3715
    %v3717 = vpop.f32.mrb[0].mxu0
    %3718 = vmatprep.mubr.f32.mxu0 0.0
    %3719 = vmatmul.mubr.f32.gmra.mrb[0].mxu0 %v139
    %v3720 = vpop.f32.mrb[0].mxu0
    %v3721 = vadd.f32 %v3333, %v3720
    %v3722 = vpop.f32.mrb[0].mxu0
    %3723 = vmatprep.mubr.f32.mxu0 0.0
    %3724 = vmatmul.mubr.f32.gmra.mrb[0].mxu0 %v142
    %v3725 = vpop.f32.mrb[0].mxu0
    %v3726 = vadd.f32 %v3338, %v3725
    %v3727 = vpop.f32.mrb[0].mxu0
    %3728 = vmatprep.mubr.f32.mxu0 0.0
    %3729 = vmatmul.mubr.f32.gmra.mrb[0].mxu0 %v145
    %v3730 = vpop.f32.mrb[0].mxu0
    %v3731 = vadd.f32 %v3343, %v3730
    %v3732 = vpop.f32.mrb[0].mxu0
    %3733 = vmatprep.mubr.f32.mxu0 0.0
    %3734 = vmatmul.mubr.f32.gmra.mrb[0].mxu0 %v148
    %v3735 = vpop.f32.mrb[0].mxu0
    %v3736 = vadd.f32 %v3348, %v3735
    %v3737 = vpop.f32.mrb[0].mxu0
    %3738 = vmatprep.mubr.f32.mxu0 0.0
    %3739 = vmatmul.mubr.f32.gmra.mrb[0].mxu0 %v151
    %v3740 = vpop.f32.mrb[0].mxu0
    %v3741 = vadd.f32 %v3353, %v3740
    %v3742 = vpop.f32.mrb[0].mxu0
    %3743 = vmatprep.mubr.f32.mxu0 0.0
    %3744 = vmatmul.mubr.f32.gmra.mrb[0].mxu0 %v154
    %v3745 = vpop.f32.mrb[0].mxu0
    %v3746 = vadd.f32 %v3358, %v3745
    %v3747 = vpop.f32.mrb[0].mxu0
    %3748 = vmatprep.mubr.f32.mxu0 0.0
    %3749 = vmatmul.mubr.f32.gmra.mrb[0].mxu0 %v157
    %v3750 = vpop.f32.mrb[0].mxu0
    %v3751 = vadd.f32 %v3363, %v3750
    %v3752 = vpop.f32.mrb[0].mxu0
    %3753 = vmatprep.mubr.f32.mxu0 0.0
    %3754 = vmatmul.mubr.f32.gmra.mrb[0].mxu0 %v160
    %v3755 = vpop.f32.mrb[0].mxu0
    %v3756 = vadd.f32 %v3368, %v3755
    %v3757 = vpop.f32.mrb[0].mxu0
    %3758 = vmatprep.mubr.f32.mxu0 0.0
    %3759 = vmatmul.mubr.f32.gmra.mrb[0].mxu0 %v163
    %v3760 = vpop.f32.mrb[0].mxu0
    %v3761 = vadd.f32 %v3373, %v3760
    %v3762 = vpop.f32.mrb[0].mxu0
    %3763 = vmatprep.mubr.f32.mxu0 0.0
    %3764 = vmatmul.mubr.f32.gmra.mrb[0].mxu0 %v166
    %v3765 = vpop.f32.mrb[0].mxu0
    %v3766 = vadd.f32 %v3378, %v3765
    %v3767 = vpop.f32.mrb[0].mxu0
    %3768 = vmatprep.mubr.f32.mxu0 0.0
    %3769 = vmatmul.mubr.f32.gmra.mrb[0].mxu0 %v169
    %v3770 = vpop.f32.mrb[0].mxu0
    %v3771 = vadd.f32 %v3383, %v3770
    %v3772 = vpop.f32.mrb[0].mxu0
    %3773 = vmatprep.mubr.f32.mxu0 0.0
    %3774 = vmatmul.mubr.f32.gmra.mrb[0].mxu0 %v172
    %v3775 = vpop.f32.mrb[0].mxu0
    %v3776 = vadd.f32 %v3388, %v3775
    %v3777 = vpop.f32.mrb[0].mxu0
    %3778 = vmatprep.mubr.f32.mxu0 0.0
    %3779 = vmatmul.mubr.f32.gmra.mrb[0].mxu0 %v175
    %v3780 = vpop.f32.mrb[0].mxu0
    %v3781 = vadd.f32 %v3393, %v3780
    %v3782 = vpop.f32.mrb[0].mxu0
    %3783 = vmatprep.mubr.f32.mxu0 0.0
    %3784 = vmatmul.mubr.f32.gmra.mrb[0].mxu0 %v178
    %v3785 = vpop.f32.mrb[0].mxu0
    %v3786 = vadd.f32 %v3398, %v3785
    %v3787 = vpop.f32.mrb[0].mxu0
    %3788 = vmatprep.mubr.f32.mxu0 0.0
    %3789 = vmatmul.mubr.f32.gmra.mrb[0].mxu0 %v181
    %v3790 = vpop.f32.mrb[0].mxu0
    %v3791 = vadd.f32 %v3403, %v3790
    %v3792 = vpop.f32.mrb[0].mxu0
    %3793 = vmatprep.mubr.f32.mxu0 0.0
    %3794 = vmatmul.mubr.f32.gmra.mrb[0].mxu0 %v184
    %v3795 = vpop.f32.mrb[0].mxu0
    %v3796 = vadd.f32 %v3408, %v3795
    %v3797 = vpop.f32.mrb[0].mxu0
    %3798 = vmatprep.mubr.f32.mxu0 0.0
    %3799 = vmatmul.mubr.f32.gmra.mrb[0].mxu0 %v187
    %v3800 = vpop.f32.mrb[0].mxu0
    %v3801 = vadd.f32 %v3413, %v3800
    %v3802 = vpop.f32.mrb[0].mxu0
    %3803 = vmatprep.mubr.f32.mxu0 0.0
    %3804 = vmatmul.mubr.f32.gmra.mrb[0].mxu0 %v190
    %v3805 = vpop.f32.mrb[0].mxu0
    %v3806 = vadd.f32 %v3418, %v3805
    %v3807 = vpop.f32.mrb[0].mxu0
    %3808 = vmatprep.mubr.f32.mxu0 0.0
    %3809 = vmatmul.mubr.f32.gmra.mrb[0].mxu0 %v193
    %v3810 = vpop.f32.mrb[0].mxu0
    %v3811 = vadd.f32 %v3423, %v3810
    %v3812 = vpop.f32.mrb[0].mxu0
    %3813 = vmatprep.mubr.f32.mxu0 0.0
    %3814 = vmatmul.mubr.f32.gmra.mrb[0].mxu0 %v196
    %v3815 = vpop.f32.mrb[0].mxu0
    %v3816 = vadd.f32 %v3428, %v3815
    %v3817 = vpop.f32.mrb[0].mxu0
    %3818 = vmatprep.mubr.f32.mxu0 0.0
    %3819 = vmatmul.mubr.f32.gmra.mrb[0].mxu0 %v199
    %v3820 = vpop.f32.mrb[0].mxu0
    %v3821 = vadd.f32 %v3433, %v3820
    %v3822 = vpop.f32.mrb[0].mxu0
    %3823 = vmatprep.mubr.f32.mxu0 0.0
    %3824 = vmatmul.mubr.f32.gmra.mrb[0].mxu0 %v202
    %v3825 = vpop.f32.mrb[0].mxu0
    %v3826 = vadd.f32 %v3438, %v3825
    %v3827 = vpop.f32.mrb[0].mxu0
    %3828 = vmatprep.mubr.f32.mxu0 0.0
    %3829 = vmatmul.mubr.f32.gmra.mrb[0].mxu0 %v205
    %v3830 = vpop.f32.mrb[0].mxu0
    %v3831 = vadd.f32 %v3443, %v3830
    %v3832 = vpop.f32.mrb[0].mxu0
    %3833 = vmatprep.mubr.f32.mxu0 0.0
    %3834 = vmatmul.mubr.f32.gmra.mrb[0].mxu0 %v208
    %v3835 = vpop.f32.mrb[0].mxu0
    %v3836 = vadd.f32 %v3448, %v3835
    %v3837 = vpop.f32.mrb[0].mxu0
    %3838 = vmatprep.mubr.f32.mxu0 0.0
    %3839 = vmatmul.mubr.f32.gmra.mrb[0].mxu0 %v211
    %v3840 = vpop.f32.mrb[0].mxu0
    %v3841 = vadd.f32 %v3453, %v3840
    %v3842 = vpop.f32.mrb[0].mxu0
    %3843 = vmatprep.mubr.f32.mxu0 0.0
    %3844 = vmatmul.mubr.f32.gmra.mrb[0].mxu0 %v214
    %v3845 = vpop.f32.mrb[0].mxu0
    %v3846 = vadd.f32 %v3458, %v3845
    %v3847 = vpop.f32.mrb[0].mxu0
    %3848 = vmatprep.mubr.f32.mxu0 0.0
    %3849 = vmatmul.mubr.f32.gmra.mrb[0].mxu0 %v217
    %v3850 = vpop.f32.mrb[0].mxu0
    %v3851 = vadd.f32 %v3463, %v3850
    %v3852 = vpop.f32.mrb[0].mxu0
    %3853 = vmatprep.mubr.f32.mxu0 0.0
    %3854 = vmatmul.mubr.f32.gmra.mrb[0].mxu0 %v220
    %v3855 = vpop.f32.mrb[0].mxu0
    %v3856 = vadd.f32 %v3468, %v3855
    %v3857 = vpop.f32.mrb[0].mxu0
    %3858 = vmatprep.mubr.f32.mxu0 0.0
    %3859 = vmatmul.mubr.f32.gmra.mrb[0].mxu0 %v223
    %v3860 = vpop.f32.mrb[0].mxu0
    %v3861 = vadd.f32 %v3473, %v3860
    %v3862 = vpop.f32.mrb[0].mxu0
    %3863 = vmatprep.mubr.f32.mxu0 0.0
    %3864 = vmatmul.mubr.f32.gmra.mrb[0].mxu0 %v226
    %v3865 = vpop.f32.mrb[0].mxu0
    %v3866 = vadd.f32 %v3478, %v3865
    %v3867 = vpop.f32.mrb[0].mxu0
    %3868 = vmatprep.mubr.f32.mxu0 0.0
    %3869 = vmatmul.mubr.f32.gmra.mrb[0].mxu0 %v229
    %v3870 = vpop.f32.mrb[0].mxu0
    %v3871 = vadd.f32 %v3483, %v3870
    %v3872 = vpop.f32.mrb[0].mxu0
    %3873 = vmatprep.mubr.f32.mxu0 0.0
    %3874 = vmatmul.mubr.f32.gmra.mrb[0].mxu0 %v232
    %v3875 = vpop.f32.mrb[0].mxu0
    %v3876 = vadd.f32 %v3488, %v3875
    %v3877 = vpop.f32.mrb[0].mxu0
    %3878 = vmatprep.mubr.f32.mxu0 0.0
    %3879 = vmatmul.mubr.f32.gmra.mrb[0].mxu0 %v235
    %v3880 = vpop.f32.mrb[0].mxu0
    %v3881 = vadd.f32 %v3493, %v3880
    %v3882 = vpop.f32.mrb[0].mxu0
    %3883 = vmatprep.mubr.f32.mxu0 0.0
    %3884 = vmatmul.mubr.f32.gmra.mrb[0].mxu0 %v238
    %v3885 = vpop.f32.mrb[0].mxu0
    %v3886 = vadd.f32 %v3498, %v3885
    %v3887 = vpop.f32.mrb[0].mxu0
    %3888 = vmatprep.mubr.f32.mxu0 0.0
    %3889 = vmatmul.mubr.f32.gmra.mrb[0].mxu0 %v241
    %v3890 = vpop.f32.mrb[0].mxu0
    %v3891 = vadd.f32 %v3503, %v3890
    %v3892 = vpop.f32.mrb[0].mxu0
    %3893 = vmatprep.mubr.f32.mxu0 0.0
    %3894 = vmatmul.mubr.f32.gmra.mrb[0].mxu0 %v244
    %v3895 = vpop.f32.mrb[0].mxu0
    %v3896 = vadd.f32 %v3508, %v3895
    %v3897 = vpop.f32.mrb[0].mxu0
    %3898 = vmatprep.mubr.f32.mxu0 0.0
    %3899 = vmatmul.mubr.f32.gmra.mrb[0].mxu0 %v247
    %v3900 = vpop.f32.mrb[0].mxu0
    %v3901 = vadd.f32 %v3513, %v3900
    %v3902 = vpop.f32.mrb[0].mxu0
    %3903 = vmatprep.mubr.f32.mxu0 0.0
    %3904 = vmatmul.mubr.f32.gmra.mrb[0].mxu0 %v250
    %v3905 = vpop.f32.mrb[0].mxu0
    %v3906 = vadd.f32 %v3518, %v3905
    %v3907 = vpop.f32.mrb[0].mxu0
    %3908 = vmatprep.mubr.f32.mxu0 0.0
    %3909 = vmatmul.mubr.f32.gmra.mrb[0].mxu0 %v253
    %v3910 = vpop.f32.mrb[0].mxu0
    %v3911 = vadd.f32 %v3523, %v3910
    %v3912 = vpop.f32.mrb[0].mxu0
    %3913 = vmatprep.mubr.f32.mxu0 0.0
    %3914 = vmatmul.mubr.f32.gmra.mrb[0].mxu0 %v256
    %v3915 = vpop.f32.mrb[0].mxu0
    %v3916 = vadd.f32 %v3528, %v3915
    %v3917 = vpop.f32.mrb[0].mxu0
    %3918 = vmatprep.mubr.f32.mxu0 0.0
    %3919 = vmatmul.mubr.f32.gmra.mrb[0].mxu0 %v259
    %v3920 = vpop.f32.mrb[0].mxu0
    %v3921 = vadd.f32 %v3533, %v3920
    %v3922 = vpop.f32.mrb[0].mxu0
    %3923 = vmatprep.mubr.f32.mxu0 0.0
    %3924 = vmatmul.mubr.f32.gmra.mrb[0].mxu0 %v262
    %v3925 = vpop.f32.mrb[0].mxu0
    %v3926 = vadd.f32 %v3538, %v3925
    %v3927 = vpop.f32.mrb[0].mxu0
    %3928 = vmatprep.mubr.f32.mxu0 0.0
    %3929 = vmatmul.mubr.f32.gmra.mrb[0].mxu0 %v265
    %v3930 = vpop.f32.mrb[0].mxu0
    %v3931 = vadd.f32 %v3543, %v3930
    %v3932 = vpop.f32.mrb[0].mxu0
    %3933 = vmatprep.mubr.f32.mxu0 0.0
    %3934 = vmatmul.mubr.f32.gmra.mrb[0].mxu0 %v268
    %v3935 = vpop.f32.mrb[0].mxu0
    %v3936 = vadd.f32 %v3548, %v3935
    %v3937 = vpop.f32.mrb[0].mxu0
    %3938 = vmatprep.mubr.f32.mxu0 0.0
    %3939 = vmatmul.mubr.f32.gmra.mrb[0].mxu0 %v271
    %v3940 = vpop.f32.mrb[0].mxu0
    %v3941 = vadd.f32 %v3553, %v3940
    %v3942 = vpop.f32.mrb[0].mxu0
    %3943 = vmatprep.mubr.f32.mxu0 0.0
    %3944 = vmatmul.mubr.f32.gmra.mrb[0].mxu0 %v274
    %v3945 = vpop.f32.mrb[0].mxu0
    %v3946 = vadd.f32 %v3558, %v3945
    %v3947 = vpop.f32.mrb[0].mxu0
    %3948 = vmatprep.mubr.f32.mxu0 0.0
    %3949 = vmatmul.mubr.f32.gmra.mrb[0].mxu0 %v277
    %v3950 = vpop.f32.mrb[0].mxu0
    %v3951 = vadd.f32 %v3563, %v3950
    %v3952 = vpop.f32.mrb[0].mxu0
    %3953 = vmatprep.mubr.f32.mxu0 0.0
    %3954 = vmatmul.mubr.f32.gmra.mrb[0].mxu0 %v280
    %v3955 = vpop.f32.mrb[0].mxu0
    %v3956 = vadd.f32 %v3568, %v3955
    %v3957 = vpop.f32.mrb[0].mxu0
    %3958 = vmatprep.mubr.f32.mxu0 0.0
    %3959 = vmatmul.mubr.f32.gmra.mrb[0].mxu0 %v283
    %v3960 = vpop.f32.mrb[0].mxu0
    %v3961 = vadd.f32 %v3573, %v3960
    %v3962 = vpop.f32.mrb[0].mxu0
    %3963 = vmatprep.mubr.f32.mxu0 0.0
    %3964 = vmatmul.mubr.f32.gmra.mrb[0].mxu0 %v286
    %v3965 = vpop.f32.mrb[0].mxu0
    %v3966 = vadd.f32 %v3578, %v3965
    %v3967 = vpop.f32.mrb[0].mxu0
    %3968 = vmatprep.mubr.f32.mxu0 0.0
    %3969 = vmatmul.mubr.f32.gmra.mrb[0].mxu0 %v289
    %v3970 = vpop.f32.mrb[0].mxu0
    %v3971 = vadd.f32 %v3583, %v3970
    %v3972 = vpop.f32.mrb[0].mxu0
    %3973 = vmatprep.mubr.f32.mxu0 0.0
    %3974 = vmatmul.mubr.f32.gmra.mrb[0].mxu0 %v292
    %v3975 = vpop.f32.mrb[0].mxu0
    %v3976 = vadd.f32 %v3588, %v3975
    %v3977 = vpop.f32.mrb[0].mxu0
    %3978 = vmatprep.mubr.f32.mxu0 0.0
    %3979 = vmatmul.mubr.f32.gmra.mrb[0].mxu0 %v295
    %v3980 = vpop.f32.mrb[0].mxu0
    %v3981 = vadd.f32 %v3593, %v3980
    %v3982 = vpop.f32.mrb[0].mxu0
    %3983 = vmatprep.mubr.f32.mxu0 0.0
    %3984 = vmatmul.mubr.f32.gmra.mrb[0].mxu0 %v298
    %v3985 = vpop.f32.mrb[0].mxu0
    %v3986 = vadd.f32 %v3598, %v3985
    %v3987 = vpop.f32.mrb[0].mxu0
    %3988 = vdwg.mxu0
    %v3989 = vlaneseq
    %v3990 = vshrl.u32 %v3989, 7
    %v3991 = vsub.s32 0, %v3990
    %v3992 = vrot.slane %v3087, %v3991
    %v3993 = vadd.f32 %v3671, %v3992
    %v3994 = vadd.f32 %v3676, %v3992
    %v3995 = vadd.f32 %v3681, %v3992
    %v3996 = vadd.f32 %v3686, %v3992
    %v3997 = vadd.f32 %v3691, %v3992
    %v3998 = vadd.f32 %v3696, %v3992
    %v3999 = vadd.f32 %v3701, %v3992
    %v4000 = vadd.f32 %v3706, %v3992
    %v4001 = vadd.f32 %v3711, %v3992
    %v4002 = vadd.f32 %v3716, %v3992
    %v4003 = vadd.f32 %v3721, %v3992
    %v4004 = vadd.f32 %v3726, %v3992
    %v4005 = vadd.f32 %v3731, %v3992
    %v4006 = vadd.f32 %v3736, %v3992
    %v4007 = vadd.f32 %v3741, %v3992
    %v4008 = vadd.f32 %v3746, %v3992
    %v4009 = vadd.f32 %v3751, %v3992
    %v4010 = vadd.f32 %v3756, %v3992
    %v4011 = vadd.f32 %v3761, %v3992
    %v4012 = vadd.f32 %v3766, %v3992
    %v4013 = vadd.f32 %v3771, %v3992
    %v4014 = vadd.f32 %v3776, %v3992
    %v4015 = vadd.f32 %v3781, %v3992
    %v4016 = vadd.f32 %v3786, %v3992
    %v4017 = vadd.f32 %v3791, %v3992
    %v4018 = vadd.f32 %v3796, %v3992
    %v4019 = vadd.f32 %v3801, %v3992
    %v4020 = vadd.f32 %v3806, %v3992
    %v4021 = vadd.f32 %v3811, %v3992
    %v4022 = vadd.f32 %v3816, %v3992
    %v4023 = vadd.f32 %v3821, %v3992
    %v4024 = vadd.f32 %v3826, %v3992
    %v4025 = vadd.f32 %v3831, %v3992
    %v4026 = vadd.f32 %v3836, %v3992
    %v4027 = vadd.f32 %v3841, %v3992
    %v4028 = vadd.f32 %v3846, %v3992
    %v4029 = vadd.f32 %v3851, %v3992
    %v4030 = vadd.f32 %v3856, %v3992
    %v4031 = vadd.f32 %v3861, %v3992
    %v4032 = vadd.f32 %v3866, %v3992
    %v4033 = vadd.f32 %v3871, %v3992
    %v4034 = vadd.f32 %v3876, %v3992
    %v4035 = vadd.f32 %v3881, %v3992
    %v4036 = vadd.f32 %v3886, %v3992
    %v4037 = vadd.f32 %v3891, %v3992
    %v4038 = vadd.f32 %v3896, %v3992
    %v4039 = vadd.f32 %v3901, %v3992
    %v4040 = vadd.f32 %v3906, %v3992
    %v4041 = vadd.f32 %v3911, %v3992
    %v4042 = vadd.f32 %v3916, %v3992
    %v4043 = vadd.f32 %v3921, %v3992
    %v4044 = vadd.f32 %v3926, %v3992
    %v4045 = vadd.f32 %v3931, %v3992
    %v4046 = vadd.f32 %v3936, %v3992
    %v4047 = vadd.f32 %v3941, %v3992
    %v4048 = vadd.f32 %v3946, %v3992
    %v4049 = vadd.f32 %v3951, %v3992
    %v4050 = vadd.f32 %v3956, %v3992
    %v4051 = vadd.f32 %v3961, %v3992
    %v4052 = vadd.f32 %v3966, %v3992
    %v4053 = vadd.f32 %v3971, %v3992
    %v4054 = vadd.f32 %v3976, %v3992
    %v4055 = vadd.f32 %v3981, %v3992
    %v4056 = vadd.f32 %v3986, %v3992
    %4057 = vmatprep.subr.mxu0 0.0
    %4058 = vmatpush1.msra.mxu0 %v3993
    %4059 = vmatprep.subr.mxu0 0.0
    %4060 = vmatpush1.msra.mxu0 %v3994
    %4061 = vmatprep.subr.mxu0 0.0
    %4062 = vmatpush1.msra.mxu0 %v3995
    %4063 = vmatprep.subr.mxu0 0.0
    %4064 = vmatpush1.msra.mxu0 %v3996
    %4065 = vmatprep.subr.mxu0 0.0
    %4066 = vmatpush1.msra.mxu0 %v3997
    %4067 = vmatprep.subr.mxu0 0.0
    %4068 = vmatpush1.msra.mxu0 %v3998
    %4069 = vmatprep.subr.mxu0 0.0
    %4070 = vmatpush1.msra.mxu0 %v3999
    %4071 = vmatprep.subr.mxu0 0.0
    %4072 = vmatpush1.msra.mxu0 %v4000
    %4073 = vmatprep.subr.mxu0 0.0
    %4074 = vmatpush1.msra.mxu0 %v4001
    %4075 = vmatprep.subr.mxu0 0.0
    %4076 = vmatpush1.msra.mxu0 %v4002
    %4077 = vmatprep.subr.mxu0 0.0
    %4078 = vmatpush1.msra.mxu0 %v4003
    %4079 = vmatprep.subr.mxu0 0.0
    %4080 = vmatpush1.msra.mxu0 %v4004
    %4081 = vmatprep.subr.mxu0 0.0
    %4082 = vmatpush1.msra.mxu0 %v4005
    %4083 = vmatprep.subr.mxu0 0.0
    %4084 = vmatpush1.msra.mxu0 %v4006
    %4085 = vmatprep.subr.mxu0 0.0
    %4086 = vmatpush1.msra.mxu0 %v4007
    %4087 = vmatprep.subr.mxu0 0.0
    %4088 = vmatpush1.msra.mxu0 %v4008
    %4089 = vmatprep.subr.mxu0 0.0
    %4090 = vmatpush1.msra.mxu0 %v4009
    %4091 = vmatprep.subr.mxu0 0.0
    %4092 = vmatpush1.msra.mxu0 %v4010
    %4093 = vmatprep.subr.mxu0 0.0
    %4094 = vmatpush1.msra.mxu0 %v4011
    %4095 = vmatprep.subr.mxu0 0.0
    %4096 = vmatpush1.msra.mxu0 %v4012
    %4097 = vmatprep.subr.mxu0 0.0
    %4098 = vmatpush1.msra.mxu0 %v4013
    %4099 = vmatprep.subr.mxu0 0.0
    %4100 = vmatpush1.msra.mxu0 %v4014
    %4101 = vmatprep.subr.mxu0 0.0
    %4102 = vmatpush1.msra.mxu0 %v4015
    %4103 = vmatprep.subr.mxu0 0.0
    %4104 = vmatpush1.msra.mxu0 %v4016
    %4105 = vmatprep.subr.mxu0 0.0
    %4106 = vmatpush1.msra.mxu0 %v4017
    %4107 = vmatprep.subr.mxu0 0.0
    %4108 = vmatpush1.msra.mxu0 %v4018
    %4109 = vmatprep.subr.mxu0 0.0
    %4110 = vmatpush1.msra.mxu0 %v4019
    %4111 = vmatprep.subr.mxu0 0.0
    %4112 = vmatpush1.msra.mxu0 %v4020
    %4113 = vmatprep.subr.mxu0 0.0
    %4114 = vmatpush1.msra.mxu0 %v4021
    %4115 = vmatprep.subr.mxu0 0.0
    %4116 = vmatpush1.msra.mxu0 %v4022
    %4117 = vmatprep.subr.mxu0 0.0
    %4118 = vmatpush1.msra.mxu0 %v4023
    %4119 = vmatprep.subr.mxu0 0.0
    %4120 = vmatpush1.msra.mxu0 %v4024
    %4121 = vmatprep.mubr.f32.mxu0 1.0
    %4122 = vmatmul.mubr.f32.gmra.mrb[0].mxu0 1.0
    %v4123 = vpop.f32.mrb[0].mxu0
    %v4124 = vadd.f32 0.0, %v4123
    %v4125 = vpop.f32.mrb[0].mxu0
    %4126 = vdwg.mxu0
    %4127 = vmatprep.subr.mxu0 0.0
    %4128 = vmatpush1.msra.mxu0 %v4025
    %4129 = vmatprep.subr.mxu0 0.0
    %4130 = vmatpush1.msra.mxu0 %v4026
    %4131 = vmatprep.subr.mxu0 0.0
    %4132 = vmatpush1.msra.mxu0 %v4027
    %4133 = vmatprep.subr.mxu0 0.0
    %4134 = vmatpush1.msra.mxu0 %v4028
    %4135 = vmatprep.subr.mxu0 0.0
    %4136 = vmatpush1.msra.mxu0 %v4029
    %4137 = vmatprep.subr.mxu0 0.0
    %4138 = vmatpush1.msra.mxu0 %v4030
    %4139 = vmatprep.subr.mxu0 0.0
    %4140 = vmatpush1.msra.mxu0 %v4031
    %4141 = vmatprep.subr.mxu0 0.0
    %4142 = vmatpush1.msra.mxu0 %v4032
    %4143 = vmatprep.subr.mxu0 0.0
    %4144 = vmatpush1.msra.mxu0 %v4033
    %4145 = vmatprep.subr.mxu0 0.0
    %4146 = vmatpush1.msra.mxu0 %v4034
    %4147 = vmatprep.subr.mxu0 0.0
    %4148 = vmatpush1.msra.mxu0 %v4035
    %4149 = vmatprep.subr.mxu0 0.0
    %4150 = vmatpush1.msra.mxu0 %v4036
    %4151 = vmatprep.subr.mxu0 0.0
    %4152 = vmatpush1.msra.mxu0 %v4037
    %4153 = vmatprep.subr.mxu0 0.0
    %4154 = vmatpush1.msra.mxu0 %v4038
    %4155 = vmatprep.subr.mxu0 0.0
    %4156 = vmatpush1.msra.mxu0 %v4039
    %4157 = vmatprep.subr.mxu0 0.0
    %4158 = vmatpush1.msra.mxu0 %v4040
    %4159 = vmatprep.subr.mxu0 0.0
    %4160 = vmatpush1.msra.mxu0 %v4041
    %4161 = vmatprep.subr.mxu0 0.0
    %4162 = vmatpush1.msra.mxu0 %v4042
    %4163 = vmatprep.subr.mxu0 0.0
    %4164 = vmatpush1.msra.mxu0 %v4043
    %4165 = vmatprep.subr.mxu0 0.0
    %4166 = vmatpush1.msra.mxu0 %v4044
    %4167 = vmatprep.subr.mxu0 0.0
    %4168 = vmatpush1.msra.mxu0 %v4045
    %4169 = vmatprep.subr.mxu0 0.0
    %4170 = vmatpush1.msra.mxu0 %v4046
    %4171 = vmatprep.subr.mxu0 0.0
    %4172 = vmatpush1.msra.mxu0 %v4047
    %4173 = vmatprep.subr.mxu0 0.0
    %4174 = vmatpush1.msra.mxu0 %v4048
    %4175 = vmatprep.subr.mxu0 0.0
    %4176 = vmatpush1.msra.mxu0 %v4049
    %4177 = vmatprep.subr.mxu0 0.0
    %4178 = vmatpush1.msra.mxu0 %v4050
    %4179 = vmatprep.subr.mxu0 0.0
    %4180 = vmatpush1.msra.mxu0 %v4051
    %4181 = vmatprep.subr.mxu0 0.0
    %4182 = vmatpush1.msra.mxu0 %v4052
    %4183 = vmatprep.subr.mxu0 0.0
    %4184 = vmatpush1.msra.mxu0 %v4053
    %4185 = vmatprep.subr.mxu0 0.0
    %4186 = vmatpush1.msra.mxu0 %v4054
    %4187 = vmatprep.subr.mxu0 0.0
    %4188 = vmatpush1.msra.mxu0 %v4055
    %4189 = vmatprep.subr.mxu0 0.0
    %4190 = vmatpush1.msra.mxu0 %v4056
    %4191 = vmatprep.mubr.f32.mxu0 1.0
    %4192 = vmatmul.mubr.f32.gmra.mrb[0].mxu0 1.0
    %v4193 = vpop.f32.mrb[0].mxu0
    %v4194 = vadd.f32 %v4124, %v4193
    %v4195 = vpop.f32.mrb[0].mxu0
    %4196 = vdwg.mxu0
    %v4197 = vmul.f32 %v4194, 0.001953125
    %v4198 = vlaneseq
    %v4199 = vshrl.u32 %v4198, 7
    %v4200 = vsub.s32 0, %v4199
    %v4201 = vrot.slane %v4197, %v4200
    %v4202 = vsub.f32 %v3993, %v4201
    %v4203 = vsub.f32 %v3994, %v4201
    %v4204 = vsub.f32 %v3995, %v4201
    %v4205 = vsub.f32 %v3996, %v4201
    %v4206 = vsub.f32 %v3997, %v4201
    %v4207 = vsub.f32 %v3998, %v4201
    %v4208 = vsub.f32 %v3999, %v4201
    %v4209 = vsub.f32 %v4000, %v4201
    %v4210 = vsub.f32 %v4001, %v4201
    %v4211 = vsub.f32 %v4002, %v4201
    %v4212 = vsub.f32 %v4003, %v4201
    %v4213 = vsub.f32 %v4004, %v4201
    %v4214 = vsub.f32 %v4005, %v4201
    %v4215 = vsub.f32 %v4006, %v4201
    %v4216 = vsub.f32 %v4007, %v4201
    %v4217 = vsub.f32 %v4008, %v4201
    %v4218 = vsub.f32 %v4009, %v4201
    %v4219 = vsub.f32 %v4010, %v4201
    %v4220 = vsub.f32 %v4011, %v4201
    %v4221 = vsub.f32 %v4012, %v4201
    %v4222 = vsub.f32 %v4013, %v4201
    %v4223 = vsub.f32 %v4014, %v4201
    %v4224 = vsub.f32 %v4015, %v4201
    %v4225 = vsub.f32 %v4016, %v4201
    %v4226 = vsub.f32 %v4017, %v4201
    %v4227 = vsub.f32 %v4018, %v4201
    %v4228 = vsub.f32 %v4019, %v4201
    %v4229 = vsub.f32 %v4020, %v4201
    %v4230 = vsub.f32 %v4021, %v4201
    %v4231 = vsub.f32 %v4022, %v4201
    %v4232 = vsub.f32 %v4023, %v4201
    %v4233 = vsub.f32 %v4024, %v4201
    %v4234 = vsub.f32 %v4025, %v4201
    %v4235 = vsub.f32 %v4026, %v4201
    %v4236 = vsub.f32 %v4027, %v4201
    %v4237 = vsub.f32 %v4028, %v4201
    %v4238 = vsub.f32 %v4029, %v4201
    %v4239 = vsub.f32 %v4030, %v4201
    %v4240 = vsub.f32 %v4031, %v4201
    %v4241 = vsub.f32 %v4032, %v4201
    %v4242 = vsub.f32 %v4033, %v4201
    %v4243 = vsub.f32 %v4034, %v4201
    %v4244 = vsub.f32 %v4035, %v4201
    %v4245 = vsub.f32 %v4036, %v4201
    %v4246 = vsub.f32 %v4037, %v4201
    %v4247 = vsub.f32 %v4038, %v4201
    %v4248 = vsub.f32 %v4039, %v4201
    %v4249 = vsub.f32 %v4040, %v4201
    %v4250 = vsub.f32 %v4041, %v4201
    %v4251 = vsub.f32 %v4042, %v4201
    %v4252 = vsub.f32 %v4043, %v4201
    %v4253 = vsub.f32 %v4044, %v4201
    %v4254 = vsub.f32 %v4045, %v4201
    %v4255 = vsub.f32 %v4046, %v4201
    %v4256 = vsub.f32 %v4047, %v4201
    %v4257 = vsub.f32 %v4048, %v4201
    %v4258 = vsub.f32 %v4049, %v4201
    %v4259 = vsub.f32 %v4050, %v4201
    %v4260 = vsub.f32 %v4051, %v4201
    %v4261 = vsub.f32 %v4052, %v4201
    %v4262 = vsub.f32 %v4053, %v4201
    %v4263 = vsub.f32 %v4054, %v4201
    %v4264 = vsub.f32 %v4055, %v4201
    %v4265 = vsub.f32 %v4056, %v4201
    %v4266 = vmul.f32 %v4202, %v4202
    %v4267 = vmul.f32 %v4203, %v4203
    %v4268 = vmul.f32 %v4204, %v4204
    %v4269 = vmul.f32 %v4205, %v4205
    %v4270 = vmul.f32 %v4206, %v4206
    %v4271 = vmul.f32 %v4207, %v4207
    %v4272 = vmul.f32 %v4208, %v4208
    %v4273 = vmul.f32 %v4209, %v4209
    %v4274 = vmul.f32 %v4210, %v4210
    %v4275 = vmul.f32 %v4211, %v4211
    %v4276 = vmul.f32 %v4212, %v4212
    %v4277 = vmul.f32 %v4213, %v4213
    %v4278 = vmul.f32 %v4214, %v4214
    %v4279 = vmul.f32 %v4215, %v4215
    %v4280 = vmul.f32 %v4216, %v4216
    %v4281 = vmul.f32 %v4217, %v4217
    %v4282 = vmul.f32 %v4218, %v4218
    %v4283 = vmul.f32 %v4219, %v4219
    %v4284 = vmul.f32 %v4220, %v4220
    %v4285 = vmul.f32 %v4221, %v4221
    %v4286 = vmul.f32 %v4222, %v4222
    %v4287 = vmul.f32 %v4223, %v4223
    %v4288 = vmul.f32 %v4224, %v4224
    %v4289 = vmul.f32 %v4225, %v4225
    %v4290 = vmul.f32 %v4226, %v4226
    %v4291 = vmul.f32 %v4227, %v4227
    %v4292 = vmul.f32 %v4228, %v4228
    %v4293 = vmul.f32 %v4229, %v4229
    %v4294 = vmul.f32 %v4230, %v4230
    %v4295 = vmul.f32 %v4231, %v4231
    %v4296 = vmul.f32 %v4232, %v4232
    %v4297 = vmul.f32 %v4233, %v4233
    %v4298 = vmul.f32 %v4234, %v4234
    %v4299 = vmul.f32 %v4235, %v4235
    %v4300 = vmul.f32 %v4236, %v4236
    %v4301 = vmul.f32 %v4237, %v4237
    %v4302 = vmul.f32 %v4238, %v4238
    %v4303 = vmul.f32 %v4239, %v4239
    %v4304 = vmul.f32 %v4240, %v4240
    %v4305 = vmul.f32 %v4241, %v4241
    %v4306 = vmul.f32 %v4242, %v4242
    %v4307 = vmul.f32 %v4243, %v4243
    %v4308 = vmul.f32 %v4244, %v4244
    %v4309 = vmul.f32 %v4245, %v4245
    %v4310 = vmul.f32 %v4246, %v4246
    %v4311 = vmul.f32 %v4247, %v4247
    %v4312 = vmul.f32 %v4248, %v4248
    %v4313 = vmul.f32 %v4249, %v4249
    %v4314 = vmul.f32 %v4250, %v4250
    %v4315 = vmul.f32 %v4251, %v4251
    %v4316 = vmul.f32 %v4252, %v4252
    %v4317 = vmul.f32 %v4253, %v4253
    %v4318 = vmul.f32 %v4254, %v4254
    %v4319 = vmul.f32 %v4255, %v4255
    %v4320 = vmul.f32 %v4256, %v4256
    %v4321 = vmul.f32 %v4257, %v4257
    %v4322 = vmul.f32 %v4258, %v4258
    %v4323 = vmul.f32 %v4259, %v4259
    %v4324 = vmul.f32 %v4260, %v4260
    %v4325 = vmul.f32 %v4261, %v4261
    %v4326 = vmul.f32 %v4262, %v4262
    %v4327 = vmul.f32 %v4263, %v4263
    %v4328 = vmul.f32 %v4264, %v4264
    %v4329 = vmul.f32 %v4265, %v4265
    %4330 = vmatprep.subr.mxu0 0.0
    %4331 = vmatpush1.msra.mxu0 %v4266
    %4332 = vmatprep.subr.mxu0 0.0
    %4333 = vmatpush1.msra.mxu0 %v4267
    %4334 = vmatprep.subr.mxu0 0.0
    %4335 = vmatpush1.msra.mxu0 %v4268
    %4336 = vmatprep.subr.mxu0 0.0
    %4337 = vmatpush1.msra.mxu0 %v4269
    %4338 = vmatprep.subr.mxu0 0.0
    %4339 = vmatpush1.msra.mxu0 %v4270
    %4340 = vmatprep.subr.mxu0 0.0
    %4341 = vmatpush1.msra.mxu0 %v4271
    %4342 = vmatprep.subr.mxu0 0.0
    %4343 = vmatpush1.msra.mxu0 %v4272
    %4344 = vmatprep.subr.mxu0 0.0
    %4345 = vmatpush1.msra.mxu0 %v4273
    %4346 = vmatprep.subr.mxu0 0.0
    %4347 = vmatpush1.msra.mxu0 %v4274
    %4348 = vmatprep.subr.mxu0 0.0
    %4349 = vmatpush1.msra.mxu0 %v4275
    %4350 = vmatprep.subr.mxu0 0.0
    %4351 = vmatpush1.msra.mxu0 %v4276
    %4352 = vmatprep.subr.mxu0 0.0
    %4353 = vmatpush1.msra.mxu0 %v4277
    %4354 = vmatprep.subr.mxu0 0.0
    %4355 = vmatpush1.msra.mxu0 %v4278
    %4356 = vmatprep.subr.mxu0 0.0
    %4357 = vmatpush1.msra.mxu0 %v4279
    %4358 = vmatprep.subr.mxu0 0.0
    %4359 = vmatpush1.msra.mxu0 %v4280
    %4360 = vmatprep.subr.mxu0 0.0
    %4361 = vmatpush1.msra.mxu0 %v4281
    %4362 = vmatprep.subr.mxu0 0.0
    %4363 = vmatpush1.msra.mxu0 %v4282
    %4364 = vmatprep.subr.mxu0 0.0
    %4365 = vmatpush1.msra.mxu0 %v4283
    %4366 = vmatprep.subr.mxu0 0.0
    %4367 = vmatpush1.msra.mxu0 %v4284
    %4368 = vmatprep.subr.mxu0 0.0
    %4369 = vmatpush1.msra.mxu0 %v4285
    %4370 = vmatprep.subr.mxu0 0.0
    %4371 = vmatpush1.msra.mxu0 %v4286
    %4372 = vmatprep.subr.mxu0 0.0
    %4373 = vmatpush1.msra.mxu0 %v4287
    %4374 = vmatprep.subr.mxu0 0.0
    %4375 = vmatpush1.msra.mxu0 %v4288
    %4376 = vmatprep.subr.mxu0 0.0
    %4377 = vmatpush1.msra.mxu0 %v4289
    %4378 = vmatprep.subr.mxu0 0.0
    %4379 = vmatpush1.msra.mxu0 %v4290
    %4380 = vmatprep.subr.mxu0 0.0
    %4381 = vmatpush1.msra.mxu0 %v4291
    %4382 = vmatprep.subr.mxu0 0.0
    %4383 = vmatpush1.msra.mxu0 %v4292
    %4384 = vmatprep.subr.mxu0 0.0
    %4385 = vmatpush1.msra.mxu0 %v4293
    %4386 = vmatprep.subr.mxu0 0.0
    %4387 = vmatpush1.msra.mxu0 %v4294
    %4388 = vmatprep.subr.mxu0 0.0
    %4389 = vmatpush1.msra.mxu0 %v4295
    %4390 = vmatprep.subr.mxu0 0.0
    %4391 = vmatpush1.msra.mxu0 %v4296
    %4392 = vmatprep.subr.mxu0 0.0
    %4393 = vmatpush1.msra.mxu0 %v4297
    %4394 = vmatprep.mubr.f32.mxu0 1.0
    %4395 = vmatmul.mubr.f32.gmra.mrb[0].mxu0 1.0
    %v4396 = vpop.f32.mrb[0].mxu0
    %v4397 = vadd.f32 0.0, %v4396
    %v4398 = vpop.f32.mrb[0].mxu0
    %4399 = vdwg.mxu0
    %4400 = vmatprep.subr.mxu0 0.0
    %4401 = vmatpush1.msra.mxu0 %v4298
    %4402 = vmatprep.subr.mxu0 0.0
    %4403 = vmatpush1.msra.mxu0 %v4299
    %4404 = vmatprep.subr.mxu0 0.0
    %4405 = vmatpush1.msra.mxu0 %v4300
    %4406 = vmatprep.subr.mxu0 0.0
    %4407 = vmatpush1.msra.mxu0 %v4301
    %4408 = vmatprep.subr.mxu0 0.0
    %4409 = vmatpush1.msra.mxu0 %v4302
    %4410 = vmatprep.subr.mxu0 0.0
    %4411 = vmatpush1.msra.mxu0 %v4303
    %4412 = vmatprep.subr.mxu0 0.0
    %4413 = vmatpush1.msra.mxu0 %v4304
    %4414 = vmatprep.subr.mxu0 0.0
    %4415 = vmatpush1.msra.mxu0 %v4305
    %4416 = vmatprep.subr.mxu0 0.0
    %4417 = vmatpush1.msra.mxu0 %v4306
    %4418 = vmatprep.subr.mxu0 0.0
    %4419 = vmatpush1.msra.mxu0 %v4307
    %4420 = vmatprep.subr.mxu0 0.0
    %4421 = vmatpush1.msra.mxu0 %v4308
    %4422 = vmatprep.subr.mxu0 0.0
    %4423 = vmatpush1.msra.mxu0 %v4309
    %4424 = vmatprep.subr.mxu0 0.0
    %4425 = vmatpush1.msra.mxu0 %v4310
    %4426 = vmatprep.subr.mxu0 0.0
    %4427 = vmatpush1.msra.mxu0 %v4311
    %4428 = vmatprep.subr.mxu0 0.0
    %4429 = vmatpush1.msra.mxu0 %v4312
    %4430 = vmatprep.subr.mxu0 0.0
    %4431 = vmatpush1.msra.mxu0 %v4313
    %4432 = vmatprep.subr.mxu0 0.0
    %4433 = vmatpush1.msra.mxu0 %v4314
    %4434 = vmatprep.subr.mxu0 0.0
    %4435 = vmatpush1.msra.mxu0 %v4315
    %4436 = vmatprep.subr.mxu0 0.0
    %4437 = vmatpush1.msra.mxu0 %v4316
    %4438 = vmatprep.subr.mxu0 0.0
    %4439 = vmatpush1.msra.mxu0 %v4317
    %4440 = vmatprep.subr.mxu0 0.0
    %4441 = vmatpush1.msra.mxu0 %v4318
    %4442 = vmatprep.subr.mxu0 0.0
    %4443 = vmatpush1.msra.mxu0 %v4319
    %4444 = vmatprep.subr.mxu0 0.0
    %4445 = vmatpush1.msra.mxu0 %v4320
    %4446 = vmatprep.subr.mxu0 0.0
    %4447 = vmatpush1.msra.mxu0 %v4321
    %4448 = vmatprep.subr.mxu0 0.0
    %4449 = vmatpush1.msra.mxu0 %v4322
    %4450 = vmatprep.subr.mxu0 0.0
    %4451 = vmatpush1.msra.mxu0 %v4323
    %4452 = vmatprep.subr.mxu0 0.0
    %4453 = vmatpush1.msra.mxu0 %v4324
    %4454 = vmatprep.subr.mxu0 0.0
    %4455 = vmatpush1.msra.mxu0 %v4325
    %4456 = vmatprep.subr.mxu0 0.0
    %4457 = vmatpush1.msra.mxu0 %v4326
    %4458 = vmatprep.subr.mxu0 0.0
    %4459 = vmatpush1.msra.mxu0 %v4327
    %4460 = vmatprep.subr.mxu0 0.0
    %4461 = vmatpush1.msra.mxu0 %v4328
    %4462 = vmatprep.subr.mxu0 0.0
    %4463 = vmatpush1.msra.mxu0 %v4329
    %4464 = vmatprep.mubr.f32.mxu0 1.0
    %4465 = vmatmul.mubr.f32.gmra.mrb[0].mxu0 1.0
    %v4466 = vpop.f32.mrb[0].mxu0
    %v4467 = vadd.f32 %v4397, %v4466
    %v4468 = vpop.f32.mrb[0].mxu0
    %4469 = vdwg.mxu0
    %v4470 = vmul.f32 %v4467, 0.001953125
    %v4471 = vadd.f32 %v4470, 1e-05
    %v4472 = vrsqrt.pop %v4471
    %v4473 = vlaneseq
    %v4474 = vshrl.u32 %v4473, 7
    %v4475 = vsub.s32 0, %v4474
    %v4476 = vrot.slane %v4472, %v4475
    %v4477 = vmul.f32 %v4202, %v4476
    %v4478 = vmul.f32 %v4203, %v4476
    %v4479 = vmul.f32 %v4204, %v4476
    %v4480 = vmul.f32 %v4205, %v4476
    %v4481 = vmul.f32 %v4206, %v4476
    %v4482 = vmul.f32 %v4207, %v4476
    %v4483 = vmul.f32 %v4208, %v4476
    %v4484 = vmul.f32 %v4209, %v4476
    %v4485 = vmul.f32 %v4210, %v4476
    %v4486 = vmul.f32 %v4211, %v4476
    %v4487 = vmul.f32 %v4212, %v4476
    %v4488 = vmul.f32 %v4213, %v4476
    %v4489 = vmul.f32 %v4214, %v4476
    %v4490 = vmul.f32 %v4215, %v4476
    %v4491 = vmul.f32 %v4216, %v4476
    %v4492 = vmul.f32 %v4217, %v4476
    %v4493 = vmul.f32 %v4218, %v4476
    %v4494 = vmul.f32 %v4219, %v4476
    %v4495 = vmul.f32 %v4220, %v4476
    %v4496 = vmul.f32 %v4221, %v4476
    %v4497 = vmul.f32 %v4222, %v4476
    %v4498 = vmul.f32 %v4223, %v4476
    %v4499 = vmul.f32 %v4224, %v4476
    %v4500 = vmul.f32 %v4225, %v4476
    %v4501 = vmul.f32 %v4226, %v4476
    %v4502 = vmul.f32 %v4227, %v4476
    %v4503 = vmul.f32 %v4228, %v4476
    %v4504 = vmul.f32 %v4229, %v4476
    %v4505 = vmul.f32 %v4230, %v4476
    %v4506 = vmul.f32 %v4231, %v4476
    %v4507 = vmul.f32 %v4232, %v4476
    %v4508 = vmul.f32 %v4233, %v4476
    %v4509 = vmul.f32 %v4234, %v4476
    %v4510 = vmul.f32 %v4235, %v4476
    %v4511 = vmul.f32 %v4236, %v4476
    %v4512 = vmul.f32 %v4237, %v4476
    %v4513 = vmul.f32 %v4238, %v4476
    %v4514 = vmul.f32 %v4239, %v4476
    %v4515 = vmul.f32 %v4240, %v4476
    %v4516 = vmul.f32 %v4241, %v4476
    %v4517 = vmul.f32 %v4242, %v4476
    %v4518 = vmul.f32 %v4243, %v4476
    %v4519 = vmul.f32 %v4244, %v4476
    %v4520 = vmul.f32 %v4245, %v4476
    %v4521 = vmul.f32 %v4246, %v4476
    %v4522 = vmul.f32 %v4247, %v4476
    %v4523 = vmul.f32 %v4248, %v4476
    %v4524 = vmul.f32 %v4249, %v4476
    %v4525 = vmul.f32 %v4250, %v4476
    %v4526 = vmul.f32 %v4251, %v4476
    %v4527 = vmul.f32 %v4252, %v4476
    %v4528 = vmul.f32 %v4253, %v4476
    %v4529 = vmul.f32 %v4254, %v4476
    %v4530 = vmul.f32 %v4255, %v4476
    %v4531 = vmul.f32 %v4256, %v4476
    %v4532 = vmul.f32 %v4257, %v4476
    %v4533 = vmul.f32 %v4258, %v4476
    %v4534 = vmul.f32 %v4259, %v4476
    %v4535 = vmul.f32 %v4260, %v4476
    %v4536 = vmul.f32 %v4261, %v4476
    %v4537 = vmul.f32 %v4262, %v4476
    %v4538 = vmul.f32 %v4263, %v4476
    %v4539 = vmul.f32 %v4264, %v4476
    %v4540 = vmul.f32 %v4265, %v4476
    %v4541 = vld [vmem:[%s2 + $0x58] sm:$0xff]
    %v4542 = vld [vmem:[%s2 + $0x60] sm:$0xff]
    %v4543 = vld [vmem:[%s2 + $0x68] sm:$0xff]
    %v4544 = vld [vmem:[%s2 + $0x70] sm:$0xff]
    %v4545 = vld [vmem:[%s2 + $0x78] sm:$0x1]
    %v4548 = vcombine.high %v99, %v99
    %v4549 = vcombine.high %v100, %v100
    %4552 = vmatprep.subr.mxu0 0.0
    %4553 = vmatpush1.msra.mxu0 %v4477
    %4554 = vmatprep.subr.mxu0 0.0
    %4555 = vmatpush1.msra.mxu0 %v4478
    %4556 = vmatprep.subr.mxu0 0.0
    %4557 = vmatpush1.msra.mxu0 %v4479
    %4558 = vmatprep.subr.mxu0 0.0
    %4559 = vmatpush1.msra.mxu0 %v4480
    %4560 = vmatprep.subr.mxu0 0.0
    %4561 = vmatpush1.msra.mxu0 %v4481
    %4562 = vmatprep.subr.mxu0 0.0
    %4563 = vmatpush1.msra.mxu0 %v4482
    %4564 = vmatprep.subr.mxu0 0.0
    %4565 = vmatpush1.msra.mxu0 %v4483
    %4566 = vmatprep.subr.mxu0 0.0
    %4567 = vmatpush1.msra.mxu0 %v4484
    %4568 = vmatprep.subr.mxu0 0.0
    %4569 = vmatpush1.msra.mxu0 %v4485
    %4570 = vmatprep.subr.mxu0 0.0
    %4571 = vmatpush1.msra.mxu0 %v4486
    %4572 = vmatprep.subr.mxu0 0.0
    %4573 = vmatpush1.msra.mxu0 %v4487
    %4574 = vmatprep.subr.mxu0 0.0
    %4575 = vmatpush1.msra.mxu0 %v4488
    %4576 = vmatprep.subr.mxu0 0.0
    %4577 = vmatpush1.msra.mxu0 %v4489
    %4578 = vmatprep.subr.mxu0 0.0
    %4579 = vmatpush1.msra.mxu0 %v4490
    %4580 = vmatprep.subr.mxu0 0.0
    %4581 = vmatpush1.msra.mxu0 %v4491
    %4582 = vmatprep.subr.mxu0 0.0
    %4583 = vmatpush1.msra.mxu0 %v4492
    %4584 = vmatprep.subr.mxu0 0.0
    %4585 = vmatpush1.msra.mxu0 %v4493
    %4586 = vmatprep.subr.mxu0 0.0
    %4587 = vmatpush1.msra.mxu0 %v4494
    %4588 = vmatprep.subr.mxu0 0.0
    %4589 = vmatpush1.msra.mxu0 %v4495
    %4590 = vmatprep.subr.mxu0 0.0
    %4591 = vmatpush1.msra.mxu0 %v4496
    %4592 = vmatprep.subr.mxu0 0.0
    %4593 = vmatpush1.msra.mxu0 %v4497
    %4594 = vmatprep.subr.mxu0 0.0
    %4595 = vmatpush1.msra.mxu0 %v4498
    %4596 = vmatprep.subr.mxu0 0.0
    %4597 = vmatpush1.msra.mxu0 %v4499
    %4598 = vmatprep.subr.mxu0 0.0
    %4599 = vmatpush1.msra.mxu0 %v4500
    %4600 = vmatprep.subr.mxu0 0.0
    %4601 = vmatpush1.msra.mxu0 %v4501
    %4602 = vmatprep.subr.mxu0 0.0
    %4603 = vmatpush1.msra.mxu0 %v4502
    %4604 = vmatprep.subr.mxu0 0.0
    %4605 = vmatpush1.msra.mxu0 %v4503
    %4606 = vmatprep.subr.mxu0 0.0
    %4607 = vmatpush1.msra.mxu0 %v4504
    %4608 = vmatprep.subr.mxu0 0.0
    %4609 = vmatpush1.msra.mxu0 %v4505
    %4610 = vmatprep.subr.mxu0 0.0
    %4611 = vmatpush1.msra.mxu0 %v4506
    %4612 = vmatprep.subr.mxu0 0.0
    %4613 = vmatpush1.msra.mxu0 %v4507
    %4614 = vmatprep.subr.mxu0 0.0
    %4615 = vmatpush1.msra.mxu0 %v4508
    %4616 = vmatprep.mubr.f32.mxu0 %v4548
    %4617 = vmatmul.mubr.f32.gmra.mrb[0].mxu0 %v99
    %v4618 = vpop.f32.mrb[0].mxu0
    %v4619 = vadd.f32 0.0, %v4618
    %v4620 = vpop.f32.mrb[0].mxu0
    %4621 = vdwg.mxu0
    %4622 = vmatprep.subr.mxu0 0.0
    %4623 = vmatpush1.msra.mxu0 %v4509
    %4624 = vmatprep.subr.mxu0 0.0
    %4625 = vmatpush1.msra.mxu0 %v4510
    %4626 = vmatprep.subr.mxu0 0.0
    %4627 = vmatpush1.msra.mxu0 %v4511
    %4628 = vmatprep.subr.mxu0 0.0
    %4629 = vmatpush1.msra.mxu0 %v4512
    %4630 = vmatprep.subr.mxu0 0.0
    %4631 = vmatpush1.msra.mxu0 %v4513
    %4632 = vmatprep.subr.mxu0 0.0
    %4633 = vmatpush1.msra.mxu0 %v4514
    %4634 = vmatprep.subr.mxu0 0.0
    %4635 = vmatpush1.msra.mxu0 %v4515
    %4636 = vmatprep.subr.mxu0 0.0
    %4637 = vmatpush1.msra.mxu0 %v4516
    %4638 = vmatprep.subr.mxu0 0.0
    %4639 = vmatpush1.msra.mxu0 %v4517
    %4640 = vmatprep.subr.mxu0 0.0
    %4641 = vmatpush1.msra.mxu0 %v4518
    %4642 = vmatprep.subr.mxu0 0.0
    %4643 = vmatpush1.msra.mxu0 %v4519
    %4644 = vmatprep.subr.mxu0 0.0
    %4645 = vmatpush1.msra.mxu0 %v4520
    %4646 = vmatprep.subr.mxu0 0.0
    %4647 = vmatpush1.msra.mxu0 %v4521
    %4648 = vmatprep.subr.mxu0 0.0
    %4649 = vmatpush1.msra.mxu0 %v4522
    %4650 = vmatprep.subr.mxu0 0.0
    %4651 = vmatpush1.msra.mxu0 %v4523
    %4652 = vmatprep.subr.mxu0 0.0
    %4653 = vmatpush1.msra.mxu0 %v4524
    %4654 = vmatprep.subr.mxu0 0.0
    %4655 = vmatpush1.msra.mxu0 %v4525
    %4656 = vmatprep.subr.mxu0 0.0
    %4657 = vmatpush1.msra.mxu0 %v4526
    %4658 = vmatprep.subr.mxu0 0.0
    %4659 = vmatpush1.msra.mxu0 %v4527
    %4660 = vmatprep.subr.mxu0 0.0
    %4661 = vmatpush1.msra.mxu0 %v4528
    %4662 = vmatprep.subr.mxu0 0.0
    %4663 = vmatpush1.msra.mxu0 %v4529
    %4664 = vmatprep.subr.mxu0 0.0
    %4665 = vmatpush1.msra.mxu0 %v4530
    %4666 = vmatprep.subr.mxu0 0.0
    %4667 = vmatpush1.msra.mxu0 %v4531
    %4668 = vmatprep.subr.mxu0 0.0
    %4669 = vmatpush1.msra.mxu0 %v4532
    %4670 = vmatprep.subr.mxu0 0.0
    %4671 = vmatpush1.msra.mxu0 %v4533
    %4672 = vmatprep.subr.mxu0 0.0
    %4673 = vmatpush1.msra.mxu0 %v4534
    %4674 = vmatprep.subr.mxu0 0.0
    %4675 = vmatpush1.msra.mxu0 %v4535
    %4676 = vmatprep.subr.mxu0 0.0
    %4677 = vmatpush1.msra.mxu0 %v4536
    %4678 = vmatprep.subr.mxu0 0.0
    %4679 = vmatpush1.msra.mxu0 %v4537
    %4680 = vmatprep.subr.mxu0 0.0
    %4681 = vmatpush1.msra.mxu0 %v4538
    %4682 = vmatprep.subr.mxu0 0.0
    %4683 = vmatpush1.msra.mxu0 %v4539
    %4684 = vmatprep.subr.mxu0 0.0
    %4685 = vmatpush1.msra.mxu0 %v4540
    %4686 = vmatprep.mubr.f32.mxu0 %v4549
    %4687 = vmatmul.mubr.f32.gmra.mrb[0].mxu0 %v100
    %v4688 = vpop.f32.mrb[0].mxu0
    %v4689 = vadd.f32 %v4619, %v4688
    %v4690 = vpop.f32.mrb[0].mxu0
    %4691 = vdwg.mxu0
    %v4693 = vrot.slane %v4689, 2
    %v4694 = vsel %vm1500, %v4693, 0
    %4696 = vmatprep.subr.mxu0 0.0
    %4697 = vmatpush1.msra.mxu0 %v4543
    %4698 = vmatprep.subr.mxu0 0.0
    %4699 = vmatpush1.msra.mxu0 %v4544
    %4700 = vmatprep.subr.mxu0 0.0
    %4701 = vmatpush1.msra.mxu0 0.0
    %4702 = vmatprep.subr.mxu0 0.0
    %4703 = vmatpush1.msra.mxu0 0.0
    %4704 = vmatprep.subr.mxu0 0.0
    %4705 = vmatpush1.msra.mxu0 0.0
    %4706 = vmatprep.subr.mxu0 0.0
    %4707 = vmatpush1.msra.mxu0 0.0
    %4708 = vmatprep.subr.mxu0 0.0
    %4709 = vmatpush1.msra.mxu0 0.0
    %4710 = vmatprep.subr.mxu0 0.0
    %4711 = vmatpush1.msra.mxu0 0.0
    %4712 = vmatprep.subr.mxu0 0.0
    %4713 = vmatpush1.msra.mxu0 0.0
    %4714 = vmatprep.subr.mxu0 0.0
    %4715 = vmatpush1.msra.mxu0 0.0
    %4716 = vmatprep.subr.mxu0 0.0
    %4717 = vmatpush1.msra.mxu0 0.0
    %4718 = vmatprep.subr.mxu0 0.0
    %4719 = vmatpush1.msra.mxu0 0.0
    %4720 = vmatprep.subr.mxu0 0.0
    %4721 = vmatpush1.msra.mxu0 0.0
    %4722 = vmatprep.subr.mxu0 0.0
    %4723 = vmatpush1.msra.mxu0 0.0
    %4724 = vmatprep.subr.mxu0 0.0
    %4725 = vmatpush1.msra.mxu0 0.0
    %4726 = vmatprep.subr.mxu0 0.0
    %4727 = vmatpush1.msra.mxu0 0.0
    %4728 = vmatprep.subr.mxu0 0.0
    %4729 = vmatpush1.msra.mxu0 0.0
    %4730 = vmatprep.subr.mxu0 0.0
    %4731 = vmatpush1.msra.mxu0 0.0
    %4732 = vmatprep.subr.mxu0 0.0
    %4733 = vmatpush1.msra.mxu0 0.0
    %4734 = vmatprep.subr.mxu0 0.0
    %4735 = vmatpush1.msra.mxu0 0.0
    %4736 = vmatprep.subr.mxu0 0.0
    %4737 = vmatpush1.msra.mxu0 0.0
    %4738 = vmatprep.subr.mxu0 0.0
    %4739 = vmatpush1.msra.mxu0 0.0
    %4740 = vmatprep.subr.mxu0 0.0
    %4741 = vmatpush1.msra.mxu0 0.0
    %4742 = vmatprep.subr.mxu0 0.0
    %4743 = vmatpush1.msra.mxu0 0.0
    %4744 = vmatprep.subr.mxu0 0.0
    %4745 = vmatpush1.msra.mxu0 0.0
    %4746 = vmatprep.subr.mxu0 0.0
    %4747 = vmatpush1.msra.mxu0 0.0
    %4748 = vmatprep.subr.mxu0 0.0
    %4749 = vmatpush1.msra.mxu0 0.0
    %4750 = vmatprep.subr.mxu0 0.0
    %4751 = vmatpush1.msra.mxu0 0.0
    %4752 = vmatprep.subr.mxu0 0.0
    %4753 = vmatpush1.msra.mxu0 0.0
    %4754 = vmatprep.subr.mxu0 0.0
    %4755 = vmatpush1.msra.mxu0 0.0
    %4756 = vmatprep.subr.mxu0 0.0
    %4757 = vmatpush1.msra.mxu0 0.0
    %4758 = vmatprep.subr.mxu0 0.0
    %4759 = vmatpush1.msra.mxu0 0.0
    %4760 = vmatprep.mubr.f32.mxu0 0.0
    %4761 = vmatmul.mubr.f32.gmra.mrb[0].mxu0 %v4694
    %v4762 = vpop.f32.mrb[0].mxu0
    %v4763 = vadd.f32 0.0, %v4762
    %v4764 = vpop.f32.mrb[0].mxu0
    %4765 = vdwg.mxu0
    %v4766 = vsel %vm1500, %v4689, 0
    %4768 = vmatprep.subr.mxu0 0.0
    %4769 = vmatpush1.msra.mxu0 %v4541
    %4770 = vmatprep.subr.mxu0 0.0
    %4771 = vmatpush1.msra.mxu0 %v4542
    %4772 = vmatprep.subr.mxu0 0.0
    %4773 = vmatpush1.msra.mxu0 0.0
    %4774 = vmatprep.subr.mxu0 0.0
    %4775 = vmatpush1.msra.mxu0 0.0
    %4776 = vmatprep.subr.mxu0 0.0
    %4777 = vmatpush1.msra.mxu0 0.0
    %4778 = vmatprep.subr.mxu0 0.0
    %4779 = vmatpush1.msra.mxu0 0.0
    %4780 = vmatprep.subr.mxu0 0.0
    %4781 = vmatpush1.msra.mxu0 0.0
    %4782 = vmatprep.subr.mxu0 0.0
    %4783 = vmatpush1.msra.mxu0 0.0
    %4784 = vmatprep.subr.mxu0 0.0
    %4785 = vmatpush1.msra.mxu0 0.0
    %4786 = vmatprep.subr.mxu0 0.0
    %4787 = vmatpush1.msra.mxu0 0.0
    %4788 = vmatprep.subr.mxu0 0.0
    %4789 = vmatpush1.msra.mxu0 0.0
    %4790 = vmatprep.subr.mxu0 0.0
    %4791 = vmatpush1.msra.mxu0 0.0
    %4792 = vmatprep.subr.mxu0 0.0
    %4793 = vmatpush1.msra.mxu0 0.0
    %4794 = vmatprep.subr.mxu0 0.0
    %4795 = vmatpush1.msra.mxu0 0.0
    %4796 = vmatprep.subr.mxu0 0.0
    %4797 = vmatpush1.msra.mxu0 0.0
    %4798 = vmatprep.subr.mxu0 0.0
    %4799 = vmatpush1.msra.mxu0 0.0
    %4800 = vmatprep.subr.mxu0 0.0
    %4801 = vmatpush1.msra.mxu0 0.0
    %4802 = vmatprep.subr.mxu0 0.0
    %4803 = vmatpush1.msra.mxu0 0.0
    %4804 = vmatprep.subr.mxu0 0.0
    %4805 = vmatpush1.msra.mxu0 0.0
    %4806 = vmatprep.subr.mxu0 0.0
    %4807 = vmatpush1.msra.mxu0 0.0
    %4808 = vmatprep.subr.mxu0 0.0
    %4809 = vmatpush1.msra.mxu0 0.0
    %4810 = vmatprep.subr.mxu0 0.0
    %4811 = vmatpush1.msra.mxu0 0.0
    %4812 = vmatprep.subr.mxu0 0.0
    %4813 = vmatpush1.msra.mxu0 0.0
    %4814 = vmatprep.subr.mxu0 0.0
    %4815 = vmatpush1.msra.mxu0 0.0
    %4816 = vmatprep.subr.mxu0 0.0
    %4817 = vmatpush1.msra.mxu0 0.0
    %4818 = vmatprep.subr.mxu0 0.0
    %4819 = vmatpush1.msra.mxu0 0.0
    %4820 = vmatprep.subr.mxu0 0.0
    %4821 = vmatpush1.msra.mxu0 0.0
    %4822 = vmatprep.subr.mxu0 0.0
    %4823 = vmatpush1.msra.mxu0 0.0
    %4824 = vmatprep.subr.mxu0 0.0
    %4825 = vmatpush1.msra.mxu0 0.0
    %4826 = vmatprep.subr.mxu0 0.0
    %4827 = vmatpush1.msra.mxu0 0.0
    %4828 = vmatprep.subr.mxu0 0.0
    %4829 = vmatpush1.msra.mxu0 0.0
    %4830 = vmatprep.subr.mxu0 0.0
    %4831 = vmatpush1.msra.mxu0 0.0
    %4832 = vmatprep.mubr.f32.mxu0 0.0
    %4833 = vmatmul.mubr.f32.gmra.mrb[0].mxu0 %v4766
    %v4834 = vpop.f32.mrb[0].mxu0
    %v4835 = vadd.f32 %v4763, %v4834
    %v4836 = vpop.f32.mrb[0].mxu0
    %4837 = vdwg.mxu0
    %v4838 = vlaneseq
    %v4839 = vshrl.u32 %v4838, 7
    %v4840 = vsub.s32 0, %v4839
    %v4841 = vrot.slane %v4545, %v4840
    %v4842 = vadd.f32 %v4835, %v4841
    %v4843 = vld [vmem:[%s2 + $0x80] sm:$0xff]
    %v4844 = vld [vmem:[%s2 + $0x88] sm:$0xff]
    %v4845 = vld [vmem:[%s2 + $0x90] sm:$0x1]
    %v4846 = vlaneseq
    %v4847 = vshrl.u32 %v4846, 7
    %v4848 = vsub.s32 0, %v4847
    %v4849 = vrot.slane %v4845, %v4848
    %v4851 = vsel %vm1500, %v4477, 0
    %v4854 = vsel %vm1500, %v4478, 0
    %v4857 = vsel %vm1500, %v4479, 0
    %v4860 = vsel %vm1500, %v4480, 0
    %v4863 = vsel %vm1500, %v4481, 0
    %v4866 = vsel %vm1500, %v4482, 0
    %v4869 = vsel %vm1500, %v4483, 0
    %v4872 = vsel %vm1500, %v4484, 0
    %v4875 = vsel %vm1500, %v4485, 0
    %v4878 = vsel %vm1500, %v4486, 0
    %v4881 = vsel %vm1500, %v4487, 0
    %v4884 = vsel %vm1500, %v4488, 0
    %v4887 = vsel %vm1500, %v4489, 0
    %v4890 = vsel %vm1500, %v4490, 0
    %v4893 = vsel %vm1500, %v4491, 0
    %v4896 = vsel %vm1500, %v4492, 0
    %v4899 = vsel %vm1500, %v4493, 0
    %v4902 = vsel %vm1500, %v4494, 0
    %v4905 = vsel %vm1500, %v4495, 0
    %v4908 = vsel %vm1500, %v4496, 0
    %v4911 = vsel %vm1500, %v4497, 0
    %v4914 = vsel %vm1500, %v4498, 0
    %v4917 = vsel %vm1500, %v4499, 0
    %v4920 = vsel %vm1500, %v4500, 0
    %v4923 = vsel %vm1500, %v4501, 0
    %v4926 = vsel %vm1500, %v4502, 0
    %v4929 = vsel %vm1500, %v4503, 0
    %v4932 = vsel %vm1500, %v4504, 0
    %v4935 = vsel %vm1500, %v4505, 0
    %v4938 = vsel %vm1500, %v4506, 0
    %v4941 = vsel %vm1500, %v4507, 0
    %v4944 = vsel %vm1500, %v4508, 0
    %v4947 = vsel %vm1500, %v4509, 0
    %v4950 = vsel %vm1500, %v4510, 0
    %v4953 = vsel %vm1500, %v4511, 0
    %v4956 = vsel %vm1500, %v4512, 0
    %v4959 = vsel %vm1500, %v4513, 0
    %v4962 = vsel %vm1500, %v4514, 0
    %v4965 = vsel %vm1500, %v4515, 0
    %v4968 = vsel %vm1500, %v4516, 0
    %v4971 = vsel %vm1500, %v4517, 0
    %v4974 = vsel %vm1500, %v4518, 0
    %v4977 = vsel %vm1500, %v4519, 0
    %v4980 = vsel %vm1500, %v4520, 0
    %v4983 = vsel %vm1500, %v4521, 0
    %v4986 = vsel %vm1500, %v4522, 0
    %v4989 = vsel %vm1500, %v4523, 0
    %v4992 = vsel %vm1500, %v4524, 0
    %v4995 = vsel %vm1500, %v4525, 0
    %v4998 = vsel %vm1500, %v4526, 0
    %v5001 = vsel %vm1500, %v4527, 0
    %v5004 = vsel %vm1500, %v4528, 0
    %v5007 = vsel %vm1500, %v4529, 0
    %v5010 = vsel %vm1500, %v4530, 0
    %v5013 = vsel %vm1500, %v4531, 0
    %v5016 = vsel %vm1500, %v4532, 0
    %v5019 = vsel %vm1500, %v4533, 0
    %v5022 = vsel %vm1500, %v4534, 0
    %v5025 = vsel %vm1500, %v4535, 0
    %v5028 = vsel %vm1500, %v4536, 0
    %v5031 = vsel %vm1500, %v4537, 0
    %v5034 = vsel %vm1500, %v4538, 0
    %v5037 = vsel %vm1500, %v4539, 0
    %v5040 = vsel %vm1500, %v4540, 0
    %5042 = vmatprep.subr.mxu0 0.0
    %5043 = vmatpush1.msra.mxu0 %v4843
    %5044 = vmatprep.subr.mxu0 0.0
    %5045 = vmatpush1.msra.mxu0 %v4844
    %5046 = vmatprep.subr.mxu0 0.0
    %5047 = vmatpush1.msra.mxu0 0.0
    %5048 = vmatprep.subr.mxu0 0.0
    %5049 = vmatpush1.msra.mxu0 0.0
    %5050 = vmatprep.subr.mxu0 0.0
    %5051 = vmatpush1.msra.mxu0 0.0
    %5052 = vmatprep.subr.mxu0 0.0
    %5053 = vmatpush1.msra.mxu0 0.0
    %5054 = vmatprep.subr.mxu0 0.0
    %5055 = vmatpush1.msra.mxu0 0.0
    %5056 = vmatprep.subr.mxu0 0.0
    %5057 = vmatpush1.msra.mxu0 0.0
    %5058 = vmatprep.subr.mxu0 0.0
    %5059 = vmatpush1.msra.mxu0 0.0
    %5060 = vmatprep.subr.mxu0 0.0
    %5061 = vmatpush1.msra.mxu0 0.0
    %5062 = vmatprep.subr.mxu0 0.0
    %5063 = vmatpush1.msra.mxu0 0.0
    %5064 = vmatprep.subr.mxu0 0.0
    %5065 = vmatpush1.msra.mxu0 0.0
    %5066 = vmatprep.subr.mxu0 0.0
    %5067 = vmatpush1.msra.mxu0 0.0
    %5068 = vmatprep.subr.mxu0 0.0
    %5069 = vmatpush1.msra.mxu0 0.0
    %5070 = vmatprep.subr.mxu0 0.0
    %5071 = vmatpush1.msra.mxu0 0.0
    %5072 = vmatprep.subr.mxu0 0.0
    %5073 = vmatpush1.msra.mxu0 0.0
    %5074 = vmatprep.subr.mxu0 0.0
    %5075 = vmatpush1.msra.mxu0 0.0
    %5076 = vmatprep.subr.mxu0 0.0
    %5077 = vmatpush1.msra.mxu0 0.0
    %5078 = vmatprep.subr.mxu0 0.0
    %5079 = vmatpush1.msra.mxu0 0.0
    %5080 = vmatprep.subr.mxu0 0.0
    %5081 = vmatpush1.msra.mxu0 0.0
    %5082 = vmatprep.subr.mxu0 0.0
    %5083 = vmatpush1.msra.mxu0 0.0
    %5084 = vmatprep.subr.mxu0 0.0
    %5085 = vmatpush1.msra.mxu0 0.0
    %5086 = vmatprep.subr.mxu0 0.0
    %5087 = vmatpush1.msra.mxu0 0.0
    %5088 = vmatprep.subr.mxu0 0.0
    %5089 = vmatpush1.msra.mxu0 0.0
    %5090 = vmatprep.subr.mxu0 0.0
    %5091 = vmatpush1.msra.mxu0 0.0
    %5092 = vmatprep.subr.mxu0 0.0
    %5093 = vmatpush1.msra.mxu0 0.0
    %5094 = vmatprep.subr.mxu0 0.0
    %5095 = vmatpush1.msra.mxu0 0.0
    %5096 = vmatprep.subr.mxu0 0.0
    %5097 = vmatpush1.msra.mxu0 0.0
    %5098 = vmatprep.subr.mxu0 0.0
    %5099 = vmatpush1.msra.mxu0 0.0
    %5100 = vmatprep.subr.mxu0 0.0
    %5101 = vmatpush1.msra.mxu0 0.0
    %5102 = vmatprep.subr.mxu0 0.0
    %5103 = vmatpush1.msra.mxu0 0.0
    %5104 = vmatprep.subr.mxu0 0.0
    %5105 = vmatpush1.msra.mxu0 0.0
    %5106 = vmatprep.mubr.f32.mxu0 0.0
    %5107 = vmatmul.mubr.f32.gmra.mrb[0].mxu0 %v4851
    %v5108 = vpop.f32.mrb[0].mxu0
    %v5109 = vadd.f32 %v4849, %v5108
    %v5110 = vpop.f32.mrb[0].mxu0
    %5111 = vmatprep.mubr.f32.mxu0 0.0
    %5112 = vmatmul.mubr.f32.gmra.mrb[0].mxu0 %v4854
    %v5113 = vpop.f32.mrb[0].mxu0
    %v5114 = vadd.f32 %v4849, %v5113
    %v5115 = vpop.f32.mrb[0].mxu0
    %5116 = vmatprep.mubr.f32.mxu0 0.0
    %5117 = vmatmul.mubr.f32.gmra.mrb[0].mxu0 %v4857
    %v5118 = vpop.f32.mrb[0].mxu0
    %v5119 = vadd.f32 %v4849, %v5118
    %v5120 = vpop.f32.mrb[0].mxu0
    %5121 = vmatprep.mubr.f32.mxu0 0.0
    %5122 = vmatmul.mubr.f32.gmra.mrb[0].mxu0 %v4860
    %v5123 = vpop.f32.mrb[0].mxu0
    %v5124 = vadd.f32 %v4849, %v5123
    %v5125 = vpop.f32.mrb[0].mxu0
    %5126 = vmatprep.mubr.f32.mxu0 0.0
    %5127 = vmatmul.mubr.f32.gmra.mrb[0].mxu0 %v4863
    %v5128 = vpop.f32.mrb[0].mxu0
    %v5129 = vadd.f32 %v4849, %v5128
    %v5130 = vpop.f32.mrb[0].mxu0
    %5131 = vmatprep.mubr.f32.mxu0 0.0
    %5132 = vmatmul.mubr.f32.gmra.mrb[0].mxu0 %v4866
    %v5133 = vpop.f32.mrb[0].mxu0
    %v5134 = vadd.f32 %v4849, %v5133
    %v5135 = vpop.f32.mrb[0].mxu0
    %5136 = vmatprep.mubr.f32.mxu0 0.0
    %5137 = vmatmul.mubr.f32.gmra.mrb[0].mxu0 %v4869
    %v5138 = vpop.f32.mrb[0].mxu0
    %v5139 = vadd.f32 %v4849, %v5138
    %v5140 = vpop.f32.mrb[0].mxu0
    %5141 = vmatprep.mubr.f32.mxu0 0.0
    %5142 = vmatmul.mubr.f32.gmra.mrb[0].mxu0 %v4872
    %v5143 = vpop.f32.mrb[0].mxu0
    %v5144 = vadd.f32 %v4849, %v5143
    %v5145 = vpop.f32.mrb[0].mxu0
    %5146 = vmatprep.mubr.f32.mxu0 0.0
    %5147 = vmatmul.mubr.f32.gmra.mrb[0].mxu0 %v4875
    %v5148 = vpop.f32.mrb[0].mxu0
    %v5149 = vadd.f32 %v4849, %v5148
    %v5150 = vpop.f32.mrb[0].mxu0
    %5151 = vmatprep.mubr.f32.mxu0 0.0
    %5152 = vmatmul.mubr.f32.gmra.mrb[0].mxu0 %v4878
    %v5153 = vpop.f32.mrb[0].mxu0
    %v5154 = vadd.f32 %v4849, %v5153
    %v5155 = vpop.f32.mrb[0].mxu0
    %5156 = vmatprep.mubr.f32.mxu0 0.0
    %5157 = vmatmul.mubr.f32.gmra.mrb[0].mxu0 %v4881
    %v5158 = vpop.f32.mrb[0].mxu0
    %v5159 = vadd.f32 %v4849, %v5158
    %v5160 = vpop.f32.mrb[0].mxu0
    %5161 = vmatprep.mubr.f32.mxu0 0.0
    %5162 = vmatmul.mubr.f32.gmra.mrb[0].mxu0 %v4884
    %v5163 = vpop.f32.mrb[0].mxu0
    %v5164 = vadd.f32 %v4849, %v5163
    %v5165 = vpop.f32.mrb[0].mxu0
    %5166 = vmatprep.mubr.f32.mxu0 0.0
    %5167 = vmatmul.mubr.f32.gmra.mrb[0].mxu0 %v4887
    %v5168 = vpop.f32.mrb[0].mxu0
    %v5169 = vadd.f32 %v4849, %v5168
    %v5170 = vpop.f32.mrb[0].mxu0
    %5171 = vmatprep.mubr.f32.mxu0 0.0
    %5172 = vmatmul.mubr.f32.gmra.mrb[0].mxu0 %v4890
    %v5173 = vpop.f32.mrb[0].mxu0
    %v5174 = vadd.f32 %v4849, %v5173
    %v5175 = vpop.f32.mrb[0].mxu0
    %5176 = vmatprep.mubr.f32.mxu0 0.0
    %5177 = vmatmul.mubr.f32.gmra.mrb[0].mxu0 %v4893
    %v5178 = vpop.f32.mrb[0].mxu0
    %v5179 = vadd.f32 %v4849, %v5178
    %v5180 = vpop.f32.mrb[0].mxu0
    %5181 = vmatprep.mubr.f32.mxu0 0.0
    %5182 = vmatmul.mubr.f32.gmra.mrb[0].mxu0 %v4896
    %v5183 = vpop.f32.mrb[0].mxu0
    %v5184 = vadd.f32 %v4849, %v5183
    %v5185 = vpop.f32.mrb[0].mxu0
    %5186 = vmatprep.mubr.f32.mxu0 0.0
    %5187 = vmatmul.mubr.f32.gmra.mrb[0].mxu0 %v4899
    %v5188 = vpop.f32.mrb[0].mxu0
    %v5189 = vadd.f32 %v4849, %v5188
    %v5190 = vpop.f32.mrb[0].mxu0
    %5191 = vmatprep.mubr.f32.mxu0 0.0
    %5192 = vmatmul.mubr.f32.gmra.mrb[0].mxu0 %v4902
    %v5193 = vpop.f32.mrb[0].mxu0
    %v5194 = vadd.f32 %v4849, %v5193
    %v5195 = vpop.f32.mrb[0].mxu0
    %5196 = vmatprep.mubr.f32.mxu0 0.0
    %5197 = vmatmul.mubr.f32.gmra.mrb[0].mxu0 %v4905
    %v5198 = vpop.f32.mrb[0].mxu0
    %v5199 = vadd.f32 %v4849, %v5198
    %v5200 = vpop.f32.mrb[0].mxu0
    %5201 = vmatprep.mubr.f32.mxu0 0.0
    %5202 = vmatmul.mubr.f32.gmra.mrb[0].mxu0 %v4908
    %v5203 = vpop.f32.mrb[0].mxu0
    %v5204 = vadd.f32 %v4849, %v5203
    %v5205 = vpop.f32.mrb[0].mxu0
    %5206 = vmatprep.mubr.f32.mxu0 0.0
    %5207 = vmatmul.mubr.f32.gmra.mrb[0].mxu0 %v4911
    %v5208 = vpop.f32.mrb[0].mxu0
    %v5209 = vadd.f32 %v4849, %v5208
    %v5210 = vpop.f32.mrb[0].mxu0
    %5211 = vmatprep.mubr.f32.mxu0 0.0
    %5212 = vmatmul.mubr.f32.gmra.mrb[0].mxu0 %v4914
    %v5213 = vpop.f32.mrb[0].mxu0
    %v5214 = vadd.f32 %v4849, %v5213
    %v5215 = vpop.f32.mrb[0].mxu0
    %5216 = vmatprep.mubr.f32.mxu0 0.0
    %5217 = vmatmul.mubr.f32.gmra.mrb[0].mxu0 %v4917
    %v5218 = vpop.f32.mrb[0].mxu0
    %v5219 = vadd.f32 %v4849, %v5218
    %v5220 = vpop.f32.mrb[0].mxu0
    %5221 = vmatprep.mubr.f32.mxu0 0.0
    %5222 = vmatmul.mubr.f32.gmra.mrb[0].mxu0 %v4920
    %v5223 = vpop.f32.mrb[0].mxu0
    %v5224 = vadd.f32 %v4849, %v5223
    %v5225 = vpop.f32.mrb[0].mxu0
    %5226 = vmatprep.mubr.f32.mxu0 0.0
    %5227 = vmatmul.mubr.f32.gmra.mrb[0].mxu0 %v4923
    %v5228 = vpop.f32.mrb[0].mxu0
    %v5229 = vadd.f32 %v4849, %v5228
    %v5230 = vpop.f32.mrb[0].mxu0
    %5231 = vmatprep.mubr.f32.mxu0 0.0
    %5232 = vmatmul.mubr.f32.gmra.mrb[0].mxu0 %v4926
    %v5233 = vpop.f32.mrb[0].mxu0
    %v5234 = vadd.f32 %v4849, %v5233
    %v5235 = vpop.f32.mrb[0].mxu0
    %5236 = vmatprep.mubr.f32.mxu0 0.0
    %5237 = vmatmul.mubr.f32.gmra.mrb[0].mxu0 %v4929
    %v5238 = vpop.f32.mrb[0].mxu0
    %v5239 = vadd.f32 %v4849, %v5238
    %v5240 = vpop.f32.mrb[0].mxu0
    %5241 = vmatprep.mubr.f32.mxu0 0.0
    %5242 = vmatmul.mubr.f32.gmra.mrb[0].mxu0 %v4932
    %v5243 = vpop.f32.mrb[0].mxu0
    %v5244 = vadd.f32 %v4849, %v5243
    %v5245 = vpop.f32.mrb[0].mxu0
    %5246 = vmatprep.mubr.f32.mxu0 0.0
    %5247 = vmatmul.mubr.f32.gmra.mrb[0].mxu0 %v4935
    %v5248 = vpop.f32.mrb[0].mxu0
    %v5249 = vadd.f32 %v4849, %v5248
    %v5250 = vpop.f32.mrb[0].mxu0
    %5251 = vmatprep.mubr.f32.mxu0 0.0
    %5252 = vmatmul.mubr.f32.gmra.mrb[0].mxu0 %v4938
    %v5253 = vpop.f32.mrb[0].mxu0
    %v5254 = vadd.f32 %v4849, %v5253
    %v5255 = vpop.f32.mrb[0].mxu0
    %5256 = vmatprep.mubr.f32.mxu0 0.0
    %5257 = vmatmul.mubr.f32.gmra.mrb[0].mxu0 %v4941
    %v5258 = vpop.f32.mrb[0].mxu0
    %v5259 = vadd.f32 %v4849, %v5258
    %v5260 = vpop.f32.mrb[0].mxu0
    %5261 = vmatprep.mubr.f32.mxu0 0.0
    %5262 = vmatmul.mubr.f32.gmra.mrb[0].mxu0 %v4944
    %v5263 = vpop.f32.mrb[0].mxu0
    %v5264 = vadd.f32 %v4849, %v5263
    %v5265 = vpop.f32.mrb[0].mxu0
    %5266 = vmatprep.mubr.f32.mxu0 0.0
    %5267 = vmatmul.mubr.f32.gmra.mrb[0].mxu0 %v4947
    %v5268 = vpop.f32.mrb[0].mxu0
    %v5269 = vadd.f32 %v4849, %v5268
    %v5270 = vpop.f32.mrb[0].mxu0
    %5271 = vmatprep.mubr.f32.mxu0 0.0
    %5272 = vmatmul.mubr.f32.gmra.mrb[0].mxu0 %v4950
    %v5273 = vpop.f32.mrb[0].mxu0
    %v5274 = vadd.f32 %v4849, %v5273
    %v5275 = vpop.f32.mrb[0].mxu0
    %5276 = vmatprep.mubr.f32.mxu0 0.0
    %5277 = vmatmul.mubr.f32.gmra.mrb[0].mxu0 %v4953
    %v5278 = vpop.f32.mrb[0].mxu0
    %v5279 = vadd.f32 %v4849, %v5278
    %v5280 = vpop.f32.mrb[0].mxu0
    %5281 = vmatprep.mubr.f32.mxu0 0.0
    %5282 = vmatmul.mubr.f32.gmra.mrb[0].mxu0 %v4956
    %v5283 = vpop.f32.mrb[0].mxu0
    %v5284 = vadd.f32 %v4849, %v5283
    %v5285 = vpop.f32.mrb[0].mxu0
    %5286 = vmatprep.mubr.f32.mxu0 0.0
    %5287 = vmatmul.mubr.f32.gmra.mrb[0].mxu0 %v4959
    %v5288 = vpop.f32.mrb[0].mxu0
    %v5289 = vadd.f32 %v4849, %v5288
    %v5290 = vpop.f32.mrb[0].mxu0
    %5291 = vmatprep.mubr.f32.mxu0 0.0
    %5292 = vmatmul.mubr.f32.gmra.mrb[0].mxu0 %v4962
    %v5293 = vpop.f32.mrb[0].mxu0
    %v5294 = vadd.f32 %v4849, %v5293
    %v5295 = vpop.f32.mrb[0].mxu0
    %5296 = vmatprep.mubr.f32.mxu0 0.0
    %5297 = vmatmul.mubr.f32.gmra.mrb[0].mxu0 %v4965
    %v5298 = vpop.f32.mrb[0].mxu0
    %v5299 = vadd.f32 %v4849, %v5298
    %v5300 = vpop.f32.mrb[0].mxu0
    %5301 = vmatprep.mubr.f32.mxu0 0.0
    %5302 = vmatmul.mubr.f32.gmra.mrb[0].mxu0 %v4968
    %v5303 = vpop.f32.mrb[0].mxu0
    %v5304 = vadd.f32 %v4849, %v5303
    %v5305 = vpop.f32.mrb[0].mxu0
    %5306 = vmatprep.mubr.f32.mxu0 0.0
    %5307 = vmatmul.mubr.f32.gmra.mrb[0].mxu0 %v4971
    %v5308 = vpop.f32.mrb[0].mxu0
    %v5309 = vadd.f32 %v4849, %v5308
    %v5310 = vpop.f32.mrb[0].mxu0
    %5311 = vmatprep.mubr.f32.mxu0 0.0
    %5312 = vmatmul.mubr.f32.gmra.mrb[0].mxu0 %v4974
    %v5313 = vpop.f32.mrb[0].mxu0
    %v5314 = vadd.f32 %v4849, %v5313
    %v5315 = vpop.f32.mrb[0].mxu0
    %5316 = vmatprep.mubr.f32.mxu0 0.0
    %5317 = vmatmul.mubr.f32.gmra.mrb[0].mxu0 %v4977
    %v5318 = vpop.f32.mrb[0].mxu0
    %v5319 = vadd.f32 %v4849, %v5318
    %v5320 = vpop.f32.mrb[0].mxu0
    %5321 = vmatprep.mubr.f32.mxu0 0.0
    %5322 = vmatmul.mubr.f32.gmra.mrb[0].mxu0 %v4980
    %v5323 = vpop.f32.mrb[0].mxu0
    %v5324 = vadd.f32 %v4849, %v5323
    %v5325 = vpop.f32.mrb[0].mxu0
    %5326 = vmatprep.mubr.f32.mxu0 0.0
    %5327 = vmatmul.mubr.f32.gmra.mrb[0].mxu0 %v4983
    %v5328 = vpop.f32.mrb[0].mxu0
    %v5329 = vadd.f32 %v4849, %v5328
    %v5330 = vpop.f32.mrb[0].mxu0
    %5331 = vmatprep.mubr.f32.mxu0 0.0
    %5332 = vmatmul.mubr.f32.gmra.mrb[0].mxu0 %v4986
    %v5333 = vpop.f32.mrb[0].mxu0
    %v5334 = vadd.f32 %v4849, %v5333
    %v5335 = vpop.f32.mrb[0].mxu0
    %5336 = vmatprep.mubr.f32.mxu0 0.0
    %5337 = vmatmul.mubr.f32.gmra.mrb[0].mxu0 %v4989
    %v5338 = vpop.f32.mrb[0].mxu0
    %v5339 = vadd.f32 %v4849, %v5338
    %v5340 = vpop.f32.mrb[0].mxu0
    %5341 = vmatprep.mubr.f32.mxu0 0.0
    %5342 = vmatmul.mubr.f32.gmra.mrb[0].mxu0 %v4992
    %v5343 = vpop.f32.mrb[0].mxu0
    %v5344 = vadd.f32 %v4849, %v5343
    %v5345 = vpop.f32.mrb[0].mxu0
    %5346 = vmatprep.mubr.f32.mxu0 0.0
    %5347 = vmatmul.mubr.f32.gmra.mrb[0].mxu0 %v4995
    %v5348 = vpop.f32.mrb[0].mxu0
    %v5349 = vadd.f32 %v4849, %v5348
    %v5350 = vpop.f32.mrb[0].mxu0
    %5351 = vmatprep.mubr.f32.mxu0 0.0
    %5352 = vmatmul.mubr.f32.gmra.mrb[0].mxu0 %v4998
    %v5353 = vpop.f32.mrb[0].mxu0
    %v5354 = vadd.f32 %v4849, %v5353
    %v5355 = vpop.f32.mrb[0].mxu0
    %5356 = vmatprep.mubr.f32.mxu0 0.0
    %5357 = vmatmul.mubr.f32.gmra.mrb[0].mxu0 %v5001
    %v5358 = vpop.f32.mrb[0].mxu0
    %v5359 = vadd.f32 %v4849, %v5358
    %v5360 = vpop.f32.mrb[0].mxu0
    %5361 = vmatprep.mubr.f32.mxu0 0.0
    %5362 = vmatmul.mubr.f32.gmra.mrb[0].mxu0 %v5004
    %v5363 = vpop.f32.mrb[0].mxu0
    %v5364 = vadd.f32 %v4849, %v5363
    %v5365 = vpop.f32.mrb[0].mxu0
    %5366 = vmatprep.mubr.f32.mxu0 0.0
    %5367 = vmatmul.mubr.f32.gmra.mrb[0].mxu0 %v5007
    %v5368 = vpop.f32.mrb[0].mxu0
    %v5369 = vadd.f32 %v4849, %v5368
    %v5370 = vpop.f32.mrb[0].mxu0
    %5371 = vmatprep.mubr.f32.mxu0 0.0
    %5372 = vmatmul.mubr.f32.gmra.mrb[0].mxu0 %v5010
    %v5373 = vpop.f32.mrb[0].mxu0
    %v5374 = vadd.f32 %v4849, %v5373
    %v5375 = vpop.f32.mrb[0].mxu0
    %5376 = vmatprep.mubr.f32.mxu0 0.0
    %5377 = vmatmul.mubr.f32.gmra.mrb[0].mxu0 %v5013
    %v5378 = vpop.f32.mrb[0].mxu0
    %v5379 = vadd.f32 %v4849, %v5378
    %v5380 = vpop.f32.mrb[0].mxu0
    %5381 = vmatprep.mubr.f32.mxu0 0.0
    %5382 = vmatmul.mubr.f32.gmra.mrb[0].mxu0 %v5016
    %v5383 = vpop.f32.mrb[0].mxu0
    %v5384 = vadd.f32 %v4849, %v5383
    %v5385 = vpop.f32.mrb[0].mxu0
    %5386 = vmatprep.mubr.f32.mxu0 0.0
    %5387 = vmatmul.mubr.f32.gmra.mrb[0].mxu0 %v5019
    %v5388 = vpop.f32.mrb[0].mxu0
    %v5389 = vadd.f32 %v4849, %v5388
    %v5390 = vpop.f32.mrb[0].mxu0
    %5391 = vmatprep.mubr.f32.mxu0 0.0
    %5392 = vmatmul.mubr.f32.gmra.mrb[0].mxu0 %v5022
    %v5393 = vpop.f32.mrb[0].mxu0
    %v5394 = vadd.f32 %v4849, %v5393
    %v5395 = vpop.f32.mrb[0].mxu0
    %5396 = vmatprep.mubr.f32.mxu0 0.0
    %5397 = vmatmul.mubr.f32.gmra.mrb[0].mxu0 %v5025
    %v5398 = vpop.f32.mrb[0].mxu0
    %v5399 = vadd.f32 %v4849, %v5398
    %v5400 = vpop.f32.mrb[0].mxu0
    %5401 = vmatprep.mubr.f32.mxu0 0.0
    %5402 = vmatmul.mubr.f32.gmra.mrb[0].mxu0 %v5028
    %v5403 = vpop.f32.mrb[0].mxu0
    %v5404 = vadd.f32 %v4849, %v5403
    %v5405 = vpop.f32.mrb[0].mxu0
    %5406 = vmatprep.mubr.f32.mxu0 0.0
    %5407 = vmatmul.mubr.f32.gmra.mrb[0].mxu0 %v5031
    %v5408 = vpop.f32.mrb[0].mxu0
    %v5409 = vadd.f32 %v4849, %v5408
    %v5410 = vpop.f32.mrb[0].mxu0
    %5411 = vmatprep.mubr.f32.mxu0 0.0
    %5412 = vmatmul.mubr.f32.gmra.mrb[0].mxu0 %v5034
    %v5413 = vpop.f32.mrb[0].mxu0
    %v5414 = vadd.f32 %v4849, %v5413
    %v5415 = vpop.f32.mrb[0].mxu0
    %5416 = vmatprep.mubr.f32.mxu0 0.0
    %5417 = vmatmul.mubr.f32.gmra.mrb[0].mxu0 %v5037
    %v5418 = vpop.f32.mrb[0].mxu0
    %v5419 = vadd.f32 %v4849, %v5418
    %v5420 = vpop.f32.mrb[0].mxu0
    %5421 = vmatprep.mubr.f32.mxu0 0.0
    %5422 = vmatmul.mubr.f32.gmra.mrb[0].mxu0 %v5040
    %v5423 = vpop.f32.mrb[0].mxu0
    %v5424 = vadd.f32 %v4849, %v5423
    %v5425 = vpop.f32.mrb[0].mxu0
    %5426 = vdwg.mxu0
    %v5427 = vmax.f32 %v5109, 0.0
    %v5428 = vmax.f32 %v5114, 0.0
    %v5429 = vmax.f32 %v5119, 0.0
    %v5430 = vmax.f32 %v5124, 0.0
    %v5431 = vmax.f32 %v5129, 0.0
    %v5432 = vmax.f32 %v5134, 0.0
    %v5433 = vmax.f32 %v5139, 0.0
    %v5434 = vmax.f32 %v5144, 0.0
    %v5435 = vmax.f32 %v5149, 0.0
    %v5436 = vmax.f32 %v5154, 0.0
    %v5437 = vmax.f32 %v5159, 0.0
    %v5438 = vmax.f32 %v5164, 0.0
    %v5439 = vmax.f32 %v5169, 0.0
    %v5440 = vmax.f32 %v5174, 0.0
    %v5441 = vmax.f32 %v5179, 0.0
    %v5442 = vmax.f32 %v5184, 0.0
    %v5443 = vmax.f32 %v5189, 0.0
    %v5444 = vmax.f32 %v5194, 0.0
    %v5445 = vmax.f32 %v5199, 0.0
    %v5446 = vmax.f32 %v5204, 0.0
    %v5447 = vmax.f32 %v5209, 0.0
    %v5448 = vmax.f32 %v5214, 0.0
    %v5449 = vmax.f32 %v5219, 0.0
    %v5450 = vmax.f32 %v5224, 0.0
    %v5451 = vmax.f32 %v5229, 0.0
    %v5452 = vmax.f32 %v5234, 0.0
    %v5453 = vmax.f32 %v5239, 0.0
    %v5454 = vmax.f32 %v5244, 0.0
    %v5455 = vmax.f32 %v5249, 0.0
    %v5456 = vmax.f32 %v5254, 0.0
    %v5457 = vmax.f32 %v5259, 0.0
    %v5458 = vmax.f32 %v5264, 0.0
    %v5459 = vmax.f32 %v5269, 0.0
    %v5460 = vmax.f32 %v5274, 0.0
    %v5461 = vmax.f32 %v5279, 0.0
    %v5462 = vmax.f32 %v5284, 0.0
    %v5463 = vmax.f32 %v5289, 0.0
    %v5464 = vmax.f32 %v5294, 0.0
    %v5465 = vmax.f32 %v5299, 0.0
    %v5466 = vmax.f32 %v5304, 0.0
    %v5467 = vmax.f32 %v5309, 0.0
    %v5468 = vmax.f32 %v5314, 0.0
    %v5469 = vmax.f32 %v5319, 0.0
    %v5470 = vmax.f32 %v5324, 0.0
    %v5471 = vmax.f32 %v5329, 0.0
    %v5472 = vmax.f32 %v5334, 0.0
    %v5473 = vmax.f32 %v5339, 0.0
    %v5474 = vmax.f32 %v5344, 0.0
    %v5475 = vmax.f32 %v5349, 0.0
    %v5476 = vmax.f32 %v5354, 0.0
    %v5477 = vmax.f32 %v5359, 0.0
    %v5478 = vmax.f32 %v5364, 0.0
    %v5479 = vmax.f32 %v5369, 0.0
    %v5480 = vmax.f32 %v5374, 0.0
    %v5481 = vmax.f32 %v5379, 0.0
    %v5482 = vmax.f32 %v5384, 0.0
    %v5483 = vmax.f32 %v5389, 0.0
    %v5484 = vmax.f32 %v5394, 0.0
    %v5485 = vmax.f32 %v5399, 0.0
    %v5486 = vmax.f32 %v5404, 0.0
    %v5487 = vmax.f32 %v5409, 0.0
    %v5488 = vmax.f32 %v5414, 0.0
    %v5489 = vmax.f32 %v5419, 0.0
    %v5490 = vmax.f32 %v5424, 0.0
    %v5491 = vld [vmem:[%s2 + $0x98] sm:$0xff]
    %v5492 = vld [vmem:[%s2 + $0xa0] sm:$0xff]
    %v5493 = vld [vmem:[%s2 + $0xa8] sm:$0xff]
    %v5494 = vld [vmem:[%s2 + $0xb0] sm:$0xff]
    %v5495 = vld [vmem:[%s2 + $0xb8] sm:$0x1]
    %v5496 = vlaneseq
    %v5497 = vshrl.u32 %v5496, 7
    %v5498 = vsub.s32 0, %v5497
    %v5499 = vrot.slane %v5495, %v5498
    %v5501 = vsel %vm762, %v5427, 0
    %v5504 = vsel %vm762, %v5428, 0
    %v5507 = vsel %vm762, %v5429, 0
    %v5510 = vsel %vm762, %v5430, 0
    %v5513 = vsel %vm762, %v5431, 0
    %v5516 = vsel %vm762, %v5432, 0
    %v5519 = vsel %vm762, %v5433, 0
    %v5522 = vsel %vm762, %v5434, 0
    %v5525 = vsel %vm762, %v5435, 0
    %v5528 = vsel %vm762, %v5436, 0
    %v5531 = vsel %vm762, %v5437, 0
    %v5534 = vsel %vm762, %v5438, 0
    %v5537 = vsel %vm762, %v5439, 0
    %v5540 = vsel %vm762, %v5440, 0
    %v5543 = vsel %vm762, %v5441, 0
    %v5546 = vsel %vm762, %v5442, 0
    %v5549 = vsel %vm762, %v5443, 0
    %v5552 = vsel %vm762, %v5444, 0
    %v5555 = vsel %vm762, %v5445, 0
    %v5558 = vsel %vm762, %v5446, 0
    %v5561 = vsel %vm762, %v5447, 0
    %v5564 = vsel %vm762, %v5448, 0
    %v5567 = vsel %vm762, %v5449, 0
    %v5570 = vsel %vm762, %v5450, 0
    %v5573 = vsel %vm762, %v5451, 0
    %v5576 = vsel %vm762, %v5452, 0
    %v5579 = vsel %vm762, %v5453, 0
    %v5582 = vsel %vm762, %v5454, 0
    %v5585 = vsel %vm762, %v5455, 0
    %v5588 = vsel %vm762, %v5456, 0
    %v5591 = vsel %vm762, %v5457, 0
    %v5594 = vsel %vm762, %v5458, 0
    %v5597 = vsel %vm762, %v5459, 0
    %v5600 = vsel %vm762, %v5460, 0
    %v5603 = vsel %vm762, %v5461, 0
    %v5606 = vsel %vm762, %v5462, 0
    %v5609 = vsel %vm762, %v5463, 0
    %v5612 = vsel %vm762, %v5464, 0
    %v5615 = vsel %vm762, %v5465, 0
    %v5618 = vsel %vm762, %v5466, 0
    %v5621 = vsel %vm762, %v5467, 0
    %v5624 = vsel %vm762, %v5468, 0
    %v5627 = vsel %vm762, %v5469, 0
    %v5630 = vsel %vm762, %v5470, 0
    %v5633 = vsel %vm762, %v5471, 0
    %v5636 = vsel %vm762, %v5472, 0
    %v5639 = vsel %vm762, %v5473, 0
    %v5642 = vsel %vm762, %v5474, 0
    %v5645 = vsel %vm762, %v5475, 0
    %v5648 = vsel %vm762, %v5476, 0
    %v5651 = vsel %vm762, %v5477, 0
    %v5654 = vsel %vm762, %v5478, 0
    %v5657 = vsel %vm762, %v5479, 0
    %v5660 = vsel %vm762, %v5480, 0
    %v5663 = vsel %vm762, %v5481, 0
    %v5666 = vsel %vm762, %v5482, 0
    %v5669 = vsel %vm762, %v5483, 0
    %v5672 = vsel %vm762, %v5484, 0
    %v5675 = vsel %vm762, %v5485, 0
    %v5678 = vsel %vm762, %v5486, 0
    %v5681 = vsel %vm762, %v5487, 0
    %v5684 = vsel %vm762, %v5488, 0
    %v5687 = vsel %vm762, %v5489, 0
    %v5690 = vsel %vm762, %v5490, 0
    %5692 = vmatprep.subr.mxu0 0.0
    %5693 = vmatpush1.msra.mxu0 %v5491
    %5694 = vmatprep.subr.mxu0 0.0
    %5695 = vmatpush1.msra.mxu0 %v5492
    %5696 = vmatprep.subr.mxu0 0.0
    %5697 = vmatpush1.msra.mxu0 %v5493
    %5698 = vmatprep.subr.mxu0 0.0
    %5699 = vmatpush1.msra.mxu0 %v5494
    %5700 = vmatprep.subr.mxu0 0.0
    %5701 = vmatpush1.msra.mxu0 0.0
    %5702 = vmatprep.subr.mxu0 0.0
    %5703 = vmatpush1.msra.mxu0 0.0
    %5704 = vmatprep.subr.mxu0 0.0
    %5705 = vmatpush1.msra.mxu0 0.0
    %5706 = vmatprep.subr.mxu0 0.0
    %5707 = vmatpush1.msra.mxu0 0.0
    %5708 = vmatprep.subr.mxu0 0.0
    %5709 = vmatpush1.msra.mxu0 0.0
    %5710 = vmatprep.subr.mxu0 0.0
    %5711 = vmatpush1.msra.mxu0 0.0
    %5712 = vmatprep.subr.mxu0 0.0
    %5713 = vmatpush1.msra.mxu0 0.0
    %5714 = vmatprep.subr.mxu0 0.0
    %5715 = vmatpush1.msra.mxu0 0.0
    %5716 = vmatprep.subr.mxu0 0.0
    %5717 = vmatpush1.msra.mxu0 0.0
    %5718 = vmatprep.subr.mxu0 0.0
    %5719 = vmatpush1.msra.mxu0 0.0
    %5720 = vmatprep.subr.mxu0 0.0
    %5721 = vmatpush1.msra.mxu0 0.0
    %5722 = vmatprep.subr.mxu0 0.0
    %5723 = vmatpush1.msra.mxu0 0.0
    %5724 = vmatprep.subr.mxu0 0.0
    %5725 = vmatpush1.msra.mxu0 0.0
    %5726 = vmatprep.subr.mxu0 0.0
    %5727 = vmatpush1.msra.mxu0 0.0
    %5728 = vmatprep.subr.mxu0 0.0
    %5729 = vmatpush1.msra.mxu0 0.0
    %5730 = vmatprep.subr.mxu0 0.0
    %5731 = vmatpush1.msra.mxu0 0.0
    %5732 = vmatprep.subr.mxu0 0.0
    %5733 = vmatpush1.msra.mxu0 0.0
    %5734 = vmatprep.subr.mxu0 0.0
    %5735 = vmatpush1.msra.mxu0 0.0
    %5736 = vmatprep.subr.mxu0 0.0
    %5737 = vmatpush1.msra.mxu0 0.0
    %5738 = vmatprep.subr.mxu0 0.0
    %5739 = vmatpush1.msra.mxu0 0.0
    %5740 = vmatprep.subr.mxu0 0.0
    %5741 = vmatpush1.msra.mxu0 0.0
    %5742 = vmatprep.subr.mxu0 0.0
    %5743 = vmatpush1.msra.mxu0 0.0
    %5744 = vmatprep.subr.mxu0 0.0
    %5745 = vmatpush1.msra.mxu0 0.0
    %5746 = vmatprep.subr.mxu0 0.0
    %5747 = vmatpush1.msra.mxu0 0.0
    %5748 = vmatprep.subr.mxu0 0.0
    %5749 = vmatpush1.msra.mxu0 0.0
    %5750 = vmatprep.subr.mxu0 0.0
    %5751 = vmatpush1.msra.mxu0 0.0
    %5752 = vmatprep.subr.mxu0 0.0
    %5753 = vmatpush1.msra.mxu0 0.0
    %5754 = vmatprep.subr.mxu0 0.0
    %5755 = vmatpush1.msra.mxu0 0.0
    %5756 = vmatprep.mubr.f32.mxu0 0.0
    %5757 = vmatmul.mubr.f32.gmra.mrb[0].mxu0 %v5501
    %v5758 = vpop.f32.mrb[0].mxu0
    %v5759 = vadd.f32 %v5499, %v5758
    %v5760 = vpop.f32.mrb[0].mxu0
    %5761 = vmatprep.mubr.f32.mxu0 0.0
    %5762 = vmatmul.mubr.f32.gmra.mrb[0].mxu0 %v5504
    %v5763 = vpop.f32.mrb[0].mxu0
    %v5764 = vadd.f32 %v5499, %v5763
    %v5765 = vpop.f32.mrb[0].mxu0
    %5766 = vmatprep.mubr.f32.mxu0 0.0
    %5767 = vmatmul.mubr.f32.gmra.mrb[0].mxu0 %v5507
    %v5768 = vpop.f32.mrb[0].mxu0
    %v5769 = vadd.f32 %v5499, %v5768
    %v5770 = vpop.f32.mrb[0].mxu0
    %5771 = vmatprep.mubr.f32.mxu0 0.0
    %5772 = vmatmul.mubr.f32.gmra.mrb[0].mxu0 %v5510
    %v5773 = vpop.f32.mrb[0].mxu0
    %v5774 = vadd.f32 %v5499, %v5773
    %v5775 = vpop.f32.mrb[0].mxu0
    %5776 = vmatprep.mubr.f32.mxu0 0.0
    %5777 = vmatmul.mubr.f32.gmra.mrb[0].mxu0 %v5513
    %v5778 = vpop.f32.mrb[0].mxu0
    %v5779 = vadd.f32 %v5499, %v5778
    %v5780 = vpop.f32.mrb[0].mxu0
    %5781 = vmatprep.mubr.f32.mxu0 0.0
    %5782 = vmatmul.mubr.f32.gmra.mrb[0].mxu0 %v5516
    %v5783 = vpop.f32.mrb[0].mxu0
    %v5784 = vadd.f32 %v5499, %v5783
    %v5785 = vpop.f32.mrb[0].mxu0
    %5786 = vmatprep.mubr.f32.mxu0 0.0
    %5787 = vmatmul.mubr.f32.gmra.mrb[0].mxu0 %v5519
    %v5788 = vpop.f32.mrb[0].mxu0
    %v5789 = vadd.f32 %v5499, %v5788
    %v5790 = vpop.f32.mrb[0].mxu0
    %5791 = vmatprep.mubr.f32.mxu0 0.0
    %5792 = vmatmul.mubr.f32.gmra.mrb[0].mxu0 %v5522
    %v5793 = vpop.f32.mrb[0].mxu0
    %v5794 = vadd.f32 %v5499, %v5793
    %v5795 = vpop.f32.mrb[0].mxu0
    %5796 = vmatprep.mubr.f32.mxu0 0.0
    %5797 = vmatmul.mubr.f32.gmra.mrb[0].mxu0 %v5525
    %v5798 = vpop.f32.mrb[0].mxu0
    %v5799 = vadd.f32 %v5499, %v5798
    %v5800 = vpop.f32.mrb[0].mxu0
    %5801 = vmatprep.mubr.f32.mxu0 0.0
    %5802 = vmatmul.mubr.f32.gmra.mrb[0].mxu0 %v5528
    %v5803 = vpop.f32.mrb[0].mxu0
    %v5804 = vadd.f32 %v5499, %v5803
    %v5805 = vpop.f32.mrb[0].mxu0
    %5806 = vmatprep.mubr.f32.mxu0 0.0
    %5807 = vmatmul.mubr.f32.gmra.mrb[0].mxu0 %v5531
    %v5808 = vpop.f32.mrb[0].mxu0
    %v5809 = vadd.f32 %v5499, %v5808
    %v5810 = vpop.f32.mrb[0].mxu0
    %5811 = vmatprep.mubr.f32.mxu0 0.0
    %5812 = vmatmul.mubr.f32.gmra.mrb[0].mxu0 %v5534
    %v5813 = vpop.f32.mrb[0].mxu0
    %v5814 = vadd.f32 %v5499, %v5813
    %v5815 = vpop.f32.mrb[0].mxu0
    %5816 = vmatprep.mubr.f32.mxu0 0.0
    %5817 = vmatmul.mubr.f32.gmra.mrb[0].mxu0 %v5537
    %v5818 = vpop.f32.mrb[0].mxu0
    %v5819 = vadd.f32 %v5499, %v5818
    %v5820 = vpop.f32.mrb[0].mxu0
    %5821 = vmatprep.mubr.f32.mxu0 0.0
    %5822 = vmatmul.mubr.f32.gmra.mrb[0].mxu0 %v5540
    %v5823 = vpop.f32.mrb[0].mxu0
    %v5824 = vadd.f32 %v5499, %v5823
    %v5825 = vpop.f32.mrb[0].mxu0
    %5826 = vmatprep.mubr.f32.mxu0 0.0
    %5827 = vmatmul.mubr.f32.gmra.mrb[0].mxu0 %v5543
    %v5828 = vpop.f32.mrb[0].mxu0
    %v5829 = vadd.f32 %v5499, %v5828
    %v5830 = vpop.f32.mrb[0].mxu0
    %5831 = vmatprep.mubr.f32.mxu0 0.0
    %5832 = vmatmul.mubr.f32.gmra.mrb[0].mxu0 %v5546
    %v5833 = vpop.f32.mrb[0].mxu0
    %v5834 = vadd.f32 %v5499, %v5833
    %v5835 = vpop.f32.mrb[0].mxu0
    %5836 = vmatprep.mubr.f32.mxu0 0.0
    %5837 = vmatmul.mubr.f32.gmra.mrb[0].mxu0 %v5549
    %v5838 = vpop.f32.mrb[0].mxu0
    %v5839 = vadd.f32 %v5499, %v5838
    %v5840 = vpop.f32.mrb[0].mxu0
    %5841 = vmatprep.mubr.f32.mxu0 0.0
    %5842 = vmatmul.mubr.f32.gmra.mrb[0].mxu0 %v5552
    %v5843 = vpop.f32.mrb[0].mxu0
    %v5844 = vadd.f32 %v5499, %v5843
    %v5845 = vpop.f32.mrb[0].mxu0
    %5846 = vmatprep.mubr.f32.mxu0 0.0
    %5847 = vmatmul.mubr.f32.gmra.mrb[0].mxu0 %v5555
    %v5848 = vpop.f32.mrb[0].mxu0
    %v5849 = vadd.f32 %v5499, %v5848
    %v5850 = vpop.f32.mrb[0].mxu0
    %5851 = vmatprep.mubr.f32.mxu0 0.0
    %5852 = vmatmul.mubr.f32.gmra.mrb[0].mxu0 %v5558
    %v5853 = vpop.f32.mrb[0].mxu0
    %v5854 = vadd.f32 %v5499, %v5853
    %v5855 = vpop.f32.mrb[0].mxu0
    %5856 = vmatprep.mubr.f32.mxu0 0.0
    %5857 = vmatmul.mubr.f32.gmra.mrb[0].mxu0 %v5561
    %v5858 = vpop.f32.mrb[0].mxu0
    %v5859 = vadd.f32 %v5499, %v5858
    %v5860 = vpop.f32.mrb[0].mxu0
    %5861 = vmatprep.mubr.f32.mxu0 0.0
    %5862 = vmatmul.mubr.f32.gmra.mrb[0].mxu0 %v5564
    %v5863 = vpop.f32.mrb[0].mxu0
    %v5864 = vadd.f32 %v5499, %v5863
    %v5865 = vpop.f32.mrb[0].mxu0
    %5866 = vmatprep.mubr.f32.mxu0 0.0
    %5867 = vmatmul.mubr.f32.gmra.mrb[0].mxu0 %v5567
    %v5868 = vpop.f32.mrb[0].mxu0
    %v5869 = vadd.f32 %v5499, %v5868
    %v5870 = vpop.f32.mrb[0].mxu0
    %5871 = vmatprep.mubr.f32.mxu0 0.0
    %5872 = vmatmul.mubr.f32.gmra.mrb[0].mxu0 %v5570
    %v5873 = vpop.f32.mrb[0].mxu0
    %v5874 = vadd.f32 %v5499, %v5873
    %v5875 = vpop.f32.mrb[0].mxu0
    %5876 = vmatprep.mubr.f32.mxu0 0.0
    %5877 = vmatmul.mubr.f32.gmra.mrb[0].mxu0 %v5573
    %v5878 = vpop.f32.mrb[0].mxu0
    %v5879 = vadd.f32 %v5499, %v5878
    %v5880 = vpop.f32.mrb[0].mxu0
    %5881 = vmatprep.mubr.f32.mxu0 0.0
    %5882 = vmatmul.mubr.f32.gmra.mrb[0].mxu0 %v5576
    %v5883 = vpop.f32.mrb[0].mxu0
    %v5884 = vadd.f32 %v5499, %v5883
    %v5885 = vpop.f32.mrb[0].mxu0
    %5886 = vmatprep.mubr.f32.mxu0 0.0
    %5887 = vmatmul.mubr.f32.gmra.mrb[0].mxu0 %v5579
    %v5888 = vpop.f32.mrb[0].mxu0
    %v5889 = vadd.f32 %v5499, %v5888
    %v5890 = vpop.f32.mrb[0].mxu0
    %5891 = vmatprep.mubr.f32.mxu0 0.0
    %5892 = vmatmul.mubr.f32.gmra.mrb[0].mxu0 %v5582
    %v5893 = vpop.f32.mrb[0].mxu0
    %v5894 = vadd.f32 %v5499, %v5893
    %v5895 = vpop.f32.mrb[0].mxu0
    %5896 = vmatprep.mubr.f32.mxu0 0.0
    %5897 = vmatmul.mubr.f32.gmra.mrb[0].mxu0 %v5585
    %v5898 = vpop.f32.mrb[0].mxu0
    %v5899 = vadd.f32 %v5499, %v5898
    %v5900 = vpop.f32.mrb[0].mxu0
    %5901 = vmatprep.mubr.f32.mxu0 0.0
    %5902 = vmatmul.mubr.f32.gmra.mrb[0].mxu0 %v5588
    %v5903 = vpop.f32.mrb[0].mxu0
    %v5904 = vadd.f32 %v5499, %v5903
    %v5905 = vpop.f32.mrb[0].mxu0
    %5906 = vmatprep.mubr.f32.mxu0 0.0
    %5907 = vmatmul.mubr.f32.gmra.mrb[0].mxu0 %v5591
    %v5908 = vpop.f32.mrb[0].mxu0
    %v5909 = vadd.f32 %v5499, %v5908
    %v5910 = vpop.f32.mrb[0].mxu0
    %5911 = vmatprep.mubr.f32.mxu0 0.0
    %5912 = vmatmul.mubr.f32.gmra.mrb[0].mxu0 %v5594
    %v5913 = vpop.f32.mrb[0].mxu0
    %v5914 = vadd.f32 %v5499, %v5913
    %v5915 = vpop.f32.mrb[0].mxu0
    %5916 = vmatprep.mubr.f32.mxu0 0.0
    %5917 = vmatmul.mubr.f32.gmra.mrb[0].mxu0 %v5597
    %v5918 = vpop.f32.mrb[0].mxu0
    %v5919 = vadd.f32 %v5499, %v5918
    %v5920 = vpop.f32.mrb[0].mxu0
    %5921 = vmatprep.mubr.f32.mxu0 0.0
    %5922 = vmatmul.mubr.f32.gmra.mrb[0].mxu0 %v5600
    %v5923 = vpop.f32.mrb[0].mxu0
    %v5924 = vadd.f32 %v5499, %v5923
    %v5925 = vpop.f32.mrb[0].mxu0
    %5926 = vmatprep.mubr.f32.mxu0 0.0
    %5927 = vmatmul.mubr.f32.gmra.mrb[0].mxu0 %v5603
    %v5928 = vpop.f32.mrb[0].mxu0
    %v5929 = vadd.f32 %v5499, %v5928
    %v5930 = vpop.f32.mrb[0].mxu0
    %5931 = vmatprep.mubr.f32.mxu0 0.0
    %5932 = vmatmul.mubr.f32.gmra.mrb[0].mxu0 %v5606
    %v5933 = vpop.f32.mrb[0].mxu0
    %v5934 = vadd.f32 %v5499, %v5933
    %v5935 = vpop.f32.mrb[0].mxu0
    %5936 = vmatprep.mubr.f32.mxu0 0.0
    %5937 = vmatmul.mubr.f32.gmra.mrb[0].mxu0 %v5609
    %v5938 = vpop.f32.mrb[0].mxu0
    %v5939 = vadd.f32 %v5499, %v5938
    %v5940 = vpop.f32.mrb[0].mxu0
    %5941 = vmatprep.mubr.f32.mxu0 0.0
    %5942 = vmatmul.mubr.f32.gmra.mrb[0].mxu0 %v5612
    %v5943 = vpop.f32.mrb[0].mxu0
    %v5944 = vadd.f32 %v5499, %v5943
    %v5945 = vpop.f32.mrb[0].mxu0
    %5946 = vmatprep.mubr.f32.mxu0 0.0
    %5947 = vmatmul.mubr.f32.gmra.mrb[0].mxu0 %v5615
    %v5948 = vpop.f32.mrb[0].mxu0
    %v5949 = vadd.f32 %v5499, %v5948
    %v5950 = vpop.f32.mrb[0].mxu0
    %5951 = vmatprep.mubr.f32.mxu0 0.0
    %5952 = vmatmul.mubr.f32.gmra.mrb[0].mxu0 %v5618
    %v5953 = vpop.f32.mrb[0].mxu0
    %v5954 = vadd.f32 %v5499, %v5953
    %v5955 = vpop.f32.mrb[0].mxu0
    %5956 = vmatprep.mubr.f32.mxu0 0.0
    %5957 = vmatmul.mubr.f32.gmra.mrb[0].mxu0 %v5621
    %v5958 = vpop.f32.mrb[0].mxu0
    %v5959 = vadd.f32 %v5499, %v5958
    %v5960 = vpop.f32.mrb[0].mxu0
    %5961 = vmatprep.mubr.f32.mxu0 0.0
    %5962 = vmatmul.mubr.f32.gmra.mrb[0].mxu0 %v5624
    %v5963 = vpop.f32.mrb[0].mxu0
    %v5964 = vadd.f32 %v5499, %v5963
    %v5965 = vpop.f32.mrb[0].mxu0
    %5966 = vmatprep.mubr.f32.mxu0 0.0
    %5967 = vmatmul.mubr.f32.gmra.mrb[0].mxu0 %v5627
    %v5968 = vpop.f32.mrb[0].mxu0
    %v5969 = vadd.f32 %v5499, %v5968
    %v5970 = vpop.f32.mrb[0].mxu0
    %5971 = vmatprep.mubr.f32.mxu0 0.0
    %5972 = vmatmul.mubr.f32.gmra.mrb[0].mxu0 %v5630
    %v5973 = vpop.f32.mrb[0].mxu0
    %v5974 = vadd.f32 %v5499, %v5973
    %v5975 = vpop.f32.mrb[0].mxu0
    %5976 = vmatprep.mubr.f32.mxu0 0.0
    %5977 = vmatmul.mubr.f32.gmra.mrb[0].mxu0 %v5633
    %v5978 = vpop.f32.mrb[0].mxu0
    %v5979 = vadd.f32 %v5499, %v5978
    %v5980 = vpop.f32.mrb[0].mxu0
    %5981 = vmatprep.mubr.f32.mxu0 0.0
    %5982 = vmatmul.mubr.f32.gmra.mrb[0].mxu0 %v5636
    %v5983 = vpop.f32.mrb[0].mxu0
    %v5984 = vadd.f32 %v5499, %v5983
    %v5985 = vpop.f32.mrb[0].mxu0
    %5986 = vmatprep.mubr.f32.mxu0 0.0
    %5987 = vmatmul.mubr.f32.gmra.mrb[0].mxu0 %v5639
    %v5988 = vpop.f32.mrb[0].mxu0
    %v5989 = vadd.f32 %v5499, %v5988
    %v5990 = vpop.f32.mrb[0].mxu0
    %5991 = vmatprep.mubr.f32.mxu0 0.0
    %5992 = vmatmul.mubr.f32.gmra.mrb[0].mxu0 %v5642
    %v5993 = vpop.f32.mrb[0].mxu0
    %v5994 = vadd.f32 %v5499, %v5993
    %v5995 = vpop.f32.mrb[0].mxu0
    %5996 = vmatprep.mubr.f32.mxu0 0.0
    %5997 = vmatmul.mubr.f32.gmra.mrb[0].mxu0 %v5645
    %v5998 = vpop.f32.mrb[0].mxu0
    %v5999 = vadd.f32 %v5499, %v5998
    %v6000 = vpop.f32.mrb[0].mxu0
    %6001 = vmatprep.mubr.f32.mxu0 0.0
    %6002 = vmatmul.mubr.f32.gmra.mrb[0].mxu0 %v5648
    %v6003 = vpop.f32.mrb[0].mxu0
    %v6004 = vadd.f32 %v5499, %v6003
    %v6005 = vpop.f32.mrb[0].mxu0
    %6006 = vmatprep.mubr.f32.mxu0 0.0
    %6007 = vmatmul.mubr.f32.gmra.mrb[0].mxu0 %v5651
    %v6008 = vpop.f32.mrb[0].mxu0
    %v6009 = vadd.f32 %v5499, %v6008
    %v6010 = vpop.f32.mrb[0].mxu0
    %6011 = vmatprep.mubr.f32.mxu0 0.0
    %6012 = vmatmul.mubr.f32.gmra.mrb[0].mxu0 %v5654
    %v6013 = vpop.f32.mrb[0].mxu0
    %v6014 = vadd.f32 %v5499, %v6013
    %v6015 = vpop.f32.mrb[0].mxu0
    %6016 = vmatprep.mubr.f32.mxu0 0.0
    %6017 = vmatmul.mubr.f32.gmra.mrb[0].mxu0 %v5657
    %v6018 = vpop.f32.mrb[0].mxu0
    %v6019 = vadd.f32 %v5499, %v6018
    %v6020 = vpop.f32.mrb[0].mxu0
    %6021 = vmatprep.mubr.f32.mxu0 0.0
    %6022 = vmatmul.mubr.f32.gmra.mrb[0].mxu0 %v5660
    %v6023 = vpop.f32.mrb[0].mxu0
    %v6024 = vadd.f32 %v5499, %v6023
    %v6025 = vpop.f32.mrb[0].mxu0
    %6026 = vmatprep.mubr.f32.mxu0 0.0
    %6027 = vmatmul.mubr.f32.gmra.mrb[0].mxu0 %v5663
    %v6028 = vpop.f32.mrb[0].mxu0
    %v6029 = vadd.f32 %v5499, %v6028
    %v6030 = vpop.f32.mrb[0].mxu0
    %6031 = vmatprep.mubr.f32.mxu0 0.0
    %6032 = vmatmul.mubr.f32.gmra.mrb[0].mxu0 %v5666
    %v6033 = vpop.f32.mrb[0].mxu0
    %v6034 = vadd.f32 %v5499, %v6033
    %v6035 = vpop.f32.mrb[0].mxu0
    %6036 = vmatprep.mubr.f32.mxu0 0.0
    %6037 = vmatmul.mubr.f32.gmra.mrb[0].mxu0 %v5669
    %v6038 = vpop.f32.mrb[0].mxu0
    %v6039 = vadd.f32 %v5499, %v6038
    %v6040 = vpop.f32.mrb[0].mxu0
    %6041 = vmatprep.mubr.f32.mxu0 0.0
    %6042 = vmatmul.mubr.f32.gmra.mrb[0].mxu0 %v5672
    %v6043 = vpop.f32.mrb[0].mxu0
    %v6044 = vadd.f32 %v5499, %v6043
    %v6045 = vpop.f32.mrb[0].mxu0
    %6046 = vmatprep.mubr.f32.mxu0 0.0
    %6047 = vmatmul.mubr.f32.gmra.mrb[0].mxu0 %v5675
    %v6048 = vpop.f32.mrb[0].mxu0
    %v6049 = vadd.f32 %v5499, %v6048
    %v6050 = vpop.f32.mrb[0].mxu0
    %6051 = vmatprep.mubr.f32.mxu0 0.0
    %6052 = vmatmul.mubr.f32.gmra.mrb[0].mxu0 %v5678
    %v6053 = vpop.f32.mrb[0].mxu0
    %v6054 = vadd.f32 %v5499, %v6053
    %v6055 = vpop.f32.mrb[0].mxu0
    %6056 = vmatprep.mubr.f32.mxu0 0.0
    %6057 = vmatmul.mubr.f32.gmra.mrb[0].mxu0 %v5681
    %v6058 = vpop.f32.mrb[0].mxu0
    %v6059 = vadd.f32 %v5499, %v6058
    %v6060 = vpop.f32.mrb[0].mxu0
    %6061 = vmatprep.mubr.f32.mxu0 0.0
    %6062 = vmatmul.mubr.f32.gmra.mrb[0].mxu0 %v5684
    %v6063 = vpop.f32.mrb[0].mxu0
    %v6064 = vadd.f32 %v5499, %v6063
    %v6065 = vpop.f32.mrb[0].mxu0
    %6066 = vmatprep.mubr.f32.mxu0 0.0
    %6067 = vmatmul.mubr.f32.gmra.mrb[0].mxu0 %v5687
    %v6068 = vpop.f32.mrb[0].mxu0
    %v6069 = vadd.f32 %v5499, %v6068
    %v6070 = vpop.f32.mrb[0].mxu0
    %6071 = vmatprep.mubr.f32.mxu0 0.0
    %6072 = vmatmul.mubr.f32.gmra.mrb[0].mxu0 %v5690
    %v6073 = vpop.f32.mrb[0].mxu0
    %v6074 = vadd.f32 %v5499, %v6073
    %v6075 = vpop.f32.mrb[0].mxu0
    %6076 = vdwg.mxu0
    %v6077 = vmax.f32 %v5759, 0.0
    %v6078 = vmax.f32 %v5764, 0.0
    %v6079 = vmax.f32 %v5769, 0.0
    %v6080 = vmax.f32 %v5774, 0.0
    %v6081 = vmax.f32 %v5779, 0.0
    %v6082 = vmax.f32 %v5784, 0.0
    %v6083 = vmax.f32 %v5789, 0.0
    %v6084 = vmax.f32 %v5794, 0.0
    %v6085 = vmax.f32 %v5799, 0.0
    %v6086 = vmax.f32 %v5804, 0.0
    %v6087 = vmax.f32 %v5809, 0.0
    %v6088 = vmax.f32 %v5814, 0.0
    %v6089 = vmax.f32 %v5819, 0.0
    %v6090 = vmax.f32 %v5824, 0.0
    %v6091 = vmax.f32 %v5829, 0.0
    %v6092 = vmax.f32 %v5834, 0.0
    %v6093 = vmax.f32 %v5839, 0.0
    %v6094 = vmax.f32 %v5844, 0.0
    %v6095 = vmax.f32 %v5849, 0.0
    %v6096 = vmax.f32 %v5854, 0.0
    %v6097 = vmax.f32 %v5859, 0.0
    %v6098 = vmax.f32 %v5864, 0.0
    %v6099 = vmax.f32 %v5869, 0.0
    %v6100 = vmax.f32 %v5874, 0.0
    %v6101 = vmax.f32 %v5879, 0.0
    %v6102 = vmax.f32 %v5884, 0.0
    %v6103 = vmax.f32 %v5889, 0.0
    %v6104 = vmax.f32 %v5894, 0.0
    %v6105 = vmax.f32 %v5899, 0.0
    %v6106 = vmax.f32 %v5904, 0.0
    %v6107 = vmax.f32 %v5909, 0.0
    %v6108 = vmax.f32 %v5914, 0.0
    %v6109 = vmax.f32 %v5919, 0.0
    %v6110 = vmax.f32 %v5924, 0.0
    %v6111 = vmax.f32 %v5929, 0.0
    %v6112 = vmax.f32 %v5934, 0.0
    %v6113 = vmax.f32 %v5939, 0.0
    %v6114 = vmax.f32 %v5944, 0.0
    %v6115 = vmax.f32 %v5949, 0.0
    %v6116 = vmax.f32 %v5954, 0.0
    %v6117 = vmax.f32 %v5959, 0.0
    %v6118 = vmax.f32 %v5964, 0.0
    %v6119 = vmax.f32 %v5969, 0.0
    %v6120 = vmax.f32 %v5974, 0.0
    %v6121 = vmax.f32 %v5979, 0.0
    %v6122 = vmax.f32 %v5984, 0.0
    %v6123 = vmax.f32 %v5989, 0.0
    %v6124 = vmax.f32 %v5994, 0.0
    %v6125 = vmax.f32 %v5999, 0.0
    %v6126 = vmax.f32 %v6004, 0.0
    %v6127 = vmax.f32 %v6009, 0.0
    %v6128 = vmax.f32 %v6014, 0.0
    %v6129 = vmax.f32 %v6019, 0.0
    %v6130 = vmax.f32 %v6024, 0.0
    %v6131 = vmax.f32 %v6029, 0.0
    %v6132 = vmax.f32 %v6034, 0.0
    %v6133 = vmax.f32 %v6039, 0.0
    %v6134 = vmax.f32 %v6044, 0.0
    %v6135 = vmax.f32 %v6049, 0.0
    %v6136 = vmax.f32 %v6054, 0.0
    %v6137 = vmax.f32 %v6059, 0.0
    %v6138 = vmax.f32 %v6064, 0.0
    %v6139 = vmax.f32 %v6069, 0.0
    %v6140 = vmax.f32 %v6074, 0.0
    %6173 = vrot.lane.b32.xlu0 %v6077, 112
    %v6174 = vpop.permute.xlu0 %6173
    %6175 = vrot.lane.b32.xlu0 %v6078, 112
    %v6176 = vpop.permute.xlu0 %6175
    %6177 = vrot.lane.b32.xlu0 %v6079, 112
    %v6178 = vpop.permute.xlu0 %6177
    %6179 = vrot.lane.b32.xlu0 %v6080, 112
    %v6180 = vpop.permute.xlu0 %6179
    %6181 = vrot.lane.b32.xlu0 %v6081, 112
    %v6182 = vpop.permute.xlu0 %6181
    %6183 = vrot.lane.b32.xlu0 %v6082, 112
    %v6184 = vpop.permute.xlu0 %6183
    %6185 = vrot.lane.b32.xlu0 %v6083, 112
    %v6186 = vpop.permute.xlu0 %6185
    %6187 = vrot.lane.b32.xlu0 %v6084, 112
    %v6188 = vpop.permute.xlu0 %6187
    %6189 = vrot.lane.b32.xlu0 %v6085, 112
    %v6190 = vpop.permute.xlu0 %6189
    %6191 = vrot.lane.b32.xlu0 %v6086, 112
    %v6192 = vpop.permute.xlu0 %6191
    %6193 = vrot.lane.b32.xlu0 %v6087, 112
    %v6194 = vpop.permute.xlu0 %6193
    %6195 = vrot.lane.b32.xlu0 %v6088, 112
    %v6196 = vpop.permute.xlu0 %6195
    %6197 = vrot.lane.b32.xlu0 %v6089, 112
    %v6198 = vpop.permute.xlu0 %6197
    %6199 = vrot.lane.b32.xlu0 %v6090, 112
    %v6200 = vpop.permute.xlu0 %6199
    %6201 = vrot.lane.b32.xlu0 %v6091, 112
    %v6202 = vpop.permute.xlu0 %6201
    %6203 = vrot.lane.b32.xlu0 %v6092, 112
    %v6204 = vpop.permute.xlu0 %6203
    %6205 = vrot.lane.b32.xlu0 %v6093, 112
    %v6206 = vpop.permute.xlu0 %6205
    %6207 = vrot.lane.b32.xlu0 %v6094, 112
    %v6208 = vpop.permute.xlu0 %6207
    %6209 = vrot.lane.b32.xlu0 %v6095, 112
    %v6210 = vpop.permute.xlu0 %6209
    %6211 = vrot.lane.b32.xlu0 %v6096, 112
    %v6212 = vpop.permute.xlu0 %6211
    %6213 = vrot.lane.b32.xlu0 %v6097, 112
    %v6214 = vpop.permute.xlu0 %6213
    %6215 = vrot.lane.b32.xlu0 %v6098, 112
    %v6216 = vpop.permute.xlu0 %6215
    %6217 = vrot.lane.b32.xlu0 %v6099, 112
    %v6218 = vpop.permute.xlu0 %6217
    %6219 = vrot.lane.b32.xlu0 %v6100, 112
    %v6220 = vpop.permute.xlu0 %6219
    %6221 = vrot.lane.b32.xlu0 %v6101, 112
    %v6222 = vpop.permute.xlu0 %6221
    %6223 = vrot.lane.b32.xlu0 %v6102, 112
    %v6224 = vpop.permute.xlu0 %6223
    %6225 = vrot.lane.b32.xlu0 %v6103, 112
    %v6226 = vpop.permute.xlu0 %6225
    %6227 = vrot.lane.b32.xlu0 %v6104, 112
    %v6228 = vpop.permute.xlu0 %6227
    %6229 = vrot.lane.b32.xlu0 %v6105, 112
    %v6230 = vpop.permute.xlu0 %6229
    %6231 = vrot.lane.b32.xlu0 %v6106, 112
    %v6232 = vpop.permute.xlu0 %6231
    %6233 = vrot.lane.b32.xlu0 %v6107, 112
    %v6234 = vpop.permute.xlu0 %6233
    %6235 = vrot.lane.b32.xlu0 %v6108, 112
    %v6236 = vpop.permute.xlu0 %6235
    %v6237 = vsel %vm1500, %v6174, 0
    %v6239 = vsel %vm1500, %v6176, 0
    %v6241 = vsel %vm1500, %v6178, 0
    %v6243 = vsel %vm1500, %v6180, 0
    %v6245 = vsel %vm1500, %v6182, 0
    %v6247 = vsel %vm1500, %v6184, 0
    %v6249 = vsel %vm1500, %v6186, 0
    %v6251 = vsel %vm1500, %v6188, 0
    %v6253 = vsel %vm1500, %v6190, 0
    %v6255 = vsel %vm1500, %v6192, 0
    %v6257 = vsel %vm1500, %v6194, 0
    %v6259 = vsel %vm1500, %v6196, 0
    %v6261 = vsel %vm1500, %v6198, 0
    %v6263 = vsel %vm1500, %v6200, 0
    %v6265 = vsel %vm1500, %v6202, 0
    %v6267 = vsel %vm1500, %v6204, 0
    %v6269 = vsel %vm1500, %v6206, 0
    %v6271 = vsel %vm1500, %v6208, 0
    %v6273 = vsel %vm1500, %v6210, 0
    %v6275 = vsel %vm1500, %v6212, 0
    %v6277 = vsel %vm1500, %v6214, 0
    %v6279 = vsel %vm1500, %v6216, 0
    %v6281 = vsel %vm1500, %v6218, 0
    %v6283 = vsel %vm1500, %v6220, 0
    %v6285 = vsel %vm1500, %v6222, 0
    %v6287 = vsel %vm1500, %v6224, 0
    %v6289 = vsel %vm1500, %v6226, 0
    %v6291 = vsel %vm1500, %v6228, 0
    %v6293 = vsel %vm1500, %v6230, 0
    %v6295 = vsel %vm1500, %v6232, 0
    %v6297 = vsel %vm1500, %v6234, 0
    %v6299 = vsel %vm1500, %v6236, 0
    %6301 = vmatprep.subr.mxu0 %v32
    %6302 = vmatpush1.msra.mxu0 %v31
    %6303 = vmatprep.subr.mxu0 %v34
    %6304 = vmatpush1.msra.mxu0 %v33
    %6305 = vmatprep.subr.mxu0 0.0
    %6306 = vmatpush1.msra.mxu0 0.0
    %6307 = vmatprep.subr.mxu0 0.0
    %6308 = vmatpush1.msra.mxu0 0.0
    %6309 = vmatprep.subr.mxu0 0.0
    %6310 = vmatpush1.msra.mxu0 0.0
    %6311 = vmatprep.subr.mxu0 0.0
    %6312 = vmatpush1.msra.mxu0 0.0
    %6313 = vmatprep.subr.mxu0 0.0
    %6314 = vmatpush1.msra.mxu0 0.0
    %6315 = vmatprep.subr.mxu0 0.0
    %6316 = vmatpush1.msra.mxu0 0.0
    %6317 = vmatprep.subr.mxu0 0.0
    %6318 = vmatpush1.msra.mxu0 0.0
    %6319 = vmatprep.subr.mxu0 0.0
    %6320 = vmatpush1.msra.mxu0 0.0
    %6321 = vmatprep.subr.mxu0 0.0
    %6322 = vmatpush1.msra.mxu0 0.0
    %6323 = vmatprep.subr.mxu0 0.0
    %6324 = vmatpush1.msra.mxu0 0.0
    %6325 = vmatprep.subr.mxu0 0.0
    %6326 = vmatpush1.msra.mxu0 0.0
    %6327 = vmatprep.subr.mxu0 0.0
    %6328 = vmatpush1.msra.mxu0 0.0
    %6329 = vmatprep.subr.mxu0 0.0
    %6330 = vmatpush1.msra.mxu0 0.0
    %6331 = vmatprep.subr.mxu0 0.0
    %6332 = vmatpush1.msra.mxu0 0.0
    %6333 = vmatprep.subr.mxu0 0.0
    %6334 = vmatpush1.msra.mxu0 0.0
    %6335 = vmatprep.subr.mxu0 0.0
    %6336 = vmatpush1.msra.mxu0 0.0
    %6337 = vmatprep.subr.mxu0 0.0
    %6338 = vmatpush1.msra.mxu0 0.0
    %6339 = vmatprep.subr.mxu0 0.0
    %6340 = vmatpush1.msra.mxu0 0.0
    %6341 = vmatprep.subr.mxu0 0.0
    %6342 = vmatpush1.msra.mxu0 0.0
    %6343 = vmatprep.subr.mxu0 0.0
    %6344 = vmatpush1.msra.mxu0 0.0
    %6345 = vmatprep.subr.mxu0 0.0
    %6346 = vmatpush1.msra.mxu0 0.0
    %6347 = vmatprep.subr.mxu0 0.0
    %6348 = vmatpush1.msra.mxu0 0.0
    %6349 = vmatprep.subr.mxu0 0.0
    %6350 = vmatpush1.msra.mxu0 0.0
    %6351 = vmatprep.subr.mxu0 0.0
    %6352 = vmatpush1.msra.mxu0 0.0
    %6353 = vmatprep.subr.mxu0 0.0
    %6354 = vmatpush1.msra.mxu0 0.0
    %6355 = vmatprep.subr.mxu0 0.0
    %6356 = vmatpush1.msra.mxu0 0.0
    %6357 = vmatprep.subr.mxu0 0.0
    %6358 = vmatpush1.msra.mxu0 0.0
    %6359 = vmatprep.subr.mxu0 0.0
    %6360 = vmatpush1.msra.mxu0 0.0
    %6361 = vmatprep.subr.mxu0 0.0
    %6362 = vmatpush1.msra.mxu0 0.0
    %6363 = vmatprep.subr.mxu0 0.0
    %6364 = vmatpush1.msra.mxu0 0.0
    %6365 = vmatprep.mubr.f32.mxu0 0.0
    %6366 = vmatmul.mubr.f32.gmra.mrb[0].mxu0 %v6237
    %v6367 = vpop.f32.mrb[0].mxu0
    %v6368 = vadd.f32 0.0, %v6367
    %v6369 = vpop.f32.mrb[0].mxu0
    %v6370 = vadd.f32 0.0, %v6369
    %6371 = vmatprep.mubr.f32.mxu0 0.0
    %6372 = vmatmul.mubr.f32.gmra.mrb[0].mxu0 %v6239
    %v6373 = vpop.f32.mrb[0].mxu0
    %v6374 = vadd.f32 0.0, %v6373
    %v6375 = vpop.f32.mrb[0].mxu0
    %v6376 = vadd.f32 0.0, %v6375
    %6377 = vmatprep.mubr.f32.mxu0 0.0
    %6378 = vmatmul.mubr.f32.gmra.mrb[0].mxu0 %v6241
    %v6379 = vpop.f32.mrb[0].mxu0
    %v6380 = vadd.f32 0.0, %v6379
    %v6381 = vpop.f32.mrb[0].mxu0
    %v6382 = vadd.f32 0.0, %v6381
    %6383 = vmatprep.mubr.f32.mxu0 0.0
    %6384 = vmatmul.mubr.f32.gmra.mrb[0].mxu0 %v6243
    %v6385 = vpop.f32.mrb[0].mxu0
    %v6386 = vadd.f32 0.0, %v6385
    %v6387 = vpop.f32.mrb[0].mxu0
    %v6388 = vadd.f32 0.0, %v6387
    %6389 = vmatprep.mubr.f32.mxu0 0.0
    %6390 = vmatmul.mubr.f32.gmra.mrb[0].mxu0 %v6245
    %v6391 = vpop.f32.mrb[0].mxu0
    %v6392 = vadd.f32 0.0, %v6391
    %v6393 = vpop.f32.mrb[0].mxu0
    %v6394 = vadd.f32 0.0, %v6393
    %6395 = vmatprep.mubr.f32.mxu0 0.0
    %6396 = vmatmul.mubr.f32.gmra.mrb[0].mxu0 %v6247
    %v6397 = vpop.f32.mrb[0].mxu0
    %v6398 = vadd.f32 0.0, %v6397
    %v6399 = vpop.f32.mrb[0].mxu0
    %v6400 = vadd.f32 0.0, %v6399
    %6401 = vmatprep.mubr.f32.mxu0 0.0
    %6402 = vmatmul.mubr.f32.gmra.mrb[0].mxu0 %v6249
    %v6403 = vpop.f32.mrb[0].mxu0
    %v6404 = vadd.f32 0.0, %v6403
    %v6405 = vpop.f32.mrb[0].mxu0
    %v6406 = vadd.f32 0.0, %v6405
    %6407 = vmatprep.mubr.f32.mxu0 0.0
    %6408 = vmatmul.mubr.f32.gmra.mrb[0].mxu0 %v6251
    %v6409 = vpop.f32.mrb[0].mxu0
    %v6410 = vadd.f32 0.0, %v6409
    %v6411 = vpop.f32.mrb[0].mxu0
    %v6412 = vadd.f32 0.0, %v6411
    %6413 = vmatprep.mubr.f32.mxu0 0.0
    %6414 = vmatmul.mubr.f32.gmra.mrb[0].mxu0 %v6253
    %v6415 = vpop.f32.mrb[0].mxu0
    %v6416 = vadd.f32 0.0, %v6415
    %v6417 = vpop.f32.mrb[0].mxu0
    %v6418 = vadd.f32 0.0, %v6417
    %6419 = vmatprep.mubr.f32.mxu0 0.0
    %6420 = vmatmul.mubr.f32.gmra.mrb[0].mxu0 %v6255
    %v6421 = vpop.f32.mrb[0].mxu0
    %v6422 = vadd.f32 0.0, %v6421
    %v6423 = vpop.f32.mrb[0].mxu0
    %v6424 = vadd.f32 0.0, %v6423
    %6425 = vmatprep.mubr.f32.mxu0 0.0
    %6426 = vmatmul.mubr.f32.gmra.mrb[0].mxu0 %v6257
    %v6427 = vpop.f32.mrb[0].mxu0
    %v6428 = vadd.f32 0.0, %v6427
    %v6429 = vpop.f32.mrb[0].mxu0
    %v6430 = vadd.f32 0.0, %v6429
    %6431 = vmatprep.mubr.f32.mxu0 0.0
    %6432 = vmatmul.mubr.f32.gmra.mrb[0].mxu0 %v6259
    %v6433 = vpop.f32.mrb[0].mxu0
    %v6434 = vadd.f32 0.0, %v6433
    %v6435 = vpop.f32.mrb[0].mxu0
    %v6436 = vadd.f32 0.0, %v6435
    %6437 = vmatprep.mubr.f32.mxu0 0.0
    %6438 = vmatmul.mubr.f32.gmra.mrb[0].mxu0 %v6261
    %v6439 = vpop.f32.mrb[0].mxu0
    %v6440 = vadd.f32 0.0, %v6439
    %v6441 = vpop.f32.mrb[0].mxu0
    %v6442 = vadd.f32 0.0, %v6441
    %6443 = vmatprep.mubr.f32.mxu0 0.0
    %6444 = vmatmul.mubr.f32.gmra.mrb[0].mxu0 %v6263
    %v6445 = vpop.f32.mrb[0].mxu0
    %v6446 = vadd.f32 0.0, %v6445
    %v6447 = vpop.f32.mrb[0].mxu0
    %v6448 = vadd.f32 0.0, %v6447
    %6449 = vmatprep.mubr.f32.mxu0 0.0
    %6450 = vmatmul.mubr.f32.gmra.mrb[0].mxu0 %v6265
    %v6451 = vpop.f32.mrb[0].mxu0
    %v6452 = vadd.f32 0.0, %v6451
    %v6453 = vpop.f32.mrb[0].mxu0
    %v6454 = vadd.f32 0.0, %v6453
    %6455 = vmatprep.mubr.f32.mxu0 0.0
    %6456 = vmatmul.mubr.f32.gmra.mrb[0].mxu0 %v6267
    %v6457 = vpop.f32.mrb[0].mxu0
    %v6458 = vadd.f32 0.0, %v6457
    %v6459 = vpop.f32.mrb[0].mxu0
    %v6460 = vadd.f32 0.0, %v6459
    %6461 = vmatprep.mubr.f32.mxu0 0.0
    %6462 = vmatmul.mubr.f32.gmra.mrb[0].mxu0 %v6269
    %v6463 = vpop.f32.mrb[0].mxu0
    %v6464 = vadd.f32 0.0, %v6463
    %v6465 = vpop.f32.mrb[0].mxu0
    %v6466 = vadd.f32 0.0, %v6465
    %6467 = vmatprep.mubr.f32.mxu0 0.0
    %6468 = vmatmul.mubr.f32.gmra.mrb[0].mxu0 %v6271
    %v6469 = vpop.f32.mrb[0].mxu0
    %v6470 = vadd.f32 0.0, %v6469
    %v6471 = vpop.f32.mrb[0].mxu0
    %v6472 = vadd.f32 0.0, %v6471
    %6473 = vmatprep.mubr.f32.mxu0 0.0
    %6474 = vmatmul.mubr.f32.gmra.mrb[0].mxu0 %v6273
    %v6475 = vpop.f32.mrb[0].mxu0
    %v6476 = vadd.f32 0.0, %v6475
    %v6477 = vpop.f32.mrb[0].mxu0
    %v6478 = vadd.f32 0.0, %v6477
    %6479 = vmatprep.mubr.f32.mxu0 0.0
    %6480 = vmatmul.mubr.f32.gmra.mrb[0].mxu0 %v6275
    %v6481 = vpop.f32.mrb[0].mxu0
    %v6482 = vadd.f32 0.0, %v6481
    %v6483 = vpop.f32.mrb[0].mxu0
    %v6484 = vadd.f32 0.0, %v6483
    %6485 = vmatprep.mubr.f32.mxu0 0.0
    %6486 = vmatmul.mubr.f32.gmra.mrb[0].mxu0 %v6277
    %v6487 = vpop.f32.mrb[0].mxu0
    %v6488 = vadd.f32 0.0, %v6487
    %v6489 = vpop.f32.mrb[0].mxu0
    %v6490 = vadd.f32 0.0, %v6489
    %6491 = vmatprep.mubr.f32.mxu0 0.0
    %6492 = vmatmul.mubr.f32.gmra.mrb[0].mxu0 %v6279
    %v6493 = vpop.f32.mrb[0].mxu0
    %v6494 = vadd.f32 0.0, %v6493
    %v6495 = vpop.f32.mrb[0].mxu0
    %v6496 = vadd.f32 0.0, %v6495
    %6497 = vmatprep.mubr.f32.mxu0 0.0
    %6498 = vmatmul.mubr.f32.gmra.mrb[0].mxu0 %v6281
    %v6499 = vpop.f32.mrb[0].mxu0
    %v6500 = vadd.f32 0.0, %v6499
    %v6501 = vpop.f32.mrb[0].mxu0
    %v6502 = vadd.f32 0.0, %v6501
    %6503 = vmatprep.mubr.f32.mxu0 0.0
    %6504 = vmatmul.mubr.f32.gmra.mrb[0].mxu0 %v6283
    %v6505 = vpop.f32.mrb[0].mxu0
    %v6506 = vadd.f32 0.0, %v6505
    %v6507 = vpop.f32.mrb[0].mxu0
    %v6508 = vadd.f32 0.0, %v6507
    %6509 = vmatprep.mubr.f32.mxu0 0.0
    %6510 = vmatmul.mubr.f32.gmra.mrb[0].mxu0 %v6285
    %v6511 = vpop.f32.mrb[0].mxu0
    %v6512 = vadd.f32 0.0, %v6511
    %v6513 = vpop.f32.mrb[0].mxu0
    %v6514 = vadd.f32 0.0, %v6513
    %6515 = vmatprep.mubr.f32.mxu0 0.0
    %6516 = vmatmul.mubr.f32.gmra.mrb[0].mxu0 %v6287
    %v6517 = vpop.f32.mrb[0].mxu0
    %v6518 = vadd.f32 0.0, %v6517
    %v6519 = vpop.f32.mrb[0].mxu0
    %v6520 = vadd.f32 0.0, %v6519
    %6521 = vmatprep.mubr.f32.mxu0 0.0
    %6522 = vmatmul.mubr.f32.gmra.mrb[0].mxu0 %v6289
    %v6523 = vpop.f32.mrb[0].mxu0
    %v6524 = vadd.f32 0.0, %v6523
    %v6525 = vpop.f32.mrb[0].mxu0
    %v6526 = vadd.f32 0.0, %v6525
    %6527 = vmatprep.mubr.f32.mxu0 0.0
    %6528 = vmatmul.mubr.f32.gmra.mrb[0].mxu0 %v6291
    %v6529 = vpop.f32.mrb[0].mxu0
    %v6530 = vadd.f32 0.0, %v6529
    %v6531 = vpop.f32.mrb[0].mxu0
    %v6532 = vadd.f32 0.0, %v6531
    %6533 = vmatprep.mubr.f32.mxu0 0.0
    %6534 = vmatmul.mubr.f32.gmra.mrb[0].mxu0 %v6293
    %v6535 = vpop.f32.mrb[0].mxu0
    %v6536 = vadd.f32 0.0, %v6535
    %v6537 = vpop.f32.mrb[0].mxu0
    %v6538 = vadd.f32 0.0, %v6537
    %6539 = vmatprep.mubr.f32.mxu0 0.0
    %6540 = vmatmul.mubr.f32.gmra.mrb[0].mxu0 %v6295
    %v6541 = vpop.f32.mrb[0].mxu0
    %v6542 = vadd.f32 0.0, %v6541
    %v6543 = vpop.f32.mrb[0].mxu0
    %v6544 = vadd.f32 0.0, %v6543
    %6545 = vmatprep.mubr.f32.mxu0 0.0
    %6546 = vmatmul.mubr.f32.gmra.mrb[0].mxu0 %v6297
    %v6547 = vpop.f32.mrb[0].mxu0
    %v6548 = vadd.f32 0.0, %v6547
    %v6549 = vpop.f32.mrb[0].mxu0
    %v6550 = vadd.f32 0.0, %v6549
    %6551 = vmatprep.mubr.f32.mxu0 0.0
    %6552 = vmatmul.mubr.f32.gmra.mrb[0].mxu0 %v6299
    %v6553 = vpop.f32.mrb[0].mxu0
    %v6554 = vadd.f32 0.0, %v6553
    %v6555 = vpop.f32.mrb[0].mxu0
    %v6556 = vadd.f32 0.0, %v6555
    %6557 = vdwg.mxu0
    %6558 = vrot.lane.b32.xlu0 %v6079, 16
    %v6559 = vpop.permute.xlu0 %6558
    %6560 = vrot.lane.b32.xlu0 %v6080, 16
    %v6561 = vpop.permute.xlu0 %6560
    %6564 = vrot.lane.b32.xlu0 %v6081, 32
    %v6565 = vpop.permute.xlu0 %6564
    %6566 = vrot.lane.b32.xlu0 %v6082, 32
    %v6567 = vpop.permute.xlu0 %6566
    %6570 = vrot.lane.b32.xlu0 %v6083, 48
    %v6571 = vpop.permute.xlu0 %6570
    %6572 = vrot.lane.b32.xlu0 %v6084, 48
    %v6573 = vpop.permute.xlu0 %6572
    %6576 = vrot.lane.b32.xlu0 %v6085, 64
    %v6577 = vpop.permute.xlu0 %6576
    %6578 = vrot.lane.b32.xlu0 %v6086, 64
    %v6579 = vpop.permute.xlu0 %6578
    %6582 = vrot.lane.b32.xlu0 %v6087, 80
    %v6583 = vpop.permute.xlu0 %6582
    %6584 = vrot.lane.b32.xlu0 %v6088, 80
    %v6585 = vpop.permute.xlu0 %6584
    %6588 = vrot.lane.b32.xlu0 %v6089, 96
    %v6589 = vpop.permute.xlu0 %6588
    %6590 = vrot.lane.b32.xlu0 %v6090, 96
    %v6591 = vpop.permute.xlu0 %6590
    %6596 = vrot.lane.b32.xlu0 %v6095, 16
    %v6597 = vpop.permute.xlu0 %6596
    %6598 = vrot.lane.b32.xlu0 %v6096, 16
    %v6599 = vpop.permute.xlu0 %6598
    %6602 = vrot.lane.b32.xlu0 %v6097, 32
    %v6603 = vpop.permute.xlu0 %6602
    %6604 = vrot.lane.b32.xlu0 %v6098, 32
    %v6605 = vpop.permute.xlu0 %6604
    %6608 = vrot.lane.b32.xlu0 %v6099, 48
    %v6609 = vpop.permute.xlu0 %6608
    %6610 = vrot.lane.b32.xlu0 %v6100, 48
    %v6611 = vpop.permute.xlu0 %6610
    %6614 = vrot.lane.b32.xlu0 %v6101, 64
    %v6615 = vpop.permute.xlu0 %6614
    %6616 = vrot.lane.b32.xlu0 %v6102, 64
    %v6617 = vpop.permute.xlu0 %6616
    %6620 = vrot.lane.b32.xlu0 %v6103, 80
    %v6621 = vpop.permute.xlu0 %6620
    %6622 = vrot.lane.b32.xlu0 %v6104, 80
    %v6623 = vpop.permute.xlu0 %6622
    %6626 = vrot.lane.b32.xlu0 %v6105, 96
    %v6627 = vpop.permute.xlu0 %6626
    %6628 = vrot.lane.b32.xlu0 %v6106, 96
    %v6629 = vpop.permute.xlu0 %6628
    %v6634 = vsel %vm1500, %v6077, %v6559
    %v6635 = vsel %vm1500, %v6078, %v6561
    %v6636 = vsel %vm762, %v6634, %v6565
    %v6637 = vsel %vm762, %v6635, %v6567
    %v6638 = vsel %vm1902, %v6636, %v6571
    %v6639 = vsel %vm1902, %v6637, %v6573
    %v6640 = vsel %vm1905, %v6638, %v6577
    %v6641 = vsel %vm1905, %v6639, %v6579
    %v6642 = vsel %vm1908, %v6640, %v6583
    %v6643 = vsel %vm1908, %v6641, %v6585
    %v6644 = vsel %vm1911, %v6642, %v6589
    %v6645 = vsel %vm1911, %v6643, %v6591
    %v6646 = vsel %vm1914, %v6644, %v6202
    %v6647 = vsel %vm1914, %v6645, %v6204
    %v6648 = vsel %vm1500, %v6093, %v6597
    %v6649 = vsel %vm1500, %v6094, %v6599
    %v6650 = vsel %vm762, %v6648, %v6603
    %v6651 = vsel %vm762, %v6649, %v6605
    %v6652 = vsel %vm1902, %v6650, %v6609
    %v6653 = vsel %vm1902, %v6651, %v6611
    %v6654 = vsel %vm1905, %v6652, %v6615
    %v6655 = vsel %vm1905, %v6653, %v6617
    %v6656 = vsel %vm1908, %v6654, %v6621
    %v6657 = vsel %vm1908, %v6655, %v6623
    %v6658 = vsel %vm1911, %v6656, %v6627
    %v6659 = vsel %vm1911, %v6657, %v6629
    %v6660 = vsel %vm1914, %v6658, %v6234
    %v6661 = vsel %vm1914, %v6659, %v6236
    %v6662 = vlaneseq
    %v6663 = vshrl.u32 %v6662, 7
    %v6664 = vsub.s32 0, %v6663
    %v6665 = vrot.slane %v6646, %v6664
    %v6666 = vlaneseq
    %v6667 = vshrl.u32 %v6666, 7
    %v6668 = vsub.s32 0, %v6667
    %v6669 = vrot.slane %v6660, %v6668
    %v6670 = vmul.f32 %v6368, %v6665
    %v6671 = vmul.f32 %v6370, %v6669
    %v6672 = vmul.f32 %v6374, %v6665
    %v6673 = vmul.f32 %v6376, %v6669
    %v6674 = vadd.f32 %v6670, 0.0
    %v6675 = vadd.f32 %v6671, 0.0
    %v6676 = vadd.f32 %v6672, 0.0
    %v6677 = vadd.f32 %v6673, 0.0
    %v6678 = vlaneseq
    %v6679 = vshrl.u32 %v6678, 7
    %v6680 = vsub.s32 1, %v6679
    %v6681 = vrot.slane %v6646, %v6680
    %v6682 = vlaneseq
    %v6683 = vshrl.u32 %v6682, 7
    %v6684 = vsub.s32 1, %v6683
    %v6685 = vrot.slane %v6660, %v6684
    %v6686 = vmul.f32 %v6380, %v6681
    %v6687 = vmul.f32 %v6382, %v6685
    %v6688 = vmul.f32 %v6386, %v6681
    %v6689 = vmul.f32 %v6388, %v6685
    %v6690 = vadd.f32 %v6674, %v6686
    %v6691 = vadd.f32 %v6675, %v6687
    %v6692 = vadd.f32 %v6676, %v6688
    %v6693 = vadd.f32 %v6677, %v6689
    %v6694 = vlaneseq
    %v6695 = vshrl.u32 %v6694, 7
    %v6696 = vsub.s32 2, %v6695
    %v6697 = vrot.slane %v6646, %v6696
    %v6698 = vlaneseq
    %v6699 = vshrl.u32 %v6698, 7
    %v6700 = vsub.s32 2, %v6699
    %v6701 = vrot.slane %v6660, %v6700
    %v6702 = vmul.f32 %v6392, %v6697
    %v6703 = vmul.f32 %v6394, %v6701
    %v6704 = vmul.f32 %v6398, %v6697
    %v6705 = vmul.f32 %v6400, %v6701
    %v6706 = vadd.f32 %v6690, %v6702
    %v6707 = vadd.f32 %v6691, %v6703
    %v6708 = vadd.f32 %v6692, %v6704
    %v6709 = vadd.f32 %v6693, %v6705
    %v6710 = vlaneseq
    %v6711 = vshrl.u32 %v6710, 7
    %v6712 = vsub.s32 3, %v6711
    %v6713 = vrot.slane %v6646, %v6712
    %v6714 = vlaneseq
    %v6715 = vshrl.u32 %v6714, 7
    %v6716 = vsub.s32 3, %v6715
    %v6717 = vrot.slane %v6660, %v6716
    %v6718 = vmul.f32 %v6404, %v6713
    %v6719 = vmul.f32 %v6406, %v6717
    %v6720 = vmul.f32 %v6410, %v6713
    %v6721 = vmul.f32 %v6412, %v6717
    %v6722 = vadd.f32 %v6706, %v6718
    %v6723 = vadd.f32 %v6707, %v6719
    %v6724 = vadd.f32 %v6708, %v6720
    %v6725 = vadd.f32 %v6709, %v6721
    %v6726 = vlaneseq
    %v6727 = vshrl.u32 %v6726, 7
    %v6728 = vsub.s32 4, %v6727
    %v6729 = vrot.slane %v6646, %v6728
    %v6730 = vlaneseq
    %v6731 = vshrl.u32 %v6730, 7
    %v6732 = vsub.s32 4, %v6731
    %v6733 = vrot.slane %v6660, %v6732
    %v6734 = vmul.f32 %v6416, %v6729
    %v6735 = vmul.f32 %v6418, %v6733
    %v6736 = vmul.f32 %v6422, %v6729
    %v6737 = vmul.f32 %v6424, %v6733
    %v6738 = vadd.f32 %v6722, %v6734
    %v6739 = vadd.f32 %v6723, %v6735
    %v6740 = vadd.f32 %v6724, %v6736
    %v6741 = vadd.f32 %v6725, %v6737
    %v6742 = vlaneseq
    %v6743 = vshrl.u32 %v6742, 7
    %v6744 = vsub.s32 5, %v6743
    %v6745 = vrot.slane %v6646, %v6744
    %v6746 = vlaneseq
    %v6747 = vshrl.u32 %v6746, 7
    %v6748 = vsub.s32 5, %v6747
    %v6749 = vrot.slane %v6660, %v6748
    %v6750 = vmul.f32 %v6428, %v6745
    %v6751 = vmul.f32 %v6430, %v6749
    %v6752 = vmul.f32 %v6434, %v6745
    %v6753 = vmul.f32 %v6436, %v6749
    %v6754 = vadd.f32 %v6738, %v6750
    %v6755 = vadd.f32 %v6739, %v6751
    %v6756 = vadd.f32 %v6740, %v6752
    %v6757 = vadd.f32 %v6741, %v6753
    %v6758 = vlaneseq
    %v6759 = vshrl.u32 %v6758, 7
    %v6760 = vsub.s32 6, %v6759
    %v6761 = vrot.slane %v6646, %v6760
    %v6762 = vlaneseq
    %v6763 = vshrl.u32 %v6762, 7
    %v6764 = vsub.s32 6, %v6763
    %v6765 = vrot.slane %v6660, %v6764
    %v6766 = vmul.f32 %v6440, %v6761
    %v6767 = vmul.f32 %v6442, %v6765
    %v6768 = vmul.f32 %v6446, %v6761
    %v6769 = vmul.f32 %v6448, %v6765
    %v6770 = vadd.f32 %v6754, %v6766
    %v6771 = vadd.f32 %v6755, %v6767
    %v6772 = vadd.f32 %v6756, %v6768
    %v6773 = vadd.f32 %v6757, %v6769
    %v6774 = vlaneseq
    %v6775 = vshrl.u32 %v6774, 7
    %v6776 = vsub.s32 7, %v6775
    %v6777 = vrot.slane %v6646, %v6776
    %v6778 = vlaneseq
    %v6779 = vshrl.u32 %v6778, 7
    %v6780 = vsub.s32 7, %v6779
    %v6781 = vrot.slane %v6660, %v6780
    %v6782 = vmul.f32 %v6452, %v6777
    %v6783 = vmul.f32 %v6454, %v6781
    %v6784 = vmul.f32 %v6458, %v6777
    %v6785 = vmul.f32 %v6460, %v6781
    %v6786 = vadd.f32 %v6770, %v6782
    %v6787 = vadd.f32 %v6771, %v6783
    %v6788 = vadd.f32 %v6772, %v6784
    %v6789 = vadd.f32 %v6773, %v6785
    %v6790 = vlaneseq
    %v6791 = vshrl.u32 %v6790, 7
    %v6792 = vsub.s32 0, %v6791
    %v6793 = vrot.slane %v6647, %v6792
    %v6794 = vlaneseq
    %v6795 = vshrl.u32 %v6794, 7
    %v6796 = vsub.s32 0, %v6795
    %v6797 = vrot.slane %v6661, %v6796
    %v6798 = vmul.f32 %v6464, %v6793
    %v6799 = vmul.f32 %v6466, %v6797
    %v6800 = vmul.f32 %v6470, %v6793
    %v6801 = vmul.f32 %v6472, %v6797
    %v6802 = vadd.f32 %v6786, %v6798
    %v6803 = vadd.f32 %v6787, %v6799
    %v6804 = vadd.f32 %v6788, %v6800
    %v6805 = vadd.f32 %v6789, %v6801
    %v6806 = vlaneseq
    %v6807 = vshrl.u32 %v6806, 7
    %v6808 = vsub.s32 1, %v6807
    %v6809 = vrot.slane %v6647, %v6808
    %v6810 = vlaneseq
    %v6811 = vshrl.u32 %v6810, 7
    %v6812 = vsub.s32 1, %v6811
    %v6813 = vrot.slane %v6661, %v6812
    %v6814 = vmul.f32 %v6476, %v6809
    %v6815 = vmul.f32 %v6478, %v6813
    %v6816 = vmul.f32 %v6482, %v6809
    %v6817 = vmul.f32 %v6484, %v6813
    %v6818 = vadd.f32 %v6802, %v6814
    %v6819 = vadd.f32 %v6803, %v6815
    %v6820 = vadd.f32 %v6804, %v6816
    %v6821 = vadd.f32 %v6805, %v6817
    %v6822 = vlaneseq
    %v6823 = vshrl.u32 %v6822, 7
    %v6824 = vsub.s32 2, %v6823
    %v6825 = vrot.slane %v6647, %v6824
    %v6826 = vlaneseq
    %v6827 = vshrl.u32 %v6826, 7
    %v6828 = vsub.s32 2, %v6827
    %v6829 = vrot.slane %v6661, %v6828
    %v6830 = vmul.f32 %v6488, %v6825
    %v6831 = vmul.f32 %v6490, %v6829
    %v6832 = vmul.f32 %v6494, %v6825
    %v6833 = vmul.f32 %v6496, %v6829
    %v6834 = vadd.f32 %v6818, %v6830
    %v6835 = vadd.f32 %v6819, %v6831
    %v6836 = vadd.f32 %v6820, %v6832
    %v6837 = vadd.f32 %v6821, %v6833
    %v6838 = vlaneseq
    %v6839 = vshrl.u32 %v6838, 7
    %v6840 = vsub.s32 3, %v6839
    %v6841 = vrot.slane %v6647, %v6840
    %v6842 = vlaneseq
    %v6843 = vshrl.u32 %v6842, 7
    %v6844 = vsub.s32 3, %v6843
    %v6845 = vrot.slane %v6661, %v6844
    %v6846 = vmul.f32 %v6500, %v6841
    %v6847 = vmul.f32 %v6502, %v6845
    %v6848 = vmul.f32 %v6506, %v6841
    %v6849 = vmul.f32 %v6508, %v6845
    %v6850 = vadd.f32 %v6834, %v6846
    %v6851 = vadd.f32 %v6835, %v6847
    %v6852 = vadd.f32 %v6836, %v6848
    %v6853 = vadd.f32 %v6837, %v6849
    %v6854 = vlaneseq
    %v6855 = vshrl.u32 %v6854, 7
    %v6856 = vsub.s32 4, %v6855
    %v6857 = vrot.slane %v6647, %v6856
    %v6858 = vlaneseq
    %v6859 = vshrl.u32 %v6858, 7
    %v6860 = vsub.s32 4, %v6859
    %v6861 = vrot.slane %v6661, %v6860
    %v6862 = vmul.f32 %v6512, %v6857
    %v6863 = vmul.f32 %v6514, %v6861
    %v6864 = vmul.f32 %v6518, %v6857
    %v6865 = vmul.f32 %v6520, %v6861
    %v6866 = vadd.f32 %v6850, %v6862
    %v6867 = vadd.f32 %v6851, %v6863
    %v6868 = vadd.f32 %v6852, %v6864
    %v6869 = vadd.f32 %v6853, %v6865
    %v6870 = vlaneseq
    %v6871 = vshrl.u32 %v6870, 7
    %v6872 = vsub.s32 5, %v6871
    %v6873 = vrot.slane %v6647, %v6872
    %v6874 = vlaneseq
    %v6875 = vshrl.u32 %v6874, 7
    %v6876 = vsub.s32 5, %v6875
    %v6877 = vrot.slane %v6661, %v6876
    %v6878 = vmul.f32 %v6524, %v6873
    %v6879 = vmul.f32 %v6526, %v6877
    %v6880 = vmul.f32 %v6530, %v6873
    %v6881 = vmul.f32 %v6532, %v6877
    %v6882 = vadd.f32 %v6866, %v6878
    %v6883 = vadd.f32 %v6867, %v6879
    %v6884 = vadd.f32 %v6868, %v6880
    %v6885 = vadd.f32 %v6869, %v6881
    %v6886 = vlaneseq
    %v6887 = vshrl.u32 %v6886, 7
    %v6888 = vsub.s32 6, %v6887
    %v6889 = vrot.slane %v6647, %v6888
    %v6890 = vlaneseq
    %v6891 = vshrl.u32 %v6890, 7
    %v6892 = vsub.s32 6, %v6891
    %v6893 = vrot.slane %v6661, %v6892
    %v6894 = vmul.f32 %v6536, %v6889
    %v6895 = vmul.f32 %v6538, %v6893
    %v6896 = vmul.f32 %v6542, %v6889
    %v6897 = vmul.f32 %v6544, %v6893
    %v6898 = vadd.f32 %v6882, %v6894
    %v6899 = vadd.f32 %v6883, %v6895
    %v6900 = vadd.f32 %v6884, %v6896
    %v6901 = vadd.f32 %v6885, %v6897
    %v6902 = vlaneseq
    %v6903 = vshrl.u32 %v6902, 7
    %v6904 = vsub.s32 7, %v6903
    %v6905 = vrot.slane %v6647, %v6904
    %v6906 = vlaneseq
    %v6907 = vshrl.u32 %v6906, 7
    %v6908 = vsub.s32 7, %v6907
    %v6909 = vrot.slane %v6661, %v6908
    %v6910 = vmul.f32 %v6548, %v6905
    %v6911 = vmul.f32 %v6550, %v6909
    %v6912 = vmul.f32 %v6554, %v6905
    %v6913 = vmul.f32 %v6556, %v6909
    %v6914 = vadd.f32 %v6898, %v6910
    %v6915 = vadd.f32 %v6899, %v6911
    %v6916 = vadd.f32 %v6900, %v6912
    %v6917 = vadd.f32 %v6901, %v6913
    %6950 = vrot.lane.b32.xlu0 %v6109, 112
    %v6951 = vpop.permute.xlu0 %6950
    %6952 = vrot.lane.b32.xlu0 %v6110, 112
    %v6953 = vpop.permute.xlu0 %6952
    %6954 = vrot.lane.b32.xlu0 %v6111, 112
    %v6955 = vpop.permute.xlu0 %6954
    %6956 = vrot.lane.b32.xlu0 %v6112, 112
    %v6957 = vpop.permute.xlu0 %6956
    %6958 = vrot.lane.b32.xlu0 %v6113, 112
    %v6959 = vpop.permute.xlu0 %6958
    %6960 = vrot.lane.b32.xlu0 %v6114, 112
    %v6961 = vpop.permute.xlu0 %6960
    %6962 = vrot.lane.b32.xlu0 %v6115, 112
    %v6963 = vpop.permute.xlu0 %6962
    %6964 = vrot.lane.b32.xlu0 %v6116, 112
    %v6965 = vpop.permute.xlu0 %6964
    %6966 = vrot.lane.b32.xlu0 %v6117, 112
    %v6967 = vpop.permute.xlu0 %6966
    %6968 = vrot.lane.b32.xlu0 %v6118, 112
    %v6969 = vpop.permute.xlu0 %6968
    %6970 = vrot.lane.b32.xlu0 %v6119, 112
    %v6971 = vpop.permute.xlu0 %6970
    %6972 = vrot.lane.b32.xlu0 %v6120, 112
    %v6973 = vpop.permute.xlu0 %6972
    %6974 = vrot.lane.b32.xlu0 %v6121, 112
    %v6975 = vpop.permute.xlu0 %6974
    %6976 = vrot.lane.b32.xlu0 %v6122, 112
    %v6977 = vpop.permute.xlu0 %6976
    %6978 = vrot.lane.b32.xlu0 %v6123, 112
    %v6979 = vpop.permute.xlu0 %6978
    %6980 = vrot.lane.b32.xlu0 %v6124, 112
    %v6981 = vpop.permute.xlu0 %6980
    %6982 = vrot.lane.b32.xlu0 %v6125, 112
    %v6983 = vpop.permute.xlu0 %6982
    %6984 = vrot.lane.b32.xlu0 %v6126, 112
    %v6985 = vpop.permute.xlu0 %6984
    %6986 = vrot.lane.b32.xlu0 %v6127, 112
    %v6987 = vpop.permute.xlu0 %6986
    %6988 = vrot.lane.b32.xlu0 %v6128, 112
    %v6989 = vpop.permute.xlu0 %6988
    %6990 = vrot.lane.b32.xlu0 %v6129, 112
    %v6991 = vpop.permute.xlu0 %6990
    %6992 = vrot.lane.b32.xlu0 %v6130, 112
    %v6993 = vpop.permute.xlu0 %6992
    %6994 = vrot.lane.b32.xlu0 %v6131, 112
    %v6995 = vpop.permute.xlu0 %6994
    %6996 = vrot.lane.b32.xlu0 %v6132, 112
    %v6997 = vpop.permute.xlu0 %6996
    %6998 = vrot.lane.b32.xlu0 %v6133, 112
    %v6999 = vpop.permute.xlu0 %6998
    %7000 = vrot.lane.b32.xlu0 %v6134, 112
    %v7001 = vpop.permute.xlu0 %7000
    %7002 = vrot.lane.b32.xlu0 %v6135, 112
    %v7003 = vpop.permute.xlu0 %7002
    %7004 = vrot.lane.b32.xlu0 %v6136, 112
    %v7005 = vpop.permute.xlu0 %7004
    %7006 = vrot.lane.b32.xlu0 %v6137, 112
    %v7007 = vpop.permute.xlu0 %7006
    %7008 = vrot.lane.b32.xlu0 %v6138, 112
    %v7009 = vpop.permute.xlu0 %7008
    %7010 = vrot.lane.b32.xlu0 %v6139, 112
    %v7011 = vpop.permute.xlu0 %7010
    %7012 = vrot.lane.b32.xlu0 %v6140, 112
    %v7013 = vpop.permute.xlu0 %7012
    %v7014 = vsel %vm1500, %v6951, 0
    %v7016 = vsel %vm1500, %v6953, 0
    %v7018 = vsel %vm1500, %v6955, 0
    %v7020 = vsel %vm1500, %v6957, 0
    %v7022 = vsel %vm1500, %v6959, 0
    %v7024 = vsel %vm1500, %v6961, 0
    %v7026 = vsel %vm1500, %v6963, 0
    %v7028 = vsel %vm1500, %v6965, 0
    %v7030 = vsel %vm1500, %v6967, 0
    %v7032 = vsel %vm1500, %v6969, 0
    %v7034 = vsel %vm1500, %v6971, 0
    %v7036 = vsel %vm1500, %v6973, 0
    %v7038 = vsel %vm1500, %v6975, 0
    %v7040 = vsel %vm1500, %v6977, 0
    %v7042 = vsel %vm1500, %v6979, 0
    %v7044 = vsel %vm1500, %v6981, 0
    %v7046 = vsel %vm1500, %v6983, 0
    %v7048 = vsel %vm1500, %v6985, 0
    %v7050 = vsel %vm1500, %v6987, 0
    %v7052 = vsel %vm1500, %v6989, 0
    %v7054 = vsel %vm1500, %v6991, 0
    %v7056 = vsel %vm1500, %v6993, 0
    %v7058 = vsel %vm1500, %v6995, 0
    %v7060 = vsel %vm1500, %v6997, 0
    %v7062 = vsel %vm1500, %v6999, 0
    %v7064 = vsel %vm1500, %v7001, 0
    %v7066 = vsel %vm1500, %v7003, 0
    %v7068 = vsel %vm1500, %v7005, 0
    %v7070 = vsel %vm1500, %v7007, 0
    %v7072 = vsel %vm1500, %v7009, 0
    %v7074 = vsel %vm1500, %v7011, 0
    %v7076 = vsel %vm1500, %v7013, 0
    %7078 = vmatprep.subr.mxu0 %v32
    %7079 = vmatpush1.msra.mxu0 %v31
    %7080 = vmatprep.subr.mxu0 %v34
    %7081 = vmatpush1.msra.mxu0 %v33
    %7082 = vmatprep.subr.mxu0 0.0
    %7083 = vmatpush1.msra.mxu0 0.0
    %7084 = vmatprep.subr.mxu0 0.0
    %7085 = vmatpush1.msra.mxu0 0.0
    %7086 = vmatprep.subr.mxu0 0.0
    %7087 = vmatpush1.msra.mxu0 0.0
    %7088 = vmatprep.subr.mxu0 0.0
    %7089 = vmatpush1.msra.mxu0 0.0
    %7090 = vmatprep.subr.mxu0 0.0
    %7091 = vmatpush1.msra.mxu0 0.0
    %7092 = vmatprep.subr.mxu0 0.0
    %7093 = vmatpush1.msra.mxu0 0.0
    %7094 = vmatprep.subr.mxu0 0.0
    %7095 = vmatpush1.msra.mxu0 0.0
    %7096 = vmatprep.subr.mxu0 0.0
    %7097 = vmatpush1.msra.mxu0 0.0
    %7098 = vmatprep.subr.mxu0 0.0
    %7099 = vmatpush1.msra.mxu0 0.0
    %7100 = vmatprep.subr.mxu0 0.0
    %7101 = vmatpush1.msra.mxu0 0.0
    %7102 = vmatprep.subr.mxu0 0.0
    %7103 = vmatpush1.msra.mxu0 0.0
    %7104 = vmatprep.subr.mxu0 0.0
    %7105 = vmatpush1.msra.mxu0 0.0
    %7106 = vmatprep.subr.mxu0 0.0
    %7107 = vmatpush1.msra.mxu0 0.0
    %7108 = vmatprep.subr.mxu0 0.0
    %7109 = vmatpush1.msra.mxu0 0.0
    %7110 = vmatprep.subr.mxu0 0.0
    %7111 = vmatpush1.msra.mxu0 0.0
    %7112 = vmatprep.subr.mxu0 0.0
    %7113 = vmatpush1.msra.mxu0 0.0
    %7114 = vmatprep.subr.mxu0 0.0
    %7115 = vmatpush1.msra.mxu0 0.0
    %7116 = vmatprep.subr.mxu0 0.0
    %7117 = vmatpush1.msra.mxu0 0.0
    %7118 = vmatprep.subr.mxu0 0.0
    %7119 = vmatpush1.msra.mxu0 0.0
    %7120 = vmatprep.subr.mxu0 0.0
    %7121 = vmatpush1.msra.mxu0 0.0
    %7122 = vmatprep.subr.mxu0 0.0
    %7123 = vmatpush1.msra.mxu0 0.0
    %7124 = vmatprep.subr.mxu0 0.0
    %7125 = vmatpush1.msra.mxu0 0.0
    %7126 = vmatprep.subr.mxu0 0.0
    %7127 = vmatpush1.msra.mxu0 0.0
    %7128 = vmatprep.subr.mxu0 0.0
    %7129 = vmatpush1.msra.mxu0 0.0
    %7130 = vmatprep.subr.mxu0 0.0
    %7131 = vmatpush1.msra.mxu0 0.0
    %7132 = vmatprep.subr.mxu0 0.0
    %7133 = vmatpush1.msra.mxu0 0.0
    %7134 = vmatprep.subr.mxu0 0.0
    %7135 = vmatpush1.msra.mxu0 0.0
    %7136 = vmatprep.subr.mxu0 0.0
    %7137 = vmatpush1.msra.mxu0 0.0
    %7138 = vmatprep.subr.mxu0 0.0
    %7139 = vmatpush1.msra.mxu0 0.0
    %7140 = vmatprep.subr.mxu0 0.0
    %7141 = vmatpush1.msra.mxu0 0.0
    %7142 = vmatprep.mubr.f32.mxu0 0.0
    %7143 = vmatmul.mubr.f32.gmra.mrb[0].mxu0 %v7014
    %v7144 = vpop.f32.mrb[0].mxu0
    %v7145 = vadd.f32 0.0, %v7144
    %v7146 = vpop.f32.mrb[0].mxu0
    %v7147 = vadd.f32 0.0, %v7146
    %7148 = vmatprep.mubr.f32.mxu0 0.0
    %7149 = vmatmul.mubr.f32.gmra.mrb[0].mxu0 %v7016
    %v7150 = vpop.f32.mrb[0].mxu0
    %v7151 = vadd.f32 0.0, %v7150
    %v7152 = vpop.f32.mrb[0].mxu0
    %v7153 = vadd.f32 0.0, %v7152
    %7154 = vmatprep.mubr.f32.mxu0 0.0
    %7155 = vmatmul.mubr.f32.gmra.mrb[0].mxu0 %v7018
    %v7156 = vpop.f32.mrb[0].mxu0
    %v7157 = vadd.f32 0.0, %v7156
    %v7158 = vpop.f32.mrb[0].mxu0
    %v7159 = vadd.f32 0.0, %v7158
    %7160 = vmatprep.mubr.f32.mxu0 0.0
    %7161 = vmatmul.mubr.f32.gmra.mrb[0].mxu0 %v7020
    %v7162 = vpop.f32.mrb[0].mxu0
    %v7163 = vadd.f32 0.0, %v7162
    %v7164 = vpop.f32.mrb[0].mxu0
    %v7165 = vadd.f32 0.0, %v7164
    %7166 = vmatprep.mubr.f32.mxu0 0.0
    %7167 = vmatmul.mubr.f32.gmra.mrb[0].mxu0 %v7022
    %v7168 = vpop.f32.mrb[0].mxu0
    %v7169 = vadd.f32 0.0, %v7168
    %v7170 = vpop.f32.mrb[0].mxu0
    %v7171 = vadd.f32 0.0, %v7170
    %7172 = vmatprep.mubr.f32.mxu0 0.0
    %7173 = vmatmul.mubr.f32.gmra.mrb[0].mxu0 %v7024
    %v7174 = vpop.f32.mrb[0].mxu0
    %v7175 = vadd.f32 0.0, %v7174
    %v7176 = vpop.f32.mrb[0].mxu0
    %v7177 = vadd.f32 0.0, %v7176
    %7178 = vmatprep.mubr.f32.mxu0 0.0
    %7179 = vmatmul.mubr.f32.gmra.mrb[0].mxu0 %v7026
    %v7180 = vpop.f32.mrb[0].mxu0
    %v7181 = vadd.f32 0.0, %v7180
    %v7182 = vpop.f32.mrb[0].mxu0
    %v7183 = vadd.f32 0.0, %v7182
    %7184 = vmatprep.mubr.f32.mxu0 0.0
    %7185 = vmatmul.mubr.f32.gmra.mrb[0].mxu0 %v7028
    %v7186 = vpop.f32.mrb[0].mxu0
    %v7187 = vadd.f32 0.0, %v7186
    %v7188 = vpop.f32.mrb[0].mxu0
    %v7189 = vadd.f32 0.0, %v7188
    %7190 = vmatprep.mubr.f32.mxu0 0.0
    %7191 = vmatmul.mubr.f32.gmra.mrb[0].mxu0 %v7030
    %v7192 = vpop.f32.mrb[0].mxu0
    %v7193 = vadd.f32 0.0, %v7192
    %v7194 = vpop.f32.mrb[0].mxu0
    %v7195 = vadd.f32 0.0, %v7194
    %7196 = vmatprep.mubr.f32.mxu0 0.0
    %7197 = vmatmul.mubr.f32.gmra.mrb[0].mxu0 %v7032
    %v7198 = vpop.f32.mrb[0].mxu0
    %v7199 = vadd.f32 0.0, %v7198
    %v7200 = vpop.f32.mrb[0].mxu0
    %v7201 = vadd.f32 0.0, %v7200
    %7202 = vmatprep.mubr.f32.mxu0 0.0
    %7203 = vmatmul.mubr.f32.gmra.mrb[0].mxu0 %v7034
    %v7204 = vpop.f32.mrb[0].mxu0
    %v7205 = vadd.f32 0.0, %v7204
    %v7206 = vpop.f32.mrb[0].mxu0
    %v7207 = vadd.f32 0.0, %v7206
    %7208 = vmatprep.mubr.f32.mxu0 0.0
    %7209 = vmatmul.mubr.f32.gmra.mrb[0].mxu0 %v7036
    %v7210 = vpop.f32.mrb[0].mxu0
    %v7211 = vadd.f32 0.0, %v7210
    %v7212 = vpop.f32.mrb[0].mxu0
    %v7213 = vadd.f32 0.0, %v7212
    %7214 = vmatprep.mubr.f32.mxu0 0.0
    %7215 = vmatmul.mubr.f32.gmra.mrb[0].mxu0 %v7038
    %v7216 = vpop.f32.mrb[0].mxu0
    %v7217 = vadd.f32 0.0, %v7216
    %v7218 = vpop.f32.mrb[0].mxu0
    %v7219 = vadd.f32 0.0, %v7218
    %7220 = vmatprep.mubr.f32.mxu0 0.0
    %7221 = vmatmul.mubr.f32.gmra.mrb[0].mxu0 %v7040
    %v7222 = vpop.f32.mrb[0].mxu0
    %v7223 = vadd.f32 0.0, %v7222
    %v7224 = vpop.f32.mrb[0].mxu0
    %v7225 = vadd.f32 0.0, %v7224
    %7226 = vmatprep.mubr.f32.mxu0 0.0
    %7227 = vmatmul.mubr.f32.gmra.mrb[0].mxu0 %v7042
    %v7228 = vpop.f32.mrb[0].mxu0
    %v7229 = vadd.f32 0.0, %v7228
    %v7230 = vpop.f32.mrb[0].mxu0
    %v7231 = vadd.f32 0.0, %v7230
    %7232 = vmatprep.mubr.f32.mxu0 0.0
    %7233 = vmatmul.mubr.f32.gmra.mrb[0].mxu0 %v7044
    %v7234 = vpop.f32.mrb[0].mxu0
    %v7235 = vadd.f32 0.0, %v7234
    %v7236 = vpop.f32.mrb[0].mxu0
    %v7237 = vadd.f32 0.0, %v7236
    %7238 = vmatprep.mubr.f32.mxu0 0.0
    %7239 = vmatmul.mubr.f32.gmra.mrb[0].mxu0 %v7046
    %v7240 = vpop.f32.mrb[0].mxu0
    %v7241 = vadd.f32 0.0, %v7240
    %v7242 = vpop.f32.mrb[0].mxu0
    %v7243 = vadd.f32 0.0, %v7242
    %7244 = vmatprep.mubr.f32.mxu0 0.0
    %7245 = vmatmul.mubr.f32.gmra.mrb[0].mxu0 %v7048
    %v7246 = vpop.f32.mrb[0].mxu0
    %v7247 = vadd.f32 0.0, %v7246
    %v7248 = vpop.f32.mrb[0].mxu0
    %v7249 = vadd.f32 0.0, %v7248
    %7250 = vmatprep.mubr.f32.mxu0 0.0
    %7251 = vmatmul.mubr.f32.gmra.mrb[0].mxu0 %v7050
    %v7252 = vpop.f32.mrb[0].mxu0
    %v7253 = vadd.f32 0.0, %v7252
    %v7254 = vpop.f32.mrb[0].mxu0
    %v7255 = vadd.f32 0.0, %v7254
    %7256 = vmatprep.mubr.f32.mxu0 0.0
    %7257 = vmatmul.mubr.f32.gmra.mrb[0].mxu0 %v7052
    %v7258 = vpop.f32.mrb[0].mxu0
    %v7259 = vadd.f32 0.0, %v7258
    %v7260 = vpop.f32.mrb[0].mxu0
    %v7261 = vadd.f32 0.0, %v7260
    %7262 = vmatprep.mubr.f32.mxu0 0.0
    %7263 = vmatmul.mubr.f32.gmra.mrb[0].mxu0 %v7054
    %v7264 = vpop.f32.mrb[0].mxu0
    %v7265 = vadd.f32 0.0, %v7264
    %v7266 = vpop.f32.mrb[0].mxu0
    %v7267 = vadd.f32 0.0, %v7266
    %7268 = vmatprep.mubr.f32.mxu0 0.0
    %7269 = vmatmul.mubr.f32.gmra.mrb[0].mxu0 %v7056
    %v7270 = vpop.f32.mrb[0].mxu0
    %v7271 = vadd.f32 0.0, %v7270
    %v7272 = vpop.f32.mrb[0].mxu0
    %v7273 = vadd.f32 0.0, %v7272
    %7274 = vmatprep.mubr.f32.mxu0 0.0
    %7275 = vmatmul.mubr.f32.gmra.mrb[0].mxu0 %v7058
    %v7276 = vpop.f32.mrb[0].mxu0
    %v7277 = vadd.f32 0.0, %v7276
    %v7278 = vpop.f32.mrb[0].mxu0
    %v7279 = vadd.f32 0.0, %v7278
    %7280 = vmatprep.mubr.f32.mxu0 0.0
    %7281 = vmatmul.mubr.f32.gmra.mrb[0].mxu0 %v7060
    %v7282 = vpop.f32.mrb[0].mxu0
    %v7283 = vadd.f32 0.0, %v7282
    %v7284 = vpop.f32.mrb[0].mxu0
    %v7285 = vadd.f32 0.0, %v7284
    %7286 = vmatprep.mubr.f32.mxu0 0.0
    %7287 = vmatmul.mubr.f32.gmra.mrb[0].mxu0 %v7062
    %v7288 = vpop.f32.mrb[0].mxu0
    %v7289 = vadd.f32 0.0, %v7288
    %v7290 = vpop.f32.mrb[0].mxu0
    %v7291 = vadd.f32 0.0, %v7290
    %7292 = vmatprep.mubr.f32.mxu0 0.0
    %7293 = vmatmul.mubr.f32.gmra.mrb[0].mxu0 %v7064
    %v7294 = vpop.f32.mrb[0].mxu0
    %v7295 = vadd.f32 0.0, %v7294
    %v7296 = vpop.f32.mrb[0].mxu0
    %v7297 = vadd.f32 0.0, %v7296
    %7298 = vmatprep.mubr.f32.mxu0 0.0
    %7299 = vmatmul.mubr.f32.gmra.mrb[0].mxu0 %v7066
    %v7300 = vpop.f32.mrb[0].mxu0
    %v7301 = vadd.f32 0.0, %v7300
    %v7302 = vpop.f32.mrb[0].mxu0
    %v7303 = vadd.f32 0.0, %v7302
    %7304 = vmatprep.mubr.f32.mxu0 0.0
    %7305 = vmatmul.mubr.f32.gmra.mrb[0].mxu0 %v7068
    %v7306 = vpop.f32.mrb[0].mxu0
    %v7307 = vadd.f32 0.0, %v7306
    %v7308 = vpop.f32.mrb[0].mxu0
    %v7309 = vadd.f32 0.0, %v7308
    %7310 = vmatprep.mubr.f32.mxu0 0.0
    %7311 = vmatmul.mubr.f32.gmra.mrb[0].mxu0 %v7070
    %v7312 = vpop.f32.mrb[0].mxu0
    %v7313 = vadd.f32 0.0, %v7312
    %v7314 = vpop.f32.mrb[0].mxu0
    %v7315 = vadd.f32 0.0, %v7314
    %7316 = vmatprep.mubr.f32.mxu0 0.0
    %7317 = vmatmul.mubr.f32.gmra.mrb[0].mxu0 %v7072
    %v7318 = vpop.f32.mrb[0].mxu0
    %v7319 = vadd.f32 0.0, %v7318
    %v7320 = vpop.f32.mrb[0].mxu0
    %v7321 = vadd.f32 0.0, %v7320
    %7322 = vmatprep.mubr.f32.mxu0 0.0
    %7323 = vmatmul.mubr.f32.gmra.mrb[0].mxu0 %v7074
    %v7324 = vpop.f32.mrb[0].mxu0
    %v7325 = vadd.f32 0.0, %v7324
    %v7326 = vpop.f32.mrb[0].mxu0
    %v7327 = vadd.f32 0.0, %v7326
    %7328 = vmatprep.mubr.f32.mxu0 0.0
    %7329 = vmatmul.mubr.f32.gmra.mrb[0].mxu0 %v7076
    %v7330 = vpop.f32.mrb[0].mxu0
    %v7331 = vadd.f32 0.0, %v7330
    %v7332 = vpop.f32.mrb[0].mxu0
    %v7333 = vadd.f32 0.0, %v7332
    %7334 = vdwg.mxu0
    %7335 = vrot.lane.b32.xlu0 %v6111, 16
    %v7336 = vpop.permute.xlu0 %7335
    %7337 = vrot.lane.b32.xlu0 %v6112, 16
    %v7338 = vpop.permute.xlu0 %7337
    %7341 = vrot.lane.b32.xlu0 %v6113, 32
    %v7342 = vpop.permute.xlu0 %7341
    %7343 = vrot.lane.b32.xlu0 %v6114, 32
    %v7344 = vpop.permute.xlu0 %7343
    %7347 = vrot.lane.b32.xlu0 %v6115, 48
    %v7348 = vpop.permute.xlu0 %7347
    %7349 = vrot.lane.b32.xlu0 %v6116, 48
    %v7350 = vpop.permute.xlu0 %7349
    %7353 = vrot.lane.b32.xlu0 %v6117, 64
    %v7354 = vpop.permute.xlu0 %7353
    %7355 = vrot.lane.b32.xlu0 %v6118, 64
    %v7356 = vpop.permute.xlu0 %7355
    %7359 = vrot.lane.b32.xlu0 %v6119, 80
    %v7360 = vpop.permute.xlu0 %7359
    %7361 = vrot.lane.b32.xlu0 %v6120, 80
    %v7362 = vpop.permute.xlu0 %7361
    %7365 = vrot.lane.b32.xlu0 %v6121, 96
    %v7366 = vpop.permute.xlu0 %7365
    %7367 = vrot.lane.b32.xlu0 %v6122, 96
    %v7368 = vpop.permute.xlu0 %7367
    %7373 = vrot.lane.b32.xlu0 %v6127, 16
    %v7374 = vpop.permute.xlu0 %7373
    %7375 = vrot.lane.b32.xlu0 %v6128, 16
    %v7376 = vpop.permute.xlu0 %7375
    %7379 = vrot.lane.b32.xlu0 %v6129, 32
    %v7380 = vpop.permute.xlu0 %7379
    %7381 = vrot.lane.b32.xlu0 %v6130, 32
    %v7382 = vpop.permute.xlu0 %7381
    %7385 = vrot.lane.b32.xlu0 %v6131, 48
    %v7386 = vpop.permute.xlu0 %7385
    %7387 = vrot.lane.b32.xlu0 %v6132, 48
    %v7388 = vpop.permute.xlu0 %7387
    %7391 = vrot.lane.b32.xlu0 %v6133, 64
    %v7392 = vpop.permute.xlu0 %7391
    %7393 = vrot.lane.b32.xlu0 %v6134, 64
    %v7394 = vpop.permute.xlu0 %7393
    %7397 = vrot.lane.b32.xlu0 %v6135, 80
    %v7398 = vpop.permute.xlu0 %7397
    %7399 = vrot.lane.b32.xlu0 %v6136, 80
    %v7400 = vpop.permute.xlu0 %7399
    %7403 = vrot.lane.b32.xlu0 %v6137, 96
    %v7404 = vpop.permute.xlu0 %7403
    %7405 = vrot.lane.b32.xlu0 %v6138, 96
    %v7406 = vpop.permute.xlu0 %7405
    %v7411 = vsel %vm1500, %v6109, %v7336
    %v7412 = vsel %vm1500, %v6110, %v7338
    %v7413 = vsel %vm762, %v7411, %v7342
    %v7414 = vsel %vm762, %v7412, %v7344
    %v7415 = vsel %vm1902, %v7413, %v7348
    %v7416 = vsel %vm1902, %v7414, %v7350
    %v7417 = vsel %vm1905, %v7415, %v7354
    %v7418 = vsel %vm1905, %v7416, %v7356
    %v7419 = vsel %vm1908, %v7417, %v7360
    %v7420 = vsel %vm1908, %v7418, %v7362
    %v7421 = vsel %vm1911, %v7419, %v7366
    %v7422 = vsel %vm1911, %v7420, %v7368
    %v7423 = vsel %vm1914, %v7421, %v6979
    %v7424 = vsel %vm1914, %v7422, %v6981
    %v7425 = vsel %vm1500, %v6125, %v7374
    %v7426 = vsel %vm1500, %v6126, %v7376
    %v7427 = vsel %vm762, %v7425, %v7380
    %v7428 = vsel %vm762, %v7426, %v7382
    %v7429 = vsel %vm1902, %v7427, %v7386
    %v7430 = vsel %vm1902, %v7428, %v7388
    %v7431 = vsel %vm1905, %v7429, %v7392
    %v7432 = vsel %vm1905, %v7430, %v7394
    %v7433 = vsel %vm1908, %v7431, %v7398
    %v7434 = vsel %vm1908, %v7432, %v7400
    %v7435 = vsel %vm1911, %v7433, %v7404
    %v7436 = vsel %vm1911, %v7434, %v7406
    %v7437 = vsel %vm1914, %v7435, %v7011
    %v7438 = vsel %vm1914, %v7436, %v7013
    %v7439 = vlaneseq
    %v7440 = vshrl.u32 %v7439, 7
    %v7441 = vsub.s32 0, %v7440
    %v7442 = vrot.slane %v7423, %v7441
    %v7443 = vlaneseq
    %v7444 = vshrl.u32 %v7443, 7
    %v7445 = vsub.s32 0, %v7444
    %v7446 = vrot.slane %v7437, %v7445
    %v7447 = vmul.f32 %v7145, %v7442
    %v7448 = vmul.f32 %v7147, %v7446
    %v7449 = vmul.f32 %v7151, %v7442
    %v7450 = vmul.f32 %v7153, %v7446
    %v7451 = vadd.f32 %v7447, 0.0
    %v7452 = vadd.f32 %v7448, 0.0
    %v7453 = vadd.f32 %v7449, 0.0
    %v7454 = vadd.f32 %v7450, 0.0
    %v7455 = vlaneseq
    %v7456 = vshrl.u32 %v7455, 7
    %v7457 = vsub.s32 1, %v7456
    %v7458 = vrot.slane %v7423, %v7457
    %v7459 = vlaneseq
    %v7460 = vshrl.u32 %v7459, 7
    %v7461 = vsub.s32 1, %v7460
    %v7462 = vrot.slane %v7437, %v7461
    %v7463 = vmul.f32 %v7157, %v7458
    %v7464 = vmul.f32 %v7159, %v7462
    %v7465 = vmul.f32 %v7163, %v7458
    %v7466 = vmul.f32 %v7165, %v7462
    %v7467 = vadd.f32 %v7451, %v7463
    %v7468 = vadd.f32 %v7452, %v7464
    %v7469 = vadd.f32 %v7453, %v7465
    %v7470 = vadd.f32 %v7454, %v7466
    %v7471 = vlaneseq
    %v7472 = vshrl.u32 %v7471, 7
    %v7473 = vsub.s32 2, %v7472
    %v7474 = vrot.slane %v7423, %v7473
    %v7475 = vlaneseq
    %v7476 = vshrl.u32 %v7475, 7
    %v7477 = vsub.s32 2, %v7476
    %v7478 = vrot.slane %v7437, %v7477
    %v7479 = vmul.f32 %v7169, %v7474
    %v7480 = vmul.f32 %v7171, %v7478
    %v7481 = vmul.f32 %v7175, %v7474
    %v7482 = vmul.f32 %v7177, %v7478
    %v7483 = vadd.f32 %v7467, %v7479
    %v7484 = vadd.f32 %v7468, %v7480
    %v7485 = vadd.f32 %v7469, %v7481
    %v7486 = vadd.f32 %v7470, %v7482
    %v7487 = vlaneseq
    %v7488 = vshrl.u32 %v7487, 7
    %v7489 = vsub.s32 3, %v7488
    %v7490 = vrot.slane %v7423, %v7489
    %v7491 = vlaneseq
    %v7492 = vshrl.u32 %v7491, 7
    %v7493 = vsub.s32 3, %v7492
    %v7494 = vrot.slane %v7437, %v7493
    %v7495 = vmul.f32 %v7181, %v7490
    %v7496 = vmul.f32 %v7183, %v7494
    %v7497 = vmul.f32 %v7187, %v7490
    %v7498 = vmul.f32 %v7189, %v7494
    %v7499 = vadd.f32 %v7483, %v7495
    %v7500 = vadd.f32 %v7484, %v7496
    %v7501 = vadd.f32 %v7485, %v7497
    %v7502 = vadd.f32 %v7486, %v7498
    %v7503 = vlaneseq
    %v7504 = vshrl.u32 %v7503, 7
    %v7505 = vsub.s32 4, %v7504
    %v7506 = vrot.slane %v7423, %v7505
    %v7507 = vlaneseq
    %v7508 = vshrl.u32 %v7507, 7
    %v7509 = vsub.s32 4, %v7508
    %v7510 = vrot.slane %v7437, %v7509
    %v7511 = vmul.f32 %v7193, %v7506
    %v7512 = vmul.f32 %v7195, %v7510
    %v7513 = vmul.f32 %v7199, %v7506
    %v7514 = vmul.f32 %v7201, %v7510
    %v7515 = vadd.f32 %v7499, %v7511
    %v7516 = vadd.f32 %v7500, %v7512
    %v7517 = vadd.f32 %v7501, %v7513
    %v7518 = vadd.f32 %v7502, %v7514
    %v7519 = vlaneseq
    %v7520 = vshrl.u32 %v7519, 7
    %v7521 = vsub.s32 5, %v7520
    %v7522 = vrot.slane %v7423, %v7521
    %v7523 = vlaneseq
    %v7524 = vshrl.u32 %v7523, 7
    %v7525 = vsub.s32 5, %v7524
    %v7526 = vrot.slane %v7437, %v7525
    %v7527 = vmul.f32 %v7205, %v7522
    %v7528 = vmul.f32 %v7207, %v7526
    %v7529 = vmul.f32 %v7211, %v7522
    %v7530 = vmul.f32 %v7213, %v7526
    %v7531 = vadd.f32 %v7515, %v7527
    %v7532 = vadd.f32 %v7516, %v7528
    %v7533 = vadd.f32 %v7517, %v7529
    %v7534 = vadd.f32 %v7518, %v7530
    %v7535 = vlaneseq
    %v7536 = vshrl.u32 %v7535, 7
    %v7537 = vsub.s32 6, %v7536
    %v7538 = vrot.slane %v7423, %v7537
    %v7539 = vlaneseq
    %v7540 = vshrl.u32 %v7539, 7
    %v7541 = vsub.s32 6, %v7540
    %v7542 = vrot.slane %v7437, %v7541
    %v7543 = vmul.f32 %v7217, %v7538
    %v7544 = vmul.f32 %v7219, %v7542
    %v7545 = vmul.f32 %v7223, %v7538
    %v7546 = vmul.f32 %v7225, %v7542
    %v7547 = vadd.f32 %v7531, %v7543
    %v7548 = vadd.f32 %v7532, %v7544
    %v7549 = vadd.f32 %v7533, %v7545
    %v7550 = vadd.f32 %v7534, %v7546
    %v7551 = vlaneseq
    %v7552 = vshrl.u32 %v7551, 7
    %v7553 = vsub.s32 7, %v7552
    %v7554 = vrot.slane %v7423, %v7553
    %v7555 = vlaneseq
    %v7556 = vshrl.u32 %v7555, 7
    %v7557 = vsub.s32 7, %v7556
    %v7558 = vrot.slane %v7437, %v7557
    %v7559 = vmul.f32 %v7229, %v7554
    %v7560 = vmul.f32 %v7231, %v7558
    %v7561 = vmul.f32 %v7235, %v7554
    %v7562 = vmul.f32 %v7237, %v7558
    %v7563 = vadd.f32 %v7547, %v7559
    %v7564 = vadd.f32 %v7548, %v7560
    %v7565 = vadd.f32 %v7549, %v7561
    %v7566 = vadd.f32 %v7550, %v7562
    %v7567 = vlaneseq
    %v7568 = vshrl.u32 %v7567, 7
    %v7569 = vsub.s32 0, %v7568
    %v7570 = vrot.slane %v7424, %v7569
    %v7571 = vlaneseq
    %v7572 = vshrl.u32 %v7571, 7
    %v7573 = vsub.s32 0, %v7572
    %v7574 = vrot.slane %v7438, %v7573
    %v7575 = vmul.f32 %v7241, %v7570
    %v7576 = vmul.f32 %v7243, %v7574
    %v7577 = vmul.f32 %v7247, %v7570
    %v7578 = vmul.f32 %v7249, %v7574
    %v7579 = vadd.f32 %v7563, %v7575
    %v7580 = vadd.f32 %v7564, %v7576
    %v7581 = vadd.f32 %v7565, %v7577
    %v7582 = vadd.f32 %v7566, %v7578
    %v7583 = vlaneseq
    %v7584 = vshrl.u32 %v7583, 7
    %v7585 = vsub.s32 1, %v7584
    %v7586 = vrot.slane %v7424, %v7585
    %v7587 = vlaneseq
    %v7588 = vshrl.u32 %v7587, 7
    %v7589 = vsub.s32 1, %v7588
    %v7590 = vrot.slane %v7438, %v7589
    %v7591 = vmul.f32 %v7253, %v7586
    %v7592 = vmul.f32 %v7255, %v7590
    %v7593 = vmul.f32 %v7259, %v7586
    %v7594 = vmul.f32 %v7261, %v7590
    %v7595 = vadd.f32 %v7579, %v7591
    %v7596 = vadd.f32 %v7580, %v7592
    %v7597 = vadd.f32 %v7581, %v7593
    %v7598 = vadd.f32 %v7582, %v7594
    %v7599 = vlaneseq
    %v7600 = vshrl.u32 %v7599, 7
    %v7601 = vsub.s32 2, %v7600
    %v7602 = vrot.slane %v7424, %v7601
    %v7603 = vlaneseq
    %v7604 = vshrl.u32 %v7603, 7
    %v7605 = vsub.s32 2, %v7604
    %v7606 = vrot.slane %v7438, %v7605
    %v7607 = vmul.f32 %v7265, %v7602
    %v7608 = vmul.f32 %v7267, %v7606
    %v7609 = vmul.f32 %v7271, %v7602
    %v7610 = vmul.f32 %v7273, %v7606
    %v7611 = vadd.f32 %v7595, %v7607
    %v7612 = vadd.f32 %v7596, %v7608
    %v7613 = vadd.f32 %v7597, %v7609
    %v7614 = vadd.f32 %v7598, %v7610
    %v7615 = vlaneseq
    %v7616 = vshrl.u32 %v7615, 7
    %v7617 = vsub.s32 3, %v7616
    %v7618 = vrot.slane %v7424, %v7617
    %v7619 = vlaneseq
    %v7620 = vshrl.u32 %v7619, 7
    %v7621 = vsub.s32 3, %v7620
    %v7622 = vrot.slane %v7438, %v7621
    %v7623 = vmul.f32 %v7277, %v7618
    %v7624 = vmul.f32 %v7279, %v7622
    %v7625 = vmul.f32 %v7283, %v7618
    %v7626 = vmul.f32 %v7285, %v7622
    %v7627 = vadd.f32 %v7611, %v7623
    %v7628 = vadd.f32 %v7612, %v7624
    %v7629 = vadd.f32 %v7613, %v7625
    %v7630 = vadd.f32 %v7614, %v7626
    %v7631 = vlaneseq
    %v7632 = vshrl.u32 %v7631, 7
    %v7633 = vsub.s32 4, %v7632
    %v7634 = vrot.slane %v7424, %v7633
    %v7635 = vlaneseq
    %v7636 = vshrl.u32 %v7635, 7
    %v7637 = vsub.s32 4, %v7636
    %v7638 = vrot.slane %v7438, %v7637
    %v7639 = vmul.f32 %v7289, %v7634
    %v7640 = vmul.f32 %v7291, %v7638
    %v7641 = vmul.f32 %v7295, %v7634
    %v7642 = vmul.f32 %v7297, %v7638
    %v7643 = vadd.f32 %v7627, %v7639
    %v7644 = vadd.f32 %v7628, %v7640
    %v7645 = vadd.f32 %v7629, %v7641
    %v7646 = vadd.f32 %v7630, %v7642
    %v7647 = vlaneseq
    %v7648 = vshrl.u32 %v7647, 7
    %v7649 = vsub.s32 5, %v7648
    %v7650 = vrot.slane %v7424, %v7649
    %v7651 = vlaneseq
    %v7652 = vshrl.u32 %v7651, 7
    %v7653 = vsub.s32 5, %v7652
    %v7654 = vrot.slane %v7438, %v7653
    %v7655 = vmul.f32 %v7301, %v7650
    %v7656 = vmul.f32 %v7303, %v7654
    %v7657 = vmul.f32 %v7307, %v7650
    %v7658 = vmul.f32 %v7309, %v7654
    %v7659 = vadd.f32 %v7643, %v7655
    %v7660 = vadd.f32 %v7644, %v7656
    %v7661 = vadd.f32 %v7645, %v7657
    %v7662 = vadd.f32 %v7646, %v7658
    %v7663 = vlaneseq
    %v7664 = vshrl.u32 %v7663, 7
    %v7665 = vsub.s32 6, %v7664
    %v7666 = vrot.slane %v7424, %v7665
    %v7667 = vlaneseq
    %v7668 = vshrl.u32 %v7667, 7
    %v7669 = vsub.s32 6, %v7668
    %v7670 = vrot.slane %v7438, %v7669
    %v7671 = vmul.f32 %v7313, %v7666
    %v7672 = vmul.f32 %v7315, %v7670
    %v7673 = vmul.f32 %v7319, %v7666
    %v7674 = vmul.f32 %v7321, %v7670
    %v7675 = vadd.f32 %v7659, %v7671
    %v7676 = vadd.f32 %v7660, %v7672
    %v7677 = vadd.f32 %v7661, %v7673
    %v7678 = vadd.f32 %v7662, %v7674
    %v7679 = vlaneseq
    %v7680 = vshrl.u32 %v7679, 7
    %v7681 = vsub.s32 7, %v7680
    %v7682 = vrot.slane %v7424, %v7681
    %v7683 = vlaneseq
    %v7684 = vshrl.u32 %v7683, 7
    %v7685 = vsub.s32 7, %v7684
    %v7686 = vrot.slane %v7438, %v7685
    %v7687 = vmul.f32 %v7325, %v7682
    %v7688 = vmul.f32 %v7327, %v7686
    %v7689 = vmul.f32 %v7331, %v7682
    %v7690 = vmul.f32 %v7333, %v7686
    %v7691 = vadd.f32 %v7675, %v7687
    %v7692 = vadd.f32 %v7676, %v7688
    %v7693 = vadd.f32 %v7677, %v7689
    %v7694 = vadd.f32 %v7678, %v7690
    %7697 = vrot.lane.b32.xlu0 %v6914, 112
    %v7698 = vpop.permute.xlu0 %7697
    %7699 = vrot.lane.b32.xlu0 %v6916, 112
    %v7700 = vpop.permute.xlu0 %7699
    %7701 = vrot.lane.b32.xlu0 %v6914, 96
    %v7702 = vpop.permute.xlu0 %7701
    %7703 = vrot.lane.b32.xlu0 %v6916, 96
    %v7704 = vpop.permute.xlu0 %7703
    %7705 = vrot.lane.b32.xlu0 %v6914, 80
    %v7706 = vpop.permute.xlu0 %7705
    %7707 = vrot.lane.b32.xlu0 %v6916, 80
    %v7708 = vpop.permute.xlu0 %7707
    %7709 = vrot.lane.b32.xlu0 %v6914, 64
    %v7710 = vpop.permute.xlu0 %7709
    %7711 = vrot.lane.b32.xlu0 %v6916, 64
    %v7712 = vpop.permute.xlu0 %7711
    %7713 = vrot.lane.b32.xlu0 %v6914, 48
    %v7714 = vpop.permute.xlu0 %7713
    %7715 = vrot.lane.b32.xlu0 %v6916, 48
    %v7716 = vpop.permute.xlu0 %7715
    %7717 = vrot.lane.b32.xlu0 %v6914, 32
    %v7718 = vpop.permute.xlu0 %7717
    %7719 = vrot.lane.b32.xlu0 %v6916, 32
    %v7720 = vpop.permute.xlu0 %7719
    %7721 = vrot.lane.b32.xlu0 %v6914, 16
    %v7722 = vpop.permute.xlu0 %7721
    %7723 = vrot.lane.b32.xlu0 %v6916, 16
    %v7724 = vpop.permute.xlu0 %7723
    %7727 = vrot.lane.b32.xlu0 %v6915, 112
    %v7728 = vpop.permute.xlu0 %7727
    %7729 = vrot.lane.b32.xlu0 %v6917, 112
    %v7730 = vpop.permute.xlu0 %7729
    %7731 = vrot.lane.b32.xlu0 %v6915, 96
    %v7732 = vpop.permute.xlu0 %7731
    %7733 = vrot.lane.b32.xlu0 %v6917, 96
    %v7734 = vpop.permute.xlu0 %7733
    %7735 = vrot.lane.b32.xlu0 %v6915, 80
    %v7736 = vpop.permute.xlu0 %7735
    %7737 = vrot.lane.b32.xlu0 %v6917, 80
    %v7738 = vpop.permute.xlu0 %7737
    %7739 = vrot.lane.b32.xlu0 %v6915, 64
    %v7740 = vpop.permute.xlu0 %7739
    %7741 = vrot.lane.b32.xlu0 %v6917, 64
    %v7742 = vpop.permute.xlu0 %7741
    %7743 = vrot.lane.b32.xlu0 %v6915, 48
    %v7744 = vpop.permute.xlu0 %7743
    %7745 = vrot.lane.b32.xlu0 %v6917, 48
    %v7746 = vpop.permute.xlu0 %7745
    %7747 = vrot.lane.b32.xlu0 %v6915, 32
    %v7748 = vpop.permute.xlu0 %7747
    %7749 = vrot.lane.b32.xlu0 %v6917, 32
    %v7750 = vpop.permute.xlu0 %7749
    %7751 = vrot.lane.b32.xlu0 %v6915, 16
    %v7752 = vpop.permute.xlu0 %7751
    %7753 = vrot.lane.b32.xlu0 %v6917, 16
    %v7754 = vpop.permute.xlu0 %7753
    %7757 = vrot.lane.b32.xlu0 %v7691, 112
    %v7758 = vpop.permute.xlu0 %7757
    %7759 = vrot.lane.b32.xlu0 %v7693, 112
    %v7760 = vpop.permute.xlu0 %7759
    %7761 = vrot.lane.b32.xlu0 %v7691, 96
    %v7762 = vpop.permute.xlu0 %7761
    %7763 = vrot.lane.b32.xlu0 %v7693, 96
    %v7764 = vpop.permute.xlu0 %7763
    %7765 = vrot.lane.b32.xlu0 %v7691, 80
    %v7766 = vpop.permute.xlu0 %7765
    %7767 = vrot.lane.b32.xlu0 %v7693, 80
    %v7768 = vpop.permute.xlu0 %7767
    %7769 = vrot.lane.b32.xlu0 %v7691, 64
    %v7770 = vpop.permute.xlu0 %7769
    %7771 = vrot.lane.b32.xlu0 %v7693, 64
    %v7772 = vpop.permute.xlu0 %7771
    %7773 = vrot.lane.b32.xlu0 %v7691, 48
    %v7774 = vpop.permute.xlu0 %7773
    %7775 = vrot.lane.b32.xlu0 %v7693, 48
    %v7776 = vpop.permute.xlu0 %7775
    %7777 = vrot.lane.b32.xlu0 %v7691, 32
    %v7778 = vpop.permute.xlu0 %7777
    %7779 = vrot.lane.b32.xlu0 %v7693, 32
    %v7780 = vpop.permute.xlu0 %7779
    %7781 = vrot.lane.b32.xlu0 %v7691, 16
    %v7782 = vpop.permute.xlu0 %7781
    %7783 = vrot.lane.b32.xlu0 %v7693, 16
    %v7784 = vpop.permute.xlu0 %7783
    %7787 = vrot.lane.b32.xlu0 %v7692, 112
    %v7788 = vpop.permute.xlu0 %7787
    %7789 = vrot.lane.b32.xlu0 %v7694, 112
    %v7790 = vpop.permute.xlu0 %7789
    %7791 = vrot.lane.b32.xlu0 %v7692, 96
    %v7792 = vpop.permute.xlu0 %7791
    %7793 = vrot.lane.b32.xlu0 %v7694, 96
    %v7794 = vpop.permute.xlu0 %7793
    %7795 = vrot.lane.b32.xlu0 %v7692, 80
    %v7796 = vpop.permute.xlu0 %7795
    %7797 = vrot.lane.b32.xlu0 %v7694, 80
    %v7798 = vpop.permute.xlu0 %7797
    %7799 = vrot.lane.b32.xlu0 %v7692, 64
    %v7800 = vpop.permute.xlu0 %7799
    %7801 = vrot.lane.b32.xlu0 %v7694, 64
    %v7802 = vpop.permute.xlu0 %7801
    %7803 = vrot.lane.b32.xlu0 %v7692, 48
    %v7804 = vpop.permute.xlu0 %7803
    %7805 = vrot.lane.b32.xlu0 %v7694, 48
    %v7806 = vpop.permute.xlu0 %7805
    %7807 = vrot.lane.b32.xlu0 %v7692, 32
    %v7808 = vpop.permute.xlu0 %7807
    %7809 = vrot.lane.b32.xlu0 %v7694, 32
    %v7810 = vpop.permute.xlu0 %7809
    %7811 = vrot.lane.b32.xlu0 %v7692, 16
    %v7812 = vpop.permute.xlu0 %7811
    %7813 = vrot.lane.b32.xlu0 %v7694, 16
    %v7814 = vpop.permute.xlu0 %7813
    %v7815 = vld [vmem:[%s2 + $0xc0] sm:$0xff]
    %v7816 = vld [vmem:[%s2 + $0xc8] sm:$0xff]
    %v7817 = vld [vmem:[%s2 + $0xd0] sm:$0xff]
    %v7818 = vld [vmem:[%s2 + $0xd8] sm:$0xff]
    %v7819 = vld [vmem:[%s2 + $0xe0] sm:$0x1]
    %v7820 = vsel %vm1500, %v6914, 0
    %v7822 = vsel %vm1500, %v6916, 0
    %v7824 = vsel %vm1500, %v7698, 0
    %v7826 = vsel %vm1500, %v7700, 0
    %v7828 = vsel %vm1500, %v7702, 0
    %v7830 = vsel %vm1500, %v7704, 0
    %v7832 = vsel %vm1500, %v7706, 0
    %v7834 = vsel %vm1500, %v7708, 0
    %v7836 = vsel %vm1500, %v7710, 0
    %v7838 = vsel %vm1500, %v7712, 0
    %v7840 = vsel %vm1500, %v7714, 0
    %v7842 = vsel %vm1500, %v7716, 0
    %v7844 = vsel %vm1500, %v7718, 0
    %v7846 = vsel %vm1500, %v7720, 0
    %v7848 = vsel %vm1500, %v7722, 0
    %v7850 = vsel %vm1500, %v7724, 0
    %v7852 = vsel %vm1500, %v6915, 0
    %v7854 = vsel %vm1500, %v6917, 0
    %v7856 = vsel %vm1500, %v7728, 0
    %v7858 = vsel %vm1500, %v7730, 0
    %v7860 = vsel %vm1500, %v7732, 0
    %v7862 = vsel %vm1500, %v7734, 0
    %v7864 = vsel %vm1500, %v7736, 0
    %v7866 = vsel %vm1500, %v7738, 0
    %v7868 = vsel %vm1500, %v7740, 0
    %v7870 = vsel %vm1500, %v7742, 0
    %v7872 = vsel %vm1500, %v7744, 0
    %v7874 = vsel %vm1500, %v7746, 0
    %v7876 = vsel %vm1500, %v7748, 0
    %v7878 = vsel %vm1500, %v7750, 0
    %v7880 = vsel %vm1500, %v7752, 0
    %v7882 = vsel %vm1500, %v7754, 0
    %v7884 = vsel %vm1500, %v7691, 0
    %v7886 = vsel %vm1500, %v7693, 0
    %v7888 = vsel %vm1500, %v7758, 0
    %v7890 = vsel %vm1500, %v7760, 0
    %v7892 = vsel %vm1500, %v7762, 0
    %v7894 = vsel %vm1500, %v7764, 0
    %v7896 = vsel %vm1500, %v7766, 0
    %v7898 = vsel %vm1500, %v7768, 0
    %v7900 = vsel %vm1500, %v7770, 0
    %v7902 = vsel %vm1500, %v7772, 0
    %v7904 = vsel %vm1500, %v7774, 0
    %v7906 = vsel %vm1500, %v7776, 0
    %v7908 = vsel %vm1500, %v7778, 0
    %v7910 = vsel %vm1500, %v7780, 0
    %v7912 = vsel %vm1500, %v7782, 0
    %v7914 = vsel %vm1500, %v7784, 0
    %v7916 = vsel %vm1500, %v7692, 0
    %v7918 = vsel %vm1500, %v7694, 0
    %v7920 = vsel %vm1500, %v7788, 0
    %v7922 = vsel %vm1500, %v7790, 0
    %v7924 = vsel %vm1500, %v7792, 0
    %v7926 = vsel %vm1500, %v7794, 0
    %v7928 = vsel %vm1500, %v7796, 0
    %v7930 = vsel %vm1500, %v7798, 0
    %v7932 = vsel %vm1500, %v7800, 0
    %v7934 = vsel %vm1500, %v7802, 0
    %v7936 = vsel %vm1500, %v7804, 0
    %v7938 = vsel %vm1500, %v7806, 0
    %v7940 = vsel %vm1500, %v7808, 0
    %v7942 = vsel %vm1500, %v7810, 0
    %v7944 = vsel %vm1500, %v7812, 0
    %v7946 = vsel %vm1500, %v7814, 0
    %7948 = vmatprep.subr.mxu0 0.0
    %7949 = vmatpush1.msra.mxu0 %v7817
    %7950 = vmatprep.subr.mxu0 0.0
    %7951 = vmatpush1.msra.mxu0 %v7818
    %7952 = vmatprep.subr.mxu0 0.0
    %7953 = vmatpush1.msra.mxu0 0.0
    %7954 = vmatprep.subr.mxu0 0.0
    %7955 = vmatpush1.msra.mxu0 0.0
    %7956 = vmatprep.subr.mxu0 0.0
    %7957 = vmatpush1.msra.mxu0 0.0
    %7958 = vmatprep.subr.mxu0 0.0
    %7959 = vmatpush1.msra.mxu0 0.0
    %7960 = vmatprep.subr.mxu0 0.0
    %7961 = vmatpush1.msra.mxu0 0.0
    %7962 = vmatprep.subr.mxu0 0.0
    %7963 = vmatpush1.msra.mxu0 0.0
    %7964 = vmatprep.subr.mxu0 0.0
    %7965 = vmatpush1.msra.mxu0 0.0
    %7966 = vmatprep.subr.mxu0 0.0
    %7967 = vmatpush1.msra.mxu0 0.0
    %7968 = vmatprep.subr.mxu0 0.0
    %7969 = vmatpush1.msra.mxu0 0.0
    %7970 = vmatprep.subr.mxu0 0.0
    %7971 = vmatpush1.msra.mxu0 0.0
    %7972 = vmatprep.subr.mxu0 0.0
    %7973 = vmatpush1.msra.mxu0 0.0
    %7974 = vmatprep.subr.mxu0 0.0
    %7975 = vmatpush1.msra.mxu0 0.0
    %7976 = vmatprep.subr.mxu0 0.0
    %7977 = vmatpush1.msra.mxu0 0.0
    %7978 = vmatprep.subr.mxu0 0.0
    %7979 = vmatpush1.msra.mxu0 0.0
    %7980 = vmatprep.subr.mxu0 0.0
    %7981 = vmatpush1.msra.mxu0 0.0
    %7982 = vmatprep.subr.mxu0 0.0
    %7983 = vmatpush1.msra.mxu0 0.0
    %7984 = vmatprep.subr.mxu0 0.0
    %7985 = vmatpush1.msra.mxu0 0.0
    %7986 = vmatprep.subr.mxu0 0.0
    %7987 = vmatpush1.msra.mxu0 0.0
    %7988 = vmatprep.subr.mxu0 0.0
    %7989 = vmatpush1.msra.mxu0 0.0
    %7990 = vmatprep.subr.mxu0 0.0
    %7991 = vmatpush1.msra.mxu0 0.0
    %7992 = vmatprep.subr.mxu0 0.0
    %7993 = vmatpush1.msra.mxu0 0.0
    %7994 = vmatprep.subr.mxu0 0.0
    %7995 = vmatpush1.msra.mxu0 0.0
    %7996 = vmatprep.subr.mxu0 0.0
    %7997 = vmatpush1.msra.mxu0 0.0
    %7998 = vmatprep.subr.mxu0 0.0
    %7999 = vmatpush1.msra.mxu0 0.0
    %8000 = vmatprep.subr.mxu0 0.0
    %8001 = vmatpush1.msra.mxu0 0.0
    %8002 = vmatprep.subr.mxu0 0.0
    %8003 = vmatpush1.msra.mxu0 0.0
    %8004 = vmatprep.subr.mxu0 0.0
    %8005 = vmatpush1.msra.mxu0 0.0
    %8006 = vmatprep.subr.mxu0 0.0
    %8007 = vmatpush1.msra.mxu0 0.0
    %8008 = vmatprep.subr.mxu0 0.0
    %8009 = vmatpush1.msra.mxu0 0.0
    %8010 = vmatprep.subr.mxu0 0.0
    %8011 = vmatpush1.msra.mxu0 0.0
    %8012 = vmatprep.mubr.f32.mxu0 0.0
    %8013 = vmatmul.mubr.f32.gmra.mrb[0].mxu0 %v7820
    %v8014 = vpop.f32.mrb[0].mxu0
    %v8015 = vadd.f32 0.0, %v8014
    %v8016 = vpop.f32.mrb[0].mxu0
    %8017 = vmatprep.mubr.f32.mxu0 0.0
    %8018 = vmatmul.mubr.f32.gmra.mrb[0].mxu0 %v7822
    %v8019 = vpop.f32.mrb[0].mxu0
    %v8020 = vadd.f32 0.0, %v8019
    %v8021 = vpop.f32.mrb[0].mxu0
    %8022 = vmatprep.mubr.f32.mxu0 0.0
    %8023 = vmatmul.mubr.f32.gmra.mrb[0].mxu0 %v7824
    %v8024 = vpop.f32.mrb[0].mxu0
    %v8025 = vadd.f32 0.0, %v8024
    %v8026 = vpop.f32.mrb[0].mxu0
    %8027 = vmatprep.mubr.f32.mxu0 0.0
    %8028 = vmatmul.mubr.f32.gmra.mrb[0].mxu0 %v7826
    %v8029 = vpop.f32.mrb[0].mxu0
    %v8030 = vadd.f32 0.0, %v8029
    %v8031 = vpop.f32.mrb[0].mxu0
    %8032 = vmatprep.mubr.f32.mxu0 0.0
    %8033 = vmatmul.mubr.f32.gmra.mrb[0].mxu0 %v7828
    %v8034 = vpop.f32.mrb[0].mxu0
    %v8035 = vadd.f32 0.0, %v8034
    %v8036 = vpop.f32.mrb[0].mxu0
    %8037 = vmatprep.mubr.f32.mxu0 0.0
    %8038 = vmatmul.mubr.f32.gmra.mrb[0].mxu0 %v7830
    %v8039 = vpop.f32.mrb[0].mxu0
    %v8040 = vadd.f32 0.0, %v8039
    %v8041 = vpop.f32.mrb[0].mxu0
    %8042 = vmatprep.mubr.f32.mxu0 0.0
    %8043 = vmatmul.mubr.f32.gmra.mrb[0].mxu0 %v7832
    %v8044 = vpop.f32.mrb[0].mxu0
    %v8045 = vadd.f32 0.0, %v8044
    %v8046 = vpop.f32.mrb[0].mxu0
    %8047 = vmatprep.mubr.f32.mxu0 0.0
    %8048 = vmatmul.mubr.f32.gmra.mrb[0].mxu0 %v7834
    %v8049 = vpop.f32.mrb[0].mxu0
    %v8050 = vadd.f32 0.0, %v8049
    %v8051 = vpop.f32.mrb[0].mxu0
    %8052 = vmatprep.mubr.f32.mxu0 0.0
    %8053 = vmatmul.mubr.f32.gmra.mrb[0].mxu0 %v7836
    %v8054 = vpop.f32.mrb[0].mxu0
    %v8055 = vadd.f32 0.0, %v8054
    %v8056 = vpop.f32.mrb[0].mxu0
    %8057 = vmatprep.mubr.f32.mxu0 0.0
    %8058 = vmatmul.mubr.f32.gmra.mrb[0].mxu0 %v7838
    %v8059 = vpop.f32.mrb[0].mxu0
    %v8060 = vadd.f32 0.0, %v8059
    %v8061 = vpop.f32.mrb[0].mxu0
    %8062 = vmatprep.mubr.f32.mxu0 0.0
    %8063 = vmatmul.mubr.f32.gmra.mrb[0].mxu0 %v7840
    %v8064 = vpop.f32.mrb[0].mxu0
    %v8065 = vadd.f32 0.0, %v8064
    %v8066 = vpop.f32.mrb[0].mxu0
    %8067 = vmatprep.mubr.f32.mxu0 0.0
    %8068 = vmatmul.mubr.f32.gmra.mrb[0].mxu0 %v7842
    %v8069 = vpop.f32.mrb[0].mxu0
    %v8070 = vadd.f32 0.0, %v8069
    %v8071 = vpop.f32.mrb[0].mxu0
    %8072 = vmatprep.mubr.f32.mxu0 0.0
    %8073 = vmatmul.mubr.f32.gmra.mrb[0].mxu0 %v7844
    %v8074 = vpop.f32.mrb[0].mxu0
    %v8075 = vadd.f32 0.0, %v8074
    %v8076 = vpop.f32.mrb[0].mxu0
    %8077 = vmatprep.mubr.f32.mxu0 0.0
    %8078 = vmatmul.mubr.f32.gmra.mrb[0].mxu0 %v7846
    %v8079 = vpop.f32.mrb[0].mxu0
    %v8080 = vadd.f32 0.0, %v8079
    %v8081 = vpop.f32.mrb[0].mxu0
    %8082 = vmatprep.mubr.f32.mxu0 0.0
    %8083 = vmatmul.mubr.f32.gmra.mrb[0].mxu0 %v7848
    %v8084 = vpop.f32.mrb[0].mxu0
    %v8085 = vadd.f32 0.0, %v8084
    %v8086 = vpop.f32.mrb[0].mxu0
    %8087 = vmatprep.mubr.f32.mxu0 0.0
    %8088 = vmatmul.mubr.f32.gmra.mrb[0].mxu0 %v7850
    %v8089 = vpop.f32.mrb[0].mxu0
    %v8090 = vadd.f32 0.0, %v8089
    %v8091 = vpop.f32.mrb[0].mxu0
    %8092 = vmatprep.mubr.f32.mxu0 0.0
    %8093 = vmatmul.mubr.f32.gmra.mrb[0].mxu0 %v7852
    %v8094 = vpop.f32.mrb[0].mxu0
    %v8095 = vadd.f32 0.0, %v8094
    %v8096 = vpop.f32.mrb[0].mxu0
    %8097 = vmatprep.mubr.f32.mxu0 0.0
    %8098 = vmatmul.mubr.f32.gmra.mrb[0].mxu0 %v7854
    %v8099 = vpop.f32.mrb[0].mxu0
    %v8100 = vadd.f32 0.0, %v8099
    %v8101 = vpop.f32.mrb[0].mxu0
    %8102 = vmatprep.mubr.f32.mxu0 0.0
    %8103 = vmatmul.mubr.f32.gmra.mrb[0].mxu0 %v7856
    %v8104 = vpop.f32.mrb[0].mxu0
    %v8105 = vadd.f32 0.0, %v8104
    %v8106 = vpop.f32.mrb[0].mxu0
    %8107 = vmatprep.mubr.f32.mxu0 0.0
    %8108 = vmatmul.mubr.f32.gmra.mrb[0].mxu0 %v7858
    %v8109 = vpop.f32.mrb[0].mxu0
    %v8110 = vadd.f32 0.0, %v8109
    %v8111 = vpop.f32.mrb[0].mxu0
    %8112 = vmatprep.mubr.f32.mxu0 0.0
    %8113 = vmatmul.mubr.f32.gmra.mrb[0].mxu0 %v7860
    %v8114 = vpop.f32.mrb[0].mxu0
    %v8115 = vadd.f32 0.0, %v8114
    %v8116 = vpop.f32.mrb[0].mxu0
    %8117 = vmatprep.mubr.f32.mxu0 0.0
    %8118 = vmatmul.mubr.f32.gmra.mrb[0].mxu0 %v7862
    %v8119 = vpop.f32.mrb[0].mxu0
    %v8120 = vadd.f32 0.0, %v8119
    %v8121 = vpop.f32.mrb[0].mxu0
    %8122 = vmatprep.mubr.f32.mxu0 0.0
    %8123 = vmatmul.mubr.f32.gmra.mrb[0].mxu0 %v7864
    %v8124 = vpop.f32.mrb[0].mxu0
    %v8125 = vadd.f32 0.0, %v8124
    %v8126 = vpop.f32.mrb[0].mxu0
    %8127 = vmatprep.mubr.f32.mxu0 0.0
    %8128 = vmatmul.mubr.f32.gmra.mrb[0].mxu0 %v7866
    %v8129 = vpop.f32.mrb[0].mxu0
    %v8130 = vadd.f32 0.0, %v8129
    %v8131 = vpop.f32.mrb[0].mxu0
    %8132 = vmatprep.mubr.f32.mxu0 0.0
    %8133 = vmatmul.mubr.f32.gmra.mrb[0].mxu0 %v7868
    %v8134 = vpop.f32.mrb[0].mxu0
    %v8135 = vadd.f32 0.0, %v8134
    %v8136 = vpop.f32.mrb[0].mxu0
    %8137 = vmatprep.mubr.f32.mxu0 0.0
    %8138 = vmatmul.mubr.f32.gmra.mrb[0].mxu0 %v7870
    %v8139 = vpop.f32.mrb[0].mxu0
    %v8140 = vadd.f32 0.0, %v8139
    %v8141 = vpop.f32.mrb[0].mxu0
    %8142 = vmatprep.mubr.f32.mxu0 0.0
    %8143 = vmatmul.mubr.f32.gmra.mrb[0].mxu0 %v7872
    %v8144 = vpop.f32.mrb[0].mxu0
    %v8145 = vadd.f32 0.0, %v8144
    %v8146 = vpop.f32.mrb[0].mxu0
    %8147 = vmatprep.mubr.f32.mxu0 0.0
    %8148 = vmatmul.mubr.f32.gmra.mrb[0].mxu0 %v7874
    %v8149 = vpop.f32.mrb[0].mxu0
    %v8150 = vadd.f32 0.0, %v8149
    %v8151 = vpop.f32.mrb[0].mxu0
    %8152 = vmatprep.mubr.f32.mxu0 0.0
    %8153 = vmatmul.mubr.f32.gmra.mrb[0].mxu0 %v7876
    %v8154 = vpop.f32.mrb[0].mxu0
    %v8155 = vadd.f32 0.0, %v8154
    %v8156 = vpop.f32.mrb[0].mxu0
    %8157 = vmatprep.mubr.f32.mxu0 0.0
    %8158 = vmatmul.mubr.f32.gmra.mrb[0].mxu0 %v7878
    %v8159 = vpop.f32.mrb[0].mxu0
    %v8160 = vadd.f32 0.0, %v8159
    %v8161 = vpop.f32.mrb[0].mxu0
    %8162 = vmatprep.mubr.f32.mxu0 0.0
    %8163 = vmatmul.mubr.f32.gmra.mrb[0].mxu0 %v7880
    %v8164 = vpop.f32.mrb[0].mxu0
    %v8165 = vadd.f32 0.0, %v8164
    %v8166 = vpop.f32.mrb[0].mxu0
    %8167 = vmatprep.mubr.f32.mxu0 0.0
    %8168 = vmatmul.mubr.f32.gmra.mrb[0].mxu0 %v7882
    %v8169 = vpop.f32.mrb[0].mxu0
    %v8170 = vadd.f32 0.0, %v8169
    %v8171 = vpop.f32.mrb[0].mxu0
    %8172 = vmatprep.mubr.f32.mxu0 0.0
    %8173 = vmatmul.mubr.f32.gmra.mrb[0].mxu0 %v7884
    %v8174 = vpop.f32.mrb[0].mxu0
    %v8175 = vadd.f32 0.0, %v8174
    %v8176 = vpop.f32.mrb[0].mxu0
    %8177 = vmatprep.mubr.f32.mxu0 0.0
    %8178 = vmatmul.mubr.f32.gmra.mrb[0].mxu0 %v7886
    %v8179 = vpop.f32.mrb[0].mxu0
    %v8180 = vadd.f32 0.0, %v8179
    %v8181 = vpop.f32.mrb[0].mxu0
    %8182 = vmatprep.mubr.f32.mxu0 0.0
    %8183 = vmatmul.mubr.f32.gmra.mrb[0].mxu0 %v7888
    %v8184 = vpop.f32.mrb[0].mxu0
    %v8185 = vadd.f32 0.0, %v8184
    %v8186 = vpop.f32.mrb[0].mxu0
    %8187 = vmatprep.mubr.f32.mxu0 0.0
    %8188 = vmatmul.mubr.f32.gmra.mrb[0].mxu0 %v7890
    %v8189 = vpop.f32.mrb[0].mxu0
    %v8190 = vadd.f32 0.0, %v8189
    %v8191 = vpop.f32.mrb[0].mxu0
    %8192 = vmatprep.mubr.f32.mxu0 0.0
    %8193 = vmatmul.mubr.f32.gmra.mrb[0].mxu0 %v7892
    %v8194 = vpop.f32.mrb[0].mxu0
    %v8195 = vadd.f32 0.0, %v8194
    %v8196 = vpop.f32.mrb[0].mxu0
    %8197 = vmatprep.mubr.f32.mxu0 0.0
    %8198 = vmatmul.mubr.f32.gmra.mrb[0].mxu0 %v7894
    %v8199 = vpop.f32.mrb[0].mxu0
    %v8200 = vadd.f32 0.0, %v8199
    %v8201 = vpop.f32.mrb[0].mxu0
    %8202 = vmatprep.mubr.f32.mxu0 0.0
    %8203 = vmatmul.mubr.f32.gmra.mrb[0].mxu0 %v7896
    %v8204 = vpop.f32.mrb[0].mxu0
    %v8205 = vadd.f32 0.0, %v8204
    %v8206 = vpop.f32.mrb[0].mxu0
    %8207 = vmatprep.mubr.f32.mxu0 0.0
    %8208 = vmatmul.mubr.f32.gmra.mrb[0].mxu0 %v7898
    %v8209 = vpop.f32.mrb[0].mxu0
    %v8210 = vadd.f32 0.0, %v8209
    %v8211 = vpop.f32.mrb[0].mxu0
    %8212 = vmatprep.mubr.f32.mxu0 0.0
    %8213 = vmatmul.mubr.f32.gmra.mrb[0].mxu0 %v7900
    %v8214 = vpop.f32.mrb[0].mxu0
    %v8215 = vadd.f32 0.0, %v8214
    %v8216 = vpop.f32.mrb[0].mxu0
    %8217 = vmatprep.mubr.f32.mxu0 0.0
    %8218 = vmatmul.mubr.f32.gmra.mrb[0].mxu0 %v7902
    %v8219 = vpop.f32.mrb[0].mxu0
    %v8220 = vadd.f32 0.0, %v8219
    %v8221 = vpop.f32.mrb[0].mxu0
    %8222 = vmatprep.mubr.f32.mxu0 0.0
    %8223 = vmatmul.mubr.f32.gmra.mrb[0].mxu0 %v7904
    %v8224 = vpop.f32.mrb[0].mxu0
    %v8225 = vadd.f32 0.0, %v8224
    %v8226 = vpop.f32.mrb[0].mxu0
    %8227 = vmatprep.mubr.f32.mxu0 0.0
    %8228 = vmatmul.mubr.f32.gmra.mrb[0].mxu0 %v7906
    %v8229 = vpop.f32.mrb[0].mxu0
    %v8230 = vadd.f32 0.0, %v8229
    %v8231 = vpop.f32.mrb[0].mxu0
    %8232 = vmatprep.mubr.f32.mxu0 0.0
    %8233 = vmatmul.mubr.f32.gmra.mrb[0].mxu0 %v7908
    %v8234 = vpop.f32.mrb[0].mxu0
    %v8235 = vadd.f32 0.0, %v8234
    %v8236 = vpop.f32.mrb[0].mxu0
    %8237 = vmatprep.mubr.f32.mxu0 0.0
    %8238 = vmatmul.mubr.f32.gmra.mrb[0].mxu0 %v7910
    %v8239 = vpop.f32.mrb[0].mxu0
    %v8240 = vadd.f32 0.0, %v8239
    %v8241 = vpop.f32.mrb[0].mxu0
    %8242 = vmatprep.mubr.f32.mxu0 0.0
    %8243 = vmatmul.mubr.f32.gmra.mrb[0].mxu0 %v7912
    %v8244 = vpop.f32.mrb[0].mxu0
    %v8245 = vadd.f32 0.0, %v8244
    %v8246 = vpop.f32.mrb[0].mxu0
    %8247 = vmatprep.mubr.f32.mxu0 0.0
    %8248 = vmatmul.mubr.f32.gmra.mrb[0].mxu0 %v7914
    %v8249 = vpop.f32.mrb[0].mxu0
    %v8250 = vadd.f32 0.0, %v8249
    %v8251 = vpop.f32.mrb[0].mxu0
    %8252 = vmatprep.mubr.f32.mxu0 0.0
    %8253 = vmatmul.mubr.f32.gmra.mrb[0].mxu0 %v7916
    %v8254 = vpop.f32.mrb[0].mxu0
    %v8255 = vadd.f32 0.0, %v8254
    %v8256 = vpop.f32.mrb[0].mxu0
    %8257 = vmatprep.mubr.f32.mxu0 0.0
    %8258 = vmatmul.mubr.f32.gmra.mrb[0].mxu0 %v7918
    %v8259 = vpop.f32.mrb[0].mxu0
    %v8260 = vadd.f32 0.0, %v8259
    %v8261 = vpop.f32.mrb[0].mxu0
    %8262 = vmatprep.mubr.f32.mxu0 0.0
    %8263 = vmatmul.mubr.f32.gmra.mrb[0].mxu0 %v7920
    %v8264 = vpop.f32.mrb[0].mxu0
    %v8265 = vadd.f32 0.0, %v8264
    %v8266 = vpop.f32.mrb[0].mxu0
    %8267 = vmatprep.mubr.f32.mxu0 0.0
    %8268 = vmatmul.mubr.f32.gmra.mrb[0].mxu0 %v7922
    %v8269 = vpop.f32.mrb[0].mxu0
    %v8270 = vadd.f32 0.0, %v8269
    %v8271 = vpop.f32.mrb[0].mxu0
    %8272 = vmatprep.mubr.f32.mxu0 0.0
    %8273 = vmatmul.mubr.f32.gmra.mrb[0].mxu0 %v7924
    %v8274 = vpop.f32.mrb[0].mxu0
    %v8275 = vadd.f32 0.0, %v8274
    %v8276 = vpop.f32.mrb[0].mxu0
    %8277 = vmatprep.mubr.f32.mxu0 0.0
    %8278 = vmatmul.mubr.f32.gmra.mrb[0].mxu0 %v7926
    %v8279 = vpop.f32.mrb[0].mxu0
    %v8280 = vadd.f32 0.0, %v8279
    %v8281 = vpop.f32.mrb[0].mxu0
    %8282 = vmatprep.mubr.f32.mxu0 0.0
    %8283 = vmatmul.mubr.f32.gmra.mrb[0].mxu0 %v7928
    %v8284 = vpop.f32.mrb[0].mxu0
    %v8285 = vadd.f32 0.0, %v8284
    %v8286 = vpop.f32.mrb[0].mxu0
    %8287 = vmatprep.mubr.f32.mxu0 0.0
    %8288 = vmatmul.mubr.f32.gmra.mrb[0].mxu0 %v7930
    %v8289 = vpop.f32.mrb[0].mxu0
    %v8290 = vadd.f32 0.0, %v8289
    %v8291 = vpop.f32.mrb[0].mxu0
    %8292 = vmatprep.mubr.f32.mxu0 0.0
    %8293 = vmatmul.mubr.f32.gmra.mrb[0].mxu0 %v7932
    %v8294 = vpop.f32.mrb[0].mxu0
    %v8295 = vadd.f32 0.0, %v8294
    %v8296 = vpop.f32.mrb[0].mxu0
    %8297 = vmatprep.mubr.f32.mxu0 0.0
    %8298 = vmatmul.mubr.f32.gmra.mrb[0].mxu0 %v7934
    %v8299 = vpop.f32.mrb[0].mxu0
    %v8300 = vadd.f32 0.0, %v8299
    %v8301 = vpop.f32.mrb[0].mxu0
    %8302 = vmatprep.mubr.f32.mxu0 0.0
    %8303 = vmatmul.mubr.f32.gmra.mrb[0].mxu0 %v7936
    %v8304 = vpop.f32.mrb[0].mxu0
    %v8305 = vadd.f32 0.0, %v8304
    %v8306 = vpop.f32.mrb[0].mxu0
    %8307 = vmatprep.mubr.f32.mxu0 0.0
    %8308 = vmatmul.mubr.f32.gmra.mrb[0].mxu0 %v7938
    %v8309 = vpop.f32.mrb[0].mxu0
    %v8310 = vadd.f32 0.0, %v8309
    %v8311 = vpop.f32.mrb[0].mxu0
    %8312 = vmatprep.mubr.f32.mxu0 0.0
    %8313 = vmatmul.mubr.f32.gmra.mrb[0].mxu0 %v7940
    %v8314 = vpop.f32.mrb[0].mxu0
    %v8315 = vadd.f32 0.0, %v8314
    %v8316 = vpop.f32.mrb[0].mxu0
    %8317 = vmatprep.mubr.f32.mxu0 0.0
    %8318 = vmatmul.mubr.f32.gmra.mrb[0].mxu0 %v7942
    %v8319 = vpop.f32.mrb[0].mxu0
    %v8320 = vadd.f32 0.0, %v8319
    %v8321 = vpop.f32.mrb[0].mxu0
    %8322 = vmatprep.mubr.f32.mxu0 0.0
    %8323 = vmatmul.mubr.f32.gmra.mrb[0].mxu0 %v7944
    %v8324 = vpop.f32.mrb[0].mxu0
    %v8325 = vadd.f32 0.0, %v8324
    %v8326 = vpop.f32.mrb[0].mxu0
    %8327 = vmatprep.mubr.f32.mxu0 0.0
    %8328 = vmatmul.mubr.f32.gmra.mrb[0].mxu0 %v7946
    %v8329 = vpop.f32.mrb[0].mxu0
    %v8330 = vadd.f32 0.0, %v8329
    %v8331 = vpop.f32.mrb[0].mxu0
    %8332 = vdwg.mxu0
    %8333 = vmatprep.subr.mxu0 0.0
    %8334 = vmatpush1.msra.mxu0 %v7815
    %8335 = vmatprep.subr.mxu0 0.0
    %8336 = vmatpush1.msra.mxu0 %v7816
    %8337 = vmatprep.subr.mxu0 0.0
    %8338 = vmatpush1.msra.mxu0 0.0
    %8339 = vmatprep.subr.mxu0 0.0
    %8340 = vmatpush1.msra.mxu0 0.0
    %8341 = vmatprep.subr.mxu0 0.0
    %8342 = vmatpush1.msra.mxu0 0.0
    %8343 = vmatprep.subr.mxu0 0.0
    %8344 = vmatpush1.msra.mxu0 0.0
    %8345 = vmatprep.subr.mxu0 0.0
    %8346 = vmatpush1.msra.mxu0 0.0
    %8347 = vmatprep.subr.mxu0 0.0
    %8348 = vmatpush1.msra.mxu0 0.0
    %8349 = vmatprep.subr.mxu0 0.0
    %8350 = vmatpush1.msra.mxu0 0.0
    %8351 = vmatprep.subr.mxu0 0.0
    %8352 = vmatpush1.msra.mxu0 0.0
    %8353 = vmatprep.subr.mxu0 0.0
    %8354 = vmatpush1.msra.mxu0 0.0
    %8355 = vmatprep.subr.mxu0 0.0
    %8356 = vmatpush1.msra.mxu0 0.0
    %8357 = vmatprep.subr.mxu0 0.0
    %8358 = vmatpush1.msra.mxu0 0.0
    %8359 = vmatprep.subr.mxu0 0.0
    %8360 = vmatpush1.msra.mxu0 0.0
    %8361 = vmatprep.subr.mxu0 0.0
    %8362 = vmatpush1.msra.mxu0 0.0
    %8363 = vmatprep.subr.mxu0 0.0
    %8364 = vmatpush1.msra.mxu0 0.0
    %8365 = vmatprep.subr.mxu0 0.0
    %8366 = vmatpush1.msra.mxu0 0.0
    %8367 = vmatprep.subr.mxu0 0.0
    %8368 = vmatpush1.msra.mxu0 0.0
    %8369 = vmatprep.subr.mxu0 0.0
    %8370 = vmatpush1.msra.mxu0 0.0
    %8371 = vmatprep.subr.mxu0 0.0
    %8372 = vmatpush1.msra.mxu0 0.0
    %8373 = vmatprep.subr.mxu0 0.0
    %8374 = vmatpush1.msra.mxu0 0.0
    %8375 = vmatprep.subr.mxu0 0.0
    %8376 = vmatpush1.msra.mxu0 0.0
    %8377 = vmatprep.subr.mxu0 0.0
    %8378 = vmatpush1.msra.mxu0 0.0
    %8379 = vmatprep.subr.mxu0 0.0
    %8380 = vmatpush1.msra.mxu0 0.0
    %8381 = vmatprep.subr.mxu0 0.0
    %8382 = vmatpush1.msra.mxu0 0.0
    %8383 = vmatprep.subr.mxu0 0.0
    %8384 = vmatpush1.msra.mxu0 0.0
    %8385 = vmatprep.subr.mxu0 0.0
    %8386 = vmatpush1.msra.mxu0 0.0
    %8387 = vmatprep.subr.mxu0 0.0
    %8388 = vmatpush1.msra.mxu0 0.0
    %8389 = vmatprep.subr.mxu0 0.0
    %8390 = vmatpush1.msra.mxu0 0.0
    %8391 = vmatprep.subr.mxu0 0.0
    %8392 = vmatpush1.msra.mxu0 0.0
    %8393 = vmatprep.subr.mxu0 0.0
    %8394 = vmatpush1.msra.mxu0 0.0
    %8395 = vmatprep.subr.mxu0 0.0
    %8396 = vmatpush1.msra.mxu0 0.0
    %8397 = vmatprep.mubr.f32.mxu0 0.0
    %8398 = vmatmul.mubr.f32.gmra.mrb[0].mxu0 %v4851
    %v8399 = vpop.f32.mrb[0].mxu0
    %v8400 = vadd.f32 %v8015, %v8399
    %v8401 = vpop.f32.mrb[0].mxu0
    %8402 = vmatprep.mubr.f32.mxu0 0.0
    %8403 = vmatmul.mubr.f32.gmra.mrb[0].mxu0 %v4854
    %v8404 = vpop.f32.mrb[0].mxu0
    %v8405 = vadd.f32 %v8020, %v8404
    %v8406 = vpop.f32.mrb[0].mxu0
    %8407 = vmatprep.mubr.f32.mxu0 0.0
    %8408 = vmatmul.mubr.f32.gmra.mrb[0].mxu0 %v4857
    %v8409 = vpop.f32.mrb[0].mxu0
    %v8410 = vadd.f32 %v8025, %v8409
    %v8411 = vpop.f32.mrb[0].mxu0
    %8412 = vmatprep.mubr.f32.mxu0 0.0
    %8413 = vmatmul.mubr.f32.gmra.mrb[0].mxu0 %v4860
    %v8414 = vpop.f32.mrb[0].mxu0
    %v8415 = vadd.f32 %v8030, %v8414
    %v8416 = vpop.f32.mrb[0].mxu0
    %8417 = vmatprep.mubr.f32.mxu0 0.0
    %8418 = vmatmul.mubr.f32.gmra.mrb[0].mxu0 %v4863
    %v8419 = vpop.f32.mrb[0].mxu0
    %v8420 = vadd.f32 %v8035, %v8419
    %v8421 = vpop.f32.mrb[0].mxu0
    %8422 = vmatprep.mubr.f32.mxu0 0.0
    %8423 = vmatmul.mubr.f32.gmra.mrb[0].mxu0 %v4866
    %v8424 = vpop.f32.mrb[0].mxu0
    %v8425 = vadd.f32 %v8040, %v8424
    %v8426 = vpop.f32.mrb[0].mxu0
    %8427 = vmatprep.mubr.f32.mxu0 0.0
    %8428 = vmatmul.mubr.f32.gmra.mrb[0].mxu0 %v4869
    %v8429 = vpop.f32.mrb[0].mxu0
    %v8430 = vadd.f32 %v8045, %v8429
    %v8431 = vpop.f32.mrb[0].mxu0
    %8432 = vmatprep.mubr.f32.mxu0 0.0
    %8433 = vmatmul.mubr.f32.gmra.mrb[0].mxu0 %v4872
    %v8434 = vpop.f32.mrb[0].mxu0
    %v8435 = vadd.f32 %v8050, %v8434
    %v8436 = vpop.f32.mrb[0].mxu0
    %8437 = vmatprep.mubr.f32.mxu0 0.0
    %8438 = vmatmul.mubr.f32.gmra.mrb[0].mxu0 %v4875
    %v8439 = vpop.f32.mrb[0].mxu0
    %v8440 = vadd.f32 %v8055, %v8439
    %v8441 = vpop.f32.mrb[0].mxu0
    %8442 = vmatprep.mubr.f32.mxu0 0.0
    %8443 = vmatmul.mubr.f32.gmra.mrb[0].mxu0 %v4878
    %v8444 = vpop.f32.mrb[0].mxu0
    %v8445 = vadd.f32 %v8060, %v8444
    %v8446 = vpop.f32.mrb[0].mxu0
    %8447 = vmatprep.mubr.f32.mxu0 0.0
    %8448 = vmatmul.mubr.f32.gmra.mrb[0].mxu0 %v4881
    %v8449 = vpop.f32.mrb[0].mxu0
    %v8450 = vadd.f32 %v8065, %v8449
    %v8451 = vpop.f32.mrb[0].mxu0
    %8452 = vmatprep.mubr.f32.mxu0 0.0
    %8453 = vmatmul.mubr.f32.gmra.mrb[0].mxu0 %v4884
    %v8454 = vpop.f32.mrb[0].mxu0
    %v8455 = vadd.f32 %v8070, %v8454
    %v8456 = vpop.f32.mrb[0].mxu0
    %8457 = vmatprep.mubr.f32.mxu0 0.0
    %8458 = vmatmul.mubr.f32.gmra.mrb[0].mxu0 %v4887
    %v8459 = vpop.f32.mrb[0].mxu0
    %v8460 = vadd.f32 %v8075, %v8459
    %v8461 = vpop.f32.mrb[0].mxu0
    %8462 = vmatprep.mubr.f32.mxu0 0.0
    %8463 = vmatmul.mubr.f32.gmra.mrb[0].mxu0 %v4890
    %v8464 = vpop.f32.mrb[0].mxu0
    %v8465 = vadd.f32 %v8080, %v8464
    %v8466 = vpop.f32.mrb[0].mxu0
    %8467 = vmatprep.mubr.f32.mxu0 0.0
    %8468 = vmatmul.mubr.f32.gmra.mrb[0].mxu0 %v4893
    %v8469 = vpop.f32.mrb[0].mxu0
    %v8470 = vadd.f32 %v8085, %v8469
    %v8471 = vpop.f32.mrb[0].mxu0
    %8472 = vmatprep.mubr.f32.mxu0 0.0
    %8473 = vmatmul.mubr.f32.gmra.mrb[0].mxu0 %v4896
    %v8474 = vpop.f32.mrb[0].mxu0
    %v8475 = vadd.f32 %v8090, %v8474
    %v8476 = vpop.f32.mrb[0].mxu0
    %8477 = vmatprep.mubr.f32.mxu0 0.0
    %8478 = vmatmul.mubr.f32.gmra.mrb[0].mxu0 %v4899
    %v8479 = vpop.f32.mrb[0].mxu0
    %v8480 = vadd.f32 %v8095, %v8479
    %v8481 = vpop.f32.mrb[0].mxu0
    %8482 = vmatprep.mubr.f32.mxu0 0.0
    %8483 = vmatmul.mubr.f32.gmra.mrb[0].mxu0 %v4902
    %v8484 = vpop.f32.mrb[0].mxu0
    %v8485 = vadd.f32 %v8100, %v8484
    %v8486 = vpop.f32.mrb[0].mxu0
    %8487 = vmatprep.mubr.f32.mxu0 0.0
    %8488 = vmatmul.mubr.f32.gmra.mrb[0].mxu0 %v4905
    %v8489 = vpop.f32.mrb[0].mxu0
    %v8490 = vadd.f32 %v8105, %v8489
    %v8491 = vpop.f32.mrb[0].mxu0
    %8492 = vmatprep.mubr.f32.mxu0 0.0
    %8493 = vmatmul.mubr.f32.gmra.mrb[0].mxu0 %v4908
    %v8494 = vpop.f32.mrb[0].mxu0
    %v8495 = vadd.f32 %v8110, %v8494
    %v8496 = vpop.f32.mrb[0].mxu0
    %8497 = vmatprep.mubr.f32.mxu0 0.0
    %8498 = vmatmul.mubr.f32.gmra.mrb[0].mxu0 %v4911
    %v8499 = vpop.f32.mrb[0].mxu0
    %v8500 = vadd.f32 %v8115, %v8499
    %v8501 = vpop.f32.mrb[0].mxu0
    %8502 = vmatprep.mubr.f32.mxu0 0.0
    %8503 = vmatmul.mubr.f32.gmra.mrb[0].mxu0 %v4914
    %v8504 = vpop.f32.mrb[0].mxu0
    %v8505 = vadd.f32 %v8120, %v8504
    %v8506 = vpop.f32.mrb[0].mxu0
    %8507 = vmatprep.mubr.f32.mxu0 0.0
    %8508 = vmatmul.mubr.f32.gmra.mrb[0].mxu0 %v4917
    %v8509 = vpop.f32.mrb[0].mxu0
    %v8510 = vadd.f32 %v8125, %v8509
    %v8511 = vpop.f32.mrb[0].mxu0
    %8512 = vmatprep.mubr.f32.mxu0 0.0
    %8513 = vmatmul.mubr.f32.gmra.mrb[0].mxu0 %v4920
    %v8514 = vpop.f32.mrb[0].mxu0
    %v8515 = vadd.f32 %v8130, %v8514
    %v8516 = vpop.f32.mrb[0].mxu0
    %8517 = vmatprep.mubr.f32.mxu0 0.0
    %8518 = vmatmul.mubr.f32.gmra.mrb[0].mxu0 %v4923
    %v8519 = vpop.f32.mrb[0].mxu0
    %v8520 = vadd.f32 %v8135, %v8519
    %v8521 = vpop.f32.mrb[0].mxu0
    %8522 = vmatprep.mubr.f32.mxu0 0.0
    %8523 = vmatmul.mubr.f32.gmra.mrb[0].mxu0 %v4926
    %v8524 = vpop.f32.mrb[0].mxu0
    %v8525 = vadd.f32 %v8140, %v8524
    %v8526 = vpop.f32.mrb[0].mxu0
    %8527 = vmatprep.mubr.f32.mxu0 0.0
    %8528 = vmatmul.mubr.f32.gmra.mrb[0].mxu0 %v4929
    %v8529 = vpop.f32.mrb[0].mxu0
    %v8530 = vadd.f32 %v8145, %v8529
    %v8531 = vpop.f32.mrb[0].mxu0
    %8532 = vmatprep.mubr.f32.mxu0 0.0
    %8533 = vmatmul.mubr.f32.gmra.mrb[0].mxu0 %v4932
    %v8534 = vpop.f32.mrb[0].mxu0
    %v8535 = vadd.f32 %v8150, %v8534
    %v8536 = vpop.f32.mrb[0].mxu0
    %8537 = vmatprep.mubr.f32.mxu0 0.0
    %8538 = vmatmul.mubr.f32.gmra.mrb[0].mxu0 %v4935
    %v8539 = vpop.f32.mrb[0].mxu0
    %v8540 = vadd.f32 %v8155, %v8539
    %v8541 = vpop.f32.mrb[0].mxu0
    %8542 = vmatprep.mubr.f32.mxu0 0.0
    %8543 = vmatmul.mubr.f32.gmra.mrb[0].mxu0 %v4938
    %v8544 = vpop.f32.mrb[0].mxu0
    %v8545 = vadd.f32 %v8160, %v8544
    %v8546 = vpop.f32.mrb[0].mxu0
    %8547 = vmatprep.mubr.f32.mxu0 0.0
    %8548 = vmatmul.mubr.f32.gmra.mrb[0].mxu0 %v4941
    %v8549 = vpop.f32.mrb[0].mxu0
    %v8550 = vadd.f32 %v8165, %v8549
    %v8551 = vpop.f32.mrb[0].mxu0
    %8552 = vmatprep.mubr.f32.mxu0 0.0
    %8553 = vmatmul.mubr.f32.gmra.mrb[0].mxu0 %v4944
    %v8554 = vpop.f32.mrb[0].mxu0
    %v8555 = vadd.f32 %v8170, %v8554
    %v8556 = vpop.f32.mrb[0].mxu0
    %8557 = vmatprep.mubr.f32.mxu0 0.0
    %8558 = vmatmul.mubr.f32.gmra.mrb[0].mxu0 %v4947
    %v8559 = vpop.f32.mrb[0].mxu0
    %v8560 = vadd.f32 %v8175, %v8559
    %v8561 = vpop.f32.mrb[0].mxu0
    %8562 = vmatprep.mubr.f32.mxu0 0.0
    %8563 = vmatmul.mubr.f32.gmra.mrb[0].mxu0 %v4950
    %v8564 = vpop.f32.mrb[0].mxu0
    %v8565 = vadd.f32 %v8180, %v8564
    %v8566 = vpop.f32.mrb[0].mxu0
    %8567 = vmatprep.mubr.f32.mxu0 0.0
    %8568 = vmatmul.mubr.f32.gmra.mrb[0].mxu0 %v4953
    %v8569 = vpop.f32.mrb[0].mxu0
    %v8570 = vadd.f32 %v8185, %v8569
    %v8571 = vpop.f32.mrb[0].mxu0
    %8572 = vmatprep.mubr.f32.mxu0 0.0
    %8573 = vmatmul.mubr.f32.gmra.mrb[0].mxu0 %v4956
    %v8574 = vpop.f32.mrb[0].mxu0
    %v8575 = vadd.f32 %v8190, %v8574
    %v8576 = vpop.f32.mrb[0].mxu0
    %8577 = vmatprep.mubr.f32.mxu0 0.0
    %8578 = vmatmul.mubr.f32.gmra.mrb[0].mxu0 %v4959
    %v8579 = vpop.f32.mrb[0].mxu0
    %v8580 = vadd.f32 %v8195, %v8579
    %v8581 = vpop.f32.mrb[0].mxu0
    %8582 = vmatprep.mubr.f32.mxu0 0.0
    %8583 = vmatmul.mubr.f32.gmra.mrb[0].mxu0 %v4962
    %v8584 = vpop.f32.mrb[0].mxu0
    %v8585 = vadd.f32 %v8200, %v8584
    %v8586 = vpop.f32.mrb[0].mxu0
    %8587 = vmatprep.mubr.f32.mxu0 0.0
    %8588 = vmatmul.mubr.f32.gmra.mrb[0].mxu0 %v4965
    %v8589 = vpop.f32.mrb[0].mxu0
    %v8590 = vadd.f32 %v8205, %v8589
    %v8591 = vpop.f32.mrb[0].mxu0
    %8592 = vmatprep.mubr.f32.mxu0 0.0
    %8593 = vmatmul.mubr.f32.gmra.mrb[0].mxu0 %v4968
    %v8594 = vpop.f32.mrb[0].mxu0
    %v8595 = vadd.f32 %v8210, %v8594
    %v8596 = vpop.f32.mrb[0].mxu0
    %8597 = vmatprep.mubr.f32.mxu0 0.0
    %8598 = vmatmul.mubr.f32.gmra.mrb[0].mxu0 %v4971
    %v8599 = vpop.f32.mrb[0].mxu0
    %v8600 = vadd.f32 %v8215, %v8599
    %v8601 = vpop.f32.mrb[0].mxu0
    %8602 = vmatprep.mubr.f32.mxu0 0.0
    %8603 = vmatmul.mubr.f32.gmra.mrb[0].mxu0 %v4974
    %v8604 = vpop.f32.mrb[0].mxu0
    %v8605 = vadd.f32 %v8220, %v8604
    %v8606 = vpop.f32.mrb[0].mxu0
    %8607 = vmatprep.mubr.f32.mxu0 0.0
    %8608 = vmatmul.mubr.f32.gmra.mrb[0].mxu0 %v4977
    %v8609 = vpop.f32.mrb[0].mxu0
    %v8610 = vadd.f32 %v8225, %v8609
    %v8611 = vpop.f32.mrb[0].mxu0
    %8612 = vmatprep.mubr.f32.mxu0 0.0
    %8613 = vmatmul.mubr.f32.gmra.mrb[0].mxu0 %v4980
    %v8614 = vpop.f32.mrb[0].mxu0
    %v8615 = vadd.f32 %v8230, %v8614
    %v8616 = vpop.f32.mrb[0].mxu0
    %8617 = vmatprep.mubr.f32.mxu0 0.0
    %8618 = vmatmul.mubr.f32.gmra.mrb[0].mxu0 %v4983
    %v8619 = vpop.f32.mrb[0].mxu0
    %v8620 = vadd.f32 %v8235, %v8619
    %v8621 = vpop.f32.mrb[0].mxu0
    %8622 = vmatprep.mubr.f32.mxu0 0.0
    %8623 = vmatmul.mubr.f32.gmra.mrb[0].mxu0 %v4986
    %v8624 = vpop.f32.mrb[0].mxu0
    %v8625 = vadd.f32 %v8240, %v8624
    %v8626 = vpop.f32.mrb[0].mxu0
    %8627 = vmatprep.mubr.f32.mxu0 0.0
    %8628 = vmatmul.mubr.f32.gmra.mrb[0].mxu0 %v4989
    %v8629 = vpop.f32.mrb[0].mxu0
    %v8630 = vadd.f32 %v8245, %v8629
    %v8631 = vpop.f32.mrb[0].mxu0
    %8632 = vmatprep.mubr.f32.mxu0 0.0
    %8633 = vmatmul.mubr.f32.gmra.mrb[0].mxu0 %v4992
    %v8634 = vpop.f32.mrb[0].mxu0
    %v8635 = vadd.f32 %v8250, %v8634
    %v8636 = vpop.f32.mrb[0].mxu0
    %8637 = vmatprep.mubr.f32.mxu0 0.0
    %8638 = vmatmul.mubr.f32.gmra.mrb[0].mxu0 %v4995
    %v8639 = vpop.f32.mrb[0].mxu0
    %v8640 = vadd.f32 %v8255, %v8639
    %v8641 = vpop.f32.mrb[0].mxu0
    %8642 = vmatprep.mubr.f32.mxu0 0.0
    %8643 = vmatmul.mubr.f32.gmra.mrb[0].mxu0 %v4998
    %v8644 = vpop.f32.mrb[0].mxu0
    %v8645 = vadd.f32 %v8260, %v8644
    %v8646 = vpop.f32.mrb[0].mxu0
    %8647 = vmatprep.mubr.f32.mxu0 0.0
    %8648 = vmatmul.mubr.f32.gmra.mrb[0].mxu0 %v5001
    %v8649 = vpop.f32.mrb[0].mxu0
    %v8650 = vadd.f32 %v8265, %v8649
    %v8651 = vpop.f32.mrb[0].mxu0
    %8652 = vmatprep.mubr.f32.mxu0 0.0
    %8653 = vmatmul.mubr.f32.gmra.mrb[0].mxu0 %v5004
    %v8654 = vpop.f32.mrb[0].mxu0
    %v8655 = vadd.f32 %v8270, %v8654
    %v8656 = vpop.f32.mrb[0].mxu0
    %8657 = vmatprep.mubr.f32.mxu0 0.0
    %8658 = vmatmul.mubr.f32.gmra.mrb[0].mxu0 %v5007
    %v8659 = vpop.f32.mrb[0].mxu0
    %v8660 = vadd.f32 %v8275, %v8659
    %v8661 = vpop.f32.mrb[0].mxu0
    %8662 = vmatprep.mubr.f32.mxu0 0.0
    %8663 = vmatmul.mubr.f32.gmra.mrb[0].mxu0 %v5010
    %v8664 = vpop.f32.mrb[0].mxu0
    %v8665 = vadd.f32 %v8280, %v8664
    %v8666 = vpop.f32.mrb[0].mxu0
    %8667 = vmatprep.mubr.f32.mxu0 0.0
    %8668 = vmatmul.mubr.f32.gmra.mrb[0].mxu0 %v5013
    %v8669 = vpop.f32.mrb[0].mxu0
    %v8670 = vadd.f32 %v8285, %v8669
    %v8671 = vpop.f32.mrb[0].mxu0
    %8672 = vmatprep.mubr.f32.mxu0 0.0
    %8673 = vmatmul.mubr.f32.gmra.mrb[0].mxu0 %v5016
    %v8674 = vpop.f32.mrb[0].mxu0
    %v8675 = vadd.f32 %v8290, %v8674
    %v8676 = vpop.f32.mrb[0].mxu0
    %8677 = vmatprep.mubr.f32.mxu0 0.0
    %8678 = vmatmul.mubr.f32.gmra.mrb[0].mxu0 %v5019
    %v8679 = vpop.f32.mrb[0].mxu0
    %v8680 = vadd.f32 %v8295, %v8679
    %v8681 = vpop.f32.mrb[0].mxu0
    %8682 = vmatprep.mubr.f32.mxu0 0.0
    %8683 = vmatmul.mubr.f32.gmra.mrb[0].mxu0 %v5022
    %v8684 = vpop.f32.mrb[0].mxu0
    %v8685 = vadd.f32 %v8300, %v8684
    %v8686 = vpop.f32.mrb[0].mxu0
    %8687 = vmatprep.mubr.f32.mxu0 0.0
    %8688 = vmatmul.mubr.f32.gmra.mrb[0].mxu0 %v5025
    %v8689 = vpop.f32.mrb[0].mxu0
    %v8690 = vadd.f32 %v8305, %v8689
    %v8691 = vpop.f32.mrb[0].mxu0
    %8692 = vmatprep.mubr.f32.mxu0 0.0
    %8693 = vmatmul.mubr.f32.gmra.mrb[0].mxu0 %v5028
    %v8694 = vpop.f32.mrb[0].mxu0
    %v8695 = vadd.f32 %v8310, %v8694
    %v8696 = vpop.f32.mrb[0].mxu0
    %8697 = vmatprep.mubr.f32.mxu0 0.0
    %8698 = vmatmul.mubr.f32.gmra.mrb[0].mxu0 %v5031
    %v8699 = vpop.f32.mrb[0].mxu0
    %v8700 = vadd.f32 %v8315, %v8699
    %v8701 = vpop.f32.mrb[0].mxu0
    %8702 = vmatprep.mubr.f32.mxu0 0.0
    %8703 = vmatmul.mubr.f32.gmra.mrb[0].mxu0 %v5034
    %v8704 = vpop.f32.mrb[0].mxu0
    %v8705 = vadd.f32 %v8320, %v8704
    %v8706 = vpop.f32.mrb[0].mxu0
    %8707 = vmatprep.mubr.f32.mxu0 0.0
    %8708 = vmatmul.mubr.f32.gmra.mrb[0].mxu0 %v5037
    %v8709 = vpop.f32.mrb[0].mxu0
    %v8710 = vadd.f32 %v8325, %v8709
    %v8711 = vpop.f32.mrb[0].mxu0
    %8712 = vmatprep.mubr.f32.mxu0 0.0
    %8713 = vmatmul.mubr.f32.gmra.mrb[0].mxu0 %v5040
    %v8714 = vpop.f32.mrb[0].mxu0
    %v8715 = vadd.f32 %v8330, %v8714
    %v8716 = vpop.f32.mrb[0].mxu0
    %8717 = vdwg.mxu0
    %v8718 = vlaneseq
    %v8719 = vshrl.u32 %v8718, 7
    %v8720 = vsub.s32 0, %v8719
    %v8721 = vrot.slane %v7819, %v8720
    %v8722 = vadd.f32 %v8400, %v8721
    %v8723 = vadd.f32 %v8405, %v8721
    %v8724 = vadd.f32 %v8410, %v8721
    %v8725 = vadd.f32 %v8415, %v8721
    %v8726 = vadd.f32 %v8420, %v8721
    %v8727 = vadd.f32 %v8425, %v8721
    %v8728 = vadd.f32 %v8430, %v8721
    %v8729 = vadd.f32 %v8435, %v8721
    %v8730 = vadd.f32 %v8440, %v8721
    %v8731 = vadd.f32 %v8445, %v8721
    %v8732 = vadd.f32 %v8450, %v8721
    %v8733 = vadd.f32 %v8455, %v8721
    %v8734 = vadd.f32 %v8460, %v8721
    %v8735 = vadd.f32 %v8465, %v8721
    %v8736 = vadd.f32 %v8470, %v8721
    %v8737 = vadd.f32 %v8475, %v8721
    %v8738 = vadd.f32 %v8480, %v8721
    %v8739 = vadd.f32 %v8485, %v8721
    %v8740 = vadd.f32 %v8490, %v8721
    %v8741 = vadd.f32 %v8495, %v8721
    %v8742 = vadd.f32 %v8500, %v8721
    %v8743 = vadd.f32 %v8505, %v8721
    %v8744 = vadd.f32 %v8510, %v8721
    %v8745 = vadd.f32 %v8515, %v8721
    %v8746 = vadd.f32 %v8520, %v8721
    %v8747 = vadd.f32 %v8525, %v8721
    %v8748 = vadd.f32 %v8530, %v8721
    %v8749 = vadd.f32 %v8535, %v8721
    %v8750 = vadd.f32 %v8540, %v8721
    %v8751 = vadd.f32 %v8545, %v8721
    %v8752 = vadd.f32 %v8550, %v8721
    %v8753 = vadd.f32 %v8555, %v8721
    %v8754 = vadd.f32 %v8560, %v8721
    %v8755 = vadd.f32 %v8565, %v8721
    %v8756 = vadd.f32 %v8570, %v8721
    %v8757 = vadd.f32 %v8575, %v8721
    %v8758 = vadd.f32 %v8580, %v8721
    %v8759 = vadd.f32 %v8585, %v8721
    %v8760 = vadd.f32 %v8590, %v8721
    %v8761 = vadd.f32 %v8595, %v8721
    %v8762 = vadd.f32 %v8600, %v8721
    %v8763 = vadd.f32 %v8605, %v8721
    %v8764 = vadd.f32 %v8610, %v8721
    %v8765 = vadd.f32 %v8615, %v8721
    %v8766 = vadd.f32 %v8620, %v8721
    %v8767 = vadd.f32 %v8625, %v8721
    %v8768 = vadd.f32 %v8630, %v8721
    %v8769 = vadd.f32 %v8635, %v8721
    %v8770 = vadd.f32 %v8640, %v8721
    %v8771 = vadd.f32 %v8645, %v8721
    %v8772 = vadd.f32 %v8650, %v8721
    %v8773 = vadd.f32 %v8655, %v8721
    %v8774 = vadd.f32 %v8660, %v8721
    %v8775 = vadd.f32 %v8665, %v8721
    %v8776 = vadd.f32 %v8670, %v8721
    %v8777 = vadd.f32 %v8675, %v8721
    %v8778 = vadd.f32 %v8680, %v8721
    %v8779 = vadd.f32 %v8685, %v8721
    %v8780 = vadd.f32 %v8690, %v8721
    %v8781 = vadd.f32 %v8695, %v8721
    %v8782 = vadd.f32 %v8700, %v8721
    %v8783 = vadd.f32 %v8705, %v8721
    %v8784 = vadd.f32 %v8710, %v8721
    %v8785 = vadd.f32 %v8715, %v8721
    %8786 = vmatprep.subr.mxu0 0.0
    %8787 = vmatpush1.msra.mxu0 %v8722
    %8788 = vmatprep.subr.mxu0 0.0
    %8789 = vmatpush1.msra.mxu0 %v8723
    %8790 = vmatprep.subr.mxu0 0.0
    %8791 = vmatpush1.msra.mxu0 %v8724
    %8792 = vmatprep.subr.mxu0 0.0
    %8793 = vmatpush1.msra.mxu0 %v8725
    %8794 = vmatprep.subr.mxu0 0.0
    %8795 = vmatpush1.msra.mxu0 %v8726
    %8796 = vmatprep.subr.mxu0 0.0
    %8797 = vmatpush1.msra.mxu0 %v8727
    %8798 = vmatprep.subr.mxu0 0.0
    %8799 = vmatpush1.msra.mxu0 %v8728
    %8800 = vmatprep.subr.mxu0 0.0
    %8801 = vmatpush1.msra.mxu0 %v8729
    %8802 = vmatprep.subr.mxu0 0.0
    %8803 = vmatpush1.msra.mxu0 %v8730
    %8804 = vmatprep.subr.mxu0 0.0
    %8805 = vmatpush1.msra.mxu0 %v8731
    %8806 = vmatprep.subr.mxu0 0.0
    %8807 = vmatpush1.msra.mxu0 %v8732
    %8808 = vmatprep.subr.mxu0 0.0
    %8809 = vmatpush1.msra.mxu0 %v8733
    %8810 = vmatprep.subr.mxu0 0.0
    %8811 = vmatpush1.msra.mxu0 %v8734
    %8812 = vmatprep.subr.mxu0 0.0
    %8813 = vmatpush1.msra.mxu0 %v8735
    %8814 = vmatprep.subr.mxu0 0.0
    %8815 = vmatpush1.msra.mxu0 %v8736
    %8816 = vmatprep.subr.mxu0 0.0
    %8817 = vmatpush1.msra.mxu0 %v8737
    %8818 = vmatprep.subr.mxu0 0.0
    %8819 = vmatpush1.msra.mxu0 %v8738
    %8820 = vmatprep.subr.mxu0 0.0
    %8821 = vmatpush1.msra.mxu0 %v8739
    %8822 = vmatprep.subr.mxu0 0.0
    %8823 = vmatpush1.msra.mxu0 %v8740
    %8824 = vmatprep.subr.mxu0 0.0
    %8825 = vmatpush1.msra.mxu0 %v8741
    %8826 = vmatprep.subr.mxu0 0.0
    %8827 = vmatpush1.msra.mxu0 %v8742
    %8828 = vmatprep.subr.mxu0 0.0
    %8829 = vmatpush1.msra.mxu0 %v8743
    %8830 = vmatprep.subr.mxu0 0.0
    %8831 = vmatpush1.msra.mxu0 %v8744
    %8832 = vmatprep.subr.mxu0 0.0
    %8833 = vmatpush1.msra.mxu0 %v8745
    %8834 = vmatprep.subr.mxu0 0.0
    %8835 = vmatpush1.msra.mxu0 %v8746
    %8836 = vmatprep.subr.mxu0 0.0
    %8837 = vmatpush1.msra.mxu0 %v8747
    %8838 = vmatprep.subr.mxu0 0.0
    %8839 = vmatpush1.msra.mxu0 %v8748
    %8840 = vmatprep.subr.mxu0 0.0
    %8841 = vmatpush1.msra.mxu0 %v8749
    %8842 = vmatprep.subr.mxu0 0.0
    %8843 = vmatpush1.msra.mxu0 %v8750
    %8844 = vmatprep.subr.mxu0 0.0
    %8845 = vmatpush1.msra.mxu0 %v8751
    %8846 = vmatprep.subr.mxu0 0.0
    %8847 = vmatpush1.msra.mxu0 %v8752
    %8848 = vmatprep.subr.mxu0 0.0
    %8849 = vmatpush1.msra.mxu0 %v8753
    %8850 = vmatprep.mubr.f32.mxu0 1.0
    %8851 = vmatmul.mubr.f32.gmra.mrb[0].mxu0 1.0
    %v8852 = vpop.f32.mrb[0].mxu0
    %v8853 = vadd.f32 0.0, %v8852
    %v8854 = vpop.f32.mrb[0].mxu0
    %8855 = vdwg.mxu0
    %8856 = vmatprep.subr.mxu0 0.0
    %8857 = vmatpush1.msra.mxu0 %v8754
    %8858 = vmatprep.subr.mxu0 0.0
    %8859 = vmatpush1.msra.mxu0 %v8755
    %8860 = vmatprep.subr.mxu0 0.0
    %8861 = vmatpush1.msra.mxu0 %v8756
    %8862 = vmatprep.subr.mxu0 0.0
    %8863 = vmatpush1.msra.mxu0 %v8757
    %8864 = vmatprep.subr.mxu0 0.0
    %8865 = vmatpush1.msra.mxu0 %v8758
    %8866 = vmatprep.subr.mxu0 0.0
    %8867 = vmatpush1.msra.mxu0 %v8759
    %8868 = vmatprep.subr.mxu0 0.0
    %8869 = vmatpush1.msra.mxu0 %v8760
    %8870 = vmatprep.subr.mxu0 0.0
    %8871 = vmatpush1.msra.mxu0 %v8761
    %8872 = vmatprep.subr.mxu0 0.0
    %8873 = vmatpush1.msra.mxu0 %v8762
    %8874 = vmatprep.subr.mxu0 0.0
    %8875 = vmatpush1.msra.mxu0 %v8763
    %8876 = vmatprep.subr.mxu0 0.0
    %8877 = vmatpush1.msra.mxu0 %v8764
    %8878 = vmatprep.subr.mxu0 0.0
    %8879 = vmatpush1.msra.mxu0 %v8765
    %8880 = vmatprep.subr.mxu0 0.0
    %8881 = vmatpush1.msra.mxu0 %v8766
    %8882 = vmatprep.subr.mxu0 0.0
    %8883 = vmatpush1.msra.mxu0 %v8767
    %8884 = vmatprep.subr.mxu0 0.0
    %8885 = vmatpush1.msra.mxu0 %v8768
    %8886 = vmatprep.subr.mxu0 0.0
    %8887 = vmatpush1.msra.mxu0 %v8769
    %8888 = vmatprep.subr.mxu0 0.0
    %8889 = vmatpush1.msra.mxu0 %v8770
    %8890 = vmatprep.subr.mxu0 0.0
    %8891 = vmatpush1.msra.mxu0 %v8771
    %8892 = vmatprep.subr.mxu0 0.0
    %8893 = vmatpush1.msra.mxu0 %v8772
    %8894 = vmatprep.subr.mxu0 0.0
    %8895 = vmatpush1.msra.mxu0 %v8773
    %8896 = vmatprep.subr.mxu0 0.0
    %8897 = vmatpush1.msra.mxu0 %v8774
    %8898 = vmatprep.subr.mxu0 0.0
    %8899 = vmatpush1.msra.mxu0 %v8775
    %8900 = vmatprep.subr.mxu0 0.0
    %8901 = vmatpush1.msra.mxu0 %v8776
    %8902 = vmatprep.subr.mxu0 0.0
    %8903 = vmatpush1.msra.mxu0 %v8777
    %8904 = vmatprep.subr.mxu0 0.0
    %8905 = vmatpush1.msra.mxu0 %v8778
    %8906 = vmatprep.subr.mxu0 0.0
    %8907 = vmatpush1.msra.mxu0 %v8779
    %8908 = vmatprep.subr.mxu0 0.0
    %8909 = vmatpush1.msra.mxu0 %v8780
    %8910 = vmatprep.subr.mxu0 0.0
    %8911 = vmatpush1.msra.mxu0 %v8781
    %8912 = vmatprep.subr.mxu0 0.0
    %8913 = vmatpush1.msra.mxu0 %v8782
    %8914 = vmatprep.subr.mxu0 0.0
    %8915 = vmatpush1.msra.mxu0 %v8783
    %8916 = vmatprep.subr.mxu0 0.0
    %8917 = vmatpush1.msra.mxu0 %v8784
    %8918 = vmatprep.subr.mxu0 0.0
    %8919 = vmatpush1.msra.mxu0 %v8785
    %8920 = vmatprep.mubr.f32.mxu0 1.0
    %8921 = vmatmul.mubr.f32.gmra.mrb[0].mxu0 1.0
    %v8922 = vpop.f32.mrb[0].mxu0
    %v8923 = vadd.f32 %v8853, %v8922
    %v8924 = vpop.f32.mrb[0].mxu0
    %8925 = vdwg.mxu0
    %v8926 = vmul.f32 %v8923, 0.001953125
    %v8927 = vlaneseq
    %v8928 = vshrl.u32 %v8927, 7
    %v8929 = vsub.s32 0, %v8928
    %v8930 = vrot.slane %v8926, %v8929
    %v8931 = vsub.f32 %v8722, %v8930
    %v8932 = vsub.f32 %v8723, %v8930
    %v8933 = vsub.f32 %v8724, %v8930
    %v8934 = vsub.f32 %v8725, %v8930
    %v8935 = vsub.f32 %v8726, %v8930
    %v8936 = vsub.f32 %v8727, %v8930
    %v8937 = vsub.f32 %v8728, %v8930
    %v8938 = vsub.f32 %v8729, %v8930
    %v8939 = vsub.f32 %v8730, %v8930
    %v8940 = vsub.f32 %v8731, %v8930
    %v8941 = vsub.f32 %v8732, %v8930
    %v8942 = vsub.f32 %v8733, %v8930
    %v8943 = vsub.f32 %v8734, %v8930
    %v8944 = vsub.f32 %v8735, %v8930
    %v8945 = vsub.f32 %v8736, %v8930
    %v8946 = vsub.f32 %v8737, %v8930
    %v8947 = vsub.f32 %v8738, %v8930
    %v8948 = vsub.f32 %v8739, %v8930
    %v8949 = vsub.f32 %v8740, %v8930
    %v8950 = vsub.f32 %v8741, %v8930
    %v8951 = vsub.f32 %v8742, %v8930
    %v8952 = vsub.f32 %v8743, %v8930
    %v8953 = vsub.f32 %v8744, %v8930
    %v8954 = vsub.f32 %v8745, %v8930
    %v8955 = vsub.f32 %v8746, %v8930
    %v8956 = vsub.f32 %v8747, %v8930
    %v8957 = vsub.f32 %v8748, %v8930
    %v8958 = vsub.f32 %v8749, %v8930
    %v8959 = vsub.f32 %v8750, %v8930
    %v8960 = vsub.f32 %v8751, %v8930
    %v8961 = vsub.f32 %v8752, %v8930
    %v8962 = vsub.f32 %v8753, %v8930
    %v8963 = vsub.f32 %v8754, %v8930
    %v8964 = vsub.f32 %v8755, %v8930
    %v8965 = vsub.f32 %v8756, %v8930
    %v8966 = vsub.f32 %v8757, %v8930
    %v8967 = vsub.f32 %v8758, %v8930
    %v8968 = vsub.f32 %v8759, %v8930
    %v8969 = vsub.f32 %v8760, %v8930
    %v8970 = vsub.f32 %v8761, %v8930
    %v8971 = vsub.f32 %v8762, %v8930
    %v8972 = vsub.f32 %v8763, %v8930
    %v8973 = vsub.f32 %v8764, %v8930
    %v8974 = vsub.f32 %v8765, %v8930
    %v8975 = vsub.f32 %v8766, %v8930
    %v8976 = vsub.f32 %v8767, %v8930
    %v8977 = vsub.f32 %v8768, %v8930
    %v8978 = vsub.f32 %v8769, %v8930
    %v8979 = vsub.f32 %v8770, %v8930
    %v8980 = vsub.f32 %v8771, %v8930
    %v8981 = vsub.f32 %v8772, %v8930
    %v8982 = vsub.f32 %v8773, %v8930
    %v8983 = vsub.f32 %v8774, %v8930
    %v8984 = vsub.f32 %v8775, %v8930
    %v8985 = vsub.f32 %v8776, %v8930
    %v8986 = vsub.f32 %v8777, %v8930
    %v8987 = vsub.f32 %v8778, %v8930
    %v8988 = vsub.f32 %v8779, %v8930
    %v8989 = vsub.f32 %v8780, %v8930
    %v8990 = vsub.f32 %v8781, %v8930
    %v8991 = vsub.f32 %v8782, %v8930
    %v8992 = vsub.f32 %v8783, %v8930
    %v8993 = vsub.f32 %v8784, %v8930
    %v8994 = vsub.f32 %v8785, %v8930
    %v8995 = vmul.f32 %v8931, %v8931
    %v8996 = vmul.f32 %v8932, %v8932
    %v8997 = vmul.f32 %v8933, %v8933
    %v8998 = vmul.f32 %v8934, %v8934
    %v8999 = vmul.f32 %v8935, %v8935
    %v9000 = vmul.f32 %v8936, %v8936
    %v9001 = vmul.f32 %v8937, %v8937
    %v9002 = vmul.f32 %v8938, %v8938
    %v9003 = vmul.f32 %v8939, %v8939
    %v9004 = vmul.f32 %v8940, %v8940
    %v9005 = vmul.f32 %v8941, %v8941
    %v9006 = vmul.f32 %v8942, %v8942
    %v9007 = vmul.f32 %v8943, %v8943
    %v9008 = vmul.f32 %v8944, %v8944
    %v9009 = vmul.f32 %v8945, %v8945
    %v9010 = vmul.f32 %v8946, %v8946
    %v9011 = vmul.f32 %v8947, %v8947
    %v9012 = vmul.f32 %v8948, %v8948
    %v9013 = vmul.f32 %v8949, %v8949
    %v9014 = vmul.f32 %v8950, %v8950
    %v9015 = vmul.f32 %v8951, %v8951
    %v9016 = vmul.f32 %v8952, %v8952
    %v9017 = vmul.f32 %v8953, %v8953
    %v9018 = vmul.f32 %v8954, %v8954
    %v9019 = vmul.f32 %v8955, %v8955
    %v9020 = vmul.f32 %v8956, %v8956
    %v9021 = vmul.f32 %v8957, %v8957
    %v9022 = vmul.f32 %v8958, %v8958
    %v9023 = vmul.f32 %v8959, %v8959
    %v9024 = vmul.f32 %v8960, %v8960
    %v9025 = vmul.f32 %v8961, %v8961
    %v9026 = vmul.f32 %v8962, %v8962
    %v9027 = vmul.f32 %v8963, %v8963
    %v9028 = vmul.f32 %v8964, %v8964
    %v9029 = vmul.f32 %v8965, %v8965
    %v9030 = vmul.f32 %v8966, %v8966
    %v9031 = vmul.f32 %v8967, %v8967
    %v9032 = vmul.f32 %v8968, %v8968
    %v9033 = vmul.f32 %v8969, %v8969
    %v9034 = vmul.f32 %v8970, %v8970
    %v9035 = vmul.f32 %v8971, %v8971
    %v9036 = vmul.f32 %v8972, %v8972
    %v9037 = vmul.f32 %v8973, %v8973
    %v9038 = vmul.f32 %v8974, %v8974
    %v9039 = vmul.f32 %v8975, %v8975
    %v9040 = vmul.f32 %v8976, %v8976
    %v9041 = vmul.f32 %v8977, %v8977
    %v9042 = vmul.f32 %v8978, %v8978
    %v9043 = vmul.f32 %v8979, %v8979
    %v9044 = vmul.f32 %v8980, %v8980
    %v9045 = vmul.f32 %v8981, %v8981
    %v9046 = vmul.f32 %v8982, %v8982
    %v9047 = vmul.f32 %v8983, %v8983
    %v9048 = vmul.f32 %v8984, %v8984
    %v9049 = vmul.f32 %v8985, %v8985
    %v9050 = vmul.f32 %v8986, %v8986
    %v9051 = vmul.f32 %v8987, %v8987
    %v9052 = vmul.f32 %v8988, %v8988
    %v9053 = vmul.f32 %v8989, %v8989
    %v9054 = vmul.f32 %v8990, %v8990
    %v9055 = vmul.f32 %v8991, %v8991
    %v9056 = vmul.f32 %v8992, %v8992
    %v9057 = vmul.f32 %v8993, %v8993
    %v9058 = vmul.f32 %v8994, %v8994
    %9059 = vmatprep.subr.mxu0 0.0
    %9060 = vmatpush1.msra.mxu0 %v8995
    %9061 = vmatprep.subr.mxu0 0.0
    %9062 = vmatpush1.msra.mxu0 %v8996
    %9063 = vmatprep.subr.mxu0 0.0
    %9064 = vmatpush1.msra.mxu0 %v8997
    %9065 = vmatprep.subr.mxu0 0.0
    %9066 = vmatpush1.msra.mxu0 %v8998
    %9067 = vmatprep.subr.mxu0 0.0
    %9068 = vmatpush1.msra.mxu0 %v8999
    %9069 = vmatprep.subr.mxu0 0.0
    %9070 = vmatpush1.msra.mxu0 %v9000
    %9071 = vmatprep.subr.mxu0 0.0
    %9072 = vmatpush1.msra.mxu0 %v9001
    %9073 = vmatprep.subr.mxu0 0.0
    %9074 = vmatpush1.msra.mxu0 %v9002
    %9075 = vmatprep.subr.mxu0 0.0
    %9076 = vmatpush1.msra.mxu0 %v9003
    %9077 = vmatprep.subr.mxu0 0.0
    %9078 = vmatpush1.msra.mxu0 %v9004
    %9079 = vmatprep.subr.mxu0 0.0
    %9080 = vmatpush1.msra.mxu0 %v9005
    %9081 = vmatprep.subr.mxu0 0.0
    %9082 = vmatpush1.msra.mxu0 %v9006
    %9083 = vmatprep.subr.mxu0 0.0
    %9084 = vmatpush1.msra.mxu0 %v9007
    %9085 = vmatprep.subr.mxu0 0.0
    %9086 = vmatpush1.msra.mxu0 %v9008
    %9087 = vmatprep.subr.mxu0 0.0
    %9088 = vmatpush1.msra.mxu0 %v9009
    %9089 = vmatprep.subr.mxu0 0.0
    %9090 = vmatpush1.msra.mxu0 %v9010
    %9091 = vmatprep.subr.mxu0 0.0
    %9092 = vmatpush1.msra.mxu0 %v9011
    %9093 = vmatprep.subr.mxu0 0.0
    %9094 = vmatpush1.msra.mxu0 %v9012
    %9095 = vmatprep.subr.mxu0 0.0
    %9096 = vmatpush1.msra.mxu0 %v9013
    %9097 = vmatprep.subr.mxu0 0.0
    %9098 = vmatpush1.msra.mxu0 %v9014
    %9099 = vmatprep.subr.mxu0 0.0
    %9100 = vmatpush1.msra.mxu0 %v9015
    %9101 = vmatprep.subr.mxu0 0.0
    %9102 = vmatpush1.msra.mxu0 %v9016
    %9103 = vmatprep.subr.mxu0 0.0
    %9104 = vmatpush1.msra.mxu0 %v9017
    %9105 = vmatprep.subr.mxu0 0.0
    %9106 = vmatpush1.msra.mxu0 %v9018
    %9107 = vmatprep.subr.mxu0 0.0
    %9108 = vmatpush1.msra.mxu0 %v9019
    %9109 = vmatprep.subr.mxu0 0.0
    %9110 = vmatpush1.msra.mxu0 %v9020
    %9111 = vmatprep.subr.mxu0 0.0
    %9112 = vmatpush1.msra.mxu0 %v9021
    %9113 = vmatprep.subr.mxu0 0.0
    %9114 = vmatpush1.msra.mxu0 %v9022
    %9115 = vmatprep.subr.mxu0 0.0
    %9116 = vmatpush1.msra.mxu0 %v9023
    %9117 = vmatprep.subr.mxu0 0.0
    %9118 = vmatpush1.msra.mxu0 %v9024
    %9119 = vmatprep.subr.mxu0 0.0
    %9120 = vmatpush1.msra.mxu0 %v9025
    %9121 = vmatprep.subr.mxu0 0.0
    %9122 = vmatpush1.msra.mxu0 %v9026
    %9123 = vmatprep.mubr.f32.mxu0 1.0
    %9124 = vmatmul.mubr.f32.gmra.mrb[0].mxu0 1.0
    %v9125 = vpop.f32.mrb[0].mxu0
    %v9126 = vadd.f32 0.0, %v9125
    %v9127 = vpop.f32.mrb[0].mxu0
    %9128 = vdwg.mxu0
    %9129 = vmatprep.subr.mxu0 0.0
    %9130 = vmatpush1.msra.mxu0 %v9027
    %9131 = vmatprep.subr.mxu0 0.0
    %9132 = vmatpush1.msra.mxu0 %v9028
    %9133 = vmatprep.subr.mxu0 0.0
    %9134 = vmatpush1.msra.mxu0 %v9029
    %9135 = vmatprep.subr.mxu0 0.0
    %9136 = vmatpush1.msra.mxu0 %v9030
    %9137 = vmatprep.subr.mxu0 0.0
    %9138 = vmatpush1.msra.mxu0 %v9031
    %9139 = vmatprep.subr.mxu0 0.0
    %9140 = vmatpush1.msra.mxu0 %v9032
    %9141 = vmatprep.subr.mxu0 0.0
    %9142 = vmatpush1.msra.mxu0 %v9033
    %9143 = vmatprep.subr.mxu0 0.0
    %9144 = vmatpush1.msra.mxu0 %v9034
    %9145 = vmatprep.subr.mxu0 0.0
    %9146 = vmatpush1.msra.mxu0 %v9035
    %9147 = vmatprep.subr.mxu0 0.0
    %9148 = vmatpush1.msra.mxu0 %v9036
    %9149 = vmatprep.subr.mxu0 0.0
    %9150 = vmatpush1.msra.mxu0 %v9037
    %9151 = vmatprep.subr.mxu0 0.0
    %9152 = vmatpush1.msra.mxu0 %v9038
    %9153 = vmatprep.subr.mxu0 0.0
    %9154 = vmatpush1.msra.mxu0 %v9039
    %9155 = vmatprep.subr.mxu0 0.0
    %9156 = vmatpush1.msra.mxu0 %v9040
    %9157 = vmatprep.subr.mxu0 0.0
    %9158 = vmatpush1.msra.mxu0 %v9041
    %9159 = vmatprep.subr.mxu0 0.0
    %9160 = vmatpush1.msra.mxu0 %v9042
    %9161 = vmatprep.subr.mxu0 0.0
    %9162 = vmatpush1.msra.mxu0 %v9043
    %9163 = vmatprep.subr.mxu0 0.0
    %9164 = vmatpush1.msra.mxu0 %v9044
    %9165 = vmatprep.subr.mxu0 0.0
    %9166 = vmatpush1.msra.mxu0 %v9045
    %9167 = vmatprep.subr.mxu0 0.0
    %9168 = vmatpush1.msra.mxu0 %v9046
    %9169 = vmatprep.subr.mxu0 0.0
    %9170 = vmatpush1.msra.mxu0 %v9047
    %9171 = vmatprep.subr.mxu0 0.0
    %9172 = vmatpush1.msra.mxu0 %v9048
    %9173 = vmatprep.subr.mxu0 0.0
    %9174 = vmatpush1.msra.mxu0 %v9049
    %9175 = vmatprep.subr.mxu0 0.0
    %9176 = vmatpush1.msra.mxu0 %v9050
    %9177 = vmatprep.subr.mxu0 0.0
    %9178 = vmatpush1.msra.mxu0 %v9051
    %9179 = vmatprep.subr.mxu0 0.0
    %9180 = vmatpush1.msra.mxu0 %v9052
    %9181 = vmatprep.subr.mxu0 0.0
    %9182 = vmatpush1.msra.mxu0 %v9053
    %9183 = vmatprep.subr.mxu0 0.0
    %9184 = vmatpush1.msra.mxu0 %v9054
    %9185 = vmatprep.subr.mxu0 0.0
    %9186 = vmatpush1.msra.mxu0 %v9055
    %9187 = vmatprep.subr.mxu0 0.0
    %9188 = vmatpush1.msra.mxu0 %v9056
    %9189 = vmatprep.subr.mxu0 0.0
    %9190 = vmatpush1.msra.mxu0 %v9057
    %9191 = vmatprep.subr.mxu0 0.0
    %9192 = vmatpush1.msra.mxu0 %v9058
    %9193 = vmatprep.mubr.f32.mxu0 1.0
    %9194 = vmatmul.mubr.f32.gmra.mrb[0].mxu0 1.0
    %v9195 = vpop.f32.mrb[0].mxu0
    %v9196 = vadd.f32 %v9126, %v9195
    %v9197 = vpop.f32.mrb[0].mxu0
    %9198 = vdwg.mxu0
    %v9199 = vmul.f32 %v9196, 0.001953125
    %v9200 = vadd.f32 %v9199, 1e-05
    %v9201 = vrsqrt.pop %v9200
    %v9202 = vlaneseq
    %v9203 = vshrl.u32 %v9202, 7
    %v9204 = vsub.s32 0, %v9203
    %v9205 = vrot.slane %v9201, %v9204
    %v9206 = vmul.f32 %v8931, %v9205
    %v9207 = vmul.f32 %v8932, %v9205
    %v9208 = vmul.f32 %v8933, %v9205
    %v9209 = vmul.f32 %v8934, %v9205
    %v9210 = vmul.f32 %v8935, %v9205
    %v9211 = vmul.f32 %v8936, %v9205
    %v9212 = vmul.f32 %v8937, %v9205
    %v9213 = vmul.f32 %v8938, %v9205
    %v9214 = vmul.f32 %v8939, %v9205
    %v9215 = vmul.f32 %v8940, %v9205
    %v9216 = vmul.f32 %v8941, %v9205
    %v9217 = vmul.f32 %v8942, %v9205
    %v9218 = vmul.f32 %v8943, %v9205
    %v9219 = vmul.f32 %v8944, %v9205
    %v9220 = vmul.f32 %v8945, %v9205
    %v9221 = vmul.f32 %v8946, %v9205
    %v9222 = vmul.f32 %v8947, %v9205
    %v9223 = vmul.f32 %v8948, %v9205
    %v9224 = vmul.f32 %v8949, %v9205
    %v9225 = vmul.f32 %v8950, %v9205
    %v9226 = vmul.f32 %v8951, %v9205
    %v9227 = vmul.f32 %v8952, %v9205
    %v9228 = vmul.f32 %v8953, %v9205
    %v9229 = vmul.f32 %v8954, %v9205
    %v9230 = vmul.f32 %v8955, %v9205
    %v9231 = vmul.f32 %v8956, %v9205
    %v9232 = vmul.f32 %v8957, %v9205
    %v9233 = vmul.f32 %v8958, %v9205
    %v9234 = vmul.f32 %v8959, %v9205
    %v9235 = vmul.f32 %v8960, %v9205
    %v9236 = vmul.f32 %v8961, %v9205
    %v9237 = vmul.f32 %v8962, %v9205
    %v9238 = vmul.f32 %v8963, %v9205
    %v9239 = vmul.f32 %v8964, %v9205
    %v9240 = vmul.f32 %v8965, %v9205
    %v9241 = vmul.f32 %v8966, %v9205
    %v9242 = vmul.f32 %v8967, %v9205
    %v9243 = vmul.f32 %v8968, %v9205
    %v9244 = vmul.f32 %v8969, %v9205
    %v9245 = vmul.f32 %v8970, %v9205
    %v9246 = vmul.f32 %v8971, %v9205
    %v9247 = vmul.f32 %v8972, %v9205
    %v9248 = vmul.f32 %v8973, %v9205
    %v9249 = vmul.f32 %v8974, %v9205
    %v9250 = vmul.f32 %v8975, %v9205
    %v9251 = vmul.f32 %v8976, %v9205
    %v9252 = vmul.f32 %v8977, %v9205
    %v9253 = vmul.f32 %v8978, %v9205
    %v9254 = vmul.f32 %v8979, %v9205
    %v9255 = vmul.f32 %v8980, %v9205
    %v9256 = vmul.f32 %v8981, %v9205
    %v9257 = vmul.f32 %v8982, %v9205
    %v9258 = vmul.f32 %v8983, %v9205
    %v9259 = vmul.f32 %v8984, %v9205
    %v9260 = vmul.f32 %v8985, %v9205
    %v9261 = vmul.f32 %v8986, %v9205
    %v9262 = vmul.f32 %v8987, %v9205
    %v9263 = vmul.f32 %v8988, %v9205
    %v9264 = vmul.f32 %v8989, %v9205
    %v9265 = vmul.f32 %v8990, %v9205
    %v9266 = vmul.f32 %v8991, %v9205
    %v9267 = vmul.f32 %v8992, %v9205
    %v9268 = vmul.f32 %v8993, %v9205
    %v9269 = vmul.f32 %v8994, %v9205
    %v9270 = vld [vmem:[%s2 + $0xe8] sm:$0xff]
    %v9271 = vld [vmem:[%s2 + $0xf0] sm:$0xff]
    %v9272 = vld [vmem:[%s2 + $0xf8] sm:$0xff]
    %v9273 = vld [vmem:[%s2 + $0x100] sm:$0xff]
    %v9274 = vld [vmem:[%s2 + $0x108] sm:$0x1]
    %9275 = vmatprep.subr.mxu0 0.0
    %9276 = vmatpush1.msra.mxu0 %v9206
    %9277 = vmatprep.subr.mxu0 0.0
    %9278 = vmatpush1.msra.mxu0 %v9207
    %9279 = vmatprep.subr.mxu0 0.0
    %9280 = vmatpush1.msra.mxu0 %v9208
    %9281 = vmatprep.subr.mxu0 0.0
    %9282 = vmatpush1.msra.mxu0 %v9209
    %9283 = vmatprep.subr.mxu0 0.0
    %9284 = vmatpush1.msra.mxu0 %v9210
    %9285 = vmatprep.subr.mxu0 0.0
    %9286 = vmatpush1.msra.mxu0 %v9211
    %9287 = vmatprep.subr.mxu0 0.0
    %9288 = vmatpush1.msra.mxu0 %v9212
    %9289 = vmatprep.subr.mxu0 0.0
    %9290 = vmatpush1.msra.mxu0 %v9213
    %9291 = vmatprep.subr.mxu0 0.0
    %9292 = vmatpush1.msra.mxu0 %v9214
    %9293 = vmatprep.subr.mxu0 0.0
    %9294 = vmatpush1.msra.mxu0 %v9215
    %9295 = vmatprep.subr.mxu0 0.0
    %9296 = vmatpush1.msra.mxu0 %v9216
    %9297 = vmatprep.subr.mxu0 0.0
    %9298 = vmatpush1.msra.mxu0 %v9217
    %9299 = vmatprep.subr.mxu0 0.0
    %9300 = vmatpush1.msra.mxu0 %v9218
    %9301 = vmatprep.subr.mxu0 0.0
    %9302 = vmatpush1.msra.mxu0 %v9219
    %9303 = vmatprep.subr.mxu0 0.0
    %9304 = vmatpush1.msra.mxu0 %v9220
    %9305 = vmatprep.subr.mxu0 0.0
    %9306 = vmatpush1.msra.mxu0 %v9221
    %9307 = vmatprep.subr.mxu0 0.0
    %9308 = vmatpush1.msra.mxu0 %v9222
    %9309 = vmatprep.subr.mxu0 0.0
    %9310 = vmatpush1.msra.mxu0 %v9223
    %9311 = vmatprep.subr.mxu0 0.0
    %9312 = vmatpush1.msra.mxu0 %v9224
    %9313 = vmatprep.subr.mxu0 0.0
    %9314 = vmatpush1.msra.mxu0 %v9225
    %9315 = vmatprep.subr.mxu0 0.0
    %9316 = vmatpush1.msra.mxu0 %v9226
    %9317 = vmatprep.subr.mxu0 0.0
    %9318 = vmatpush1.msra.mxu0 %v9227
    %9319 = vmatprep.subr.mxu0 0.0
    %9320 = vmatpush1.msra.mxu0 %v9228
    %9321 = vmatprep.subr.mxu0 0.0
    %9322 = vmatpush1.msra.mxu0 %v9229
    %9323 = vmatprep.subr.mxu0 0.0
    %9324 = vmatpush1.msra.mxu0 %v9230
    %9325 = vmatprep.subr.mxu0 0.0
    %9326 = vmatpush1.msra.mxu0 %v9231
    %9327 = vmatprep.subr.mxu0 0.0
    %9328 = vmatpush1.msra.mxu0 %v9232
    %9329 = vmatprep.subr.mxu0 0.0
    %9330 = vmatpush1.msra.mxu0 %v9233
    %9331 = vmatprep.subr.mxu0 0.0
    %9332 = vmatpush1.msra.mxu0 %v9234
    %9333 = vmatprep.subr.mxu0 0.0
    %9334 = vmatpush1.msra.mxu0 %v9235
    %9335 = vmatprep.subr.mxu0 0.0
    %9336 = vmatpush1.msra.mxu0 %v9236
    %9337 = vmatprep.subr.mxu0 0.0
    %9338 = vmatpush1.msra.mxu0 %v9237
    %9339 = vmatprep.mubr.f32.mxu0 %v4548
    %9340 = vmatmul.mubr.f32.gmra.mrb[0].mxu0 %v99
    %v9341 = vpop.f32.mrb[0].mxu0
    %v9342 = vadd.f32 0.0, %v9341
    %v9343 = vpop.f32.mrb[0].mxu0
    %9344 = vdwg.mxu0
    %9345 = vmatprep.subr.mxu0 0.0
    %9346 = vmatpush1.msra.mxu0 %v9238
    %9347 = vmatprep.subr.mxu0 0.0
    %9348 = vmatpush1.msra.mxu0 %v9239
    %9349 = vmatprep.subr.mxu0 0.0
    %9350 = vmatpush1.msra.mxu0 %v9240
    %9351 = vmatprep.subr.mxu0 0.0
    %9352 = vmatpush1.msra.mxu0 %v9241
    %9353 = vmatprep.subr.mxu0 0.0
    %9354 = vmatpush1.msra.mxu0 %v9242
    %9355 = vmatprep.subr.mxu0 0.0
    %9356 = vmatpush1.msra.mxu0 %v9243
    %9357 = vmatprep.subr.mxu0 0.0
    %9358 = vmatpush1.msra.mxu0 %v9244
    %9359 = vmatprep.subr.mxu0 0.0
    %9360 = vmatpush1.msra.mxu0 %v9245
    %9361 = vmatprep.subr.mxu0 0.0
    %9362 = vmatpush1.msra.mxu0 %v9246
    %9363 = vmatprep.subr.mxu0 0.0
    %9364 = vmatpush1.msra.mxu0 %v9247
    %9365 = vmatprep.subr.mxu0 0.0
    %9366 = vmatpush1.msra.mxu0 %v9248
    %9367 = vmatprep.subr.mxu0 0.0
    %9368 = vmatpush1.msra.mxu0 %v9249
    %9369 = vmatprep.subr.mxu0 0.0
    %9370 = vmatpush1.msra.mxu0 %v9250
    %9371 = vmatprep.subr.mxu0 0.0
    %9372 = vmatpush1.msra.mxu0 %v9251
    %9373 = vmatprep.subr.mxu0 0.0
    %9374 = vmatpush1.msra.mxu0 %v9252
    %9375 = vmatprep.subr.mxu0 0.0
    %9376 = vmatpush1.msra.mxu0 %v9253
    %9377 = vmatprep.subr.mxu0 0.0
    %9378 = vmatpush1.msra.mxu0 %v9254
    %9379 = vmatprep.subr.mxu0 0.0
    %9380 = vmatpush1.msra.mxu0 %v9255
    %9381 = vmatprep.subr.mxu0 0.0
    %9382 = vmatpush1.msra.mxu0 %v9256
    %9383 = vmatprep.subr.mxu0 0.0
    %9384 = vmatpush1.msra.mxu0 %v9257
    %9385 = vmatprep.subr.mxu0 0.0
    %9386 = vmatpush1.msra.mxu0 %v9258
    %9387 = vmatprep.subr.mxu0 0.0
    %9388 = vmatpush1.msra.mxu0 %v9259
    %9389 = vmatprep.subr.mxu0 0.0
    %9390 = vmatpush1.msra.mxu0 %v9260
    %9391 = vmatprep.subr.mxu0 0.0
    %9392 = vmatpush1.msra.mxu0 %v9261
    %9393 = vmatprep.subr.mxu0 0.0
    %9394 = vmatpush1.msra.mxu0 %v9262
    %9395 = vmatprep.subr.mxu0 0.0
    %9396 = vmatpush1.msra.mxu0 %v9263
    %9397 = vmatprep.subr.mxu0 0.0
    %9398 = vmatpush1.msra.mxu0 %v9264
    %9399 = vmatprep.subr.mxu0 0.0
    %9400 = vmatpush1.msra.mxu0 %v9265
    %9401 = vmatprep.subr.mxu0 0.0
    %9402 = vmatpush1.msra.mxu0 %v9266
    %9403 = vmatprep.subr.mxu0 0.0
    %9404 = vmatpush1.msra.mxu0 %v9267
    %9405 = vmatprep.subr.mxu0 0.0
    %9406 = vmatpush1.msra.mxu0 %v9268
    %9407 = vmatprep.subr.mxu0 0.0
    %9408 = vmatpush1.msra.mxu0 %v9269
    %9409 = vmatprep.mubr.f32.mxu0 %v4549
    %9410 = vmatmul.mubr.f32.gmra.mrb[0].mxu0 %v100
    %v9411 = vpop.f32.mrb[0].mxu0
    %v9412 = vadd.f32 %v9342, %v9411
    %v9413 = vpop.f32.mrb[0].mxu0
    %9414 = vdwg.mxu0
    %v9416 = vsel %vm1500, %v9412, 0
    %9418 = vmatprep.subr.mxu0 0.0
    %9419 = vmatpush1.msra.mxu0 %v9270
    %9420 = vmatprep.subr.mxu0 0.0
    %9421 = vmatpush1.msra.mxu0 %v9271
    %9422 = vmatprep.subr.mxu0 0.0
    %9423 = vmatpush1.msra.mxu0 0.0
    %9424 = vmatprep.subr.mxu0 0.0
    %9425 = vmatpush1.msra.mxu0 0.0
    %9426 = vmatprep.subr.mxu0 0.0
    %9427 = vmatpush1.msra.mxu0 0.0
    %9428 = vmatprep.subr.mxu0 0.0
    %9429 = vmatpush1.msra.mxu0 0.0
    %9430 = vmatprep.subr.mxu0 0.0
    %9431 = vmatpush1.msra.mxu0 0.0
    %9432 = vmatprep.subr.mxu0 0.0
    %9433 = vmatpush1.msra.mxu0 0.0
    %9434 = vmatprep.subr.mxu0 0.0
    %9435 = vmatpush1.msra.mxu0 0.0
    %9436 = vmatprep.subr.mxu0 0.0
    %9437 = vmatpush1.msra.mxu0 0.0
    %9438 = vmatprep.subr.mxu0 0.0
    %9439 = vmatpush1.msra.mxu0 0.0
    %9440 = vmatprep.subr.mxu0 0.0
    %9441 = vmatpush1.msra.mxu0 0.0
    %9442 = vmatprep.subr.mxu0 0.0
    %9443 = vmatpush1.msra.mxu0 0.0
    %9444 = vmatprep.subr.mxu0 0.0
    %9445 = vmatpush1.msra.mxu0 0.0
    %9446 = vmatprep.subr.mxu0 0.0
    %9447 = vmatpush1.msra.mxu0 0.0
    %9448 = vmatprep.subr.mxu0 0.0
    %9449 = vmatpush1.msra.mxu0 0.0
    %9450 = vmatprep.subr.mxu0 0.0
    %9451 = vmatpush1.msra.mxu0 0.0
    %9452 = vmatprep.subr.mxu0 0.0
    %9453 = vmatpush1.msra.mxu0 0.0
    %9454 = vmatprep.subr.mxu0 0.0
    %9455 = vmatpush1.msra.mxu0 0.0
    %9456 = vmatprep.subr.mxu0 0.0
    %9457 = vmatpush1.msra.mxu0 0.0
    %9458 = vmatprep.subr.mxu0 0.0
    %9459 = vmatpush1.msra.mxu0 0.0
    %9460 = vmatprep.subr.mxu0 0.0
    %9461 = vmatpush1.msra.mxu0 0.0
    %9462 = vmatprep.subr.mxu0 0.0
    %9463 = vmatpush1.msra.mxu0 0.0
    %9464 = vmatprep.subr.mxu0 0.0
    %9465 = vmatpush1.msra.mxu0 0.0
    %9466 = vmatprep.subr.mxu0 0.0
    %9467 = vmatpush1.msra.mxu0 0.0
    %9468 = vmatprep.subr.mxu0 0.0
    %9469 = vmatpush1.msra.mxu0 0.0
    %9470 = vmatprep.subr.mxu0 0.0
    %9471 = vmatpush1.msra.mxu0 0.0
    %9472 = vmatprep.subr.mxu0 0.0
    %9473 = vmatpush1.msra.mxu0 0.0
    %9474 = vmatprep.subr.mxu0 0.0
    %9475 = vmatpush1.msra.mxu0 0.0
    %9476 = vmatprep.subr.mxu0 0.0
    %9477 = vmatpush1.msra.mxu0 0.0
    %9478 = vmatprep.subr.mxu0 0.0
    %9479 = vmatpush1.msra.mxu0 0.0
    %9480 = vmatprep.subr.mxu0 0.0
    %9481 = vmatpush1.msra.mxu0 0.0
    %9482 = vmatprep.mubr.f32.mxu0 0.0
    %9483 = vmatmul.mubr.f32.gmra.mrb[0].mxu0 %v9416
    %v9484 = vpop.f32.mrb[0].mxu0
    %v9485 = vadd.f32 0.0, %v9484
    %v9486 = vpop.f32.mrb[0].mxu0
    %9487 = vdwg.mxu0
    %v9488 = vadd.f32 %v4842, %v9485
    %v9489 = vrot.slane %v9412, 2
    %v9490 = vsel %vm1500, %v9489, 0
    %9492 = vmatprep.subr.mxu0 0.0
    %9493 = vmatpush1.msra.mxu0 %v9272
    %9494 = vmatprep.subr.mxu0 0.0
    %9495 = vmatpush1.msra.mxu0 %v9273
    %9496 = vmatprep.subr.mxu0 0.0
    %9497 = vmatpush1.msra.mxu0 0.0
    %9498 = vmatprep.subr.mxu0 0.0
    %9499 = vmatpush1.msra.mxu0 0.0
    %9500 = vmatprep.subr.mxu0 0.0
    %9501 = vmatpush1.msra.mxu0 0.0
    %9502 = vmatprep.subr.mxu0 0.0
    %9503 = vmatpush1.msra.mxu0 0.0
    %9504 = vmatprep.subr.mxu0 0.0
    %9505 = vmatpush1.msra.mxu0 0.0
    %9506 = vmatprep.subr.mxu0 0.0
    %9507 = vmatpush1.msra.mxu0 0.0
    %9508 = vmatprep.subr.mxu0 0.0
    %9509 = vmatpush1.msra.mxu0 0.0
    %9510 = vmatprep.subr.mxu0 0.0
    %9511 = vmatpush1.msra.mxu0 0.0
    %9512 = vmatprep.subr.mxu0 0.0
    %9513 = vmatpush1.msra.mxu0 0.0
    %9514 = vmatprep.subr.mxu0 0.0
    %9515 = vmatpush1.msra.mxu0 0.0
    %9516 = vmatprep.subr.mxu0 0.0
    %9517 = vmatpush1.msra.mxu0 0.0
    %9518 = vmatprep.subr.mxu0 0.0
    %9519 = vmatpush1.msra.mxu0 0.0
    %9520 = vmatprep.subr.mxu0 0.0
    %9521 = vmatpush1.msra.mxu0 0.0
    %9522 = vmatprep.subr.mxu0 0.0
    %9523 = vmatpush1.msra.mxu0 0.0
    %9524 = vmatprep.subr.mxu0 0.0
    %9525 = vmatpush1.msra.mxu0 0.0
    %9526 = vmatprep.subr.mxu0 0.0
    %9527 = vmatpush1.msra.mxu0 0.0
    %9528 = vmatprep.subr.mxu0 0.0
    %9529 = vmatpush1.msra.mxu0 0.0
    %9530 = vmatprep.subr.mxu0 0.0
    %9531 = vmatpush1.msra.mxu0 0.0
    %9532 = vmatprep.subr.mxu0 0.0
    %9533 = vmatpush1.msra.mxu0 0.0
    %9534 = vmatprep.subr.mxu0 0.0
    %9535 = vmatpush1.msra.mxu0 0.0
    %9536 = vmatprep.subr.mxu0 0.0
    %9537 = vmatpush1.msra.mxu0 0.0
    %9538 = vmatprep.subr.mxu0 0.0
    %9539 = vmatpush1.msra.mxu0 0.0
    %9540 = vmatprep.subr.mxu0 0.0
    %9541 = vmatpush1.msra.mxu0 0.0
    %9542 = vmatprep.subr.mxu0 0.0
    %9543 = vmatpush1.msra.mxu0 0.0
    %9544 = vmatprep.subr.mxu0 0.0
    %9545 = vmatpush1.msra.mxu0 0.0
    %9546 = vmatprep.subr.mxu0 0.0
    %9547 = vmatpush1.msra.mxu0 0.0
    %9548 = vmatprep.subr.mxu0 0.0
    %9549 = vmatpush1.msra.mxu0 0.0
    %9550 = vmatprep.subr.mxu0 0.0
    %9551 = vmatpush1.msra.mxu0 0.0
    %9552 = vmatprep.subr.mxu0 0.0
    %9553 = vmatpush1.msra.mxu0 0.0
    %9554 = vmatprep.subr.mxu0 0.0
    %9555 = vmatpush1.msra.mxu0 0.0
    %9556 = vmatprep.mubr.f32.mxu0 0.0
    %9557 = vmatmul.mubr.f32.gmra.mrb[0].mxu0 %v9490
    %v9558 = vpop.f32.mrb[0].mxu0
    %v9559 = vadd.f32 0.0, %v9558
    %v9560 = vpop.f32.mrb[0].mxu0
    %9561 = vdwg.mxu0
    %v9562 = vadd.f32 %v9488, %v9559
    %v9563 = vlaneseq
    %v9564 = vshrl.u32 %v9563, 7
    %v9565 = vsub.s32 0, %v9564
    %v9566 = vrot.slane %v9274, %v9565
    %v9567 = vadd.f32 %v9562, %v9566
    %vm9568 = vcmask 17408
    %v9569 = vsel %vm9568, %v9567, 0.0
    %v9570 = vrot.slane %v9569, 4
    %v9571 = vadd.f32 %v9569, %v9570
    %v9572 = vrot.slane %v9571, 2
    %v9573 = vadd.f32 %v9571, %v9572
    %v9574 = vrot.slane %v9573, 1
    %v9575 = vadd.f32 %v9573, %v9574
    %v9576 = vrcp.pop 2.0
    %v9577 = vmul.f32 %v9575, %v9576
    %v9578 = vsub.f32 %v9567, %v9577
    %v9579 = vmul.f32 %v9578, %v9578
    %v9580 = vsel %vm9568, %v9579, 0.0
    %v9581 = vrot.slane %v9580, 4
    %v9582 = vadd.f32 %v9580, %v9581
    %v9583 = vrot.slane %v9582, 2
    %v9584 = vadd.f32 %v9582, %v9583
    %v9585 = vrot.slane %v9584, 1
    %v9586 = vadd.f32 %v9584, %v9585
    %v9587 = vmul.f32 %v9586, %v9576
    %v9588 = vadd.f32 %v9587, 1e-05
    %v9589 = vrsqrt.pop %v9588
    %v9590 = vmul.f32 %v9578, %v9589
    %9591 = vst.msk [vmem:[#allocation2] sm:$0x3] %vm9568, %v9590
    // Predicated region
    $region14: #{forward.1} parent=1 // pred_check
      _
    $region15: #{forward.1} parent=1 // pred_check_branch
      %9593 = sbr.rel (0) target = $region17
    $region16: #{forward.1} parent=1 // pred_region
      %s9595 = ssub.s32 32, 32
      %9596 = vsyncadd [#allocation3], %s9595
      %s9598 = sshll.u32 [#allocation2], 4
      %s9599 = int_to_ptr.vmem [resolvable:$true] %s9598
      %9601 = dma.vmem_to_hbm [thread:$0]  %s9599, 32, %s3, [#allocation3]
    $region17: #{forward.1} parent=1 // pred_fallthru
      _
    // Predicated region
    $region18: #{forward.1} parent=1 // pred_check
      _
    $region19: #{forward.1} parent=1 // pred_check_branch
      %9603 = sbr.rel (0) target = $region21
    $region20: #{forward.1} parent=1 // pred_region
      %9604 = dma.done [#allocation3], 32
    $region21: #{forward.1} parent=1 // pred_fallthru
      _
    %9605 = vsyncpa [#allocation3], 1

</llo_original>
